<compile_context>
chip_gen: v6e
topology: v6e:2x2x1
jax: 0.10.0
libtpu: 0.0.40
codegen_flags: <defaults>
</compile_context>

<pallas_src>
import functools

import jax
import jax.numpy as jnp
from jax.experimental import pallas as pl
from jax.experimental.pallas import tpu as pltpu


CONV_TILE_M = 1024   # lane tile for conv GEMM outputs (multiple of 256)
FC1_BLOCK_K = 512    # K-streaming block for fc1's weight


def _round_up(x, m):
    return (x + m - 1) // m * m


# ----------------------------- Pallas kernels ------------------------------

def _conv_gemm_kernel(w_ref, b_ref, cols_ref, o_ref):
    """o = relu(W @ cols + b); W:(C_out,K) cols:(K,TM) b:(C_out,1)."""
    acc = jnp.dot(w_ref[...], cols_ref[...], preferred_element_type=jnp.float32)
    o_ref[...] = jnp.maximum(acc + b_ref[...], 0.0).astype(o_ref.dtype)


def _fused_fc_kernel(x_ref, w1_ref, b1_ref, w2_ref, b2_ref, w3_ref, b3_ref,
                     w4a_ref, w4b_ref, b4_ref, o_ref, acc_ref, *, batch):
    """Fused fc1(relu)->fc2(relu)->fc3(relu)->fc4 for the batched branches.

    Grid iterates over fc1's (padded) K dimension; fc1 accumulates into an
    f32 VMEM scratch.  On the last step the remaining layers are computed on
    VMEM-resident intermediates and the final (B, 4) result is written.
    x rows 0..batch-1 are branch 1, rows batch..2*batch-1 are branch 2.
    """
    k = pl.program_id(0)

    @pl.when(k == 0)
    def _init():
        acc_ref[...] = jnp.zeros_like(acc_ref)

    acc_ref[...] += jnp.dot(x_ref[...], w1_ref[...],
                            preferred_element_type=jnp.float32)

    @pl.when(k == pl.num_programs(0) - 1)
    def _finalize():
        h1 = jnp.maximum(acc_ref[...] + b1_ref[...], 0.0)          # (2B, 1254)
        h2 = jnp.dot(h1.astype(jnp.bfloat16), w2_ref[...],
                     preferred_element_type=jnp.float32) + b2_ref[...]
        h2 = jnp.maximum(h2, 0.0)                                  # (2B, 627)
        h3 = jnp.dot(h2, w3_ref[...],
                     preferred_element_type=jnp.float32) + b3_ref[...]
        h3 = jnp.maximum(h3, 0.0)                                  # (2B, 32)
        y1 = h3[:batch]                                            # (B, 32)
        y2 = h3[batch:]                                            # (B, 32)
        out = (jnp.dot(y1, w4a_ref[...], preferred_element_type=jnp.float32)
               + jnp.dot(y2, w4b_ref[...], preferred_element_type=jnp.float32)
               + b4_ref[...])                                      # (B, 4)
        o_ref[...] = out.astype(o_ref.dtype)


# ------------------------------ conv via GEMM -------------------------------

def _im2col_km(x_cbhw, kh, kw, stride, pad):
    """(C, B, H, W) -> cols (C*kh*kw, B*Ho*Wo).

    Row order is (c, kh, kw), matching torch weight.reshape(C_out, -1);
    column order is (b, ho, wo).  Built directly in the (K, M) layout needed
    by the flipped (lane-dense output) GEMM, so no big transposes are needed.
    """
    if pad:
        x_cbhw = jnp.pad(x_cbhw, ((0, 0), (0, 0), (pad, pad), (pad, pad)))
    C, B, H, W = x_cbhw.shape
    Ho = (H - kh) // stride + 1
    Wo = (W - kw) // stride + 1
    rows = []
    for i in range(kh):
        for j in range(kw):
            patch = x_cbhw[:, :,
                           i:i + stride * (Ho - 1) + 1:stride,
                           j:j + stride * (Wo - 1) + 1:stride]   # (C, B, Ho, Wo)
            rows.append(patch.reshape(C, B * Ho * Wo))
    cols = jnp.stack(rows, axis=1).reshape(C * kh * kw, B * Ho * Wo)
    return cols, Ho, Wo


def conv2d_relu(x_cbhw, wmat, bias, kh, kw, stride, pad, tile_m=CONV_TILE_M):
    """PyTorch-semantics conv + ReLU on a (C, B, H, W) activation.

    Lowered to a lane-dense GEMM: out(C_out, M) = relu(W @ cols + b), with M
    tiled across a parallel grid.  Returns the next (C_out, B, Ho, Wo)
    activation (same layout as the input, so convs chain with no transpose).
    """
    C_out = wmat.shape[0]
    B2 = x_cbhw.shape[1]
    cols, Ho, Wo = _im2col_km(x_cbhw, kh, kw, stride, pad)   # (K, M) f32
    K, M = cols.shape
    tile_m = min(tile_m, _round_up(M, 256))
    m_pad = _round_up(M, tile_m)
    if m_pad != M:
        cols = jnp.pad(cols, ((0, 0), (0, m_pad - M)))

    out = pl.pallas_call(
        _conv_gemm_kernel,
        out_shape=jax.ShapeDtypeStruct((C_out, m_pad), jnp.float32),
        grid=(m_pad // tile_m,),
        in_specs=[
            pl.BlockSpec((C_out, K), lambda m: (0, 0)),        # weight (resident)
            pl.BlockSpec((C_out, 1), lambda m: (0, 0)),        # bias   (resident)
            pl.BlockSpec((K, tile_m), lambda m: (0, m)),       # streamed columns
        ],
        out_specs=pl.BlockSpec((C_out, tile_m), lambda m: (0, m)),
        compiler_params=pltpu.CompilerParams(
            dimension_semantics=("parallel",)),
    )(wmat, bias, cols)

    return out[:, :M].reshape(C_out, B2, Ho, Wo)


# ------------------------------- fused FC stack ------------------------------

def fused_fc(x_bf16, prep, batch, block_k=FC1_BLOCK_K):
    """x_bf16: (2*batch, K_pad) bf16, flattened conv features (padded).

    Runs fc1..fc4 in one pallas_call; returns (batch, 4) f32.
    """
    m, kp = x_bf16.shape
    assert m == 2 * batch
    n1 = prep["fc1_w"].shape[1]     # 1254
    n2 = prep["fc2_w"].shape[1]     # 627
    n3 = prep["fc3_w"].shape[1]     # 32
    n4 = prep["fc4_b"].shape[1]     # 4
    assert kp % block_k == 0

    kernel = functools.partial(_fused_fc_kernel, batch=batch)
    return pl.pallas_call(
        kernel,
        out_shape=jax.ShapeDtypeStruct((batch, n4), jnp.float32),
        grid=(kp // block_k,),
        in_specs=[
            pl.BlockSpec((m, block_k), lambda k: (0, k)),      # x (K-streamed)
            pl.BlockSpec((block_k, n1), lambda k: (k, 0)),     # fc1 W (K-streamed)
            pl.BlockSpec((1, n1), lambda k: (0, 0)),           # fc1 b
            pl.BlockSpec((n1, n2), lambda k: (0, 0)),          # fc2 W (resident)
            pl.BlockSpec((1, n2), lambda k: (0, 0)),           # fc2 b
            pl.BlockSpec((n2, n3), lambda k: (0, 0)),          # fc3 W
            pl.BlockSpec((1, n3), lambda k: (0, 0)),           # fc3 b
            pl.BlockSpec((n3, n4), lambda k: (0, 0)),          # fc4 W (branch 1 half)
            pl.BlockSpec((n3, n4), lambda k: (0, 0)),          # fc4 W (branch 2 half)
            pl.BlockSpec((1, n4), lambda k: (0, 0)),           # fc4 b
        ],
        out_specs=pl.BlockSpec((batch, n4), lambda k: (0, 0)),
        scratch_shapes=[pltpu.VMEM((m, n1), jnp.float32)],     # fc1 accumulator
        compiler_params=pltpu.CompilerParams(
            dimension_semantics=("arbitrary",)),
    )(x_bf16, prep["fc1_w"], prep["fc1_b"], prep["fc2_w"], prep["fc2_b"],
      prep["fc3_w"], prep["fc3_b"], prep["fc4_wa"], prep["fc4_wb"],
      prep["fc4_b"])


# --------------------------------- model ------------------------------------

def init_params(key):
    """PyTorch-default-style init, PyTorch layouts (Linear: (out, in))."""
    def dense_init(key, out_f, in_f):
        k1, k2 = jax.random.split(key)
        scale = 1.0 / jnp.sqrt(in_f)
        w = jax.random.uniform(k1, (out_f, in_f), jnp.float32, -scale, scale)
        b = jax.random.uniform(k2, (out_f,), jnp.float32, -scale, scale)
        return w, b

    def conv_init(key, c_out, c_in, k):
        k1, k2 = jax.random.split(key)
        fan_in = c_in * k * k
        scale = 1.0 / jnp.sqrt(fan_in)
        w = jax.random.uniform(k1, (c_out, c_in, k, k), jnp.float32, -scale, scale)
        b = jax.random.uniform(k2, (c_out,), jnp.float32, -scale, scale)
        return w, b

    ks = jax.random.split(key, 7)
    p = {}
    p["conv1_w"], p["conv1_b"] = conv_init(ks[0], 5, 1, 5)
    p["conv2_w"], p["conv2_b"] = conv_init(ks[1], 3, 5, 3)
    p["conv3_w"], p["conv3_b"] = conv_init(ks[2], 2, 3, 2)
    p["fc1_w"], p["fc1_b"] = dense_init(ks[3], 1254, 2508)
    p["fc2_w"], p["fc2_b"] = dense_init(ks[4], 627, 1254)
    p["fc3_w"], p["fc3_b"] = dense_init(ks[5], 32, 627)
    p["fc4_w"], p["fc4_b"] = dense_init(ks[6], 4, 64)
    return p


def prepare_params(p, block_k=FC1_BLOCK_K):
    """One-time conversion of PyTorch-layout params into kernel layouts:
    conv weights -> (C_out, C_in*kh*kw), biases -> (C_out, 1);
    fc weights transposed, fc1 K-padded, fc1/fc2 cast to bf16;
    fc4 weight split into the two 32-wide halves (siamese concat)."""
    prep = {}
    for name in ("conv1", "conv2", "conv3"):
        w = p[f"{name}_w"]
        c_out = w.shape[0]
        prep[f"{name}_w"] = w.reshape(c_out, -1)
        prep[f"{name}_b"] = p[f"{name}_b"].reshape(c_out, 1)

    w1 = p["fc1_w"].T                                   # (2508, 1254)
    kp = _round_up(w1.shape[0], block_k)                # 2560
    prep["fc1_w"] = jnp.pad(w1, ((0, kp - w1.shape[0]), (0, 0))).astype(jnp.bfloat16)
    prep["fc1_b"] = p["fc1_b"].reshape(1, -1)
    prep["fc2_w"] = p["fc2_w"].T.astype(jnp.bfloat16)   # (1254, 627)
    prep["fc2_b"] = p["fc2_b"].reshape(1, -1)
    prep["fc3_w"] = p["fc3_w"].T                        # (627, 32)
    prep["fc3_b"] = p["fc3_b"].reshape(1, -1)
    w4 = p["fc4_w"].T                                   # (64, 4)
    prep["fc4_wa"] = w4[:32]
    prep["fc4_wb"] = w4[32:]
    prep["fc4_b"] = p["fc4_b"].reshape(1, -1)
    return prep


@jax.jit
def net_forward(xs, prep):
    # xs: (B, 2, H, W) f32.  Batch both siamese branches: rows 0..B-1 are the
    # channel-0 images, rows B..2B-1 the channel-1 images; activation layout
    # through the conv stack is (C, batch, H, W).
    B, _, H, W = xs.shape
    x = xs.transpose(1, 0, 2, 3).reshape(1, 2 * B, H, W)

    x = conv2d_relu(x, prep["conv1_w"], prep["conv1_b"], 5, 5, stride=3, pad=0)
    x = conv2d_relu(x, prep["conv2_w"], prep["conv2_b"], 3, 3, stride=2, pad=3)
    x = conv2d_relu(x, prep["conv3_w"], prep["conv3_b"], 2, 2, stride=1, pad=0)

    # torch.flatten(x, 1): (2B, C*Ho*Wo) with (c, ho, wo) feature order.
    feat = x.transpose(1, 0, 2, 3).reshape(2 * B, -1)            # (2B, 2508)
    kp = prep["fc1_w"].shape[0]                                  # padded K (2560)
    feat = jnp.pad(feat, ((0, 0), (0, kp - feat.shape[1]))).astype(jnp.bfloat16)

    # fc1..fc4 fused in one kernel; fc4 consumes cat(branch1, branch2).
    return fused_fc(feat, prep, batch=B)                         # (B, 4) f32


# ---------------------------------- main -------------------------------------

if __name__ == "__main__":
    # Spatial size chosen so the flattened conv feature size is exactly 2508
    # (= 2 channels * 33 * 38), as required by fc1's in_features.
    # conv1(k5,s3): 191x221 -> 63x73 ; conv2(k3,s2,p3): -> 34x39 ;
    # conv3(k2,s1): -> 33x38.
    B, H, W = 2, 191, 221
    key = jax.random.PRNGKey(0)
    k_x, k_p = jax.random.split(key)
    xs = jax.random.normal(k_x, (B, 2, H, W), jnp.float32)
    params = init_params(k_p)
    prep = prepare_params(params)   # one-time weight layout/bf16 conversion

    out = net_forward(xs, prep)
    out = jax.block_until_ready(out)
    assert out.shape == (B, 4), out.shape
    assert out.dtype == jnp.float32
    assert bool(jnp.all(jnp.isfinite(out)))
    print("KERNEL_OK")
</pallas_src>

<mosaic_0001>
module attributes {stable_mosaic.version = 11 : i64} {
  func.func @_conv_gemm_kernel(%arg0: i32, %arg1: memref<5x25xf32, #tpu.memory_space<vmem>>, %arg2: memref<5x1xf32, #tpu.memory_space<vmem>>, %arg3: memref<25x1024xf32, #tpu.memory_space<vmem>>, %arg4: memref<5x1024xf32, #tpu.memory_space<vmem>>) attributes {dimension_semantics = [#tpu.dimension_semantics<parallel>], iteration_bounds = array<i64: 18>, scalar_prefetch = 0 : i64, scratch_operands = 0 : i64, tpu.core_type = #tpu.core_type<tc>, window_params = [{pipeline_mode = #tpu.pipeline_mode<synchronous>, transform_indices = @transform_0, window_bounds = array<i64: 5, 25>}, {pipeline_mode = #tpu.pipeline_mode<synchronous>, transform_indices = @transform_1, window_bounds = array<i64: 5, 1>}, {transform_indices = @transform_2, window_bounds = array<i64: 25, 1024>}, {transform_indices = @transform_3, window_bounds = array<i64: 5, 1024>}]} {
    %c0 = arith.constant 0 : index
    %c0_0 = arith.constant 0 : index
    %0 = vector.load %arg1[%c0, %c0_0] : memref<5x25xf32, #tpu.memory_space<vmem>>, vector<5x25xf32>
    %c0_1 = arith.constant 0 : index
    %c0_2 = arith.constant 0 : index
    %1 = vector.load %arg3[%c0_1, %c0_2] : memref<25x1024xf32, #tpu.memory_space<vmem>>, vector<25x1024xf32>
    %cst = arith.constant dense<0.000000e+00> : vector<5x1024xf32>
    %2 = tpu.matmul %0, %1, %cst {dimension_numbers = #tpu.dot_dimension_numbers<[1], [0], [0], [1], [0, 0, 1, 1], [], []>} : vector<5x25xf32>, vector<25x1024xf32>, vector<5x1024xf32> -> vector<5x1024xf32>
    %c0_3 = arith.constant 0 : index
    %c0_4 = arith.constant 0 : index
    %3 = vector.load %arg2[%c0_3, %c0_4] : memref<5x1xf32, #tpu.memory_space<vmem>>, vector<5x1xf32>
    %4 = vector.broadcast %3 : vector<5x1xf32> to vector<5x1024xf32>
    %5 = arith.addf %2, %4 : vector<5x1024xf32>
    %cst_5 = arith.constant 0.000000e+00 : f32
    %6 = vector.broadcast %cst_5 : f32 to vector<5x1024xf32>
    %7 = arith.maximumf %5, %6 : vector<5x1024xf32>
    %c0_6 = arith.constant 0 : index
    %c0_7 = arith.constant 0 : index
    %8 = vector.load %arg4[%c0_6, %c0_7] : memref<5x1024xf32, #tpu.memory_space<vmem>>, vector<5x1024xf32>
    tpu.vector_store %arg4[%c0_6, %c0_7], %7 {strides = array<i32>} : memref<5x1024xf32, #tpu.memory_space<vmem>>, vector<5x1024xf32>,
    return
  }
  func.func @transform_0(%arg0: i32) -> (i32, i32) {
    %c0_i32 = arith.constant 0 : i32
    %c0_i32_0 = arith.constant 0 : i32
    %c0_i32_1 = arith.constant 0 : i32
    return %c0_i32, %c0_i32_0 : i32, i32
  }
  func.func @transform_1(%arg0: i32) -> (i32, i32) {
    %c0_i32 = arith.constant 0 : i32
    %c0_i32_0 = arith.constant 0 : i32
    %c0_i32_1 = arith.constant 0 : i32
    return %c0_i32, %c0_i32_0 : i32, i32
  }
  func.func @transform_2(%arg0: i32) -> (i32, i32) {
    %c0_i32 = arith.constant 0 : i32
    %c0_i32_0 = arith.constant 0 : i32
    return %c0_i32, %arg0 : i32, i32
  }
  func.func @transform_3(%arg0: i32) -> (i32, i32) {
    %c0_i32 = arith.constant 0 : i32
    %c0_i32_0 = arith.constant 0 : i32
    return %c0_i32, %arg0 : i32, i32
  }
}

module attributes {stable_mosaic.version = 11 : i64} {
  func.func @_conv_gemm_kernel(%arg0: i32, %arg1: memref<3x45xf32, #tpu.memory_space<vmem>>, %arg2: memref<3x1xf32, #tpu.memory_space<vmem>>, %arg3: memref<45x1024xf32, #tpu.memory_space<vmem>>, %arg4: memref<3x1024xf32, #tpu.memory_space<vmem>>) attributes {dimension_semantics = [#tpu.dimension_semantics<parallel>], iteration_bounds = array<i64: 6>, scalar_prefetch = 0 : i64, scratch_operands = 0 : i64, tpu.core_type = #tpu.core_type<tc>, window_params = [{pipeline_mode = #tpu.pipeline_mode<synchronous>, transform_indices = @transform_0, window_bounds = array<i64: 3, 45>}, {pipeline_mode = #tpu.pipeline_mode<synchronous>, transform_indices = @transform_1, window_bounds = array<i64: 3, 1>}, {transform_indices = @transform_2, window_bounds = array<i64: 45, 1024>}, {transform_indices = @transform_3, window_bounds = array<i64: 3, 1024>}]} {
    %c0 = arith.constant 0 : index
    %c0_0 = arith.constant 0 : index
    %0 = vector.load %arg1[%c0, %c0_0] : memref<3x45xf32, #tpu.memory_space<vmem>>, vector<3x45xf32>
    %c0_1 = arith.constant 0 : index
    %c0_2 = arith.constant 0 : index
    %1 = vector.load %arg3[%c0_1, %c0_2] : memref<45x1024xf32, #tpu.memory_space<vmem>>, vector<45x1024xf32>
    %cst = arith.constant dense<0.000000e+00> : vector<3x1024xf32>
    %2 = tpu.matmul %0, %1, %cst {dimension_numbers = #tpu.dot_dimension_numbers<[1], [0], [0], [1], [0, 0, 1, 1], [], []>} : vector<3x45xf32>, vector<45x1024xf32>, vector<3x1024xf32> -> vector<3x1024xf32>
    %c0_3 = arith.constant 0 : index
    %c0_4 = arith.constant 0 : index
    %3 = vector.load %arg2[%c0_3, %c0_4] : memref<3x1xf32, #tpu.memory_space<vmem>>, vector<3x1xf32>
    %4 = vector.broadcast %3 : vector<3x1xf32> to vector<3x1024xf32>
    %5 = arith.addf %2, %4 : vector<3x1024xf32>
    %cst_5 = arith.constant 0.000000e+00 : f32
    %6 = vector.broadcast %cst_5 : f32 to vector<3x1024xf32>
    %7 = arith.maximumf %5, %6 : vector<3x1024xf32>
    %c0_6 = arith.constant 0 : index
    %c0_7 = arith.constant 0 : index
    %8 = vector.load %arg4[%c0_6, %c0_7] : memref<3x1024xf32, #tpu.memory_space<vmem>>, vector<3x1024xf32>
    tpu.vector_store %arg4[%c0_6, %c0_7], %7 {strides = array<i32>} : memref<3x1024xf32, #tpu.memory_space<vmem>>, vector<3x1024xf32>,
    return
  }
  func.func @transform_0(%arg0: i32) -> (i32, i32) {
    %c0_i32 = arith.constant 0 : i32
    %c0_i32_0 = arith.constant 0 : i32
    %c0_i32_1 = arith.constant 0 : i32
    return %c0_i32, %c0_i32_0 : i32, i32
  }
  func.func @transform_1(%arg0: i32) -> (i32, i32) {
    %c0_i32 = arith.constant 0 : i32
    %c0_i32_0 = arith.constant 0 : i32
    %c0_i32_1 = arith.constant 0 : i32
    return %c0_i32, %c0_i32_0 : i32, i32
  }
  func.func @transform_2(%arg0: i32) -> (i32, i32) {
    %c0_i32 = arith.constant 0 : i32
    %c0_i32_0 = arith.constant 0 : i32
    return %c0_i32, %arg0 : i32, i32
  }
  func.func @transform_3(%arg0: i32) -> (i32, i32) {
    %c0_i32 = arith.constant 0 : i32
    %c0_i32_0 = arith.constant 0 : i32
    return %c0_i32, %arg0 : i32, i32
  }
}

module attributes {stable_mosaic.version = 11 : i64} {
  func.func @_conv_gemm_kernel(%arg0: i32, %arg1: memref<2x12xf32, #tpu.memory_space<vmem>>, %arg2: memref<2x1xf32, #tpu.memory_space<vmem>>, %arg3: memref<12x1024xf32, #tpu.memory_space<vmem>>, %arg4: memref<2x1024xf32, #tpu.memory_space<vmem>>) attributes {dimension_semantics = [#tpu.dimension_semantics<parallel>], iteration_bounds = array<i64: 5>, scalar_prefetch = 0 : i64, scratch_operands = 0 : i64, tpu.core_type = #tpu.core_type<tc>, window_params = [{pipeline_mode = #tpu.pipeline_mode<synchronous>, transform_indices = @transform_0, window_bounds = array<i64: 2, 12>}, {pipeline_mode = #tpu.pipeline_mode<synchronous>, transform_indices = @transform_1, window_bounds = array<i64: 2, 1>}, {transform_indices = @transform_2, window_bounds = array<i64: 12, 1024>}, {transform_indices = @transform_3, window_bounds = array<i64: 2, 1024>}]} {
    %c0 = arith.constant 0 : index
    %c0_0 = arith.constant 0 : index
    %0 = vector.load %arg1[%c0, %c0_0] : memref<2x12xf32, #tpu.memory_space<vmem>>, vector<2x12xf32>
    %c0_1 = arith.constant 0 : index
    %c0_2 = arith.constant 0 : index
    %1 = vector.load %arg3[%c0_1, %c0_2] : memref<12x1024xf32, #tpu.memory_space<vmem>>, vector<12x1024xf32>
    %cst = arith.constant dense<0.000000e+00> : vector<2x1024xf32>
    %2 = tpu.matmul %0, %1, %cst {dimension_numbers = #tpu.dot_dimension_numbers<[1], [0], [0], [1], [0, 0, 1, 1], [], []>} : vector<2x12xf32>, vector<12x1024xf32>, vector<2x1024xf32> -> vector<2x1024xf32>
    %c0_3 = arith.constant 0 : index
    %c0_4 = arith.constant 0 : index
    %3 = vector.load %arg2[%c0_3, %c0_4] : memref<2x1xf32, #tpu.memory_space<vmem>>, vector<2x1xf32>
    %4 = vector.broadcast %3 : vector<2x1xf32> to vector<2x1024xf32>
    %5 = arith.addf %2, %4 : vector<2x1024xf32>
    %cst_5 = arith.constant 0.000000e+00 : f32
    %6 = vector.broadcast %cst_5 : f32 to vector<2x1024xf32>
    %7 = arith.maximumf %5, %6 : vector<2x1024xf32>
    %c0_6 = arith.constant 0 : index
    %c0_7 = arith.constant 0 : index
    %8 = vector.load %arg4[%c0_6, %c0_7] : memref<2x1024xf32, #tpu.memory_space<vmem>>, vector<2x1024xf32>
    tpu.vector_store %arg4[%c0_6, %c0_7], %7 {strides = array<i32>} : memref<2x1024xf32, #tpu.memory_space<vmem>>, vector<2x1024xf32>,
    return
  }
  func.func @transform_0(%arg0: i32) -> (i32, i32) {
    %c0_i32 = arith.constant 0 : i32
    %c0_i32_0 = arith.constant 0 : i32
    %c0_i32_1 = arith.constant 0 : i32
    return %c0_i32, %c0_i32_0 : i32, i32
  }
  func.func @transform_1(%arg0: i32) -> (i32, i32) {
    %c0_i32 = arith.constant 0 : i32
    %c0_i32_0 = arith.constant 0 : i32
    %c0_i32_1 = arith.constant 0 : i32
    return %c0_i32, %c0_i32_0 : i32, i32
  }
  func.func @transform_2(%arg0: i32) -> (i32, i32) {
    %c0_i32 = arith.constant 0 : i32
    %c0_i32_0 = arith.constant 0 : i32
    return %c0_i32, %arg0 : i32, i32
  }
  func.func @transform_3(%arg0: i32) -> (i32, i32) {
    %c0_i32 = arith.constant 0 : i32
    %c0_i32_0 = arith.constant 0 : i32
    return %c0_i32, %arg0 : i32, i32
  }
}

module attributes {stable_mosaic.version = 11 : i64} {
  func.func @_fused_fc_kernel(%arg0: i32, %arg1: memref<4x512xbf16, #tpu.memory_space<vmem>>, %arg2: memref<512x1254xbf16, #tpu.memory_space<vmem>>, %arg3: memref<1x1254xf32, #tpu.memory_space<vmem>>, %arg4: memref<1254x627xbf16, #tpu.memory_space<vmem>>, %arg5: memref<1x627xf32, #tpu.memory_space<vmem>>, %arg6: memref<627x32xf32, #tpu.memory_space<vmem>>, %arg7: memref<1x32xf32, #tpu.memory_space<vmem>>, %arg8: memref<32x4xf32, #tpu.memory_space<vmem>>, %arg9: memref<32x4xf32, #tpu.memory_space<vmem>>, %arg10: memref<1x4xf32, #tpu.memory_space<vmem>>, %arg11: memref<2x4xf32, #tpu.memory_space<vmem>>, %arg12: memref<4x1254xf32, #tpu.memory_space<vmem>>) attributes {dimension_semantics = [#tpu.dimension_semantics<arbitrary>], iteration_bounds = array<i64: 5>, scalar_prefetch = 0 : i64, scratch_operands = 1 : i64, tpu.core_type = #tpu.core_type<tc>, window_params = [{transform_indices = @transform_0, window_bounds = array<i64: 4, 512>}, {transform_indices = @transform_1, window_bounds = array<i64: 512, 1254>}, {pipeline_mode = #tpu.pipeline_mode<synchronous>, transform_indices = @transform_2, window_bounds = array<i64: 1, 1254>}, {pipeline_mode = #tpu.pipeline_mode<synchronous>, transform_indices = @transform_3, window_bounds = array<i64: 1254, 627>}, {pipeline_mode = #tpu.pipeline_mode<synchronous>, transform_indices = @transform_4, window_bounds = array<i64: 1, 627>}, {pipeline_mode = #tpu.pipeline_mode<synchronous>, transform_indices = @transform_5, window_bounds = array<i64: 627, 32>}, {pipeline_mode = #tpu.pipeline_mode<synchronous>, transform_indices = @transform_6, window_bounds = array<i64: 1, 32>}, {pipeline_mode = #tpu.pipeline_mode<synchronous>, transform_indices = @transform_7, window_bounds = array<i64: 32, 4>}, {pipeline_mode = #tpu.pipeline_mode<synchronous>, transform_indices = @transform_8, window_bounds = array<i64: 32, 4>}, {pipeline_mode = #tpu.pipeline_mode<synchronous>, transform_indices = @transform_9, window_bounds = array<i64: 1, 4>}, {pipeline_mode = #tpu.pipeline_mode<synchronous>, transform_indices = @transform_10, window_bounds = array<i64: 2, 4>}]} {
    %c0_i32 = arith.constant 0 : i32
    %0 = arith.cmpi eq, %arg0, %c0_i32 : i32
    %1 = arith.extui %0 : i1 to i32
    %c0_i32_0 = arith.constant 0 : i32
    %2 = arith.cmpi ne, %1, %c0_i32_0 : i32
    scf.if %2 {
      %cst_9 = arith.constant 0.000000e+00 : f32
      %12 = vector.broadcast %cst_9 : f32 to vector<4x1254xf32>
      %c0_10 = arith.constant 0 : index
      %c0_11 = arith.constant 0 : index
      %13 = vector.load %arg12[%c0_10, %c0_11] : memref<4x1254xf32, #tpu.memory_space<vmem>>, vector<4x1254xf32>
      tpu.vector_store %arg12[%c0_10, %c0_11], %12 {strides = array<i32>} : memref<4x1254xf32, #tpu.memory_space<vmem>>, vector<4x1254xf32>,
    } else {
    }
    %c0 = arith.constant 0 : index
    %c0_1 = arith.constant 0 : index
    %3 = vector.load %arg12[%c0, %c0_1] : memref<4x1254xf32, #tpu.memory_space<vmem>>, vector<4x1254xf32>
    %c0_2 = arith.constant 0 : index
    %c0_3 = arith.constant 0 : index
    %4 = vector.load %arg1[%c0_2, %c0_3] : memref<4x512xbf16, #tpu.memory_space<vmem>>, vector<4x512xbf16>
    %c0_4 = arith.constant 0 : index
    %c0_5 = arith.constant 0 : index
    %5 = vector.load %arg2[%c0_4, %c0_5] : memref<512x1254xbf16, #tpu.memory_space<vmem>>, vector<512x1254xbf16>
    %cst = arith.constant dense<0.000000e+00> : vector<4x1254xf32>
    %6 = tpu.matmul %4, %5, %cst {dimension_numbers = #tpu.dot_dimension_numbers<[1], [0], [0], [1], [0, 0, 1, 1], [], []>} : vector<4x512xbf16>, vector<512x1254xbf16>, vector<4x1254xf32> -> vector<4x1254xf32>
    %7 = arith.addf %3, %6 : vector<4x1254xf32>
    %c0_6 = arith.constant 0 : index
    %c0_7 = arith.constant 0 : index
    %8 = vector.load %arg12[%c0_6, %c0_7] : memref<4x1254xf32, #tpu.memory_space<vmem>>, vector<4x1254xf32>
    tpu.vector_store %arg12[%c0_6, %c0_7], %7 {strides = array<i32>} : memref<4x1254xf32, #tpu.memory_space<vmem>>, vector<4x1254xf32>,
    %c4_i32 = arith.constant 4 : i32
    %9 = arith.cmpi eq, %arg0, %c4_i32 : i32
    %10 = arith.extui %9 : i1 to i32
    %c0_i32_8 = arith.constant 0 : i32
    %11 = arith.cmpi ne, %10, %c0_i32_8 : i32
    scf.if %11 {
      %c0_9 = arith.constant 0 : index
      %c0_10 = arith.constant 0 : index
      %12 = vector.load %arg12[%c0_9, %c0_10] : memref<4x1254xf32, #tpu.memory_space<vmem>>, vector<4x1254xf32>
      %c0_11 = arith.constant 0 : index
      %c0_12 = arith.constant 0 : index
      %13 = vector.load %arg3[%c0_11, %c0_12] : memref<1x1254xf32, #tpu.memory_space<vmem>>, vector<1x1254xf32>
      %14 = vector.broadcast %13 : vector<1x1254xf32> to vector<4x1254xf32>
      %15 = arith.addf %12, %14 : vector<4x1254xf32>
      %cst_13 = arith.constant 0.000000e+00 : f32
      %16 = vector.broadcast %cst_13 : f32 to vector<4x1254xf32>
      %17 = arith.maximumf %15, %16 : vector<4x1254xf32>
      %18 = arith.truncf %17 : vector<4x1254xf32> to vector<4x1254xbf16>
      %c0_14 = arith.constant 0 : index
      %c0_15 = arith.constant 0 : index
      %19 = vector.load %arg4[%c0_14, %c0_15] : memref<1254x627xbf16, #tpu.memory_space<vmem>>, vector<1254x627xbf16>
      %cst_16 = arith.constant dense<0.000000e+00> : vector<4x627xf32>
      %20 = tpu.matmul %18, %19, %cst_16 {dimension_numbers = #tpu.dot_dimension_numbers<[1], [0], [0], [1], [0, 0, 1, 1], [], []>} : vector<4x1254xbf16>, vector<1254x627xbf16>, vector<4x627xf32> -> vector<4x627xf32>
      %c0_17 = arith.constant 0 : index
      %c0_18 = arith.constant 0 : index
      %21 = vector.load %arg5[%c0_17, %c0_18] : memref<1x627xf32, #tpu.memory_space<vmem>>, vector<1x627xf32>
      %22 = vector.broadcast %21 : vector<1x627xf32> to vector<4x627xf32>
      %23 = arith.addf %20, %22 : vector<4x627xf32>
      %cst_19 = arith.constant 0.000000e+00 : f32
      %24 = vector.broadcast %cst_19 : f32 to vector<4x627xf32>
      %25 = arith.maximumf %23, %24 : vector<4x627xf32>
      %c0_20 = arith.constant 0 : index
      %c0_21 = arith.constant 0 : index
      %26 = vector.load %arg6[%c0_20, %c0_21] : memref<627x32xf32, #tpu.memory_space<vmem>>, vector<627x32xf32>
      %cst_22 = arith.constant dense<0.000000e+00> : vector<4x32xf32>
      %27 = tpu.matmul %25, %26, %cst_22 {dimension_numbers = #tpu.dot_dimension_numbers<[1], [0], [0], [1], [0, 0, 1, 1], [], []>} : vector<4x627xf32>, vector<627x32xf32>, vector<4x32xf32> -> vector<4x32xf32>
      %c0_23 = arith.constant 0 : index
      %c0_24 = arith.constant 0 : index
      %28 = vector.load %arg7[%c0_23, %c0_24] : memref<1x32xf32, #tpu.memory_space<vmem>>, vector<1x32xf32>
      %29 = vector.broadcast %28 : vector<1x32xf32> to vector<4x32xf32>
      %30 = arith.addf %27, %29 : vector<4x32xf32>
      %cst_25 = arith.constant 0.000000e+00 : f32
      %31 = vector.broadcast %cst_25 : f32 to vector<4x32xf32>
      %32 = arith.maximumf %30, %31 : vector<4x32xf32>
      %33 = vector.extract_strided_slice %32 {offsets = [0, 0], sizes = [2, 32], strides = [1, 1]} : vector<4x32xf32> to vector<2x32xf32>
      %34 = vector.extract_strided_slice %32 {offsets = [2, 0], sizes = [2, 32], strides = [1, 1]} : vector<4x32xf32> to vector<2x32xf32>
      %c0_26 = arith.constant 0 : index
      %c0_27 = arith.constant 0 : index
      %35 = vector.load %arg8[%c0_26, %c0_27] : memref<32x4xf32, #tpu.memory_space<vmem>>, vector<32x4xf32>
      %cst_28 = arith.constant dense<0.000000e+00> : vector<2x4xf32>
      %36 = tpu.matmul %33, %35, %cst_28 {dimension_numbers = #tpu.dot_dimension_numbers<[1], [0], [0], [1], [0, 0, 1, 1], [], []>} : vector<2x32xf32>, vector<32x4xf32>, vector<2x4xf32> -> vector<2x4xf32>
      %c0_29 = arith.constant 0 : index
      %c0_30 = arith.constant 0 : index
      %37 = vector.load %arg9[%c0_29, %c0_30] : memref<32x4xf32, #tpu.memory_space<vmem>>, vector<32x4xf32>
      %cst_31 = arith.constant dense<0.000000e+00> : vector<2x4xf32>
      %38 = tpu.matmul %34, %37, %cst_31 {dimension_numbers = #tpu.dot_dimension_numbers<[1], [0], [0], [1], [0, 0, 1, 1], [], []>} : vector<2x32xf32>, vector<32x4xf32>, vector<2x4xf32> -> vector<2x4xf32>
      %39 = arith.addf %36, %38 : vector<2x4xf32>
      %c0_32 = arith.constant 0 : index
      %c0_33 = arith.constant 0 : index
      %40 = vector.load %arg10[%c0_32, %c0_33] : memref<1x4xf32, #tpu.memory_space<vmem>>, vector<1x4xf32>
      %41 = vector.broadcast %40 : vector<1x4xf32> to vector<2x4xf32>
      %42 = arith.addf %39, %41 : vector<2x4xf32>
      %c0_34 = arith.constant 0 : index
      %c0_35 = arith.constant 0 : index
      %43 = vector.load %arg11[%c0_34, %c0_35] : memref<2x4xf32, #tpu.memory_space<vmem>>, vector<2x4xf32>
      tpu.vector_store %arg11[%c0_34, %c0_35], %42 {strides = array<i32>} : memref<2x4xf32, #tpu.memory_space<vmem>>, vector<2x4xf32>,
    } else {
    }
    return
  }
  func.func @transform_0(%arg0: i32) -> (i32, i32) {
    %c0_i32 = arith.constant 0 : i32
    %c0_i32_0 = arith.constant 0 : i32
    return %c0_i32, %arg0 : i32, i32
  }
  func.func @transform_1(%arg0: i32) -> (i32, i32) {
    %c0_i32 = arith.constant 0 : i32
    %c0_i32_0 = arith.constant 0 : i32
    return %arg0, %c0_i32 : i32, i32
  }
  func.func @transform_2(%arg0: i32) -> (i32, i32) {
    %c0_i32 = arith.constant 0 : i32
    %c0_i32_0 = arith.constant 0 : i32
    %c0_i32_1 = arith.constant 0 : i32
    return %c0_i32, %c0_i32_0 : i32, i32
  }
  func.func @transform_3(%arg0: i32) -> (i32, i32) {
    %c0_i32 = arith.constant 0 : i32
    %c0_i32_0 = arith.constant 0 : i32
    %c0_i32_1 = arith.constant 0 : i32
    return %c0_i32, %c0_i32_0 : i32, i32
  }
  func.func @transform_4(%arg0: i32) -> (i32, i32) {
    %c0_i32 = arith.constant 0 : i32
    %c0_i32_0 = arith.constant 0 : i32
    %c0_i32_1 = arith.constant 0 : i32
    return %c0_i32, %c0_i32_0 : i32, i32
  }
  func.func @transform_5(%arg0: i32) -> (i32, i32) {
    %c0_i32 = arith.constant 0 : i32
    %c0_i32_0 = arith.constant 0 : i32
    %c0_i32_1 = arith.constant 0 : i32
    return %c0_i32, %c0_i32_0 : i32, i32
  }
  func.func @transform_6(%arg0: i32) -> (i32, i32) {
    %c0_i32 = arith.constant 0 : i32
    %c0_i32_0 = arith.constant 0 : i32
    %c0_i32_1 = arith.constant 0 : i32
    return %c0_i32, %c0_i32_0 : i32, i32
  }
  func.func @transform_7(%arg0: i32) -> (i32, i32) {
    %c0_i32 = arith.constant 0 : i32
    %c0_i32_0 = arith.constant 0 : i32
    %c0_i32_1 = arith.constant 0 : i32
    return %c0_i32, %c0_i32_0 : i32, i32
  }
  func.func @transform_8(%arg0: i32) -> (i32, i32) {
    %c0_i32 = arith.constant 0 : i32
    %c0_i32_0 = arith.constant 0 : i32
    %c0_i32_1 = arith.constant 0 : i32
    return %c0_i32, %c0_i32_0 : i32, i32
  }
  func.func @transform_9(%arg0: i32) -> (i32, i32) {
    %c0_i32 = arith.constant 0 : i32
    %c0_i32_0 = arith.constant 0 : i32
    %c0_i32_1 = arith.constant 0 : i32
    return %c0_i32, %c0_i32_0 : i32, i32
  }
  func.func @transform_10(%arg0: i32) -> (i32, i32) {
    %c0_i32 = arith.constant 0 : i32
    %c0_i32_0 = arith.constant 0 : i32
    %c0_i32_1 = arith.constant 0 : i32
    return %c0_i32, %c0_i32_0 : i32, i32
  }
}

</mosaic_0001>

<llo_original>
// kernel: net_forward.4
$region0: #{net_forward.4}
  #allocation0 [shape = 'u32[]', space=smem, size = 0x4, offset = 0x4, fixed_abs, tag = 'smem constant byte address 0x4 - core index']
  #allocation1 [shape = 'u32[144,128]{1,0:T(1,128)}', space=vmem, size = 0x12000, scoped, tag = 'internal scratch']
  %s0 = inlined_call_operand.vmem [shape: f32[5,25], index: 0, kind: input, shape index: {}]
  %s1 = inlined_call_operand.vmem [shape: f32[5,1], index: 1, kind: input, shape index: {}]
  %s2 = inlined_call_operand.vmem [shape: f32[25,18432], index: 2, kind: input, shape index: {}]
  %s3 = inlined_call_operand.vmem [shape: f32[5,18432], index: 3, kind: output, shape index: {}]
  %s4 = sld [smem:[#allocation0]]
  $region68: #{net_forward.4} parent=0
    _
  %s6 = ssub.s32 1, %s4
  %s7 = scalar_select 0, %s6, %s4
  $region1: #{net_forward.4} parent=0
    #allocation2 [shape = 'u8[262144]{0}', space=vmem, size = 0x40000, scoped, tag = 'input window, operand 2']
    loop: start=0, step=1, limit=20
    $region2: #{net_forward.4} parent=1 // loop_pre_header
      _
    $region3: #{net_forward.4} parent=1 // loop_header
      %s9 = sphi 0, %s13
      %p10 = scmp.ge.s32.totalorder %s9, 20
      %s17 = sphi 0, %s17
      %s19 = sphi 0, %s17
      %s20 = sphi 0, %s19
      %s34 = sphi 0, %s20
      %s38 = sphi 0, %s38
      %s40 = sphi 0, %s38
      %s41 = sphi 0, %s40
      %s55 = sphi 0, %s41
      %s61 = sphi 0, %s63
      %s64 = sphi 0, %s61
      %s65 = sphi 0, %s64
      %s81 = sphi 0, %s65
      %s87 = sphi 0, %s89
      %s90 = sphi 0, %s87
      %s91 = sphi 0, %s90
      %s107 = sphi 0, %s91
    $region4: #{net_forward.4} parent=1 // loop_header_branch
      %12 = sbr.rel (%p10) target = $region8
    $region5: #{net_forward.4} parent=1 // loop_body
      %s14 = ssub.s32 %s9, 1
      %s15 = ssub.s32 %s9, 2
      %s16 = sadd.s32 %s9, 1
      %s18 = sadd.s32 %s17, 1
      %p21 = scmp.eq.s32.totalorder %s9, 17
      %p22 = scmp.ne.s32.totalorder %s17, %s19
      %p23 = scmp.eq.s32.totalorder %s9, 0
      %p24 = por %p22, %p23
      %p25 = scmp.ne.s32.totalorder %s17, %s19
      %p26 = scmp.eq.s32.totalorder %s14, 17
      %p27 = por %p25, %p26
      %p28 = scmp.ne.s32.totalorder %s19, %s20
      %p29 = scmp.eq.s32.totalorder %s14, 0
      %p30 = por %p28, %p29
      %p31 = scmp.ne.s32.totalorder %s19, %s20
      %p32 = scmp.eq.s32.totalorder %s15, 17
      %p33 = por %p31, %p32
      %p35 = scmp.ne.s32.totalorder %s20, %s34
      %p36 = scmp.eq.s32.totalorder %s15, 0
      %p37 = por %p35, %p36
      %s39 = sadd.s32 %s38, 1
      %p42 = scmp.eq.s32.totalorder %s9, 17
      %p43 = scmp.ne.s32.totalorder %s38, %s40
      %p44 = scmp.eq.s32.totalorder %s9, 0
      %p45 = por %p43, %p44
      %p46 = scmp.ne.s32.totalorder %s38, %s40
      %p47 = scmp.eq.s32.totalorder %s14, 17
      %p48 = por %p46, %p47
      %p49 = scmp.ne.s32.totalorder %s40, %s41
      %p50 = scmp.eq.s32.totalorder %s14, 0
      %p51 = por %p49, %p50
      %p52 = scmp.ne.s32.totalorder %s40, %s41
      %p53 = scmp.eq.s32.totalorder %s15, 17
      %p54 = por %p52, %p53
      %p56 = scmp.ne.s32.totalorder %s41, %s55
      %p57 = scmp.eq.s32.totalorder %s15, 0
      %p58 = por %p56, %p57
      %s59 = ssub.s32 %s9, %s16
      %p60 = scmp.eq.s32.totalorder %s59, 0
      %s62 = sadd.s32 %s61, 1
      %s63 = scalar_select %p60, %s61, %s62
      %p66 = pneg %p60
      %p67 = scmp.eq.s32.totalorder %s9, 17
      %p68 = por %p66, %p67
      %p69 = scmp.ne.s32.totalorder %s61, %s64
      %p70 = scmp.eq.s32.totalorder %s9, 0
      %p71 = por %p69, %p70
      %p72 = scmp.ne.s32.totalorder %s61, %s64
      %p73 = scmp.eq.s32.totalorder %s14, 17
      %p74 = por %p72, %p73
      %p75 = scmp.ne.s32.totalorder %s64, %s65
      %p76 = scmp.eq.s32.totalorder %s14, 0
      %p77 = por %p75, %p76
      %p78 = scmp.ne.s32.totalorder %s64, %s65
      %p79 = scmp.eq.s32.totalorder %s15, 17
      %p80 = por %p78, %p79
      %p82 = scmp.ne.s32.totalorder %s65, %s81
      %p83 = scmp.eq.s32.totalorder %s15, 0
      %p84 = por %p82, %p83
      %s85 = ssub.s32 %s9, %s16
      %p86 = scmp.eq.s32.totalorder %s85, 0
      %s88 = sadd.s32 %s87, 1
      %s89 = scalar_select %p86, %s87, %s88
      %p92 = pneg %p86
      %p93 = scmp.eq.s32.totalorder %s9, 17
      %p94 = por %p92, %p93
      %p95 = scmp.ne.s32.totalorder %s87, %s90
      %p96 = scmp.eq.s32.totalorder %s9, 0
      %p97 = por %p95, %p96
      %p98 = scmp.ne.s32.totalorder %s87, %s90
      %p99 = scmp.eq.s32.totalorder %s14, 17
      %p100 = por %p98, %p99
      %p101 = scmp.ne.s32.totalorder %s90, %s91
      %p102 = scmp.eq.s32.totalorder %s14, 0
      %p103 = por %p101, %p102
      %p104 = scmp.ne.s32.totalorder %s90, %s91
      %p105 = scmp.eq.s32.totalorder %s15, 17
      %p106 = por %p104, %p105
      %p108 = scmp.ne.s32.totalorder %s91, %s107
      %p109 = scmp.eq.s32.totalorder %s15, 0
      %p110 = por %p108, %p109
      %p111 = scmp.le.s32.totalorder 1, %s9
      %p112 = scmp.lt.s32.totalorder %s9, 19
      %p113 = pnand %p111, %p112
      %p114 = pneg %p113
      // Predicated region
      $region9: #{net_forward.4} parent=5 // pred_check
        _
      $region10: #{net_forward.4} parent=5 // pred_check_branch
        %116 = sbr.rel (%p113) target = $region12
      $region11: #{net_forward.4} parent=5 // pred_region
        %s117 = ssub.s32 %s9, 1
        // Predicated region
        $region13: #{net_forward.4} parent=11 // pred_check
          %p118 = pneg %p30
        $region14: #{net_forward.4} parent=11 // pred_check_branch
          %120 = sbr.rel (%p118) target = $region16
        $region15: #{net_forward.4} parent=11 // pred_region
          _
        $region16: #{net_forward.4} parent=11 // pred_fallthru
          _
        // Predicated region
        $region17: #{net_forward.4} parent=11 // pred_check
          %p121 = pneg %p51
        $region18: #{net_forward.4} parent=11 // pred_check_branch
          %123 = sbr.rel (%p121) target = $region20
        $region19: #{net_forward.4} parent=11 // pred_region
          _
        $region20: #{net_forward.4} parent=11 // pred_fallthru
          _
      $region12: #{net_forward.4} parent=5 // pred_fallthru
        _
      %p124 = scmp.lt.s32.totalorder %s9, 18
      // Predicated region
      $region21: #{net_forward.4} parent=5 // pred_check
        %p125 = pneg %p124
      $region22: #{net_forward.4} parent=5 // pred_check_branch
        %127 = sbr.rel (%p125) target = $region24
      $region23: #{net_forward.4} parent=5 // pred_region
        // Predicated region
        $region25: #{net_forward.4} parent=23 // pred_check
          %p128 = pneg %p71
        $region26: #{net_forward.4} parent=23 // pred_check_branch
          %130 = sbr.rel (%p128) target = $region28
        $region27: #{net_forward.4} parent=23 // pred_region
          %s131 = sand.u32 %s61, 1
          %s132 = sand.u32 %s61, 1
          %s133 = smul.addr %s132, 256
          %s134 = scalar_lea.vmem [#allocation2], %s133
          %s135 = smul.u32 8, %s9
          %s136 = smul.addr %s135, 8
          %s137 = scalar_lea.vmem %s2, %s136
          // Predicated region
          $region29: #{net_forward.4} parent=27 // pred_check
            _
          $region30: #{net_forward.4} parent=27 // pred_check_branch
            %139 = sbr.rel (0) target = $region32
          $region31: #{net_forward.4} parent=27 // pred_region
            // Predicated region
            $region33: #{net_forward.4} parent=31 // pred_check
              _
            $region34: #{net_forward.4} parent=31 // pred_check_branch
              %141 = sbr.rel (0) target = $region36
            $region35: #{net_forward.4} parent=31 // pred_region
              loop: start=0, step=1, limit=1
              $region37: #{net_forward.4} parent=35 // loop_pre_header
                _
              $region38: #{net_forward.4} parent=35 // loop_header
                %s143 = sphi 0, %s147
                %p144 = scmp.ge.s32.totalorder %s143, 1
                %s148 = sphi %s137, %s137
                %s149 = sphi %s134, %s134
              $region39: #{net_forward.4} parent=35 // loop_header_branch
                %146 = sbr.rel (%p144) target = $region43
              $region40: #{net_forward.4} parent=35 // loop_body
                %v150 = vld [vmem:[%s148] sm:$0xff]
                %151 = vst [vmem:[%s149] sm:$0xff] %v150
                %v152 = vld [vmem:[%s148 + $0x8] sm:$0xff]
                %153 = vst [vmem:[%s149 + $0x8] sm:$0xff] %v152
                %v154 = vld [vmem:[%s148 + $0x10] sm:$0xff]
                %155 = vst [vmem:[%s149 + $0x10] sm:$0xff] %v154
                %v156 = vld [vmem:[%s148 + $0x18] sm:$0xff]
                %157 = vst [vmem:[%s149 + $0x18] sm:$0xff] %v156
                %v158 = vld [vmem:[%s148 + $0x20] sm:$0xff]
                %159 = vst [vmem:[%s149 + $0x20] sm:$0xff] %v158
                %v160 = vld [vmem:[%s148 + $0x28] sm:$0xff]
                %161 = vst [vmem:[%s149 + $0x28] sm:$0xff] %v160
                %v162 = vld [vmem:[%s148 + $0x30] sm:$0xff]
                %163 = vst [vmem:[%s149 + $0x30] sm:$0xff] %v162
                %v164 = vld [vmem:[%s148 + $0x38] sm:$0xff]
                %165 = vst [vmem:[%s149 + $0x38] sm:$0xff] %v164
                %v166 = vld [vmem:[%s148 + $0x480] sm:$0xff]
                %167 = vst [vmem:[%s149 + $0x40] sm:$0xff] %v166
                %v168 = vld [vmem:[%s148 + $0x488] sm:$0xff]
                %169 = vst [vmem:[%s149 + $0x48] sm:$0xff] %v168
                %v170 = vld [vmem:[%s148 + $0x490] sm:$0xff]
                %171 = vst [vmem:[%s149 + $0x50] sm:$0xff] %v170
                %v172 = vld [vmem:[%s148 + $0x498] sm:$0xff]
                %173 = vst [vmem:[%s149 + $0x58] sm:$0xff] %v172
                %v174 = vld [vmem:[%s148 + $0x4a0] sm:$0xff]
                %175 = vst [vmem:[%s149 + $0x60] sm:$0xff] %v174
                %v176 = vld [vmem:[%s148 + $0x4a8] sm:$0xff]
                %177 = vst [vmem:[%s149 + $0x68] sm:$0xff] %v176
                %v178 = vld [vmem:[%s148 + $0x4b0] sm:$0xff]
                %179 = vst [vmem:[%s149 + $0x70] sm:$0xff] %v178
                %v180 = vld [vmem:[%s148 + $0x4b8] sm:$0xff]
                %181 = vst [vmem:[%s149 + $0x78] sm:$0xff] %v180
                %v182 = vld [vmem:[%s148 + $0x900] sm:$0xff]
                %183 = vst [vmem:[%s149 + $0x80] sm:$0xff] %v182
                %v184 = vld [vmem:[%s148 + $0x908] sm:$0xff]
                %185 = vst [vmem:[%s149 + $0x88] sm:$0xff] %v184
                %v186 = vld [vmem:[%s148 + $0x910] sm:$0xff]
                %187 = vst [vmem:[%s149 + $0x90] sm:$0xff] %v186
                %v188 = vld [vmem:[%s148 + $0x918] sm:$0xff]
                %189 = vst [vmem:[%s149 + $0x98] sm:$0xff] %v188
                %v190 = vld [vmem:[%s148 + $0x920] sm:$0xff]
                %191 = vst [vmem:[%s149 + $0xa0] sm:$0xff] %v190
                %v192 = vld [vmem:[%s148 + $0x928] sm:$0xff]
                %193 = vst [vmem:[%s149 + $0xa8] sm:$0xff] %v192
                %v194 = vld [vmem:[%s148 + $0x930] sm:$0xff]
                %195 = vst [vmem:[%s149 + $0xb0] sm:$0xff] %v194
                %v196 = vld [vmem:[%s148 + $0x938] sm:$0xff]
                %197 = vst [vmem:[%s149 + $0xb8] sm:$0xff] %v196
                %v198 = vld [vmem:[%s148 + $0xd80] sm:$0xff]
                %199 = vst [vmem:[%s149 + $0xc0] sm:$0xff] %v198
                %v200 = vld [vmem:[%s148 + $0xd88] sm:$0xff]
                %201 = vst [vmem:[%s149 + $0xc8] sm:$0xff] %v200
                %v202 = vld [vmem:[%s148 + $0xd90] sm:$0xff]
                %203 = vst [vmem:[%s149 + $0xd0] sm:$0xff] %v202
                %v204 = vld [vmem:[%s148 + $0xd98] sm:$0xff]
                %205 = vst [vmem:[%s149 + $0xd8] sm:$0xff] %v204
                %v206 = vld [vmem:[%s148 + $0xda0] sm:$0xff]
                %207 = vst [vmem:[%s149 + $0xe0] sm:$0xff] %v206
                %v208 = vld [vmem:[%s148 + $0xda8] sm:$0xff]
                %209 = vst [vmem:[%s149 + $0xe8] sm:$0xff] %v208
                %v210 = vld [vmem:[%s148 + $0xdb0] sm:$0xff]
                %211 = vst [vmem:[%s149 + $0xf0] sm:$0xff] %v210
                %v212 = vld [vmem:[%s148 + $0xdb8] sm:$0xff]
                %213 = vst [vmem:[%s149 + $0xf8] sm:$0xff] %v212
              $region41: #{net_forward.4} parent=35 // loop_footer
                %s147 = sadd.s32 1, %s143
              $region42: #{net_forward.4} parent=35 // loop_footer_branch
                %142 = sbr.rel target = $region38
              $region43: #{net_forward.4} parent=35 // loop_exit
                _
            $region36: #{net_forward.4} parent=31 // pred_fallthru
              _
            // Predicated region
            $region44: #{net_forward.4} parent=31 // pred_check
              _
            $region45: #{net_forward.4} parent=31 // pred_check_branch
              %215 = sbr.rel target = $region47
            $region46: #{net_forward.4} parent=31 // pred_region
              _
            $region47: #{net_forward.4} parent=31 // pred_fallthru
              _
          $region32: #{net_forward.4} parent=27 // pred_fallthru
            _
          %216 = vnop
        $region28: #{net_forward.4} parent=23 // pred_fallthru
          _
      $region24: #{net_forward.4} parent=5 // pred_fallthru
        _
      %p217 = scmp.le.s32.totalorder 1, %s9
      %p218 = scmp.lt.s32.totalorder %s9, 19
      %p219 = pnand %p217, %p218
      %p220 = pneg %p219
      // Predicated region
      $region48: #{net_forward.4} parent=5 // pred_check
        _
      $region49: #{net_forward.4} parent=5 // pred_check_branch
        %222 = sbr.rel (%p219) target = $region51
      $region50: #{net_forward.4} parent=5 // pred_region
        %s223 = ssub.s32 %s9, 1
        %s224 = sand.u32 %s64, 1
        %s225 = sand.u32 %s64, 1
        %s226 = smul.addr %s225, 256
        %s227 = scalar_lea.vmem [#allocation2], %s226
        // Predicated region
        $region52: #{net_forward.4} parent=50 // pred_check
          %p228 = pneg %p77
        $region53: #{net_forward.4} parent=50 // pred_check_branch
          %230 = sbr.rel (%p228) target = $region55
        $region54: #{net_forward.4} parent=50 // pred_region
          _
        $region55: #{net_forward.4} parent=50 // pred_fallthru
          _
        %p231 = pneg %p30
        %p232 = pneg %p27
        %p233 = pneg %p51
        %p234 = pneg %p48
        %s235 = sand.u32 %s64, 1
        %s236 = sand.u32 %s64, 1
        %s237 = smul.addr %s236, 256
        %s238 = scalar_lea.vmem [#allocation2], %s237
        %p239 = pneg %p77
        %p240 = pneg %p74
        %p241 = pneg %p103
        %p242 = pneg %p100
        %s243 = smul.u32 8, %s14
        %p244 = scmp.lt.s32.totalorder %s243, 143
        %s245 = scalar_select %p244, %s243, 143
        %s246 = smul.addr %s245, 8
        %s247 = scalar_lea.vmem %s3, %s246
        %s248 = smul.u32 8, %s14
        %s249 = smul.u32 8, %s14
        %p250 = scmp.lt.s32.totalorder %s249, 143
        %s251 = scalar_select %p250, %s249, 143
        %s252 = smul.addr %s251, 8
        %s253 = scalar_lea.vmem %s3, %s252
        %s254 = smul.u32 8, %s14
        %v255 = vld [vmem:[%s0] sm:$0x1f]
        %v256 = vld [vmem:[%s227] sm:$0xff]
        %v257 = vld [vmem:[%s227 + $0x8] sm:$0xff]
        %v258 = vld [vmem:[%s227 + $0x10] sm:$0xff]
        %v259 = vld [vmem:[%s227 + $0x18] sm:$0xff]
        %v260 = vld [vmem:[%s227 + $0x20] sm:$0xff]
        %v261 = vld [vmem:[%s227 + $0x28] sm:$0xff]
        %v262 = vld [vmem:[%s227 + $0x30] sm:$0xff]
        %v263 = vld [vmem:[%s227 + $0x38] sm:$0xff]
        %v264 = vld [vmem:[%s227 + $0x40] sm:$0xff]
        %v265 = vld [vmem:[%s227 + $0x48] sm:$0xff]
        %v266 = vld [vmem:[%s227 + $0x50] sm:$0xff]
        %v267 = vld [vmem:[%s227 + $0x58] sm:$0xff]
        %v268 = vld [vmem:[%s227 + $0x60] sm:$0xff]
        %v269 = vld [vmem:[%s227 + $0x68] sm:$0xff]
        %v270 = vld [vmem:[%s227 + $0x70] sm:$0xff]
        %v271 = vld [vmem:[%s227 + $0x78] sm:$0xff]
        %v272 = vld [vmem:[%s227 + $0x80] sm:$0xff]
        %v273 = vld [vmem:[%s227 + $0x88] sm:$0xff]
        %v274 = vld [vmem:[%s227 + $0x90] sm:$0xff]
        %v275 = vld [vmem:[%s227 + $0x98] sm:$0xff]
        %v276 = vld [vmem:[%s227 + $0xa0] sm:$0xff]
        %v277 = vld [vmem:[%s227 + $0xa8] sm:$0xff]
        %v278 = vld [vmem:[%s227 + $0xb0] sm:$0xff]
        %v279 = vld [vmem:[%s227 + $0xb8] sm:$0xff]
        %v280 = vld [vmem:[%s227 + $0xc0] sm:$0x1]
        %v281 = vld [vmem:[%s227 + $0xc8] sm:$0x1]
        %v282 = vld [vmem:[%s227 + $0xd0] sm:$0x1]
        %v283 = vld [vmem:[%s227 + $0xd8] sm:$0x1]
        %v284 = vld [vmem:[%s227 + $0xe0] sm:$0x1]
        %v285 = vld [vmem:[%s227 + $0xe8] sm:$0x1]
        %v286 = vld [vmem:[%s227 + $0xf0] sm:$0x1]
        %v287 = vld [vmem:[%s227 + $0xf8] sm:$0x1]
        %v288 = vld [vmem:[%s1] sm:$0x1f]
        %290 = vset.pattern.permute.xlu0 0
        %291 = vperm.xlu0 %290, %v288
        %v292 = vpop.permute.xlu0 %291
        %vm294 = vcmask 203776
        %v296 = vsel %vm294, %v255, 0
        %vm298 = vcmask 1040384
        %v300 = vsel %vm298, %v280, 0
        %v303 = vsel %vm298, %v281, 0
        %v306 = vsel %vm298, %v282, 0
        %v309 = vsel %vm298, %v283, 0
        %v312 = vsel %vm298, %v284, 0
        %v315 = vsel %vm298, %v285, 0
        %v318 = vsel %vm298, %v286, 0
        %v321 = vsel %vm298, %v287, 0
        %323 = vmatprep.subr.mxu0 0.0
        %324 = vmatpush1.msra.mxu0 0.0
        %325 = vmatprep.subr.mxu0 0.0
        %326 = vmatpush1.msra.mxu0 0.0
        %327 = vmatprep.subr.mxu0 0.0
        %328 = vmatpush1.msra.mxu0 0.0
        %329 = vmatprep.subr.mxu0 0.0
        %330 = vmatpush1.msra.mxu0 0.0
        %331 = vmatprep.subr.mxu0 0.0
        %332 = vmatpush1.msra.mxu0 0.0
        %333 = vmatprep.subr.mxu0 0.0
        %334 = vmatpush1.msra.mxu0 0.0
        %335 = vmatprep.subr.mxu0 0.0
        %336 = vmatpush1.msra.mxu0 0.0
        %337 = vmatprep.subr.mxu0 0.0
        %338 = vmatpush1.msra.mxu0 0.0
        %339 = vmatprep.subr.mxu0 0.0
        %340 = vmatpush1.msra.mxu0 0.0
        %341 = vmatprep.subr.mxu0 0.0
        %342 = vmatpush1.msra.mxu0 0.0
        %343 = vmatprep.subr.mxu0 0.0
        %344 = vmatpush1.msra.mxu0 0.0
        %345 = vmatprep.subr.mxu0 0.0
        %346 = vmatpush1.msra.mxu0 0.0
        %347 = vmatprep.subr.mxu0 %v303
        %348 = vmatpush1.msra.mxu0 %v300
        %349 = vmatprep.subr.mxu0 %v273
        %350 = vmatpush1.msra.mxu0 %v272
        %351 = vmatprep.subr.mxu0 %v265
        %352 = vmatpush1.msra.mxu0 %v264
        %353 = vmatprep.subr.mxu0 %v257
        %354 = vmatpush1.msra.mxu0 %v256
        %355 = vmatprep.subr.mxu0 0.0
        %356 = vmatpush2.msra.mxu0 0.0
        %357 = vmatprep.subr.mxu0 0.0
        %358 = vmatpush2.msra.mxu0 0.0
        %359 = vmatprep.subr.mxu0 0.0
        %360 = vmatpush2.msra.mxu0 0.0
        %361 = vmatprep.subr.mxu0 0.0
        %362 = vmatpush2.msra.mxu0 0.0
        %363 = vmatprep.subr.mxu0 0.0
        %364 = vmatpush2.msra.mxu0 0.0
        %365 = vmatprep.subr.mxu0 0.0
        %366 = vmatpush2.msra.mxu0 0.0
        %367 = vmatprep.subr.mxu0 0.0
        %368 = vmatpush2.msra.mxu0 0.0
        %369 = vmatprep.subr.mxu0 0.0
        %370 = vmatpush2.msra.mxu0 0.0
        %371 = vmatprep.subr.mxu0 0.0
        %372 = vmatpush2.msra.mxu0 0.0
        %373 = vmatprep.subr.mxu0 0.0
        %374 = vmatpush2.msra.mxu0 0.0
        %375 = vmatprep.subr.mxu0 0.0
        %376 = vmatpush2.msra.mxu0 0.0
        %377 = vmatprep.subr.mxu0 0.0
        %378 = vmatpush2.msra.mxu0 0.0
        %379 = vmatprep.subr.mxu0 0.0
        %380 = vmatpush2.msra.mxu0 0.0
        %381 = vmatprep.subr.mxu0 0.0
        %382 = vmatpush2.msra.mxu0 0.0
        %383 = vmatprep.subr.mxu0 0.0
        %384 = vmatpush2.msra.mxu0 0.0
        %385 = vmatprep.subr.mxu0 0.0
        %386 = vmatpush2.msra.mxu0 0.0
        %387 = vmatprep.mubr.f32.mxu0 0.0
        %388 = vmatmul.mubr.f32.gmra.mxu0 %v296
        %v389 = vpop.f32.mrf.mxu0
        %v390 = vadd.f32 %v292, %v389
        %v391 = vpop.f32.mrf.mxu0
        %v392 = vadd.f32 %v292, %v391
        %393 = vdwg.mxu0
        %394 = vmatprep.subr.mxu0 0.0
        %395 = vmatpush1.msra.mxu0 0.0
        %396 = vmatprep.subr.mxu0 0.0
        %397 = vmatpush1.msra.mxu0 0.0
        %398 = vmatprep.subr.mxu0 0.0
        %399 = vmatpush1.msra.mxu0 0.0
        %400 = vmatprep.subr.mxu0 0.0
        %401 = vmatpush1.msra.mxu0 0.0
        %402 = vmatprep.subr.mxu0 0.0
        %403 = vmatpush1.msra.mxu0 0.0
        %404 = vmatprep.subr.mxu0 0.0
        %405 = vmatpush1.msra.mxu0 0.0
        %406 = vmatprep.subr.mxu0 0.0
        %407 = vmatpush1.msra.mxu0 0.0
        %408 = vmatprep.subr.mxu0 0.0
        %409 = vmatpush1.msra.mxu0 0.0
        %410 = vmatprep.subr.mxu0 0.0
        %411 = vmatpush1.msra.mxu0 0.0
        %412 = vmatprep.subr.mxu0 0.0
        %413 = vmatpush1.msra.mxu0 0.0
        %414 = vmatprep.subr.mxu0 0.0
        %415 = vmatpush1.msra.mxu0 0.0
        %416 = vmatprep.subr.mxu0 0.0
        %417 = vmatpush1.msra.mxu0 0.0
        %418 = vmatprep.subr.mxu0 %v309
        %419 = vmatpush1.msra.mxu0 %v306
        %420 = vmatprep.subr.mxu0 %v275
        %421 = vmatpush1.msra.mxu0 %v274
        %422 = vmatprep.subr.mxu0 %v267
        %423 = vmatpush1.msra.mxu0 %v266
        %424 = vmatprep.subr.mxu0 %v259
        %425 = vmatpush1.msra.mxu0 %v258
        %426 = vmatprep.subr.mxu0 0.0
        %427 = vmatpush2.msra.mxu0 0.0
        %428 = vmatprep.subr.mxu0 0.0
        %429 = vmatpush2.msra.mxu0 0.0
        %430 = vmatprep.subr.mxu0 0.0
        %431 = vmatpush2.msra.mxu0 0.0
        %432 = vmatprep.subr.mxu0 0.0
        %433 = vmatpush2.msra.mxu0 0.0
        %434 = vmatprep.subr.mxu0 0.0
        %435 = vmatpush2.msra.mxu0 0.0
        %436 = vmatprep.subr.mxu0 0.0
        %437 = vmatpush2.msra.mxu0 0.0
        %438 = vmatprep.subr.mxu0 0.0
        %439 = vmatpush2.msra.mxu0 0.0
        %440 = vmatprep.subr.mxu0 0.0
        %441 = vmatpush2.msra.mxu0 0.0
        %442 = vmatprep.subr.mxu0 0.0
        %443 = vmatpush2.msra.mxu0 0.0
        %444 = vmatprep.subr.mxu0 0.0
        %445 = vmatpush2.msra.mxu0 0.0
        %446 = vmatprep.subr.mxu0 0.0
        %447 = vmatpush2.msra.mxu0 0.0
        %448 = vmatprep.subr.mxu0 0.0
        %449 = vmatpush2.msra.mxu0 0.0
        %450 = vmatprep.subr.mxu0 0.0
        %451 = vmatpush2.msra.mxu0 0.0
        %452 = vmatprep.subr.mxu0 0.0
        %453 = vmatpush2.msra.mxu0 0.0
        %454 = vmatprep.subr.mxu0 0.0
        %455 = vmatpush2.msra.mxu0 0.0
        %456 = vmatprep.subr.mxu0 0.0
        %457 = vmatpush2.msra.mxu0 0.0
        %458 = vmatprep.mubr.f32.mxu0 0.0
        %459 = vmatmul.mubr.f32.gmra.mxu0 %v296
        %v460 = vpop.f32.mrf.mxu0
        %v461 = vadd.f32 %v292, %v460
        %v462 = vpop.f32.mrf.mxu0
        %v463 = vadd.f32 %v292, %v462
        %464 = vdwg.mxu0
        %465 = vmatprep.subr.mxu0 0.0
        %466 = vmatpush1.msra.mxu0 0.0
        %467 = vmatprep.subr.mxu0 0.0
        %468 = vmatpush1.msra.mxu0 0.0
        %469 = vmatprep.subr.mxu0 0.0
        %470 = vmatpush1.msra.mxu0 0.0
        %471 = vmatprep.subr.mxu0 0.0
        %472 = vmatpush1.msra.mxu0 0.0
        %473 = vmatprep.subr.mxu0 0.0
        %474 = vmatpush1.msra.mxu0 0.0
        %475 = vmatprep.subr.mxu0 0.0
        %476 = vmatpush1.msra.mxu0 0.0
        %477 = vmatprep.subr.mxu0 0.0
        %478 = vmatpush1.msra.mxu0 0.0
        %479 = vmatprep.subr.mxu0 0.0
        %480 = vmatpush1.msra.mxu0 0.0
        %481 = vmatprep.subr.mxu0 0.0
        %482 = vmatpush1.msra.mxu0 0.0
        %483 = vmatprep.subr.mxu0 0.0
        %484 = vmatpush1.msra.mxu0 0.0
        %485 = vmatprep.subr.mxu0 0.0
        %486 = vmatpush1.msra.mxu0 0.0
        %487 = vmatprep.subr.mxu0 0.0
        %488 = vmatpush1.msra.mxu0 0.0
        %489 = vmatprep.subr.mxu0 %v315
        %490 = vmatpush1.msra.mxu0 %v312
        %491 = vmatprep.subr.mxu0 %v277
        %492 = vmatpush1.msra.mxu0 %v276
        %493 = vmatprep.subr.mxu0 %v269
        %494 = vmatpush1.msra.mxu0 %v268
        %495 = vmatprep.subr.mxu0 %v261
        %496 = vmatpush1.msra.mxu0 %v260
        %497 = vmatprep.subr.mxu0 0.0
        %498 = vmatpush2.msra.mxu0 0.0
        %499 = vmatprep.subr.mxu0 0.0
        %500 = vmatpush2.msra.mxu0 0.0
        %501 = vmatprep.subr.mxu0 0.0
        %502 = vmatpush2.msra.mxu0 0.0
        %503 = vmatprep.subr.mxu0 0.0
        %504 = vmatpush2.msra.mxu0 0.0
        %505 = vmatprep.subr.mxu0 0.0
        %506 = vmatpush2.msra.mxu0 0.0
        %507 = vmatprep.subr.mxu0 0.0
        %508 = vmatpush2.msra.mxu0 0.0
        %509 = vmatprep.subr.mxu0 0.0
        %510 = vmatpush2.msra.mxu0 0.0
        %511 = vmatprep.subr.mxu0 0.0
        %512 = vmatpush2.msra.mxu0 0.0
        %513 = vmatprep.subr.mxu0 0.0
        %514 = vmatpush2.msra.mxu0 0.0
        %515 = vmatprep.subr.mxu0 0.0
        %516 = vmatpush2.msra.mxu0 0.0
        %517 = vmatprep.subr.mxu0 0.0
        %518 = vmatpush2.msra.mxu0 0.0
        %519 = vmatprep.subr.mxu0 0.0
        %520 = vmatpush2.msra.mxu0 0.0
        %521 = vmatprep.subr.mxu0 0.0
        %522 = vmatpush2.msra.mxu0 0.0
        %523 = vmatprep.subr.mxu0 0.0
        %524 = vmatpush2.msra.mxu0 0.0
        %525 = vmatprep.subr.mxu0 0.0
        %526 = vmatpush2.msra.mxu0 0.0
        %527 = vmatprep.subr.mxu0 0.0
        %528 = vmatpush2.msra.mxu0 0.0
        %529 = vmatprep.mubr.f32.mxu0 0.0
        %530 = vmatmul.mubr.f32.gmra.mxu0 %v296
        %v531 = vpop.f32.mrf.mxu0
        %v532 = vadd.f32 %v292, %v531
        %v533 = vpop.f32.mrf.mxu0
        %v534 = vadd.f32 %v292, %v533
        %535 = vdwg.mxu0
        %536 = vmatprep.subr.mxu0 0.0
        %537 = vmatpush1.msra.mxu0 0.0
        %538 = vmatprep.subr.mxu0 0.0
        %539 = vmatpush1.msra.mxu0 0.0
        %540 = vmatprep.subr.mxu0 0.0
        %541 = vmatpush1.msra.mxu0 0.0
        %542 = vmatprep.subr.mxu0 0.0
        %543 = vmatpush1.msra.mxu0 0.0
        %544 = vmatprep.subr.mxu0 0.0
        %545 = vmatpush1.msra.mxu0 0.0
        %546 = vmatprep.subr.mxu0 0.0
        %547 = vmatpush1.msra.mxu0 0.0
        %548 = vmatprep.subr.mxu0 0.0
        %549 = vmatpush1.msra.mxu0 0.0
        %550 = vmatprep.subr.mxu0 0.0
        %551 = vmatpush1.msra.mxu0 0.0
        %552 = vmatprep.subr.mxu0 0.0
        %553 = vmatpush1.msra.mxu0 0.0
        %554 = vmatprep.subr.mxu0 0.0
        %555 = vmatpush1.msra.mxu0 0.0
        %556 = vmatprep.subr.mxu0 0.0
        %557 = vmatpush1.msra.mxu0 0.0
        %558 = vmatprep.subr.mxu0 0.0
        %559 = vmatpush1.msra.mxu0 0.0
        %560 = vmatprep.subr.mxu0 %v321
        %561 = vmatpush1.msra.mxu0 %v318
        %562 = vmatprep.subr.mxu0 %v279
        %563 = vmatpush1.msra.mxu0 %v278
        %564 = vmatprep.subr.mxu0 %v271
        %565 = vmatpush1.msra.mxu0 %v270
        %566 = vmatprep.subr.mxu0 %v263
        %567 = vmatpush1.msra.mxu0 %v262
        %568 = vmatprep.subr.mxu0 0.0
        %569 = vmatpush2.msra.mxu0 0.0
        %570 = vmatprep.subr.mxu0 0.0
        %571 = vmatpush2.msra.mxu0 0.0
        %572 = vmatprep.subr.mxu0 0.0
        %573 = vmatpush2.msra.mxu0 0.0
        %574 = vmatprep.subr.mxu0 0.0
        %575 = vmatpush2.msra.mxu0 0.0
        %576 = vmatprep.subr.mxu0 0.0
        %577 = vmatpush2.msra.mxu0 0.0
        %578 = vmatprep.subr.mxu0 0.0
        %579 = vmatpush2.msra.mxu0 0.0
        %580 = vmatprep.subr.mxu0 0.0
        %581 = vmatpush2.msra.mxu0 0.0
        %582 = vmatprep.subr.mxu0 0.0
        %583 = vmatpush2.msra.mxu0 0.0
        %584 = vmatprep.subr.mxu0 0.0
        %585 = vmatpush2.msra.mxu0 0.0
        %586 = vmatprep.subr.mxu0 0.0
        %587 = vmatpush2.msra.mxu0 0.0
        %588 = vmatprep.subr.mxu0 0.0
        %589 = vmatpush2.msra.mxu0 0.0
        %590 = vmatprep.subr.mxu0 0.0
        %591 = vmatpush2.msra.mxu0 0.0
        %592 = vmatprep.subr.mxu0 0.0
        %593 = vmatpush2.msra.mxu0 0.0
        %594 = vmatprep.subr.mxu0 0.0
        %595 = vmatpush2.msra.mxu0 0.0
        %596 = vmatprep.subr.mxu0 0.0
        %597 = vmatpush2.msra.mxu0 0.0
        %598 = vmatprep.subr.mxu0 0.0
        %599 = vmatpush2.msra.mxu0 0.0
        %600 = vmatprep.mubr.f32.mxu0 0.0
        %601 = vmatmul.mubr.f32.gmra.mxu0 %v296
        %v602 = vpop.f32.mrf.mxu0
        %v603 = vadd.f32 %v292, %v602
        %v604 = vpop.f32.mrf.mxu0
        %v605 = vadd.f32 %v292, %v604
        %606 = vdwg.mxu0
        %v607 = vmax.f32 %v390, 0.0
        %v608 = vmax.f32 %v392, 0.0
        %v609 = vmax.f32 %v461, 0.0
        %v610 = vmax.f32 %v463, 0.0
        %v611 = vmax.f32 %v532, 0.0
        %v612 = vmax.f32 %v534, 0.0
        %v613 = vmax.f32 %v603, 0.0
        %v614 = vmax.f32 %v605, 0.0
        %615 = vst [vmem:[%s253] sm:$0x1f] %v607
        %616 = vst [vmem:[%s253 + $0x8] sm:$0x1f] %v608
        %617 = vst [vmem:[%s253 + $0x10] sm:$0x1f] %v609
        %618 = vst [vmem:[%s253 + $0x18] sm:$0x1f] %v610
        %619 = vst [vmem:[%s253 + $0x20] sm:$0x1f] %v611
        %620 = vst [vmem:[%s253 + $0x28] sm:$0x1f] %v612
        %621 = vst [vmem:[%s253 + $0x30] sm:$0x1f] %v613
        %622 = vst [vmem:[%s253 + $0x38] sm:$0x1f] %v614
        %s623 = smul.u32 8, %s14
        %p624 = scmp.lt.s32.totalorder %s623, 143
        %s625 = scalar_select %p624, %s623, 143
        %s626 = smul.addr %s625, 8
        %s627 = scalar_lea.vmem %s3, %s626
        // Predicated region
        $region56: #{net_forward.4} parent=50 // pred_check
          %p628 = pneg %p100
        $region57: #{net_forward.4} parent=50 // pred_check_branch
          %630 = sbr.rel (%p628) target = $region59
        $region58: #{net_forward.4} parent=50 // pred_region
          %s631 = smul.u32 8, %s14
        $region59: #{net_forward.4} parent=50 // pred_fallthru
          _
      $region51: #{net_forward.4} parent=5 // pred_fallthru
        _
      %p632 = scmp.le.s32.totalorder 2, %s9
      // Predicated region
      $region60: #{net_forward.4} parent=5 // pred_check
        %p633 = pneg %p632
      $region61: #{net_forward.4} parent=5 // pred_check_branch
        %635 = sbr.rel (%p633) target = $region63
      $region62: #{net_forward.4} parent=5 // pred_region
        %s636 = ssub.s32 %s9, 2
        // Predicated region
        $region64: #{net_forward.4} parent=62 // pred_check
          %p637 = pneg %p106
        $region65: #{net_forward.4} parent=62 // pred_check_branch
          %639 = sbr.rel (%p637) target = $region67
        $region66: #{net_forward.4} parent=62 // pred_region
          %s640 = smul.u32 8, %s15
          %p641 = scmp.lt.s32.totalorder %s640, 143
          %s642 = scalar_select %p641, %s640, 143
          %s643 = smul.addr %s642, 8
          %s644 = scalar_lea.vmem %s3, %s643
        $region67: #{net_forward.4} parent=62 // pred_fallthru
          _
      $region63: #{net_forward.4} parent=5 // pred_fallthru
        _
    $region6: #{net_forward.4} parent=1 // loop_footer
      %s13 = sadd.s32 1, %s9
    $region7: #{net_forward.4} parent=1 // loop_footer_branch
      %8 = sbr.rel target = $region3
    $region8: #{net_forward.4} parent=1 // loop_exit
      _

// kernel: net_forward.5
$region0: #{net_forward.5}
  #allocation0 [shape = 'u32[]', space=smem, size = 0x4, offset = 0x4, fixed_abs, tag = 'smem constant byte address 0x4 - core index']
  #allocation1 [shape = 'u32[144,128]{1,0:T(1,128)}', space=vmem, size = 0x12000, scoped, tag = 'internal scratch']
  %s0 = inlined_call_operand.vmem [shape: f32[3,45], index: 0, kind: input, shape index: {}]
  %s1 = inlined_call_operand.vmem [shape: f32[3,1], index: 1, kind: input, shape index: {}]
  %s2 = inlined_call_operand.vmem [shape: f32[45,6144], index: 2, kind: input, shape index: {}]
  %s3 = inlined_call_operand.vmem [shape: f32[3,6144], index: 3, kind: output, shape index: {}]
  %s4 = sld [smem:[#allocation0]]
  $region68: #{net_forward.5} parent=0
    _
  %s6 = ssub.s32 1, %s4
  %s7 = scalar_select 0, %s6, %s4
  $region1: #{net_forward.5} parent=0
    #allocation2 [shape = 'u8[393216]{0}', space=vmem, size = 0x60000, scoped, tag = 'input window, operand 2']
    loop: start=0, step=1, limit=8
    $region2: #{net_forward.5} parent=1 // loop_pre_header
      _
    $region3: #{net_forward.5} parent=1 // loop_header
      %s9 = sphi 0, %s13
      %p10 = scmp.ge.s32.totalorder %s9, 8
      %s17 = sphi 0, %s17
      %s19 = sphi 0, %s17
      %s20 = sphi 0, %s19
      %s34 = sphi 0, %s20
      %s38 = sphi 0, %s38
      %s40 = sphi 0, %s38
      %s41 = sphi 0, %s40
      %s55 = sphi 0, %s41
      %s61 = sphi 0, %s63
      %s64 = sphi 0, %s61
      %s65 = sphi 0, %s64
      %s81 = sphi 0, %s65
      %s87 = sphi 0, %s89
      %s90 = sphi 0, %s87
      %s91 = sphi 0, %s90
      %s107 = sphi 0, %s91
    $region4: #{net_forward.5} parent=1 // loop_header_branch
      %12 = sbr.rel (%p10) target = $region8
    $region5: #{net_forward.5} parent=1 // loop_body
      %s14 = ssub.s32 %s9, 1
      %s15 = ssub.s32 %s9, 2
      %s16 = sadd.s32 %s9, 1
      %s18 = sadd.s32 %s17, 1
      %p21 = scmp.eq.s32.totalorder %s9, 5
      %p22 = scmp.ne.s32.totalorder %s17, %s19
      %p23 = scmp.eq.s32.totalorder %s9, 0
      %p24 = por %p22, %p23
      %p25 = scmp.ne.s32.totalorder %s17, %s19
      %p26 = scmp.eq.s32.totalorder %s14, 5
      %p27 = por %p25, %p26
      %p28 = scmp.ne.s32.totalorder %s19, %s20
      %p29 = scmp.eq.s32.totalorder %s14, 0
      %p30 = por %p28, %p29
      %p31 = scmp.ne.s32.totalorder %s19, %s20
      %p32 = scmp.eq.s32.totalorder %s15, 5
      %p33 = por %p31, %p32
      %p35 = scmp.ne.s32.totalorder %s20, %s34
      %p36 = scmp.eq.s32.totalorder %s15, 0
      %p37 = por %p35, %p36
      %s39 = sadd.s32 %s38, 1
      %p42 = scmp.eq.s32.totalorder %s9, 5
      %p43 = scmp.ne.s32.totalorder %s38, %s40
      %p44 = scmp.eq.s32.totalorder %s9, 0
      %p45 = por %p43, %p44
      %p46 = scmp.ne.s32.totalorder %s38, %s40
      %p47 = scmp.eq.s32.totalorder %s14, 5
      %p48 = por %p46, %p47
      %p49 = scmp.ne.s32.totalorder %s40, %s41
      %p50 = scmp.eq.s32.totalorder %s14, 0
      %p51 = por %p49, %p50
      %p52 = scmp.ne.s32.totalorder %s40, %s41
      %p53 = scmp.eq.s32.totalorder %s15, 5
      %p54 = por %p52, %p53
      %p56 = scmp.ne.s32.totalorder %s41, %s55
      %p57 = scmp.eq.s32.totalorder %s15, 0
      %p58 = por %p56, %p57
      %s59 = ssub.s32 %s9, %s16
      %p60 = scmp.eq.s32.totalorder %s59, 0
      %s62 = sadd.s32 %s61, 1
      %s63 = scalar_select %p60, %s61, %s62
      %p66 = pneg %p60
      %p67 = scmp.eq.s32.totalorder %s9, 5
      %p68 = por %p66, %p67
      %p69 = scmp.ne.s32.totalorder %s61, %s64
      %p70 = scmp.eq.s32.totalorder %s9, 0
      %p71 = por %p69, %p70
      %p72 = scmp.ne.s32.totalorder %s61, %s64
      %p73 = scmp.eq.s32.totalorder %s14, 5
      %p74 = por %p72, %p73
      %p75 = scmp.ne.s32.totalorder %s64, %s65
      %p76 = scmp.eq.s32.totalorder %s14, 0
      %p77 = por %p75, %p76
      %p78 = scmp.ne.s32.totalorder %s64, %s65
      %p79 = scmp.eq.s32.totalorder %s15, 5
      %p80 = por %p78, %p79
      %p82 = scmp.ne.s32.totalorder %s65, %s81
      %p83 = scmp.eq.s32.totalorder %s15, 0
      %p84 = por %p82, %p83
      %s85 = ssub.s32 %s9, %s16
      %p86 = scmp.eq.s32.totalorder %s85, 0
      %s88 = sadd.s32 %s87, 1
      %s89 = scalar_select %p86, %s87, %s88
      %p92 = pneg %p86
      %p93 = scmp.eq.s32.totalorder %s9, 5
      %p94 = por %p92, %p93
      %p95 = scmp.ne.s32.totalorder %s87, %s90
      %p96 = scmp.eq.s32.totalorder %s9, 0
      %p97 = por %p95, %p96
      %p98 = scmp.ne.s32.totalorder %s87, %s90
      %p99 = scmp.eq.s32.totalorder %s14, 5
      %p100 = por %p98, %p99
      %p101 = scmp.ne.s32.totalorder %s90, %s91
      %p102 = scmp.eq.s32.totalorder %s14, 0
      %p103 = por %p101, %p102
      %p104 = scmp.ne.s32.totalorder %s90, %s91
      %p105 = scmp.eq.s32.totalorder %s15, 5
      %p106 = por %p104, %p105
      %p108 = scmp.ne.s32.totalorder %s91, %s107
      %p109 = scmp.eq.s32.totalorder %s15, 0
      %p110 = por %p108, %p109
      %p111 = scmp.le.s32.totalorder 1, %s9
      %p112 = scmp.lt.s32.totalorder %s9, 7
      %p113 = pnand %p111, %p112
      %p114 = pneg %p113
      // Predicated region
      $region9: #{net_forward.5} parent=5 // pred_check
        _
      $region10: #{net_forward.5} parent=5 // pred_check_branch
        %116 = sbr.rel (%p113) target = $region12
      $region11: #{net_forward.5} parent=5 // pred_region
        %s117 = ssub.s32 %s9, 1
        // Predicated region
        $region13: #{net_forward.5} parent=11 // pred_check
          %p118 = pneg %p30
        $region14: #{net_forward.5} parent=11 // pred_check_branch
          %120 = sbr.rel (%p118) target = $region16
        $region15: #{net_forward.5} parent=11 // pred_region
          _
        $region16: #{net_forward.5} parent=11 // pred_fallthru
          _
        // Predicated region
        $region17: #{net_forward.5} parent=11 // pred_check
          %p121 = pneg %p51
        $region18: #{net_forward.5} parent=11 // pred_check_branch
          %123 = sbr.rel (%p121) target = $region20
        $region19: #{net_forward.5} parent=11 // pred_region
          _
        $region20: #{net_forward.5} parent=11 // pred_fallthru
          _
      $region12: #{net_forward.5} parent=5 // pred_fallthru
        _
      %p124 = scmp.lt.s32.totalorder %s9, 6
      // Predicated region
      $region21: #{net_forward.5} parent=5 // pred_check
        %p125 = pneg %p124
      $region22: #{net_forward.5} parent=5 // pred_check_branch
        %127 = sbr.rel (%p125) target = $region24
      $region23: #{net_forward.5} parent=5 // pred_region
        // Predicated region
        $region25: #{net_forward.5} parent=23 // pred_check
          %p128 = pneg %p71
        $region26: #{net_forward.5} parent=23 // pred_check_branch
          %130 = sbr.rel (%p128) target = $region28
        $region27: #{net_forward.5} parent=23 // pred_region
          %s131 = sand.u32 %s61, 1
          %s132 = sand.u32 %s61, 1
          %s133 = smul.addr %s132, 384
          %s134 = scalar_lea.vmem [#allocation2], %s133
          %s135 = smul.u32 8, %s9
          %s136 = smul.addr %s135, 8
          %s137 = scalar_lea.vmem %s2, %s136
          // Predicated region
          $region29: #{net_forward.5} parent=27 // pred_check
            _
          $region30: #{net_forward.5} parent=27 // pred_check_branch
            %139 = sbr.rel (0) target = $region32
          $region31: #{net_forward.5} parent=27 // pred_region
            // Predicated region
            $region33: #{net_forward.5} parent=31 // pred_check
              _
            $region34: #{net_forward.5} parent=31 // pred_check_branch
              %141 = sbr.rel (0) target = $region36
            $region35: #{net_forward.5} parent=31 // pred_region
              loop: start=0, step=1, limit=1
              $region37: #{net_forward.5} parent=35 // loop_pre_header
                _
              $region38: #{net_forward.5} parent=35 // loop_header
                %s143 = sphi 0, %s147
                %p144 = scmp.ge.s32.totalorder %s143, 1
                %s148 = sphi %s137, %s137
                %s149 = sphi %s134, %s134
              $region39: #{net_forward.5} parent=35 // loop_header_branch
                %146 = sbr.rel (%p144) target = $region43
              $region40: #{net_forward.5} parent=35 // loop_body
                %v150 = vld [vmem:[%s148] sm:$0xff]
                %151 = vst [vmem:[%s149] sm:$0xff] %v150
                %v152 = vld [vmem:[%s148 + $0x8] sm:$0xff]
                %153 = vst [vmem:[%s149 + $0x8] sm:$0xff] %v152
                %v154 = vld [vmem:[%s148 + $0x10] sm:$0xff]
                %155 = vst [vmem:[%s149 + $0x10] sm:$0xff] %v154
                %v156 = vld [vmem:[%s148 + $0x18] sm:$0xff]
                %157 = vst [vmem:[%s149 + $0x18] sm:$0xff] %v156
                %v158 = vld [vmem:[%s148 + $0x20] sm:$0xff]
                %159 = vst [vmem:[%s149 + $0x20] sm:$0xff] %v158
                %v160 = vld [vmem:[%s148 + $0x28] sm:$0xff]
                %161 = vst [vmem:[%s149 + $0x28] sm:$0xff] %v160
                %v162 = vld [vmem:[%s148 + $0x30] sm:$0xff]
                %163 = vst [vmem:[%s149 + $0x30] sm:$0xff] %v162
                %v164 = vld [vmem:[%s148 + $0x38] sm:$0xff]
                %165 = vst [vmem:[%s149 + $0x38] sm:$0xff] %v164
                %v166 = vld [vmem:[%s148 + $0x180] sm:$0xff]
                %167 = vst [vmem:[%s149 + $0x40] sm:$0xff] %v166
                %v168 = vld [vmem:[%s148 + $0x188] sm:$0xff]
                %169 = vst [vmem:[%s149 + $0x48] sm:$0xff] %v168
                %v170 = vld [vmem:[%s148 + $0x190] sm:$0xff]
                %171 = vst [vmem:[%s149 + $0x50] sm:$0xff] %v170
                %v172 = vld [vmem:[%s148 + $0x198] sm:$0xff]
                %173 = vst [vmem:[%s149 + $0x58] sm:$0xff] %v172
                %v174 = vld [vmem:[%s148 + $0x1a0] sm:$0xff]
                %175 = vst [vmem:[%s149 + $0x60] sm:$0xff] %v174
                %v176 = vld [vmem:[%s148 + $0x1a8] sm:$0xff]
                %177 = vst [vmem:[%s149 + $0x68] sm:$0xff] %v176
                %v178 = vld [vmem:[%s148 + $0x1b0] sm:$0xff]
                %179 = vst [vmem:[%s149 + $0x70] sm:$0xff] %v178
                %v180 = vld [vmem:[%s148 + $0x1b8] sm:$0xff]
                %181 = vst [vmem:[%s149 + $0x78] sm:$0xff] %v180
                %v182 = vld [vmem:[%s148 + $0x300] sm:$0xff]
                %183 = vst [vmem:[%s149 + $0x80] sm:$0xff] %v182
                %v184 = vld [vmem:[%s148 + $0x308] sm:$0xff]
                %185 = vst [vmem:[%s149 + $0x88] sm:$0xff] %v184
                %v186 = vld [vmem:[%s148 + $0x310] sm:$0xff]
                %187 = vst [vmem:[%s149 + $0x90] sm:$0xff] %v186
                %v188 = vld [vmem:[%s148 + $0x318] sm:$0xff]
                %189 = vst [vmem:[%s149 + $0x98] sm:$0xff] %v188
                %v190 = vld [vmem:[%s148 + $0x320] sm:$0xff]
                %191 = vst [vmem:[%s149 + $0xa0] sm:$0xff] %v190
                %v192 = vld [vmem:[%s148 + $0x328] sm:$0xff]
                %193 = vst [vmem:[%s149 + $0xa8] sm:$0xff] %v192
                %v194 = vld [vmem:[%s148 + $0x330] sm:$0xff]
                %195 = vst [vmem:[%s149 + $0xb0] sm:$0xff] %v194
                %v196 = vld [vmem:[%s148 + $0x338] sm:$0xff]
                %197 = vst [vmem:[%s149 + $0xb8] sm:$0xff] %v196
                %v198 = vld [vmem:[%s148 + $0x480] sm:$0xff]
                %199 = vst [vmem:[%s149 + $0xc0] sm:$0xff] %v198
                %v200 = vld [vmem:[%s148 + $0x488] sm:$0xff]
                %201 = vst [vmem:[%s149 + $0xc8] sm:$0xff] %v200
                %v202 = vld [vmem:[%s148 + $0x490] sm:$0xff]
                %203 = vst [vmem:[%s149 + $0xd0] sm:$0xff] %v202
                %v204 = vld [vmem:[%s148 + $0x498] sm:$0xff]
                %205 = vst [vmem:[%s149 + $0xd8] sm:$0xff] %v204
                %v206 = vld [vmem:[%s148 + $0x4a0] sm:$0xff]
                %207 = vst [vmem:[%s149 + $0xe0] sm:$0xff] %v206
                %v208 = vld [vmem:[%s148 + $0x4a8] sm:$0xff]
                %209 = vst [vmem:[%s149 + $0xe8] sm:$0xff] %v208
                %v210 = vld [vmem:[%s148 + $0x4b0] sm:$0xff]
                %211 = vst [vmem:[%s149 + $0xf0] sm:$0xff] %v210
                %v212 = vld [vmem:[%s148 + $0x4b8] sm:$0xff]
                %213 = vst [vmem:[%s149 + $0xf8] sm:$0xff] %v212
                %v214 = vld [vmem:[%s148 + $0x600] sm:$0xff]
                %215 = vst [vmem:[%s149 + $0x100] sm:$0xff] %v214
                %v216 = vld [vmem:[%s148 + $0x608] sm:$0xff]
                %217 = vst [vmem:[%s149 + $0x108] sm:$0xff] %v216
                %v218 = vld [vmem:[%s148 + $0x610] sm:$0xff]
                %219 = vst [vmem:[%s149 + $0x110] sm:$0xff] %v218
                %v220 = vld [vmem:[%s148 + $0x618] sm:$0xff]
                %221 = vst [vmem:[%s149 + $0x118] sm:$0xff] %v220
                %v222 = vld [vmem:[%s148 + $0x620] sm:$0xff]
                %223 = vst [vmem:[%s149 + $0x120] sm:$0xff] %v222
                %v224 = vld [vmem:[%s148 + $0x628] sm:$0xff]
                %225 = vst [vmem:[%s149 + $0x128] sm:$0xff] %v224
                %v226 = vld [vmem:[%s148 + $0x630] sm:$0xff]
                %227 = vst [vmem:[%s149 + $0x130] sm:$0xff] %v226
                %v228 = vld [vmem:[%s148 + $0x638] sm:$0xff]
                %229 = vst [vmem:[%s149 + $0x138] sm:$0xff] %v228
                %v230 = vld [vmem:[%s148 + $0x780] sm:$0xff]
                %231 = vst [vmem:[%s149 + $0x140] sm:$0xff] %v230
                %v232 = vld [vmem:[%s148 + $0x788] sm:$0xff]
                %233 = vst [vmem:[%s149 + $0x148] sm:$0xff] %v232
                %v234 = vld [vmem:[%s148 + $0x790] sm:$0xff]
                %235 = vst [vmem:[%s149 + $0x150] sm:$0xff] %v234
                %v236 = vld [vmem:[%s148 + $0x798] sm:$0xff]
                %237 = vst [vmem:[%s149 + $0x158] sm:$0xff] %v236
                %v238 = vld [vmem:[%s148 + $0x7a0] sm:$0xff]
                %239 = vst [vmem:[%s149 + $0x160] sm:$0xff] %v238
                %v240 = vld [vmem:[%s148 + $0x7a8] sm:$0xff]
                %241 = vst [vmem:[%s149 + $0x168] sm:$0xff] %v240
                %v242 = vld [vmem:[%s148 + $0x7b0] sm:$0xff]
                %243 = vst [vmem:[%s149 + $0x170] sm:$0xff] %v242
                %v244 = vld [vmem:[%s148 + $0x7b8] sm:$0xff]
                %245 = vst [vmem:[%s149 + $0x178] sm:$0xff] %v244
              $region41: #{net_forward.5} parent=35 // loop_footer
                %s147 = sadd.s32 1, %s143
              $region42: #{net_forward.5} parent=35 // loop_footer_branch
                %142 = sbr.rel target = $region38
              $region43: #{net_forward.5} parent=35 // loop_exit
                _
            $region36: #{net_forward.5} parent=31 // pred_fallthru
              _
            // Predicated region
            $region44: #{net_forward.5} parent=31 // pred_check
              _
            $region45: #{net_forward.5} parent=31 // pred_check_branch
              %247 = sbr.rel target = $region47
            $region46: #{net_forward.5} parent=31 // pred_region
              _
            $region47: #{net_forward.5} parent=31 // pred_fallthru
              _
          $region32: #{net_forward.5} parent=27 // pred_fallthru
            _
          %248 = vnop
        $region28: #{net_forward.5} parent=23 // pred_fallthru
          _
      $region24: #{net_forward.5} parent=5 // pred_fallthru
        _
      %p249 = scmp.le.s32.totalorder 1, %s9
      %p250 = scmp.lt.s32.totalorder %s9, 7
      %p251 = pnand %p249, %p250
      %p252 = pneg %p251
      // Predicated region
      $region48: #{net_forward.5} parent=5 // pred_check
        _
      $region49: #{net_forward.5} parent=5 // pred_check_branch
        %254 = sbr.rel (%p251) target = $region51
      $region50: #{net_forward.5} parent=5 // pred_region
        %s255 = ssub.s32 %s9, 1
        %s256 = sand.u32 %s64, 1
        %s257 = sand.u32 %s64, 1
        %s258 = smul.addr %s257, 384
        %s259 = scalar_lea.vmem [#allocation2], %s258
        // Predicated region
        $region52: #{net_forward.5} parent=50 // pred_check
          %p260 = pneg %p77
        $region53: #{net_forward.5} parent=50 // pred_check_branch
          %262 = sbr.rel (%p260) target = $region55
        $region54: #{net_forward.5} parent=50 // pred_region
          _
        $region55: #{net_forward.5} parent=50 // pred_fallthru
          _
        %p263 = pneg %p30
        %p264 = pneg %p27
        %p265 = pneg %p51
        %p266 = pneg %p48
        %s267 = sand.u32 %s64, 1
        %s268 = sand.u32 %s64, 1
        %s269 = smul.addr %s268, 384
        %s270 = scalar_lea.vmem [#allocation2], %s269
        %p271 = pneg %p77
        %p272 = pneg %p74
        %p273 = pneg %p103
        %p274 = pneg %p100
        %s275 = smul.u32 8, %s14
        %p276 = scmp.lt.s32.totalorder %s275, 47
        %s277 = scalar_select %p276, %s275, 47
        %s278 = smul.addr %s277, 4
        %s279 = scalar_lea.vmem %s3, %s278
        %s280 = smul.u32 8, %s14
        %s281 = smul.u32 8, %s14
        %p282 = scmp.lt.s32.totalorder %s281, 47
        %s283 = scalar_select %p282, %s281, 47
        %s284 = smul.addr %s283, 4
        %s285 = scalar_lea.vmem %s3, %s284
        %s286 = smul.u32 8, %s14
        %v287 = vld [vmem:[%s0] sm:$0x7]
        %v288 = vld [vmem:[%s259] sm:$0xff]
        %v289 = vld [vmem:[%s259 + $0x8] sm:$0xff]
        %v290 = vld [vmem:[%s259 + $0x10] sm:$0xff]
        %v291 = vld [vmem:[%s259 + $0x18] sm:$0xff]
        %v292 = vld [vmem:[%s259 + $0x20] sm:$0xff]
        %v293 = vld [vmem:[%s259 + $0x28] sm:$0xff]
        %v294 = vld [vmem:[%s259 + $0x30] sm:$0xff]
        %v295 = vld [vmem:[%s259 + $0x38] sm:$0xff]
        %v296 = vld [vmem:[%s259 + $0x40] sm:$0xff]
        %v297 = vld [vmem:[%s259 + $0x48] sm:$0xff]
        %v298 = vld [vmem:[%s259 + $0x50] sm:$0xff]
        %v299 = vld [vmem:[%s259 + $0x58] sm:$0xff]
        %v300 = vld [vmem:[%s259 + $0x60] sm:$0xff]
        %v301 = vld [vmem:[%s259 + $0x68] sm:$0xff]
        %v302 = vld [vmem:[%s259 + $0x70] sm:$0xff]
        %v303 = vld [vmem:[%s259 + $0x78] sm:$0xff]
        %v304 = vld [vmem:[%s259 + $0x80] sm:$0xff]
        %v305 = vld [vmem:[%s259 + $0x88] sm:$0xff]
        %v306 = vld [vmem:[%s259 + $0x90] sm:$0xff]
        %v307 = vld [vmem:[%s259 + $0x98] sm:$0xff]
        %v308 = vld [vmem:[%s259 + $0xa0] sm:$0xff]
        %v309 = vld [vmem:[%s259 + $0xa8] sm:$0xff]
        %v310 = vld [vmem:[%s259 + $0xb0] sm:$0xff]
        %v311 = vld [vmem:[%s259 + $0xb8] sm:$0xff]
        %v312 = vld [vmem:[%s259 + $0xc0] sm:$0xff]
        %v313 = vld [vmem:[%s259 + $0xc8] sm:$0xff]
        %v314 = vld [vmem:[%s259 + $0xd0] sm:$0xff]
        %v315 = vld [vmem:[%s259 + $0xd8] sm:$0xff]
        %v316 = vld [vmem:[%s259 + $0xe0] sm:$0xff]
        %v317 = vld [vmem:[%s259 + $0xe8] sm:$0xff]
        %v318 = vld [vmem:[%s259 + $0xf0] sm:$0xff]
        %v319 = vld [vmem:[%s259 + $0xf8] sm:$0xff]
        %v320 = vld [vmem:[%s259 + $0x100] sm:$0xff]
        %v321 = vld [vmem:[%s259 + $0x108] sm:$0xff]
        %v322 = vld [vmem:[%s259 + $0x110] sm:$0xff]
        %v323 = vld [vmem:[%s259 + $0x118] sm:$0xff]
        %v324 = vld [vmem:[%s259 + $0x120] sm:$0xff]
        %v325 = vld [vmem:[%s259 + $0x128] sm:$0xff]
        %v326 = vld [vmem:[%s259 + $0x130] sm:$0xff]
        %v327 = vld [vmem:[%s259 + $0x138] sm:$0xff]
        %v328 = vld [vmem:[%s259 + $0x140] sm:$0x1f]
        %v329 = vld [vmem:[%s259 + $0x148] sm:$0x1f]
        %v330 = vld [vmem:[%s259 + $0x150] sm:$0x1f]
        %v331 = vld [vmem:[%s259 + $0x158] sm:$0x1f]
        %v332 = vld [vmem:[%s259 + $0x160] sm:$0x1f]
        %v333 = vld [vmem:[%s259 + $0x168] sm:$0x1f]
        %v334 = vld [vmem:[%s259 + $0x170] sm:$0x1f]
        %v335 = vld [vmem:[%s259 + $0x178] sm:$0x1f]
        %v336 = vld [vmem:[%s1] sm:$0x7]
        %338 = vset.pattern.permute.xlu0 0
        %339 = vperm.xlu0 %338, %v336
        %v340 = vpop.permute.xlu0 %339
        %vm342 = vcmask 367616
        %v344 = vsel %vm342, %v287, 0
        %vm346 = vcmask 1044480
        %v348 = vsel %vm346, %v328, 0
        %v351 = vsel %vm346, %v329, 0
        %v354 = vsel %vm346, %v330, 0
        %v357 = vsel %vm346, %v331, 0
        %v360 = vsel %vm346, %v332, 0
        %v363 = vsel %vm346, %v333, 0
        %v366 = vsel %vm346, %v334, 0
        %v369 = vsel %vm346, %v335, 0
        %371 = vmatprep.subr.mxu0 0.0
        %372 = vmatpush1.msra.mxu0 0.0
        %373 = vmatprep.subr.mxu0 0.0
        %374 = vmatpush1.msra.mxu0 0.0
        %375 = vmatprep.subr.mxu0 0.0
        %376 = vmatpush1.msra.mxu0 0.0
        %377 = vmatprep.subr.mxu0 0.0
        %378 = vmatpush1.msra.mxu0 0.0
        %379 = vmatprep.subr.mxu0 0.0
        %380 = vmatpush1.msra.mxu0 0.0
        %381 = vmatprep.subr.mxu0 0.0
        %382 = vmatpush1.msra.mxu0 0.0
        %383 = vmatprep.subr.mxu0 0.0
        %384 = vmatpush1.msra.mxu0 0.0
        %385 = vmatprep.subr.mxu0 0.0
        %386 = vmatpush1.msra.mxu0 0.0
        %387 = vmatprep.subr.mxu0 0.0
        %388 = vmatpush1.msra.mxu0 0.0
        %389 = vmatprep.subr.mxu0 0.0
        %390 = vmatpush1.msra.mxu0 0.0
        %391 = vmatprep.subr.mxu0 %v351
        %392 = vmatpush1.msra.mxu0 %v348
        %393 = vmatprep.subr.mxu0 %v321
        %394 = vmatpush1.msra.mxu0 %v320
        %395 = vmatprep.subr.mxu0 %v313
        %396 = vmatpush1.msra.mxu0 %v312
        %397 = vmatprep.subr.mxu0 %v305
        %398 = vmatpush1.msra.mxu0 %v304
        %399 = vmatprep.subr.mxu0 %v297
        %400 = vmatpush1.msra.mxu0 %v296
        %401 = vmatprep.subr.mxu0 %v289
        %402 = vmatpush1.msra.mxu0 %v288
        %403 = vmatprep.subr.mxu0 0.0
        %404 = vmatpush2.msra.mxu0 0.0
        %405 = vmatprep.subr.mxu0 0.0
        %406 = vmatpush2.msra.mxu0 0.0
        %407 = vmatprep.subr.mxu0 0.0
        %408 = vmatpush2.msra.mxu0 0.0
        %409 = vmatprep.subr.mxu0 0.0
        %410 = vmatpush2.msra.mxu0 0.0
        %411 = vmatprep.subr.mxu0 0.0
        %412 = vmatpush2.msra.mxu0 0.0
        %413 = vmatprep.subr.mxu0 0.0
        %414 = vmatpush2.msra.mxu0 0.0
        %415 = vmatprep.subr.mxu0 0.0
        %416 = vmatpush2.msra.mxu0 0.0
        %417 = vmatprep.subr.mxu0 0.0
        %418 = vmatpush2.msra.mxu0 0.0
        %419 = vmatprep.subr.mxu0 0.0
        %420 = vmatpush2.msra.mxu0 0.0
        %421 = vmatprep.subr.mxu0 0.0
        %422 = vmatpush2.msra.mxu0 0.0
        %423 = vmatprep.subr.mxu0 0.0
        %424 = vmatpush2.msra.mxu0 0.0
        %425 = vmatprep.subr.mxu0 0.0
        %426 = vmatpush2.msra.mxu0 0.0
        %427 = vmatprep.subr.mxu0 0.0
        %428 = vmatpush2.msra.mxu0 0.0
        %429 = vmatprep.subr.mxu0 0.0
        %430 = vmatpush2.msra.mxu0 0.0
        %431 = vmatprep.subr.mxu0 0.0
        %432 = vmatpush2.msra.mxu0 0.0
        %433 = vmatprep.subr.mxu0 0.0
        %434 = vmatpush2.msra.mxu0 0.0
        %435 = vmatprep.mubr.f32.mxu0 0.0
        %436 = vmatmul.mubr.f32.gmra.mxu0 %v344
        %v437 = vpop.f32.mrf.mxu0
        %v438 = vadd.f32 %v340, %v437
        %v439 = vpop.f32.mrf.mxu0
        %v440 = vadd.f32 %v340, %v439
        %441 = vdwg.mxu0
        %442 = vmatprep.subr.mxu0 0.0
        %443 = vmatpush1.msra.mxu0 0.0
        %444 = vmatprep.subr.mxu0 0.0
        %445 = vmatpush1.msra.mxu0 0.0
        %446 = vmatprep.subr.mxu0 0.0
        %447 = vmatpush1.msra.mxu0 0.0
        %448 = vmatprep.subr.mxu0 0.0
        %449 = vmatpush1.msra.mxu0 0.0
        %450 = vmatprep.subr.mxu0 0.0
        %451 = vmatpush1.msra.mxu0 0.0
        %452 = vmatprep.subr.mxu0 0.0
        %453 = vmatpush1.msra.mxu0 0.0
        %454 = vmatprep.subr.mxu0 0.0
        %455 = vmatpush1.msra.mxu0 0.0
        %456 = vmatprep.subr.mxu0 0.0
        %457 = vmatpush1.msra.mxu0 0.0
        %458 = vmatprep.subr.mxu0 0.0
        %459 = vmatpush1.msra.mxu0 0.0
        %460 = vmatprep.subr.mxu0 0.0
        %461 = vmatpush1.msra.mxu0 0.0
        %462 = vmatprep.subr.mxu0 %v357
        %463 = vmatpush1.msra.mxu0 %v354
        %464 = vmatprep.subr.mxu0 %v323
        %465 = vmatpush1.msra.mxu0 %v322
        %466 = vmatprep.subr.mxu0 %v315
        %467 = vmatpush1.msra.mxu0 %v314
        %468 = vmatprep.subr.mxu0 %v307
        %469 = vmatpush1.msra.mxu0 %v306
        %470 = vmatprep.subr.mxu0 %v299
        %471 = vmatpush1.msra.mxu0 %v298
        %472 = vmatprep.subr.mxu0 %v291
        %473 = vmatpush1.msra.mxu0 %v290
        %474 = vmatprep.subr.mxu0 0.0
        %475 = vmatpush2.msra.mxu0 0.0
        %476 = vmatprep.subr.mxu0 0.0
        %477 = vmatpush2.msra.mxu0 0.0
        %478 = vmatprep.subr.mxu0 0.0
        %479 = vmatpush2.msra.mxu0 0.0
        %480 = vmatprep.subr.mxu0 0.0
        %481 = vmatpush2.msra.mxu0 0.0
        %482 = vmatprep.subr.mxu0 0.0
        %483 = vmatpush2.msra.mxu0 0.0
        %484 = vmatprep.subr.mxu0 0.0
        %485 = vmatpush2.msra.mxu0 0.0
        %486 = vmatprep.subr.mxu0 0.0
        %487 = vmatpush2.msra.mxu0 0.0
        %488 = vmatprep.subr.mxu0 0.0
        %489 = vmatpush2.msra.mxu0 0.0
        %490 = vmatprep.subr.mxu0 0.0
        %491 = vmatpush2.msra.mxu0 0.0
        %492 = vmatprep.subr.mxu0 0.0
        %493 = vmatpush2.msra.mxu0 0.0
        %494 = vmatprep.subr.mxu0 0.0
        %495 = vmatpush2.msra.mxu0 0.0
        %496 = vmatprep.subr.mxu0 0.0
        %497 = vmatpush2.msra.mxu0 0.0
        %498 = vmatprep.subr.mxu0 0.0
        %499 = vmatpush2.msra.mxu0 0.0
        %500 = vmatprep.subr.mxu0 0.0
        %501 = vmatpush2.msra.mxu0 0.0
        %502 = vmatprep.subr.mxu0 0.0
        %503 = vmatpush2.msra.mxu0 0.0
        %504 = vmatprep.subr.mxu0 0.0
        %505 = vmatpush2.msra.mxu0 0.0
        %506 = vmatprep.mubr.f32.mxu0 0.0
        %507 = vmatmul.mubr.f32.gmra.mxu0 %v344
        %v508 = vpop.f32.mrf.mxu0
        %v509 = vadd.f32 %v340, %v508
        %v510 = vpop.f32.mrf.mxu0
        %v511 = vadd.f32 %v340, %v510
        %512 = vdwg.mxu0
        %513 = vmatprep.subr.mxu0 0.0
        %514 = vmatpush1.msra.mxu0 0.0
        %515 = vmatprep.subr.mxu0 0.0
        %516 = vmatpush1.msra.mxu0 0.0
        %517 = vmatprep.subr.mxu0 0.0
        %518 = vmatpush1.msra.mxu0 0.0
        %519 = vmatprep.subr.mxu0 0.0
        %520 = vmatpush1.msra.mxu0 0.0
        %521 = vmatprep.subr.mxu0 0.0
        %522 = vmatpush1.msra.mxu0 0.0
        %523 = vmatprep.subr.mxu0 0.0
        %524 = vmatpush1.msra.mxu0 0.0
        %525 = vmatprep.subr.mxu0 0.0
        %526 = vmatpush1.msra.mxu0 0.0
        %527 = vmatprep.subr.mxu0 0.0
        %528 = vmatpush1.msra.mxu0 0.0
        %529 = vmatprep.subr.mxu0 0.0
        %530 = vmatpush1.msra.mxu0 0.0
        %531 = vmatprep.subr.mxu0 0.0
        %532 = vmatpush1.msra.mxu0 0.0
        %533 = vmatprep.subr.mxu0 %v363
        %534 = vmatpush1.msra.mxu0 %v360
        %535 = vmatprep.subr.mxu0 %v325
        %536 = vmatpush1.msra.mxu0 %v324
        %537 = vmatprep.subr.mxu0 %v317
        %538 = vmatpush1.msra.mxu0 %v316
        %539 = vmatprep.subr.mxu0 %v309
        %540 = vmatpush1.msra.mxu0 %v308
        %541 = vmatprep.subr.mxu0 %v301
        %542 = vmatpush1.msra.mxu0 %v300
        %543 = vmatprep.subr.mxu0 %v293
        %544 = vmatpush1.msra.mxu0 %v292
        %545 = vmatprep.subr.mxu0 0.0
        %546 = vmatpush2.msra.mxu0 0.0
        %547 = vmatprep.subr.mxu0 0.0
        %548 = vmatpush2.msra.mxu0 0.0
        %549 = vmatprep.subr.mxu0 0.0
        %550 = vmatpush2.msra.mxu0 0.0
        %551 = vmatprep.subr.mxu0 0.0
        %552 = vmatpush2.msra.mxu0 0.0
        %553 = vmatprep.subr.mxu0 0.0
        %554 = vmatpush2.msra.mxu0 0.0
        %555 = vmatprep.subr.mxu0 0.0
        %556 = vmatpush2.msra.mxu0 0.0
        %557 = vmatprep.subr.mxu0 0.0
        %558 = vmatpush2.msra.mxu0 0.0
        %559 = vmatprep.subr.mxu0 0.0
        %560 = vmatpush2.msra.mxu0 0.0
        %561 = vmatprep.subr.mxu0 0.0
        %562 = vmatpush2.msra.mxu0 0.0
        %563 = vmatprep.subr.mxu0 0.0
        %564 = vmatpush2.msra.mxu0 0.0
        %565 = vmatprep.subr.mxu0 0.0
        %566 = vmatpush2.msra.mxu0 0.0
        %567 = vmatprep.subr.mxu0 0.0
        %568 = vmatpush2.msra.mxu0 0.0
        %569 = vmatprep.subr.mxu0 0.0
        %570 = vmatpush2.msra.mxu0 0.0
        %571 = vmatprep.subr.mxu0 0.0
        %572 = vmatpush2.msra.mxu0 0.0
        %573 = vmatprep.subr.mxu0 0.0
        %574 = vmatpush2.msra.mxu0 0.0
        %575 = vmatprep.subr.mxu0 0.0
        %576 = vmatpush2.msra.mxu0 0.0
        %577 = vmatprep.mubr.f32.mxu0 0.0
        %578 = vmatmul.mubr.f32.gmra.mxu0 %v344
        %v579 = vpop.f32.mrf.mxu0
        %v580 = vadd.f32 %v340, %v579
        %v581 = vpop.f32.mrf.mxu0
        %v582 = vadd.f32 %v340, %v581
        %583 = vdwg.mxu0
        %584 = vmatprep.subr.mxu0 0.0
        %585 = vmatpush1.msra.mxu0 0.0
        %586 = vmatprep.subr.mxu0 0.0
        %587 = vmatpush1.msra.mxu0 0.0
        %588 = vmatprep.subr.mxu0 0.0
        %589 = vmatpush1.msra.mxu0 0.0
        %590 = vmatprep.subr.mxu0 0.0
        %591 = vmatpush1.msra.mxu0 0.0
        %592 = vmatprep.subr.mxu0 0.0
        %593 = vmatpush1.msra.mxu0 0.0
        %594 = vmatprep.subr.mxu0 0.0
        %595 = vmatpush1.msra.mxu0 0.0
        %596 = vmatprep.subr.mxu0 0.0
        %597 = vmatpush1.msra.mxu0 0.0
        %598 = vmatprep.subr.mxu0 0.0
        %599 = vmatpush1.msra.mxu0 0.0
        %600 = vmatprep.subr.mxu0 0.0
        %601 = vmatpush1.msra.mxu0 0.0
        %602 = vmatprep.subr.mxu0 0.0
        %603 = vmatpush1.msra.mxu0 0.0
        %604 = vmatprep.subr.mxu0 %v369
        %605 = vmatpush1.msra.mxu0 %v366
        %606 = vmatprep.subr.mxu0 %v327
        %607 = vmatpush1.msra.mxu0 %v326
        %608 = vmatprep.subr.mxu0 %v319
        %609 = vmatpush1.msra.mxu0 %v318
        %610 = vmatprep.subr.mxu0 %v311
        %611 = vmatpush1.msra.mxu0 %v310
        %612 = vmatprep.subr.mxu0 %v303
        %613 = vmatpush1.msra.mxu0 %v302
        %614 = vmatprep.subr.mxu0 %v295
        %615 = vmatpush1.msra.mxu0 %v294
        %616 = vmatprep.subr.mxu0 0.0
        %617 = vmatpush2.msra.mxu0 0.0
        %618 = vmatprep.subr.mxu0 0.0
        %619 = vmatpush2.msra.mxu0 0.0
        %620 = vmatprep.subr.mxu0 0.0
        %621 = vmatpush2.msra.mxu0 0.0
        %622 = vmatprep.subr.mxu0 0.0
        %623 = vmatpush2.msra.mxu0 0.0
        %624 = vmatprep.subr.mxu0 0.0
        %625 = vmatpush2.msra.mxu0 0.0
        %626 = vmatprep.subr.mxu0 0.0
        %627 = vmatpush2.msra.mxu0 0.0
        %628 = vmatprep.subr.mxu0 0.0
        %629 = vmatpush2.msra.mxu0 0.0
        %630 = vmatprep.subr.mxu0 0.0
        %631 = vmatpush2.msra.mxu0 0.0
        %632 = vmatprep.subr.mxu0 0.0
        %633 = vmatpush2.msra.mxu0 0.0
        %634 = vmatprep.subr.mxu0 0.0
        %635 = vmatpush2.msra.mxu0 0.0
        %636 = vmatprep.subr.mxu0 0.0
        %637 = vmatpush2.msra.mxu0 0.0
        %638 = vmatprep.subr.mxu0 0.0
        %639 = vmatpush2.msra.mxu0 0.0
        %640 = vmatprep.subr.mxu0 0.0
        %641 = vmatpush2.msra.mxu0 0.0
        %642 = vmatprep.subr.mxu0 0.0
        %643 = vmatpush2.msra.mxu0 0.0
        %644 = vmatprep.subr.mxu0 0.0
        %645 = vmatpush2.msra.mxu0 0.0
        %646 = vmatprep.subr.mxu0 0.0
        %647 = vmatpush2.msra.mxu0 0.0
        %648 = vmatprep.mubr.f32.mxu0 0.0
        %649 = vmatmul.mubr.f32.gmra.mxu0 %v344
        %v650 = vpop.f32.mrf.mxu0
        %v651 = vadd.f32 %v340, %v650
        %v652 = vpop.f32.mrf.mxu0
        %v653 = vadd.f32 %v340, %v652
        %654 = vdwg.mxu0
        %v655 = vmax.f32 %v438, 0.0
        %v656 = vmax.f32 %v440, 0.0
        %v657 = vmax.f32 %v509, 0.0
        %v658 = vmax.f32 %v511, 0.0
        %v659 = vmax.f32 %v580, 0.0
        %v660 = vmax.f32 %v582, 0.0
        %v661 = vmax.f32 %v651, 0.0
        %v662 = vmax.f32 %v653, 0.0
        %v671 = vcombine.low %v655, %v656
        %v672 = vcombine.low %v657, %v658
        %v673 = vcombine.low %v659, %v660
        %v674 = vcombine.low %v661, %v662
        %679 = vst [vmem:[%s285] sm:$0x77] %v671
        %680 = vst [vmem:[%s285 + $0x8] sm:$0x77] %v672
        %681 = vst [vmem:[%s285 + $0x10] sm:$0x77] %v673
        %682 = vst [vmem:[%s285 + $0x18] sm:$0x77] %v674
        %s683 = smul.u32 8, %s14
        %p684 = scmp.lt.s32.totalorder %s683, 47
        %s685 = scalar_select %p684, %s683, 47
        %s686 = smul.addr %s685, 4
        %s687 = scalar_lea.vmem %s3, %s686
        // Predicated region
        $region56: #{net_forward.5} parent=50 // pred_check
          %p688 = pneg %p100
        $region57: #{net_forward.5} parent=50 // pred_check_branch
          %690 = sbr.rel (%p688) target = $region59
        $region58: #{net_forward.5} parent=50 // pred_region
          %s691 = smul.u32 8, %s14
        $region59: #{net_forward.5} parent=50 // pred_fallthru
          _
      $region51: #{net_forward.5} parent=5 // pred_fallthru
        _
      %p692 = scmp.le.s32.totalorder 2, %s9
      // Predicated region
      $region60: #{net_forward.5} parent=5 // pred_check
        %p693 = pneg %p692
      $region61: #{net_forward.5} parent=5 // pred_check_branch
        %695 = sbr.rel (%p693) target = $region63
      $region62: #{net_forward.5} parent=5 // pred_region
        %s696 = ssub.s32 %s9, 2
        // Predicated region
        $region64: #{net_forward.5} parent=62 // pred_check
          %p697 = pneg %p106
        $region65: #{net_forward.5} parent=62 // pred_check_branch
          %699 = sbr.rel (%p697) target = $region67
        $region66: #{net_forward.5} parent=62 // pred_region
          %s700 = smul.u32 8, %s15
          %p701 = scmp.lt.s32.totalorder %s700, 47
          %s702 = scalar_select %p701, %s700, 47
          %s703 = smul.addr %s702, 4
          %s704 = scalar_lea.vmem %s3, %s703
        $region67: #{net_forward.5} parent=62 // pred_fallthru
          _
      $region63: #{net_forward.5} parent=5 // pred_fallthru
        _
    $region6: #{net_forward.5} parent=1 // loop_footer
      %s13 = sadd.s32 1, %s9
    $region7: #{net_forward.5} parent=1 // loop_footer_branch
      %8 = sbr.rel target = $region3
    $region8: #{net_forward.5} parent=1 // loop_exit
      _

// kernel: net_forward.6
$region0: #{net_forward.6}
  #allocation0 [shape = 'u32[]', space=smem, size = 0x4, offset = 0x4, fixed_abs, tag = 'smem constant byte address 0x4 - core index']
  #allocation1 [shape = 'u32[144,128]{1,0:T(1,128)}', space=vmem, size = 0x12000, scoped, tag = 'internal scratch']
  %s0 = inlined_call_operand.vmem [shape: f32[2,12], index: 0, kind: input, shape index: {}]
  %s1 = inlined_call_operand.vmem [shape: f32[2,1], index: 1, kind: input, shape index: {}]
  %s2 = inlined_call_operand.vmem [shape: f32[12,5120], index: 2, kind: input, shape index: {}]
  %s3 = inlined_call_operand.vmem [shape: f32[2,5120], index: 3, kind: output, shape index: {}]
  %s4 = sld [smem:[#allocation0]]
  $region68: #{net_forward.6} parent=0
    _
  %s6 = ssub.s32 1, %s4
  %s7 = scalar_select 0, %s6, %s4
  $region1: #{net_forward.6} parent=0
    #allocation2 [shape = 'u8[131072]{0}', space=vmem, size = 0x20000, scoped, tag = 'input window, operand 2']
    loop: start=0, step=1, limit=7
    $region2: #{net_forward.6} parent=1 // loop_pre_header
      _
    $region3: #{net_forward.6} parent=1 // loop_header
      %s9 = sphi 0, %s13
      %p10 = scmp.ge.s32.totalorder %s9, 7
      %s17 = sphi 0, %s17
      %s19 = sphi 0, %s17
      %s20 = sphi 0, %s19
      %s34 = sphi 0, %s20
      %s38 = sphi 0, %s38
      %s40 = sphi 0, %s38
      %s41 = sphi 0, %s40
      %s55 = sphi 0, %s41
      %s61 = sphi 0, %s63
      %s64 = sphi 0, %s61
      %s65 = sphi 0, %s64
      %s81 = sphi 0, %s65
      %s87 = sphi 0, %s89
      %s90 = sphi 0, %s87
      %s91 = sphi 0, %s90
      %s107 = sphi 0, %s91
    $region4: #{net_forward.6} parent=1 // loop_header_branch
      %12 = sbr.rel (%p10) target = $region8
    $region5: #{net_forward.6} parent=1 // loop_body
      %s14 = ssub.s32 %s9, 1
      %s15 = ssub.s32 %s9, 2
      %s16 = sadd.s32 %s9, 1
      %s18 = sadd.s32 %s17, 1
      %p21 = scmp.eq.s32.totalorder %s9, 4
      %p22 = scmp.ne.s32.totalorder %s17, %s19
      %p23 = scmp.eq.s32.totalorder %s9, 0
      %p24 = por %p22, %p23
      %p25 = scmp.ne.s32.totalorder %s17, %s19
      %p26 = scmp.eq.s32.totalorder %s14, 4
      %p27 = por %p25, %p26
      %p28 = scmp.ne.s32.totalorder %s19, %s20
      %p29 = scmp.eq.s32.totalorder %s14, 0
      %p30 = por %p28, %p29
      %p31 = scmp.ne.s32.totalorder %s19, %s20
      %p32 = scmp.eq.s32.totalorder %s15, 4
      %p33 = por %p31, %p32
      %p35 = scmp.ne.s32.totalorder %s20, %s34
      %p36 = scmp.eq.s32.totalorder %s15, 0
      %p37 = por %p35, %p36
      %s39 = sadd.s32 %s38, 1
      %p42 = scmp.eq.s32.totalorder %s9, 4
      %p43 = scmp.ne.s32.totalorder %s38, %s40
      %p44 = scmp.eq.s32.totalorder %s9, 0
      %p45 = por %p43, %p44
      %p46 = scmp.ne.s32.totalorder %s38, %s40
      %p47 = scmp.eq.s32.totalorder %s14, 4
      %p48 = por %p46, %p47
      %p49 = scmp.ne.s32.totalorder %s40, %s41
      %p50 = scmp.eq.s32.totalorder %s14, 0
      %p51 = por %p49, %p50
      %p52 = scmp.ne.s32.totalorder %s40, %s41
      %p53 = scmp.eq.s32.totalorder %s15, 4
      %p54 = por %p52, %p53
      %p56 = scmp.ne.s32.totalorder %s41, %s55
      %p57 = scmp.eq.s32.totalorder %s15, 0
      %p58 = por %p56, %p57
      %s59 = ssub.s32 %s9, %s16
      %p60 = scmp.eq.s32.totalorder %s59, 0
      %s62 = sadd.s32 %s61, 1
      %s63 = scalar_select %p60, %s61, %s62
      %p66 = pneg %p60
      %p67 = scmp.eq.s32.totalorder %s9, 4
      %p68 = por %p66, %p67
      %p69 = scmp.ne.s32.totalorder %s61, %s64
      %p70 = scmp.eq.s32.totalorder %s9, 0
      %p71 = por %p69, %p70
      %p72 = scmp.ne.s32.totalorder %s61, %s64
      %p73 = scmp.eq.s32.totalorder %s14, 4
      %p74 = por %p72, %p73
      %p75 = scmp.ne.s32.totalorder %s64, %s65
      %p76 = scmp.eq.s32.totalorder %s14, 0
      %p77 = por %p75, %p76
      %p78 = scmp.ne.s32.totalorder %s64, %s65
      %p79 = scmp.eq.s32.totalorder %s15, 4
      %p80 = por %p78, %p79
      %p82 = scmp.ne.s32.totalorder %s65, %s81
      %p83 = scmp.eq.s32.totalorder %s15, 0
      %p84 = por %p82, %p83
      %s85 = ssub.s32 %s9, %s16
      %p86 = scmp.eq.s32.totalorder %s85, 0
      %s88 = sadd.s32 %s87, 1
      %s89 = scalar_select %p86, %s87, %s88
      %p92 = pneg %p86
      %p93 = scmp.eq.s32.totalorder %s9, 4
      %p94 = por %p92, %p93
      %p95 = scmp.ne.s32.totalorder %s87, %s90
      %p96 = scmp.eq.s32.totalorder %s9, 0
      %p97 = por %p95, %p96
      %p98 = scmp.ne.s32.totalorder %s87, %s90
      %p99 = scmp.eq.s32.totalorder %s14, 4
      %p100 = por %p98, %p99
      %p101 = scmp.ne.s32.totalorder %s90, %s91
      %p102 = scmp.eq.s32.totalorder %s14, 0
      %p103 = por %p101, %p102
      %p104 = scmp.ne.s32.totalorder %s90, %s91
      %p105 = scmp.eq.s32.totalorder %s15, 4
      %p106 = por %p104, %p105
      %p108 = scmp.ne.s32.totalorder %s91, %s107
      %p109 = scmp.eq.s32.totalorder %s15, 0
      %p110 = por %p108, %p109
      %p111 = scmp.le.s32.totalorder 1, %s9
      %p112 = scmp.lt.s32.totalorder %s9, 6
      %p113 = pnand %p111, %p112
      %p114 = pneg %p113
      // Predicated region
      $region9: #{net_forward.6} parent=5 // pred_check
        _
      $region10: #{net_forward.6} parent=5 // pred_check_branch
        %116 = sbr.rel (%p113) target = $region12
      $region11: #{net_forward.6} parent=5 // pred_region
        %s117 = ssub.s32 %s9, 1
        // Predicated region
        $region13: #{net_forward.6} parent=11 // pred_check
          %p118 = pneg %p30
        $region14: #{net_forward.6} parent=11 // pred_check_branch
          %120 = sbr.rel (%p118) target = $region16
        $region15: #{net_forward.6} parent=11 // pred_region
          _
        $region16: #{net_forward.6} parent=11 // pred_fallthru
          _
        // Predicated region
        $region17: #{net_forward.6} parent=11 // pred_check
          %p121 = pneg %p51
        $region18: #{net_forward.6} parent=11 // pred_check_branch
          %123 = sbr.rel (%p121) target = $region20
        $region19: #{net_forward.6} parent=11 // pred_region
          _
        $region20: #{net_forward.6} parent=11 // pred_fallthru
          _
      $region12: #{net_forward.6} parent=5 // pred_fallthru
        _
      %p124 = scmp.lt.s32.totalorder %s9, 5
      // Predicated region
      $region21: #{net_forward.6} parent=5 // pred_check
        %p125 = pneg %p124
      $region22: #{net_forward.6} parent=5 // pred_check_branch
        %127 = sbr.rel (%p125) target = $region24
      $region23: #{net_forward.6} parent=5 // pred_region
        // Predicated region
        $region25: #{net_forward.6} parent=23 // pred_check
          %p128 = pneg %p71
        $region26: #{net_forward.6} parent=23 // pred_check_branch
          %130 = sbr.rel (%p128) target = $region28
        $region27: #{net_forward.6} parent=23 // pred_region
          %s131 = sand.u32 %s61, 1
          %s132 = sand.u32 %s61, 1
          %s133 = smul.addr %s132, 128
          %s134 = scalar_lea.vmem [#allocation2], %s133
          %s135 = smul.u32 8, %s9
          %s136 = smul.addr %s135, 8
          %s137 = scalar_lea.vmem %s2, %s136
          // Predicated region
          $region29: #{net_forward.6} parent=27 // pred_check
            _
          $region30: #{net_forward.6} parent=27 // pred_check_branch
            %139 = sbr.rel (0) target = $region32
          $region31: #{net_forward.6} parent=27 // pred_region
            // Predicated region
            $region33: #{net_forward.6} parent=31 // pred_check
              _
            $region34: #{net_forward.6} parent=31 // pred_check_branch
              %141 = sbr.rel (0) target = $region36
            $region35: #{net_forward.6} parent=31 // pred_region
              loop: start=0, step=1, limit=1
              $region37: #{net_forward.6} parent=35 // loop_pre_header
                _
              $region38: #{net_forward.6} parent=35 // loop_header
                %s143 = sphi 0, %s147
                %p144 = scmp.ge.s32.totalorder %s143, 1
                %s148 = sphi %s137, %s137
                %s149 = sphi %s134, %s134
              $region39: #{net_forward.6} parent=35 // loop_header_branch
                %146 = sbr.rel (%p144) target = $region43
              $region40: #{net_forward.6} parent=35 // loop_body
                %v150 = vld [vmem:[%s148] sm:$0xff]
                %151 = vst [vmem:[%s149] sm:$0xff] %v150
                %v152 = vld [vmem:[%s148 + $0x8] sm:$0xff]
                %153 = vst [vmem:[%s149 + $0x8] sm:$0xff] %v152
                %v154 = vld [vmem:[%s148 + $0x10] sm:$0xff]
                %155 = vst [vmem:[%s149 + $0x10] sm:$0xff] %v154
                %v156 = vld [vmem:[%s148 + $0x18] sm:$0xff]
                %157 = vst [vmem:[%s149 + $0x18] sm:$0xff] %v156
                %v158 = vld [vmem:[%s148 + $0x20] sm:$0xff]
                %159 = vst [vmem:[%s149 + $0x20] sm:$0xff] %v158
                %v160 = vld [vmem:[%s148 + $0x28] sm:$0xff]
                %161 = vst [vmem:[%s149 + $0x28] sm:$0xff] %v160
                %v162 = vld [vmem:[%s148 + $0x30] sm:$0xff]
                %163 = vst [vmem:[%s149 + $0x30] sm:$0xff] %v162
                %v164 = vld [vmem:[%s148 + $0x38] sm:$0xff]
                %165 = vst [vmem:[%s149 + $0x38] sm:$0xff] %v164
                %v166 = vld [vmem:[%s148 + $0x140] sm:$0xff]
                %167 = vst [vmem:[%s149 + $0x40] sm:$0xff] %v166
                %v168 = vld [vmem:[%s148 + $0x148] sm:$0xff]
                %169 = vst [vmem:[%s149 + $0x48] sm:$0xff] %v168
                %v170 = vld [vmem:[%s148 + $0x150] sm:$0xff]
                %171 = vst [vmem:[%s149 + $0x50] sm:$0xff] %v170
                %v172 = vld [vmem:[%s148 + $0x158] sm:$0xff]
                %173 = vst [vmem:[%s149 + $0x58] sm:$0xff] %v172
                %v174 = vld [vmem:[%s148 + $0x160] sm:$0xff]
                %175 = vst [vmem:[%s149 + $0x60] sm:$0xff] %v174
                %v176 = vld [vmem:[%s148 + $0x168] sm:$0xff]
                %177 = vst [vmem:[%s149 + $0x68] sm:$0xff] %v176
                %v178 = vld [vmem:[%s148 + $0x170] sm:$0xff]
                %179 = vst [vmem:[%s149 + $0x70] sm:$0xff] %v178
                %v180 = vld [vmem:[%s148 + $0x178] sm:$0xff]
                %181 = vst [vmem:[%s149 + $0x78] sm:$0xff] %v180
              $region41: #{net_forward.6} parent=35 // loop_footer
                %s147 = sadd.s32 1, %s143
              $region42: #{net_forward.6} parent=35 // loop_footer_branch
                %142 = sbr.rel target = $region38
              $region43: #{net_forward.6} parent=35 // loop_exit
                _
            $region36: #{net_forward.6} parent=31 // pred_fallthru
              _
            // Predicated region
            $region44: #{net_forward.6} parent=31 // pred_check
              _
            $region45: #{net_forward.6} parent=31 // pred_check_branch
              %183 = sbr.rel target = $region47
            $region46: #{net_forward.6} parent=31 // pred_region
              _
            $region47: #{net_forward.6} parent=31 // pred_fallthru
              _
          $region32: #{net_forward.6} parent=27 // pred_fallthru
            _
          %184 = vnop
        $region28: #{net_forward.6} parent=23 // pred_fallthru
          _
      $region24: #{net_forward.6} parent=5 // pred_fallthru
        _
      %p185 = scmp.le.s32.totalorder 1, %s9
      %p186 = scmp.lt.s32.totalorder %s9, 6
      %p187 = pnand %p185, %p186
      %p188 = pneg %p187
      // Predicated region
      $region48: #{net_forward.6} parent=5 // pred_check
        _
      $region49: #{net_forward.6} parent=5 // pred_check_branch
        %190 = sbr.rel (%p187) target = $region51
      $region50: #{net_forward.6} parent=5 // pred_region
        %s191 = ssub.s32 %s9, 1
        %s192 = sand.u32 %s64, 1
        %s193 = sand.u32 %s64, 1
        %s194 = smul.addr %s193, 128
        %s195 = scalar_lea.vmem [#allocation2], %s194
        // Predicated region
        $region52: #{net_forward.6} parent=50 // pred_check
          %p196 = pneg %p77
        $region53: #{net_forward.6} parent=50 // pred_check_branch
          %198 = sbr.rel (%p196) target = $region55
        $region54: #{net_forward.6} parent=50 // pred_region
          _
        $region55: #{net_forward.6} parent=50 // pred_fallthru
          _
        %p199 = pneg %p30
        %p200 = pneg %p27
        %p201 = pneg %p51
        %p202 = pneg %p48
        %s203 = sand.u32 %s64, 1
        %s204 = sand.u32 %s64, 1
        %s205 = smul.addr %s204, 128
        %s206 = scalar_lea.vmem [#allocation2], %s205
        %p207 = pneg %p77
        %p208 = pneg %p74
        %p209 = pneg %p103
        %p210 = pneg %p100
        %s211 = smul.u32 8, %s14
        %p212 = scmp.lt.s32.totalorder %s211, 39
        %s213 = scalar_select %p212, %s211, 39
        %s214 = smul.addr %s213, 2
        %s215 = scalar_lea.vmem %s3, %s214
        %s216 = smul.u32 8, %s14
        %s217 = smul.u32 8, %s14
        %p218 = scmp.lt.s32.totalorder %s217, 39
        %s219 = scalar_select %p218, %s217, 39
        %s220 = smul.addr %s219, 2
        %s221 = scalar_lea.vmem %s3, %s220
        %s222 = smul.u32 8, %s14
        %v223 = vld [vmem:[%s0] sm:$0x3]
        %v224 = vld [vmem:[%s195] sm:$0xff]
        %v225 = vld [vmem:[%s195 + $0x8] sm:$0xff]
        %v226 = vld [vmem:[%s195 + $0x10] sm:$0xff]
        %v227 = vld [vmem:[%s195 + $0x18] sm:$0xff]
        %v228 = vld [vmem:[%s195 + $0x20] sm:$0xff]
        %v229 = vld [vmem:[%s195 + $0x28] sm:$0xff]
        %v230 = vld [vmem:[%s195 + $0x30] sm:$0xff]
        %v231 = vld [vmem:[%s195 + $0x38] sm:$0xff]
        %v232 = vld [vmem:[%s195 + $0x40] sm:$0xf]
        %v233 = vld [vmem:[%s195 + $0x48] sm:$0xf]
        %v234 = vld [vmem:[%s195 + $0x50] sm:$0xf]
        %v235 = vld [vmem:[%s195 + $0x58] sm:$0xf]
        %v236 = vld [vmem:[%s195 + $0x60] sm:$0xf]
        %v237 = vld [vmem:[%s195 + $0x68] sm:$0xf]
        %v238 = vld [vmem:[%s195 + $0x70] sm:$0xf]
        %v239 = vld [vmem:[%s195 + $0x78] sm:$0xf]
        %v240 = vld [vmem:[%s1] sm:$0x3]
        %242 = vset.pattern.permute.xlu0 0
        %243 = vperm.xlu0 %242, %v240
        %v244 = vpop.permute.xlu0 %243
        %vm246 = vcmask 97280
        %v248 = vsel %vm246, %v223, 0
        %vm250 = vcmask 1043456
        %v252 = vsel %vm250, %v232, 0
        %v255 = vsel %vm250, %v233, 0
        %v258 = vsel %vm250, %v234, 0
        %v261 = vsel %vm250, %v235, 0
        %v264 = vsel %vm250, %v236, 0
        %v267 = vsel %vm250, %v237, 0
        %v270 = vsel %vm250, %v238, 0
        %v273 = vsel %vm250, %v239, 0
        %275 = vmatprep.subr.mxu0 0.0
        %276 = vmatpush1.msra.mxu0 0.0
        %277 = vmatprep.subr.mxu0 0.0
        %278 = vmatpush1.msra.mxu0 0.0
        %279 = vmatprep.subr.mxu0 0.0
        %280 = vmatpush1.msra.mxu0 0.0
        %281 = vmatprep.subr.mxu0 0.0
        %282 = vmatpush1.msra.mxu0 0.0
        %283 = vmatprep.subr.mxu0 0.0
        %284 = vmatpush1.msra.mxu0 0.0
        %285 = vmatprep.subr.mxu0 0.0
        %286 = vmatpush1.msra.mxu0 0.0
        %287 = vmatprep.subr.mxu0 0.0
        %288 = vmatpush1.msra.mxu0 0.0
        %289 = vmatprep.subr.mxu0 0.0
        %290 = vmatpush1.msra.mxu0 0.0
        %291 = vmatprep.subr.mxu0 0.0
        %292 = vmatpush1.msra.mxu0 0.0
        %293 = vmatprep.subr.mxu0 0.0
        %294 = vmatpush1.msra.mxu0 0.0
        %295 = vmatprep.subr.mxu0 0.0
        %296 = vmatpush1.msra.mxu0 0.0
        %297 = vmatprep.subr.mxu0 0.0
        %298 = vmatpush1.msra.mxu0 0.0
        %299 = vmatprep.subr.mxu0 0.0
        %300 = vmatpush1.msra.mxu0 0.0
        %301 = vmatprep.subr.mxu0 0.0
        %302 = vmatpush1.msra.mxu0 0.0
        %303 = vmatprep.subr.mxu0 %v255
        %304 = vmatpush1.msra.mxu0 %v252
        %305 = vmatprep.subr.mxu0 %v225
        %306 = vmatpush1.msra.mxu0 %v224
        %307 = vmatprep.subr.mxu0 0.0
        %308 = vmatpush2.msra.mxu0 0.0
        %309 = vmatprep.subr.mxu0 0.0
        %310 = vmatpush2.msra.mxu0 0.0
        %311 = vmatprep.subr.mxu0 0.0
        %312 = vmatpush2.msra.mxu0 0.0
        %313 = vmatprep.subr.mxu0 0.0
        %314 = vmatpush2.msra.mxu0 0.0
        %315 = vmatprep.subr.mxu0 0.0
        %316 = vmatpush2.msra.mxu0 0.0
        %317 = vmatprep.subr.mxu0 0.0
        %318 = vmatpush2.msra.mxu0 0.0
        %319 = vmatprep.subr.mxu0 0.0
        %320 = vmatpush2.msra.mxu0 0.0
        %321 = vmatprep.subr.mxu0 0.0
        %322 = vmatpush2.msra.mxu0 0.0
        %323 = vmatprep.subr.mxu0 0.0
        %324 = vmatpush2.msra.mxu0 0.0
        %325 = vmatprep.subr.mxu0 0.0
        %326 = vmatpush2.msra.mxu0 0.0
        %327 = vmatprep.subr.mxu0 0.0
        %328 = vmatpush2.msra.mxu0 0.0
        %329 = vmatprep.subr.mxu0 0.0
        %330 = vmatpush2.msra.mxu0 0.0
        %331 = vmatprep.subr.mxu0 0.0
        %332 = vmatpush2.msra.mxu0 0.0
        %333 = vmatprep.subr.mxu0 0.0
        %334 = vmatpush2.msra.mxu0 0.0
        %335 = vmatprep.subr.mxu0 0.0
        %336 = vmatpush2.msra.mxu0 0.0
        %337 = vmatprep.subr.mxu0 0.0
        %338 = vmatpush2.msra.mxu0 0.0
        %339 = vmatprep.mubr.f32.mxu0 0.0
        %340 = vmatmul.mubr.f32.gmra.mxu0 %v248
        %v341 = vpop.f32.mrf.mxu0
        %v342 = vadd.f32 %v244, %v341
        %v343 = vpop.f32.mrf.mxu0
        %v344 = vadd.f32 %v244, %v343
        %345 = vdwg.mxu0
        %346 = vmatprep.subr.mxu0 0.0
        %347 = vmatpush1.msra.mxu0 0.0
        %348 = vmatprep.subr.mxu0 0.0
        %349 = vmatpush1.msra.mxu0 0.0
        %350 = vmatprep.subr.mxu0 0.0
        %351 = vmatpush1.msra.mxu0 0.0
        %352 = vmatprep.subr.mxu0 0.0
        %353 = vmatpush1.msra.mxu0 0.0
        %354 = vmatprep.subr.mxu0 0.0
        %355 = vmatpush1.msra.mxu0 0.0
        %356 = vmatprep.subr.mxu0 0.0
        %357 = vmatpush1.msra.mxu0 0.0
        %358 = vmatprep.subr.mxu0 0.0
        %359 = vmatpush1.msra.mxu0 0.0
        %360 = vmatprep.subr.mxu0 0.0
        %361 = vmatpush1.msra.mxu0 0.0
        %362 = vmatprep.subr.mxu0 0.0
        %363 = vmatpush1.msra.mxu0 0.0
        %364 = vmatprep.subr.mxu0 0.0
        %365 = vmatpush1.msra.mxu0 0.0
        %366 = vmatprep.subr.mxu0 0.0
        %367 = vmatpush1.msra.mxu0 0.0
        %368 = vmatprep.subr.mxu0 0.0
        %369 = vmatpush1.msra.mxu0 0.0
        %370 = vmatprep.subr.mxu0 0.0
        %371 = vmatpush1.msra.mxu0 0.0
        %372 = vmatprep.subr.mxu0 0.0
        %373 = vmatpush1.msra.mxu0 0.0
        %374 = vmatprep.subr.mxu0 %v261
        %375 = vmatpush1.msra.mxu0 %v258
        %376 = vmatprep.subr.mxu0 %v227
        %377 = vmatpush1.msra.mxu0 %v226
        %378 = vmatprep.subr.mxu0 0.0
        %379 = vmatpush2.msra.mxu0 0.0
        %380 = vmatprep.subr.mxu0 0.0
        %381 = vmatpush2.msra.mxu0 0.0
        %382 = vmatprep.subr.mxu0 0.0
        %383 = vmatpush2.msra.mxu0 0.0
        %384 = vmatprep.subr.mxu0 0.0
        %385 = vmatpush2.msra.mxu0 0.0
        %386 = vmatprep.subr.mxu0 0.0
        %387 = vmatpush2.msra.mxu0 0.0
        %388 = vmatprep.subr.mxu0 0.0
        %389 = vmatpush2.msra.mxu0 0.0
        %390 = vmatprep.subr.mxu0 0.0
        %391 = vmatpush2.msra.mxu0 0.0
        %392 = vmatprep.subr.mxu0 0.0
        %393 = vmatpush2.msra.mxu0 0.0
        %394 = vmatprep.subr.mxu0 0.0
        %395 = vmatpush2.msra.mxu0 0.0
        %396 = vmatprep.subr.mxu0 0.0
        %397 = vmatpush2.msra.mxu0 0.0
        %398 = vmatprep.subr.mxu0 0.0
        %399 = vmatpush2.msra.mxu0 0.0
        %400 = vmatprep.subr.mxu0 0.0
        %401 = vmatpush2.msra.mxu0 0.0
        %402 = vmatprep.subr.mxu0 0.0
        %403 = vmatpush2.msra.mxu0 0.0
        %404 = vmatprep.subr.mxu0 0.0
        %405 = vmatpush2.msra.mxu0 0.0
        %406 = vmatprep.subr.mxu0 0.0
        %407 = vmatpush2.msra.mxu0 0.0
        %408 = vmatprep.subr.mxu0 0.0
        %409 = vmatpush2.msra.mxu0 0.0
        %410 = vmatprep.mubr.f32.mxu0 0.0
        %411 = vmatmul.mubr.f32.gmra.mxu0 %v248
        %v412 = vpop.f32.mrf.mxu0
        %v413 = vadd.f32 %v244, %v412
        %v414 = vpop.f32.mrf.mxu0
        %v415 = vadd.f32 %v244, %v414
        %416 = vdwg.mxu0
        %417 = vmatprep.subr.mxu0 0.0
        %418 = vmatpush1.msra.mxu0 0.0
        %419 = vmatprep.subr.mxu0 0.0
        %420 = vmatpush1.msra.mxu0 0.0
        %421 = vmatprep.subr.mxu0 0.0
        %422 = vmatpush1.msra.mxu0 0.0
        %423 = vmatprep.subr.mxu0 0.0
        %424 = vmatpush1.msra.mxu0 0.0
        %425 = vmatprep.subr.mxu0 0.0
        %426 = vmatpush1.msra.mxu0 0.0
        %427 = vmatprep.subr.mxu0 0.0
        %428 = vmatpush1.msra.mxu0 0.0
        %429 = vmatprep.subr.mxu0 0.0
        %430 = vmatpush1.msra.mxu0 0.0
        %431 = vmatprep.subr.mxu0 0.0
        %432 = vmatpush1.msra.mxu0 0.0
        %433 = vmatprep.subr.mxu0 0.0
        %434 = vmatpush1.msra.mxu0 0.0
        %435 = vmatprep.subr.mxu0 0.0
        %436 = vmatpush1.msra.mxu0 0.0
        %437 = vmatprep.subr.mxu0 0.0
        %438 = vmatpush1.msra.mxu0 0.0
        %439 = vmatprep.subr.mxu0 0.0
        %440 = vmatpush1.msra.mxu0 0.0
        %441 = vmatprep.subr.mxu0 0.0
        %442 = vmatpush1.msra.mxu0 0.0
        %443 = vmatprep.subr.mxu0 0.0
        %444 = vmatpush1.msra.mxu0 0.0
        %445 = vmatprep.subr.mxu0 %v267
        %446 = vmatpush1.msra.mxu0 %v264
        %447 = vmatprep.subr.mxu0 %v229
        %448 = vmatpush1.msra.mxu0 %v228
        %449 = vmatprep.subr.mxu0 0.0
        %450 = vmatpush2.msra.mxu0 0.0
        %451 = vmatprep.subr.mxu0 0.0
        %452 = vmatpush2.msra.mxu0 0.0
        %453 = vmatprep.subr.mxu0 0.0
        %454 = vmatpush2.msra.mxu0 0.0
        %455 = vmatprep.subr.mxu0 0.0
        %456 = vmatpush2.msra.mxu0 0.0
        %457 = vmatprep.subr.mxu0 0.0
        %458 = vmatpush2.msra.mxu0 0.0
        %459 = vmatprep.subr.mxu0 0.0
        %460 = vmatpush2.msra.mxu0 0.0
        %461 = vmatprep.subr.mxu0 0.0
        %462 = vmatpush2.msra.mxu0 0.0
        %463 = vmatprep.subr.mxu0 0.0
        %464 = vmatpush2.msra.mxu0 0.0
        %465 = vmatprep.subr.mxu0 0.0
        %466 = vmatpush2.msra.mxu0 0.0
        %467 = vmatprep.subr.mxu0 0.0
        %468 = vmatpush2.msra.mxu0 0.0
        %469 = vmatprep.subr.mxu0 0.0
        %470 = vmatpush2.msra.mxu0 0.0
        %471 = vmatprep.subr.mxu0 0.0
        %472 = vmatpush2.msra.mxu0 0.0
        %473 = vmatprep.subr.mxu0 0.0
        %474 = vmatpush2.msra.mxu0 0.0
        %475 = vmatprep.subr.mxu0 0.0
        %476 = vmatpush2.msra.mxu0 0.0
        %477 = vmatprep.subr.mxu0 0.0
        %478 = vmatpush2.msra.mxu0 0.0
        %479 = vmatprep.subr.mxu0 0.0
        %480 = vmatpush2.msra.mxu0 0.0
        %481 = vmatprep.mubr.f32.mxu0 0.0
        %482 = vmatmul.mubr.f32.gmra.mxu0 %v248
        %v483 = vpop.f32.mrf.mxu0
        %v484 = vadd.f32 %v244, %v483
        %v485 = vpop.f32.mrf.mxu0
        %v486 = vadd.f32 %v244, %v485
        %487 = vdwg.mxu0
        %488 = vmatprep.subr.mxu0 0.0
        %489 = vmatpush1.msra.mxu0 0.0
        %490 = vmatprep.subr.mxu0 0.0
        %491 = vmatpush1.msra.mxu0 0.0
        %492 = vmatprep.subr.mxu0 0.0
        %493 = vmatpush1.msra.mxu0 0.0
        %494 = vmatprep.subr.mxu0 0.0
        %495 = vmatpush1.msra.mxu0 0.0
        %496 = vmatprep.subr.mxu0 0.0
        %497 = vmatpush1.msra.mxu0 0.0
        %498 = vmatprep.subr.mxu0 0.0
        %499 = vmatpush1.msra.mxu0 0.0
        %500 = vmatprep.subr.mxu0 0.0
        %501 = vmatpush1.msra.mxu0 0.0
        %502 = vmatprep.subr.mxu0 0.0
        %503 = vmatpush1.msra.mxu0 0.0
        %504 = vmatprep.subr.mxu0 0.0
        %505 = vmatpush1.msra.mxu0 0.0
        %506 = vmatprep.subr.mxu0 0.0
        %507 = vmatpush1.msra.mxu0 0.0
        %508 = vmatprep.subr.mxu0 0.0
        %509 = vmatpush1.msra.mxu0 0.0
        %510 = vmatprep.subr.mxu0 0.0
        %511 = vmatpush1.msra.mxu0 0.0
        %512 = vmatprep.subr.mxu0 0.0
        %513 = vmatpush1.msra.mxu0 0.0
        %514 = vmatprep.subr.mxu0 0.0
        %515 = vmatpush1.msra.mxu0 0.0
        %516 = vmatprep.subr.mxu0 %v273
        %517 = vmatpush1.msra.mxu0 %v270
        %518 = vmatprep.subr.mxu0 %v231
        %519 = vmatpush1.msra.mxu0 %v230
        %520 = vmatprep.subr.mxu0 0.0
        %521 = vmatpush2.msra.mxu0 0.0
        %522 = vmatprep.subr.mxu0 0.0
        %523 = vmatpush2.msra.mxu0 0.0
        %524 = vmatprep.subr.mxu0 0.0
        %525 = vmatpush2.msra.mxu0 0.0
        %526 = vmatprep.subr.mxu0 0.0
        %527 = vmatpush2.msra.mxu0 0.0
        %528 = vmatprep.subr.mxu0 0.0
        %529 = vmatpush2.msra.mxu0 0.0
        %530 = vmatprep.subr.mxu0 0.0
        %531 = vmatpush2.msra.mxu0 0.0
        %532 = vmatprep.subr.mxu0 0.0
        %533 = vmatpush2.msra.mxu0 0.0
        %534 = vmatprep.subr.mxu0 0.0
        %535 = vmatpush2.msra.mxu0 0.0
        %536 = vmatprep.subr.mxu0 0.0
        %537 = vmatpush2.msra.mxu0 0.0
        %538 = vmatprep.subr.mxu0 0.0
        %539 = vmatpush2.msra.mxu0 0.0
        %540 = vmatprep.subr.mxu0 0.0
        %541 = vmatpush2.msra.mxu0 0.0
        %542 = vmatprep.subr.mxu0 0.0
        %543 = vmatpush2.msra.mxu0 0.0
        %544 = vmatprep.subr.mxu0 0.0
        %545 = vmatpush2.msra.mxu0 0.0
        %546 = vmatprep.subr.mxu0 0.0
        %547 = vmatpush2.msra.mxu0 0.0
        %548 = vmatprep.subr.mxu0 0.0
        %549 = vmatpush2.msra.mxu0 0.0
        %550 = vmatprep.subr.mxu0 0.0
        %551 = vmatpush2.msra.mxu0 0.0
        %552 = vmatprep.mubr.f32.mxu0 0.0
        %553 = vmatmul.mubr.f32.gmra.mxu0 %v248
        %v554 = vpop.f32.mrf.mxu0
        %v555 = vadd.f32 %v244, %v554
        %v556 = vpop.f32.mrf.mxu0
        %v557 = vadd.f32 %v244, %v556
        %558 = vdwg.mxu0
        %v559 = vmax.f32 %v342, 0.0
        %v560 = vmax.f32 %v344, 0.0
        %v561 = vmax.f32 %v413, 0.0
        %v562 = vmax.f32 %v415, 0.0
        %v563 = vmax.f32 %v484, 0.0
        %v564 = vmax.f32 %v486, 0.0
        %v565 = vmax.f32 %v555, 0.0
        %v566 = vmax.f32 %v557, 0.0
        %v575 = vcombine.low %v559, %v560
        %v576 = vcombine.low %v561, %v562
        %v578 = vunpack.c.l.s4 1983009808
        %v579 = vunpack.c.0.s8 %v578
        %v580 = vlaneseq
        %v581 = vshrl.u32 %v580, 7
        %v582 = vsub.s32 %v579, %v581
        %v583 = vrot.slane %v575, %v582
        %v585 = vunpack.c.l.s4 1983009808
        %v586 = vunpack.c.0.s8 %v585
        %v587 = vlaneseq
        %v588 = vshrl.u32 %v587, 7
        %v589 = vsub.s32 %v586, %v588
        %v590 = vrot.slane %v576, %v589
        %v591 = vcombine.low %v583, %v590
        %v592 = vcombine.low %v563, %v564
        %v593 = vcombine.low %v565, %v566
        %v595 = vunpack.c.l.s4 1983009808
        %v596 = vunpack.c.0.s8 %v595
        %v597 = vlaneseq
        %v598 = vshrl.u32 %v597, 7
        %v599 = vsub.s32 %v596, %v598
        %v600 = vrot.slane %v592, %v599
        %v602 = vunpack.c.l.s4 1983009808
        %v603 = vunpack.c.0.s8 %v602
        %v604 = vlaneseq
        %v605 = vshrl.u32 %v604, 7
        %v606 = vsub.s32 %v603, %v605
        %v607 = vrot.slane %v593, %v606
        %v608 = vcombine.low %v600, %v607
        %611 = vst [vmem:[%s221] sm:$0xff] %v591
        %612 = vst [vmem:[%s221 + $0x8] sm:$0xff] %v608
        %s613 = smul.u32 8, %s14
        %p614 = scmp.lt.s32.totalorder %s613, 39
        %s615 = scalar_select %p614, %s613, 39
        %s616 = smul.addr %s615, 2
        %s617 = scalar_lea.vmem %s3, %s616
        // Predicated region
        $region56: #{net_forward.6} parent=50 // pred_check
          %p618 = pneg %p100
        $region57: #{net_forward.6} parent=50 // pred_check_branch
          %620 = sbr.rel (%p618) target = $region59
        $region58: #{net_forward.6} parent=50 // pred_region
          %s621 = smul.u32 8, %s14
        $region59: #{net_forward.6} parent=50 // pred_fallthru
          _
      $region51: #{net_forward.6} parent=5 // pred_fallthru
        _
      %p622 = scmp.le.s32.totalorder 2, %s9
      // Predicated region
      $region60: #{net_forward.6} parent=5 // pred_check
        %p623 = pneg %p622
      $region61: #{net_forward.6} parent=5 // pred_check_branch
        %625 = sbr.rel (%p623) target = $region63
      $region62: #{net_forward.6} parent=5 // pred_region
        %s626 = ssub.s32 %s9, 2
        // Predicated region
        $region64: #{net_forward.6} parent=62 // pred_check
          %p627 = pneg %p106
        $region65: #{net_forward.6} parent=62 // pred_check_branch
          %629 = sbr.rel (%p627) target = $region67
        $region66: #{net_forward.6} parent=62 // pred_region
          %s630 = smul.u32 8, %s15
          %p631 = scmp.lt.s32.totalorder %s630, 39
          %s632 = scalar_select %p631, %s630, 39
          %s633 = smul.addr %s632, 2
          %s634 = scalar_lea.vmem %s3, %s633
        $region67: #{net_forward.6} parent=62 // pred_fallthru
          _
      $region63: #{net_forward.6} parent=5 // pred_fallthru
        _
    $region6: #{net_forward.6} parent=1 // loop_footer
      %s13 = sadd.s32 1, %s9
    $region7: #{net_forward.6} parent=1 // loop_footer_branch
      %8 = sbr.rel target = $region3
    $region8: #{net_forward.6} parent=1 // loop_exit
      _

// kernel: net_forward.7
$region0: #{net_forward.7}
  #allocation0 [shape = 'u32[]', space=smem, size = 0x4, offset = 0x4, fixed_abs, tag = 'smem constant byte address 0x4 - core index']
  #allocation1 [shape = 'u32[144,128]{1,0:T(1,128)}', space=vmem, size = 0x12000, scoped, tag = 'internal scratch']
  #allocation2 [shape = 'f32[4,1254]{1,0:T(4,128)}', space=vmem, size = 0x5000, scoped, tag = 'scratch operand']
  %s0 = inlined_call_operand.vmem [shape: bf16[4,2560], index: 0, kind: input, shape index: {}]
  %s1 = inlined_call_operand.vmem [shape: bf16[2560,1254], index: 1, kind: input, shape index: {}]
  %s2 = inlined_call_operand.vmem [shape: f32[1,1254], index: 2, kind: input, shape index: {}]
  %s3 = inlined_call_operand.vmem [shape: bf16[1254,627], index: 3, kind: input, shape index: {}]
  %s4 = inlined_call_operand.vmem [shape: f32[1,627], index: 4, kind: input, shape index: {}]
  %s5 = inlined_call_operand.vmem [shape: f32[627,32], index: 5, kind: input, shape index: {}]
  %s6 = inlined_call_operand.vmem [shape: f32[1,32], index: 6, kind: input, shape index: {}]
  %s7 = inlined_call_operand.vmem [shape: f32[32,4], index: 7, kind: input, shape index: {}]
  %s8 = inlined_call_operand.vmem [shape: f32[32,4], index: 8, kind: input, shape index: {}]
  %s9 = inlined_call_operand.vmem [shape: f32[1,4], index: 9, kind: input, shape index: {}]
  %s10 = inlined_call_operand.hbm [shape: f32[2,4], index: 10, kind: output, shape index: {}]
  %s11 = sld [smem:[#allocation0]]
  $region81: #{net_forward.7} parent=0
    _
  %s13 = ssub.s32 1, %s11
  %s14 = scalar_select 0, %s13, %s11
  $region1: #{net_forward.7} parent=0
    #allocation3 [shape = 'u8[1024]{0}', space=vmem, size = 0x400, scoped, tag = 'output window, operand 0, single buffered']
    #allocation4 [shape = 's32[2]{0}', space=sflag, size = 0x8, scoped, tag = 'scoped memory for net_forward.7']
    %15 = vsyncpa [#allocation4], 0
    loop: start=0, step=1, limit=7
    $region2: #{net_forward.7} parent=1 // loop_pre_header
      _
    $region3: #{net_forward.7} parent=1 // loop_header
      %s17 = sphi 0, %s21
      %p18 = scmp.ge.s32.totalorder %s17, 7
      %s27 = sphi 0, %s29
      %s30 = sphi 0, %s27
      %s31 = sphi 0, %s30
      %s47 = sphi 0, %s31
      %s53 = sphi 0, %s55
      %s56 = sphi 0, %s53
      %s57 = sphi 0, %s56
      %s73 = sphi 0, %s57
      %s77 = sphi 0, %s77
      %s79 = sphi 0, %s77
      %s80 = sphi 0, %s79
      %s94 = sphi 0, %s80
      %s98 = sphi 0, %s98
      %s100 = sphi 0, %s98
      %s101 = sphi 0, %s100
      %s115 = sphi 0, %s101
      %s119 = sphi 0, %s119
      %s121 = sphi 0, %s119
      %s122 = sphi 0, %s121
      %s136 = sphi 0, %s122
      %s140 = sphi 0, %s140
      %s142 = sphi 0, %s140
      %s143 = sphi 0, %s142
      %s157 = sphi 0, %s143
      %s161 = sphi 0, %s161
      %s163 = sphi 0, %s161
      %s164 = sphi 0, %s163
      %s178 = sphi 0, %s164
      %s182 = sphi 0, %s182
      %s184 = sphi 0, %s182
      %s185 = sphi 0, %s184
      %s199 = sphi 0, %s185
      %s203 = sphi 0, %s203
      %s205 = sphi 0, %s203
      %s206 = sphi 0, %s205
      %s220 = sphi 0, %s206
      %s224 = sphi 0, %s224
      %s226 = sphi 0, %s224
      %s227 = sphi 0, %s226
      %s241 = sphi 0, %s227
      %s245 = sphi 0, %s245
      %s247 = sphi 0, %s245
      %s248 = sphi 0, %s247
      %s262 = sphi 0, %s248
    $region4: #{net_forward.7} parent=1 // loop_header_branch
      %20 = sbr.rel (%p18) target = $region8
    $region5: #{net_forward.7} parent=1 // loop_body
      %s22 = ssub.s32 %s17, 1
      %s23 = ssub.s32 %s17, 2
      %s24 = sadd.s32 %s17, 1
      %s25 = ssub.s32 %s17, %s24
      %p26 = scmp.eq.s32.totalorder %s25, 0
      %s28 = sadd.s32 %s27, 1
      %s29 = scalar_select %p26, %s27, %s28
      %p32 = pneg %p26
      %p33 = scmp.eq.s32.totalorder %s17, 4
      %p34 = por %p32, %p33
      %p35 = scmp.ne.s32.totalorder %s27, %s30
      %p36 = scmp.eq.s32.totalorder %s17, 0
      %p37 = por %p35, %p36
      %p38 = scmp.ne.s32.totalorder %s27, %s30
      %p39 = scmp.eq.s32.totalorder %s22, 4
      %p40 = por %p38, %p39
      %p41 = scmp.ne.s32.totalorder %s30, %s31
      %p42 = scmp.eq.s32.totalorder %s22, 0
      %p43 = por %p41, %p42
      %p44 = scmp.ne.s32.totalorder %s30, %s31
      %p45 = scmp.eq.s32.totalorder %s23, 4
      %p46 = por %p44, %p45
      %p48 = scmp.ne.s32.totalorder %s31, %s47
      %p49 = scmp.eq.s32.totalorder %s23, 0
      %p50 = por %p48, %p49
      %s51 = ssub.s32 %s17, %s24
      %p52 = scmp.eq.s32.totalorder %s51, 0
      %s54 = sadd.s32 %s53, 1
      %s55 = scalar_select %p52, %s53, %s54
      %p58 = pneg %p52
      %p59 = scmp.eq.s32.totalorder %s17, 4
      %p60 = por %p58, %p59
      %p61 = scmp.ne.s32.totalorder %s53, %s56
      %p62 = scmp.eq.s32.totalorder %s17, 0
      %p63 = por %p61, %p62
      %p64 = scmp.ne.s32.totalorder %s53, %s56
      %p65 = scmp.eq.s32.totalorder %s22, 4
      %p66 = por %p64, %p65
      %p67 = scmp.ne.s32.totalorder %s56, %s57
      %p68 = scmp.eq.s32.totalorder %s22, 0
      %p69 = por %p67, %p68
      %p70 = scmp.ne.s32.totalorder %s56, %s57
      %p71 = scmp.eq.s32.totalorder %s23, 4
      %p72 = por %p70, %p71
      %p74 = scmp.ne.s32.totalorder %s57, %s73
      %p75 = scmp.eq.s32.totalorder %s23, 0
      %p76 = por %p74, %p75
      %s78 = sadd.s32 %s77, 1
      %p81 = scmp.eq.s32.totalorder %s17, 4
      %p82 = scmp.ne.s32.totalorder %s77, %s79
      %p83 = scmp.eq.s32.totalorder %s17, 0
      %p84 = por %p82, %p83
      %p85 = scmp.ne.s32.totalorder %s77, %s79
      %p86 = scmp.eq.s32.totalorder %s22, 4
      %p87 = por %p85, %p86
      %p88 = scmp.ne.s32.totalorder %s79, %s80
      %p89 = scmp.eq.s32.totalorder %s22, 0
      %p90 = por %p88, %p89
      %p91 = scmp.ne.s32.totalorder %s79, %s80
      %p92 = scmp.eq.s32.totalorder %s23, 4
      %p93 = por %p91, %p92
      %p95 = scmp.ne.s32.totalorder %s80, %s94
      %p96 = scmp.eq.s32.totalorder %s23, 0
      %p97 = por %p95, %p96
      %s99 = sadd.s32 %s98, 1
      %p102 = scmp.eq.s32.totalorder %s17, 4
      %p103 = scmp.ne.s32.totalorder %s98, %s100
      %p104 = scmp.eq.s32.totalorder %s17, 0
      %p105 = por %p103, %p104
      %p106 = scmp.ne.s32.totalorder %s98, %s100
      %p107 = scmp.eq.s32.totalorder %s22, 4
      %p108 = por %p106, %p107
      %p109 = scmp.ne.s32.totalorder %s100, %s101
      %p110 = scmp.eq.s32.totalorder %s22, 0
      %p111 = por %p109, %p110
      %p112 = scmp.ne.s32.totalorder %s100, %s101
      %p113 = scmp.eq.s32.totalorder %s23, 4
      %p114 = por %p112, %p113
      %p116 = scmp.ne.s32.totalorder %s101, %s115
      %p117 = scmp.eq.s32.totalorder %s23, 0
      %p118 = por %p116, %p117
      %s120 = sadd.s32 %s119, 1
      %p123 = scmp.eq.s32.totalorder %s17, 4
      %p124 = scmp.ne.s32.totalorder %s119, %s121
      %p125 = scmp.eq.s32.totalorder %s17, 0
      %p126 = por %p124, %p125
      %p127 = scmp.ne.s32.totalorder %s119, %s121
      %p128 = scmp.eq.s32.totalorder %s22, 4
      %p129 = por %p127, %p128
      %p130 = scmp.ne.s32.totalorder %s121, %s122
      %p131 = scmp.eq.s32.totalorder %s22, 0
      %p132 = por %p130, %p131
      %p133 = scmp.ne.s32.totalorder %s121, %s122
      %p134 = scmp.eq.s32.totalorder %s23, 4
      %p135 = por %p133, %p134
      %p137 = scmp.ne.s32.totalorder %s122, %s136
      %p138 = scmp.eq.s32.totalorder %s23, 0
      %p139 = por %p137, %p138
      %s141 = sadd.s32 %s140, 1
      %p144 = scmp.eq.s32.totalorder %s17, 4
      %p145 = scmp.ne.s32.totalorder %s140, %s142
      %p146 = scmp.eq.s32.totalorder %s17, 0
      %p147 = por %p145, %p146
      %p148 = scmp.ne.s32.totalorder %s140, %s142
      %p149 = scmp.eq.s32.totalorder %s22, 4
      %p150 = por %p148, %p149
      %p151 = scmp.ne.s32.totalorder %s142, %s143
      %p152 = scmp.eq.s32.totalorder %s22, 0
      %p153 = por %p151, %p152
      %p154 = scmp.ne.s32.totalorder %s142, %s143
      %p155 = scmp.eq.s32.totalorder %s23, 4
      %p156 = por %p154, %p155
      %p158 = scmp.ne.s32.totalorder %s143, %s157
      %p159 = scmp.eq.s32.totalorder %s23, 0
      %p160 = por %p158, %p159
      %s162 = sadd.s32 %s161, 1
      %p165 = scmp.eq.s32.totalorder %s17, 4
      %p166 = scmp.ne.s32.totalorder %s161, %s163
      %p167 = scmp.eq.s32.totalorder %s17, 0
      %p168 = por %p166, %p167
      %p169 = scmp.ne.s32.totalorder %s161, %s163
      %p170 = scmp.eq.s32.totalorder %s22, 4
      %p171 = por %p169, %p170
      %p172 = scmp.ne.s32.totalorder %s163, %s164
      %p173 = scmp.eq.s32.totalorder %s22, 0
      %p174 = por %p172, %p173
      %p175 = scmp.ne.s32.totalorder %s163, %s164
      %p176 = scmp.eq.s32.totalorder %s23, 4
      %p177 = por %p175, %p176
      %p179 = scmp.ne.s32.totalorder %s164, %s178
      %p180 = scmp.eq.s32.totalorder %s23, 0
      %p181 = por %p179, %p180
      %s183 = sadd.s32 %s182, 1
      %p186 = scmp.eq.s32.totalorder %s17, 4
      %p187 = scmp.ne.s32.totalorder %s182, %s184
      %p188 = scmp.eq.s32.totalorder %s17, 0
      %p189 = por %p187, %p188
      %p190 = scmp.ne.s32.totalorder %s182, %s184
      %p191 = scmp.eq.s32.totalorder %s22, 4
      %p192 = por %p190, %p191
      %p193 = scmp.ne.s32.totalorder %s184, %s185
      %p194 = scmp.eq.s32.totalorder %s22, 0
      %p195 = por %p193, %p194
      %p196 = scmp.ne.s32.totalorder %s184, %s185
      %p197 = scmp.eq.s32.totalorder %s23, 4
      %p198 = por %p196, %p197
      %p200 = scmp.ne.s32.totalorder %s185, %s199
      %p201 = scmp.eq.s32.totalorder %s23, 0
      %p202 = por %p200, %p201
      %s204 = sadd.s32 %s203, 1
      %p207 = scmp.eq.s32.totalorder %s17, 4
      %p208 = scmp.ne.s32.totalorder %s203, %s205
      %p209 = scmp.eq.s32.totalorder %s17, 0
      %p210 = por %p208, %p209
      %p211 = scmp.ne.s32.totalorder %s203, %s205
      %p212 = scmp.eq.s32.totalorder %s22, 4
      %p213 = por %p211, %p212
      %p214 = scmp.ne.s32.totalorder %s205, %s206
      %p215 = scmp.eq.s32.totalorder %s22, 0
      %p216 = por %p214, %p215
      %p217 = scmp.ne.s32.totalorder %s205, %s206
      %p218 = scmp.eq.s32.totalorder %s23, 4
      %p219 = por %p217, %p218
      %p221 = scmp.ne.s32.totalorder %s206, %s220
      %p222 = scmp.eq.s32.totalorder %s23, 0
      %p223 = por %p221, %p222
      %s225 = sadd.s32 %s224, 1
      %p228 = scmp.eq.s32.totalorder %s17, 4
      %p229 = scmp.ne.s32.totalorder %s224, %s226
      %p230 = scmp.eq.s32.totalorder %s17, 0
      %p231 = por %p229, %p230
      %p232 = scmp.ne.s32.totalorder %s224, %s226
      %p233 = scmp.eq.s32.totalorder %s22, 4
      %p234 = por %p232, %p233
      %p235 = scmp.ne.s32.totalorder %s226, %s227
      %p236 = scmp.eq.s32.totalorder %s22, 0
      %p237 = por %p235, %p236
      %p238 = scmp.ne.s32.totalorder %s226, %s227
      %p239 = scmp.eq.s32.totalorder %s23, 4
      %p240 = por %p238, %p239
      %p242 = scmp.ne.s32.totalorder %s227, %s241
      %p243 = scmp.eq.s32.totalorder %s23, 0
      %p244 = por %p242, %p243
      %s246 = sadd.s32 %s245, 1
      %p249 = scmp.eq.s32.totalorder %s17, 4
      %p250 = scmp.ne.s32.totalorder %s245, %s247
      %p251 = scmp.eq.s32.totalorder %s17, 0
      %p252 = por %p250, %p251
      %p253 = scmp.ne.s32.totalorder %s245, %s247
      %p254 = scmp.eq.s32.totalorder %s22, 4
      %p255 = por %p253, %p254
      %p256 = scmp.ne.s32.totalorder %s247, %s248
      %p257 = scmp.eq.s32.totalorder %s22, 0
      %p258 = por %p256, %p257
      %p259 = scmp.ne.s32.totalorder %s247, %s248
      %p260 = scmp.eq.s32.totalorder %s23, 4
      %p261 = por %p259, %p260
      %p263 = scmp.ne.s32.totalorder %s248, %s262
      %p264 = scmp.eq.s32.totalorder %s23, 0
      %p265 = por %p263, %p264
      %p266 = scmp.le.s32.totalorder 1, %s17
      %p267 = scmp.lt.s32.totalorder %s17, 6
      %p268 = pnand %p266, %p267
      %p269 = pneg %p268
      // Predicated region
      $region9: #{net_forward.7} parent=5 // pred_check
        _
      $region10: #{net_forward.7} parent=5 // pred_check_branch
        %271 = sbr.rel (%p268) target = $region12
      $region11: #{net_forward.7} parent=5 // pred_region
        %s272 = ssub.s32 %s17, 1
        // Predicated region
        $region13: #{net_forward.7} parent=11 // pred_check
          %p273 = pneg %p90
        $region14: #{net_forward.7} parent=11 // pred_check_branch
          %275 = sbr.rel (%p273) target = $region16
        $region15: #{net_forward.7} parent=11 // pred_region
          _
        $region16: #{net_forward.7} parent=11 // pred_fallthru
          _
        // Predicated region
        $region17: #{net_forward.7} parent=11 // pred_check
          %p276 = pneg %p111
        $region18: #{net_forward.7} parent=11 // pred_check_branch
          %278 = sbr.rel (%p276) target = $region20
        $region19: #{net_forward.7} parent=11 // pred_region
          _
        $region20: #{net_forward.7} parent=11 // pred_fallthru
          _
        // Predicated region
        $region21: #{net_forward.7} parent=11 // pred_check
          %p279 = pneg %p132
        $region22: #{net_forward.7} parent=11 // pred_check_branch
          %281 = sbr.rel (%p279) target = $region24
        $region23: #{net_forward.7} parent=11 // pred_region
          _
        $region24: #{net_forward.7} parent=11 // pred_fallthru
          _
        // Predicated region
        $region25: #{net_forward.7} parent=11 // pred_check
          %p282 = pneg %p153
        $region26: #{net_forward.7} parent=11 // pred_check_branch
          %284 = sbr.rel (%p282) target = $region28
        $region27: #{net_forward.7} parent=11 // pred_region
          _
        $region28: #{net_forward.7} parent=11 // pred_fallthru
          _
        // Predicated region
        $region29: #{net_forward.7} parent=11 // pred_check
          %p285 = pneg %p174
        $region30: #{net_forward.7} parent=11 // pred_check_branch
          %287 = sbr.rel (%p285) target = $region32
        $region31: #{net_forward.7} parent=11 // pred_region
          _
        $region32: #{net_forward.7} parent=11 // pred_fallthru
          _
        // Predicated region
        $region33: #{net_forward.7} parent=11 // pred_check
          %p288 = pneg %p195
        $region34: #{net_forward.7} parent=11 // pred_check_branch
          %290 = sbr.rel (%p288) target = $region36
        $region35: #{net_forward.7} parent=11 // pred_region
          _
        $region36: #{net_forward.7} parent=11 // pred_fallthru
          _
        // Predicated region
        $region37: #{net_forward.7} parent=11 // pred_check
          %p291 = pneg %p216
        $region38: #{net_forward.7} parent=11 // pred_check_branch
          %293 = sbr.rel (%p291) target = $region40
        $region39: #{net_forward.7} parent=11 // pred_region
          _
        $region40: #{net_forward.7} parent=11 // pred_fallthru
          _
        // Predicated region
        $region41: #{net_forward.7} parent=11 // pred_check
          %p294 = pneg %p237
        $region42: #{net_forward.7} parent=11 // pred_check_branch
          %296 = sbr.rel (%p294) target = $region44
        $region43: #{net_forward.7} parent=11 // pred_region
          _
        $region44: #{net_forward.7} parent=11 // pred_fallthru
          _
      $region12: #{net_forward.7} parent=5 // pred_fallthru
        _
      %p297 = scmp.lt.s32.totalorder %s17, 5
      // Predicated region
      $region45: #{net_forward.7} parent=5 // pred_check
        %p298 = pneg %p297
      $region46: #{net_forward.7} parent=5 // pred_check_branch
        %300 = sbr.rel (%p298) target = $region48
      $region47: #{net_forward.7} parent=5 // pred_region
        // Predicated region
        $region49: #{net_forward.7} parent=47 // pred_check
          %p301 = pneg %p37
        $region50: #{net_forward.7} parent=47 // pred_check_branch
          %303 = sbr.rel (%p301) target = $region52
        $region51: #{net_forward.7} parent=47 // pred_region
          %s304 = smul.u32 4, %s17
          %p305 = scmp.lt.s32.totalorder %s304, 19
          %s306 = scalar_select %p305, %s304, 19
          %s307 = smul.addr %s306, 2
          %s308 = scalar_lea.vmem %s0, %s307
          %s309 = smul.u32 4, %s17
        $region52: #{net_forward.7} parent=47 // pred_fallthru
          _
        // Predicated region
        $region53: #{net_forward.7} parent=47 // pred_check
          %p310 = pneg %p63
        $region54: #{net_forward.7} parent=47 // pred_check_branch
          %312 = sbr.rel (%p310) target = $region56
        $region55: #{net_forward.7} parent=47 // pred_region
          %s313 = smul.u32 64, %s17
          %p314 = scmp.lt.s32.totalorder %s313, 319
          %s315 = scalar_select %p314, %s313, 319
          %s316 = smul.addr %s315, 10
          %s317 = smul.addr %s316, 4
          %s318 = scalar_lea.vmem %s1, %s317
          %s319 = smul.u32 64, %s17
        $region56: #{net_forward.7} parent=47 // pred_fallthru
          _
      $region48: #{net_forward.7} parent=5 // pred_fallthru
        _
      %p320 = scmp.le.s32.totalorder 1, %s17
      %p321 = scmp.lt.s32.totalorder %s17, 6
      %p322 = pnand %p320, %p321
      %p323 = pneg %p322
      // Predicated region
      $region57: #{net_forward.7} parent=5 // pred_check
        _
      $region58: #{net_forward.7} parent=5 // pred_check_branch
        %325 = sbr.rel (%p322) target = $region60
      $region59: #{net_forward.7} parent=5 // pred_region
        %s326 = ssub.s32 %s17, 1
        %s327 = smul.u32 4, %s22
        %p328 = scmp.lt.s32.totalorder %s327, 19
        %s329 = scalar_select %p328, %s327, 19
        %s330 = smul.addr %s329, 2
        %s331 = scalar_lea.vmem %s0, %s330
        %p332 = pneg %p43
        %p333 = pneg %p40
        %s334 = smul.u32 64, %s22
        %p335 = scmp.lt.s32.totalorder %s334, 319
        %s336 = scalar_select %p335, %s334, 319
        %s337 = smul.addr %s336, 10
        %s338 = smul.addr %s337, 4
        %s339 = scalar_lea.vmem %s1, %s338
        %p340 = pneg %p69
        %p341 = pneg %p66
        %p342 = pneg %p90
        %p343 = pneg %p87
        %p344 = pneg %p111
        %p345 = pneg %p108
        %p346 = pneg %p132
        %p347 = pneg %p129
        %p348 = pneg %p153
        %p349 = pneg %p150
        %p350 = pneg %p174
        %p351 = pneg %p171
        %p352 = pneg %p195
        %p353 = pneg %p192
        %p354 = pneg %p216
        %p355 = pneg %p213
        %p356 = pneg %p237
        %p357 = pneg %p234
        %p358 = pneg %p258
        %p359 = pneg %p255
        %s360 = smul.u32 4, %s22
        %p361 = scmp.lt.s32.totalorder %s360, 19
        %s362 = scalar_select %p361, %s360, 19
        %s363 = smul.addr %s362, 2
        %s364 = scalar_lea.vmem %s0, %s363
        %s365 = smul.u32 4, %s22
        %s366 = smul.u32 64, %s22
        %p367 = scmp.lt.s32.totalorder %s366, 319
        %s368 = scalar_select %p367, %s366, 319
        %s369 = smul.addr %s368, 10
        %s370 = smul.addr %s369, 4
        %s371 = scalar_lea.vmem %s1, %s370
        %s372 = smul.u32 64, %s22
        %p374 = scmp.eq.s32.totalorder %s22, 0
        // Predicated region
        $region61: #{net_forward.7} parent=59 // pred_check
          %p375 = pneg %p374
        $region62: #{net_forward.7} parent=59 // pred_check_branch
          %377 = sbr.rel (%p375) target = $region64
        $region63: #{net_forward.7} parent=59 // pred_region
          %378 = vst [vmem:[#allocation2] sm:$0xff] 0.0
          %379 = vst [vmem:[#allocation2 + $0x8] sm:$0xff] 0.0
          %380 = vst [vmem:[#allocation2 + $0x10] sm:$0xff] 0.0
          %381 = vst [vmem:[#allocation2 + $0x18] sm:$0xff] 0.0
          %vm382 = vcmask 1043456
          %vm383 = vcmask 834564
          %vm384 = vmor %vm383, %vm382
          %385 = vst.msk [vmem:[#allocation2 + $0x20] sm:$0xff] %vm384, 0.0
        $region64: #{net_forward.7} parent=59 // pred_fallthru
          _
        %v386 = vld [vmem:[#allocation2] sm:$0xff]
        %v387 = vld [vmem:[#allocation2 + $0x8] sm:$0xff]
        %v388 = vld [vmem:[#allocation2 + $0x10] sm:$0xff]
        %v389 = vld [vmem:[#allocation2 + $0x18] sm:$0xff]
        %v390 = vld [vmem:[#allocation2 + $0x20] sm:$0xff]
        %v391 = vld [vmem:[%s364] sm:$0xff]
        %v392 = vld [vmem:[%s371] sm:$0xff]
        %v393 = vld [vmem:[%s371 + $0x8] sm:$0xff]
        %v394 = vld [vmem:[%s371 + $0x10] sm:$0xff]
        %v395 = vld [vmem:[%s371 + $0x18] sm:$0xff]
        %v396 = vld [vmem:[%s371 + $0x20] sm:$0xff]
        %v397 = vld [vmem:[%s371 + $0x28] sm:$0xff]
        %v398 = vld [vmem:[%s371 + $0x30] sm:$0xff]
        %v399 = vld [vmem:[%s371 + $0x38] sm:$0xff]
        %v400 = vld [vmem:[%s371 + $0x40] sm:$0xff]
        %v401 = vld [vmem:[%s371 + $0x48] sm:$0xff]
        %v402 = vld [vmem:[%s371 + $0x50] sm:$0xff]
        %v403 = vld [vmem:[%s371 + $0x58] sm:$0xff]
        %v404 = vld [vmem:[%s371 + $0x60] sm:$0xff]
        %v405 = vld [vmem:[%s371 + $0x68] sm:$0xff]
        %v406 = vld [vmem:[%s371 + $0x70] sm:$0xff]
        %v407 = vld [vmem:[%s371 + $0x78] sm:$0xff]
        %v408 = vld [vmem:[%s371 + $0x80] sm:$0xff]
        %v409 = vld [vmem:[%s371 + $0x88] sm:$0xff]
        %v410 = vld [vmem:[%s371 + $0x90] sm:$0xff]
        %v411 = vld [vmem:[%s371 + $0x98] sm:$0xff]
        %v412 = vld [vmem:[%s371 + $0xa0] sm:$0xff]
        %v413 = vld [vmem:[%s371 + $0xa8] sm:$0xff]
        %v414 = vld [vmem:[%s371 + $0xb0] sm:$0xff]
        %v415 = vld [vmem:[%s371 + $0xb8] sm:$0xff]
        %v416 = vld [vmem:[%s371 + $0xc0] sm:$0xff]
        %v417 = vld [vmem:[%s371 + $0xc8] sm:$0xff]
        %v418 = vld [vmem:[%s371 + $0xd0] sm:$0xff]
        %v419 = vld [vmem:[%s371 + $0xd8] sm:$0xff]
        %v420 = vld [vmem:[%s371 + $0xe0] sm:$0xff]
        %v421 = vld [vmem:[%s371 + $0xe8] sm:$0xff]
        %v422 = vld [vmem:[%s371 + $0xf0] sm:$0xff]
        %v423 = vld [vmem:[%s371 + $0xf8] sm:$0xff]
        %v424 = vld [vmem:[%s371 + $0x100] sm:$0xff]
        %v425 = vld [vmem:[%s371 + $0x108] sm:$0xff]
        %v426 = vld [vmem:[%s371 + $0x110] sm:$0xff]
        %v427 = vld [vmem:[%s371 + $0x118] sm:$0xff]
        %v428 = vld [vmem:[%s371 + $0x120] sm:$0xff]
        %v429 = vld [vmem:[%s371 + $0x128] sm:$0xff]
        %v430 = vld [vmem:[%s371 + $0x130] sm:$0xff]
        %v431 = vld [vmem:[%s371 + $0x138] sm:$0xff]
        %v432 = vld [vmem:[%s371 + $0x140] sm:$0xff]
        %v433 = vld [vmem:[%s371 + $0x148] sm:$0xff]
        %v434 = vld [vmem:[%s371 + $0x150] sm:$0xff]
        %v435 = vld [vmem:[%s371 + $0x158] sm:$0xff]
        %v436 = vld [vmem:[%s371 + $0x160] sm:$0xff]
        %v437 = vld [vmem:[%s371 + $0x168] sm:$0xff]
        %v438 = vld [vmem:[%s371 + $0x170] sm:$0xff]
        %v439 = vld [vmem:[%s371 + $0x178] sm:$0xff]
        %v440 = vld [vmem:[%s371 + $0x180] sm:$0xff]
        %v441 = vld [vmem:[%s371 + $0x188] sm:$0xff]
        %v442 = vld [vmem:[%s371 + $0x190] sm:$0xff]
        %v443 = vld [vmem:[%s371 + $0x198] sm:$0xff]
        %v444 = vld [vmem:[%s371 + $0x1a0] sm:$0xff]
        %v445 = vld [vmem:[%s371 + $0x1a8] sm:$0xff]
        %v446 = vld [vmem:[%s371 + $0x1b0] sm:$0xff]
        %v447 = vld [vmem:[%s371 + $0x1b8] sm:$0xff]
        %v448 = vld [vmem:[%s371 + $0x1c0] sm:$0xff]
        %v449 = vld [vmem:[%s371 + $0x1c8] sm:$0xff]
        %v450 = vld [vmem:[%s371 + $0x1d0] sm:$0xff]
        %v451 = vld [vmem:[%s371 + $0x1d8] sm:$0xff]
        %v452 = vld [vmem:[%s371 + $0x1e0] sm:$0xff]
        %v453 = vld [vmem:[%s371 + $0x1e8] sm:$0xff]
        %v454 = vld [vmem:[%s371 + $0x1f0] sm:$0xff]
        %v455 = vld [vmem:[%s371 + $0x1f8] sm:$0xff]
        %v456 = vld [vmem:[%s371 + $0x200] sm:$0xff]
        %v457 = vld [vmem:[%s371 + $0x208] sm:$0xff]
        %v458 = vld [vmem:[%s371 + $0x210] sm:$0xff]
        %v459 = vld [vmem:[%s371 + $0x218] sm:$0xff]
        %v460 = vld [vmem:[%s371 + $0x220] sm:$0xff]
        %v461 = vld [vmem:[%s371 + $0x228] sm:$0xff]
        %v462 = vld [vmem:[%s371 + $0x230] sm:$0xff]
        %v463 = vld [vmem:[%s371 + $0x238] sm:$0xff]
        %v464 = vld [vmem:[%s371 + $0x240] sm:$0xff]
        %v465 = vld [vmem:[%s371 + $0x248] sm:$0xff]
        %v466 = vld [vmem:[%s371 + $0x250] sm:$0xff]
        %v467 = vld [vmem:[%s371 + $0x258] sm:$0xff]
        %v468 = vld [vmem:[%s371 + $0x260] sm:$0xff]
        %v469 = vld [vmem:[%s371 + $0x268] sm:$0xff]
        %v470 = vld [vmem:[%s371 + $0x270] sm:$0xff]
        %v471 = vld [vmem:[%s371 + $0x278] sm:$0xff]
        %v472 = vld [vmem:[%s371 + $0x280] sm:$0xff]
        %v473 = vld [vmem:[%s371 + $0x288] sm:$0xff]
        %v474 = vld [vmem:[%s371 + $0x290] sm:$0xff]
        %v475 = vld [vmem:[%s371 + $0x298] sm:$0xff]
        %v476 = vld [vmem:[%s371 + $0x2a0] sm:$0xff]
        %v477 = vld [vmem:[%s371 + $0x2a8] sm:$0xff]
        %v478 = vld [vmem:[%s371 + $0x2b0] sm:$0xff]
        %v479 = vld [vmem:[%s371 + $0x2b8] sm:$0xff]
        %v480 = vld [vmem:[%s371 + $0x2c0] sm:$0xff]
        %v481 = vld [vmem:[%s371 + $0x2c8] sm:$0xff]
        %v482 = vld [vmem:[%s371 + $0x2d0] sm:$0xff]
        %v483 = vld [vmem:[%s371 + $0x2d8] sm:$0xff]
        %v484 = vld [vmem:[%s371 + $0x2e0] sm:$0xff]
        %v485 = vld [vmem:[%s371 + $0x2e8] sm:$0xff]
        %v486 = vld [vmem:[%s371 + $0x2f0] sm:$0xff]
        %v487 = vld [vmem:[%s371 + $0x2f8] sm:$0xff]
        %v488 = vld [vmem:[%s371 + $0x300] sm:$0xff]
        %v489 = vld [vmem:[%s371 + $0x308] sm:$0xff]
        %v490 = vld [vmem:[%s371 + $0x310] sm:$0xff]
        %v491 = vld [vmem:[%s371 + $0x318] sm:$0xff]
        %v492 = vld [vmem:[%s371 + $0x320] sm:$0xff]
        %v493 = vld [vmem:[%s371 + $0x328] sm:$0xff]
        %v494 = vld [vmem:[%s371 + $0x330] sm:$0xff]
        %v495 = vld [vmem:[%s371 + $0x338] sm:$0xff]
        %v496 = vld [vmem:[%s371 + $0x340] sm:$0xff]
        %v497 = vld [vmem:[%s371 + $0x348] sm:$0xff]
        %v498 = vld [vmem:[%s371 + $0x350] sm:$0xff]
        %v499 = vld [vmem:[%s371 + $0x358] sm:$0xff]
        %v500 = vld [vmem:[%s371 + $0x360] sm:$0xff]
        %v501 = vld [vmem:[%s371 + $0x368] sm:$0xff]
        %v502 = vld [vmem:[%s371 + $0x370] sm:$0xff]
        %v503 = vld [vmem:[%s371 + $0x378] sm:$0xff]
        %v504 = vld [vmem:[%s371 + $0x380] sm:$0xff]
        %v505 = vld [vmem:[%s371 + $0x388] sm:$0xff]
        %v506 = vld [vmem:[%s371 + $0x390] sm:$0xff]
        %v507 = vld [vmem:[%s371 + $0x398] sm:$0xff]
        %v508 = vld [vmem:[%s371 + $0x3a0] sm:$0xff]
        %v509 = vld [vmem:[%s371 + $0x3a8] sm:$0xff]
        %v510 = vld [vmem:[%s371 + $0x3b0] sm:$0xff]
        %v511 = vld [vmem:[%s371 + $0x3b8] sm:$0xff]
        %v512 = vld [vmem:[%s371 + $0x3c0] sm:$0xff]
        %v513 = vld [vmem:[%s371 + $0x3c8] sm:$0xff]
        %v514 = vld [vmem:[%s371 + $0x3d0] sm:$0xff]
        %v515 = vld [vmem:[%s371 + $0x3d8] sm:$0xff]
        %v516 = vld [vmem:[%s371 + $0x3e0] sm:$0xff]
        %v517 = vld [vmem:[%s371 + $0x3e8] sm:$0xff]
        %v518 = vld [vmem:[%s371 + $0x3f0] sm:$0xff]
        %v519 = vld [vmem:[%s371 + $0x3f8] sm:$0xff]
        %v520 = vld [vmem:[%s371 + $0x400] sm:$0xff]
        %v521 = vld [vmem:[%s371 + $0x408] sm:$0xff]
        %v522 = vld [vmem:[%s371 + $0x410] sm:$0xff]
        %v523 = vld [vmem:[%s371 + $0x418] sm:$0xff]
        %v524 = vld [vmem:[%s371 + $0x420] sm:$0xff]
        %v525 = vld [vmem:[%s371 + $0x428] sm:$0xff]
        %v526 = vld [vmem:[%s371 + $0x430] sm:$0xff]
        %v527 = vld [vmem:[%s371 + $0x438] sm:$0xff]
        %v528 = vld [vmem:[%s371 + $0x440] sm:$0xff]
        %v529 = vld [vmem:[%s371 + $0x448] sm:$0xff]
        %v530 = vld [vmem:[%s371 + $0x450] sm:$0xff]
        %v531 = vld [vmem:[%s371 + $0x458] sm:$0xff]
        %v532 = vld [vmem:[%s371 + $0x460] sm:$0xff]
        %v533 = vld [vmem:[%s371 + $0x468] sm:$0xff]
        %v534 = vld [vmem:[%s371 + $0x470] sm:$0xff]
        %v535 = vld [vmem:[%s371 + $0x478] sm:$0xff]
        %v536 = vld [vmem:[%s371 + $0x480] sm:$0xff]
        %v537 = vld [vmem:[%s371 + $0x488] sm:$0xff]
        %v538 = vld [vmem:[%s371 + $0x490] sm:$0xff]
        %v539 = vld [vmem:[%s371 + $0x498] sm:$0xff]
        %v540 = vld [vmem:[%s371 + $0x4a0] sm:$0xff]
        %v541 = vld [vmem:[%s371 + $0x4a8] sm:$0xff]
        %v542 = vld [vmem:[%s371 + $0x4b0] sm:$0xff]
        %v543 = vld [vmem:[%s371 + $0x4b8] sm:$0xff]
        %v544 = vld [vmem:[%s371 + $0x4c0] sm:$0xff]
        %v545 = vld [vmem:[%s371 + $0x4c8] sm:$0xff]
        %v546 = vld [vmem:[%s371 + $0x4d0] sm:$0xff]
        %v547 = vld [vmem:[%s371 + $0x4d8] sm:$0xff]
        %v548 = vld [vmem:[%s371 + $0x4e0] sm:$0xff]
        %v549 = vld [vmem:[%s371 + $0x4e8] sm:$0xff]
        %v550 = vld [vmem:[%s371 + $0x4f0] sm:$0xff]
        %v551 = vld [vmem:[%s371 + $0x4f8] sm:$0xff]
        %v552 = vld [vmem:[%s371 + $0x500] sm:$0xff]
        %v553 = vld [vmem:[%s371 + $0x508] sm:$0xff]
        %v554 = vld [vmem:[%s371 + $0x510] sm:$0xff]
        %v555 = vld [vmem:[%s371 + $0x518] sm:$0xff]
        %v556 = vld [vmem:[%s371 + $0x520] sm:$0xff]
        %v557 = vld [vmem:[%s371 + $0x528] sm:$0xff]
        %v558 = vld [vmem:[%s371 + $0x530] sm:$0xff]
        %v559 = vld [vmem:[%s371 + $0x538] sm:$0xff]
        %v560 = vld [vmem:[%s371 + $0x540] sm:$0xff]
        %v561 = vld [vmem:[%s371 + $0x548] sm:$0xff]
        %v562 = vld [vmem:[%s371 + $0x550] sm:$0xff]
        %v563 = vld [vmem:[%s371 + $0x558] sm:$0xff]
        %v564 = vld [vmem:[%s371 + $0x560] sm:$0xff]
        %v565 = vld [vmem:[%s371 + $0x568] sm:$0xff]
        %v566 = vld [vmem:[%s371 + $0x570] sm:$0xff]
        %v567 = vld [vmem:[%s371 + $0x578] sm:$0xff]
        %v568 = vld [vmem:[%s371 + $0x580] sm:$0xff]
        %v569 = vld [vmem:[%s371 + $0x588] sm:$0xff]
        %v570 = vld [vmem:[%s371 + $0x590] sm:$0xff]
        %v571 = vld [vmem:[%s371 + $0x598] sm:$0xff]
        %v572 = vld [vmem:[%s371 + $0x5a0] sm:$0xff]
        %v573 = vld [vmem:[%s371 + $0x5a8] sm:$0xff]
        %v574 = vld [vmem:[%s371 + $0x5b0] sm:$0xff]
        %v575 = vld [vmem:[%s371 + $0x5b8] sm:$0xff]
        %v576 = vld [vmem:[%s371 + $0x5c0] sm:$0xff]
        %v577 = vld [vmem:[%s371 + $0x5c8] sm:$0xff]
        %v578 = vld [vmem:[%s371 + $0x5d0] sm:$0xff]
        %v579 = vld [vmem:[%s371 + $0x5d8] sm:$0xff]
        %v580 = vld [vmem:[%s371 + $0x5e0] sm:$0xff]
        %v581 = vld [vmem:[%s371 + $0x5e8] sm:$0xff]
        %v582 = vld [vmem:[%s371 + $0x5f0] sm:$0xff]
        %v583 = vld [vmem:[%s371 + $0x5f8] sm:$0xff]
        %v584 = vld [vmem:[%s371 + $0x600] sm:$0xff]
        %v585 = vld [vmem:[%s371 + $0x608] sm:$0xff]
        %v586 = vld [vmem:[%s371 + $0x610] sm:$0xff]
        %v587 = vld [vmem:[%s371 + $0x618] sm:$0xff]
        %v588 = vld [vmem:[%s371 + $0x620] sm:$0xff]
        %v589 = vld [vmem:[%s371 + $0x628] sm:$0xff]
        %v590 = vld [vmem:[%s371 + $0x630] sm:$0xff]
        %v591 = vld [vmem:[%s371 + $0x638] sm:$0xff]
        %v592 = vld [vmem:[%s371 + $0x640] sm:$0xff]
        %v593 = vld [vmem:[%s371 + $0x648] sm:$0xff]
        %v594 = vld [vmem:[%s371 + $0x650] sm:$0xff]
        %v595 = vld [vmem:[%s371 + $0x658] sm:$0xff]
        %v596 = vld [vmem:[%s371 + $0x660] sm:$0xff]
        %v597 = vld [vmem:[%s371 + $0x668] sm:$0xff]
        %v598 = vld [vmem:[%s371 + $0x670] sm:$0xff]
        %v599 = vld [vmem:[%s371 + $0x678] sm:$0xff]
        %v600 = vld [vmem:[%s371 + $0x680] sm:$0xff]
        %v601 = vld [vmem:[%s371 + $0x688] sm:$0xff]
        %v602 = vld [vmem:[%s371 + $0x690] sm:$0xff]
        %v603 = vld [vmem:[%s371 + $0x698] sm:$0xff]
        %v604 = vld [vmem:[%s371 + $0x6a0] sm:$0xff]
        %v605 = vld [vmem:[%s371 + $0x6a8] sm:$0xff]
        %v606 = vld [vmem:[%s371 + $0x6b0] sm:$0xff]
        %v607 = vld [vmem:[%s371 + $0x6b8] sm:$0xff]
        %v608 = vld [vmem:[%s371 + $0x6c0] sm:$0xff]
        %v609 = vld [vmem:[%s371 + $0x6c8] sm:$0xff]
        %v610 = vld [vmem:[%s371 + $0x6d0] sm:$0xff]
        %v611 = vld [vmem:[%s371 + $0x6d8] sm:$0xff]
        %v612 = vld [vmem:[%s371 + $0x6e0] sm:$0xff]
        %v613 = vld [vmem:[%s371 + $0x6e8] sm:$0xff]
        %v614 = vld [vmem:[%s371 + $0x6f0] sm:$0xff]
        %v615 = vld [vmem:[%s371 + $0x6f8] sm:$0xff]
        %v616 = vld [vmem:[%s371 + $0x700] sm:$0xff]
        %v617 = vld [vmem:[%s371 + $0x708] sm:$0xff]
        %v618 = vld [vmem:[%s371 + $0x710] sm:$0xff]
        %v619 = vld [vmem:[%s371 + $0x718] sm:$0xff]
        %v620 = vld [vmem:[%s371 + $0x720] sm:$0xff]
        %v621 = vld [vmem:[%s371 + $0x728] sm:$0xff]
        %v622 = vld [vmem:[%s371 + $0x730] sm:$0xff]
        %v623 = vld [vmem:[%s371 + $0x738] sm:$0xff]
        %v624 = vld [vmem:[%s371 + $0x740] sm:$0xff]
        %v625 = vld [vmem:[%s371 + $0x748] sm:$0xff]
        %v626 = vld [vmem:[%s371 + $0x750] sm:$0xff]
        %v627 = vld [vmem:[%s371 + $0x758] sm:$0xff]
        %v628 = vld [vmem:[%s371 + $0x760] sm:$0xff]
        %v629 = vld [vmem:[%s371 + $0x768] sm:$0xff]
        %v630 = vld [vmem:[%s371 + $0x770] sm:$0xff]
        %v631 = vld [vmem:[%s371 + $0x778] sm:$0xff]
        %v632 = vld [vmem:[%s371 + $0x780] sm:$0xff]
        %v633 = vld [vmem:[%s371 + $0x788] sm:$0xff]
        %v634 = vld [vmem:[%s371 + $0x790] sm:$0xff]
        %v635 = vld [vmem:[%s371 + $0x798] sm:$0xff]
        %v636 = vld [vmem:[%s371 + $0x7a0] sm:$0xff]
        %v637 = vld [vmem:[%s371 + $0x7a8] sm:$0xff]
        %v638 = vld [vmem:[%s371 + $0x7b0] sm:$0xff]
        %v639 = vld [vmem:[%s371 + $0x7b8] sm:$0xff]
        %v640 = vld [vmem:[%s371 + $0x7c0] sm:$0xff]
        %v641 = vld [vmem:[%s371 + $0x7c8] sm:$0xff]
        %v642 = vld [vmem:[%s371 + $0x7d0] sm:$0xff]
        %v643 = vld [vmem:[%s371 + $0x7d8] sm:$0xff]
        %v644 = vld [vmem:[%s371 + $0x7e0] sm:$0xff]
        %v645 = vld [vmem:[%s371 + $0x7e8] sm:$0xff]
        %v646 = vld [vmem:[%s371 + $0x7f0] sm:$0xff]
        %v647 = vld [vmem:[%s371 + $0x7f8] sm:$0xff]
        %v648 = vld [vmem:[%s371 + $0x800] sm:$0xff]
        %v649 = vld [vmem:[%s371 + $0x808] sm:$0xff]
        %v650 = vld [vmem:[%s371 + $0x810] sm:$0xff]
        %v651 = vld [vmem:[%s371 + $0x818] sm:$0xff]
        %v652 = vld [vmem:[%s371 + $0x820] sm:$0xff]
        %v653 = vld [vmem:[%s371 + $0x828] sm:$0xff]
        %v654 = vld [vmem:[%s371 + $0x830] sm:$0xff]
        %v655 = vld [vmem:[%s371 + $0x838] sm:$0xff]
        %v656 = vld [vmem:[%s371 + $0x840] sm:$0xff]
        %v657 = vld [vmem:[%s371 + $0x848] sm:$0xff]
        %v658 = vld [vmem:[%s371 + $0x850] sm:$0xff]
        %v659 = vld [vmem:[%s371 + $0x858] sm:$0xff]
        %v660 = vld [vmem:[%s371 + $0x860] sm:$0xff]
        %v661 = vld [vmem:[%s371 + $0x868] sm:$0xff]
        %v662 = vld [vmem:[%s371 + $0x870] sm:$0xff]
        %v663 = vld [vmem:[%s371 + $0x878] sm:$0xff]
        %v664 = vld [vmem:[%s371 + $0x880] sm:$0xff]
        %v665 = vld [vmem:[%s371 + $0x888] sm:$0xff]
        %v666 = vld [vmem:[%s371 + $0x890] sm:$0xff]
        %v667 = vld [vmem:[%s371 + $0x898] sm:$0xff]
        %v668 = vld [vmem:[%s371 + $0x8a0] sm:$0xff]
        %v669 = vld [vmem:[%s371 + $0x8a8] sm:$0xff]
        %v670 = vld [vmem:[%s371 + $0x8b0] sm:$0xff]
        %v671 = vld [vmem:[%s371 + $0x8b8] sm:$0xff]
        %v672 = vld [vmem:[%s371 + $0x8c0] sm:$0xff]
        %v673 = vld [vmem:[%s371 + $0x8c8] sm:$0xff]
        %v674 = vld [vmem:[%s371 + $0x8d0] sm:$0xff]
        %v675 = vld [vmem:[%s371 + $0x8d8] sm:$0xff]
        %v676 = vld [vmem:[%s371 + $0x8e0] sm:$0xff]
        %v677 = vld [vmem:[%s371 + $0x8e8] sm:$0xff]
        %v678 = vld [vmem:[%s371 + $0x8f0] sm:$0xff]
        %v679 = vld [vmem:[%s371 + $0x8f8] sm:$0xff]
        %v680 = vld [vmem:[%s371 + $0x900] sm:$0xff]
        %v681 = vld [vmem:[%s371 + $0x908] sm:$0xff]
        %v682 = vld [vmem:[%s371 + $0x910] sm:$0xff]
        %v683 = vld [vmem:[%s371 + $0x918] sm:$0xff]
        %v684 = vld [vmem:[%s371 + $0x920] sm:$0xff]
        %v685 = vld [vmem:[%s371 + $0x928] sm:$0xff]
        %v686 = vld [vmem:[%s371 + $0x930] sm:$0xff]
        %v687 = vld [vmem:[%s371 + $0x938] sm:$0xff]
        %v688 = vld [vmem:[%s371 + $0x940] sm:$0xff]
        %v689 = vld [vmem:[%s371 + $0x948] sm:$0xff]
        %v690 = vld [vmem:[%s371 + $0x950] sm:$0xff]
        %v691 = vld [vmem:[%s371 + $0x958] sm:$0xff]
        %v692 = vld [vmem:[%s371 + $0x960] sm:$0xff]
        %v693 = vld [vmem:[%s371 + $0x968] sm:$0xff]
        %v694 = vld [vmem:[%s371 + $0x970] sm:$0xff]
        %v695 = vld [vmem:[%s371 + $0x978] sm:$0xff]
        %v696 = vld [vmem:[%s371 + $0x980] sm:$0xff]
        %v697 = vld [vmem:[%s371 + $0x988] sm:$0xff]
        %v698 = vld [vmem:[%s371 + $0x990] sm:$0xff]
        %v699 = vld [vmem:[%s371 + $0x998] sm:$0xff]
        %v700 = vld [vmem:[%s371 + $0x9a0] sm:$0xff]
        %v701 = vld [vmem:[%s371 + $0x9a8] sm:$0xff]
        %v702 = vld [vmem:[%s371 + $0x9b0] sm:$0xff]
        %v703 = vld [vmem:[%s371 + $0x9b8] sm:$0xff]
        %v704 = vld [vmem:[%s371 + $0x9c0] sm:$0xff]
        %v705 = vld [vmem:[%s371 + $0x9c8] sm:$0xff]
        %v706 = vld [vmem:[%s371 + $0x9d0] sm:$0xff]
        %v707 = vld [vmem:[%s371 + $0x9d8] sm:$0xff]
        %v708 = vld [vmem:[%s371 + $0x9e0] sm:$0xff]
        %v709 = vld [vmem:[%s371 + $0x9e8] sm:$0xff]
        %v710 = vld [vmem:[%s371 + $0x9f0] sm:$0xff]
        %v711 = vld [vmem:[%s371 + $0x9f8] sm:$0xff]
        %v713 = vcombine.high %v391, %v391
        %v715 = vunpack.c.l.s4 1983009808
        %v716 = vunpack.c.0.s8 %v715
        %v717 = vlaneseq
        %v718 = vshrl.u32 %v717, 7
        %v719 = vsub.s32 %v716, %v718
        %v720 = vrot.slane %v391, %v719
        %v722 = vunpack.c.l.s4 1983009808
        %v723 = vunpack.c.0.s8 %v722
        %v724 = vlaneseq
        %v725 = vshrl.u32 %v724, 7
        %v726 = vsub.s32 %v723, %v725
        %v727 = vrot.slane %v713, %v726
        %v728 = vcombine.high %v720, %v720
        %v729 = vcombine.high %v727, %v727
        %v1054 = vunpack.c.l.b16 %v392
        %v1055 = vunpack.c.h.b16 %v392
        %v1056 = vunpack.c.l.b16 %v393
        %v1057 = vunpack.c.h.b16 %v393
        %v1058 = vunpack.c.l.b16 %v394
        %v1059 = vunpack.c.h.b16 %v394
        %v1060 = vunpack.c.l.b16 %v395
        %v1061 = vunpack.c.h.b16 %v395
        %v1062 = vunpack.c.l.b16 %v396
        %v1063 = vunpack.c.h.b16 %v396
        %v1064 = vunpack.c.l.b16 %v397
        %v1065 = vunpack.c.h.b16 %v397
        %v1066 = vunpack.c.l.b16 %v398
        %v1067 = vunpack.c.h.b16 %v398
        %v1068 = vunpack.c.l.b16 %v399
        %v1069 = vunpack.c.h.b16 %v399
        %v1070 = vunpack.c.l.b16 %v400
        %v1071 = vunpack.c.h.b16 %v400
        %v1072 = vunpack.c.l.b16 %v401
        %v1073 = vunpack.c.h.b16 %v401
        %v1074 = vunpack.c.l.b16 %v402
        %v1075 = vunpack.c.h.b16 %v402
        %v1076 = vunpack.c.l.b16 %v403
        %v1077 = vunpack.c.h.b16 %v403
        %v1078 = vunpack.c.l.b16 %v404
        %v1079 = vunpack.c.h.b16 %v404
        %v1080 = vunpack.c.l.b16 %v405
        %v1081 = vunpack.c.h.b16 %v405
        %v1082 = vunpack.c.l.b16 %v406
        %v1083 = vunpack.c.h.b16 %v406
        %v1084 = vunpack.c.l.b16 %v407
        %v1085 = vunpack.c.h.b16 %v407
        %v1086 = vunpack.c.l.b16 %v408
        %v1087 = vunpack.c.h.b16 %v408
        %v1088 = vunpack.c.l.b16 %v409
        %v1089 = vunpack.c.h.b16 %v409
        %v1090 = vunpack.c.l.b16 %v410
        %v1091 = vunpack.c.h.b16 %v410
        %v1092 = vunpack.c.l.b16 %v411
        %v1093 = vunpack.c.h.b16 %v411
        %v1094 = vunpack.c.l.b16 %v412
        %v1095 = vunpack.c.h.b16 %v412
        %v1096 = vunpack.c.l.b16 %v413
        %v1097 = vunpack.c.h.b16 %v413
        %v1098 = vunpack.c.l.b16 %v414
        %v1099 = vunpack.c.h.b16 %v414
        %v1100 = vunpack.c.l.b16 %v415
        %v1101 = vunpack.c.h.b16 %v415
        %v1102 = vunpack.c.l.b16 %v416
        %v1103 = vunpack.c.h.b16 %v416
        %v1104 = vunpack.c.l.b16 %v417
        %v1105 = vunpack.c.h.b16 %v417
        %v1106 = vunpack.c.l.b16 %v418
        %v1107 = vunpack.c.h.b16 %v418
        %v1108 = vunpack.c.l.b16 %v419
        %v1109 = vunpack.c.h.b16 %v419
        %v1110 = vunpack.c.l.b16 %v420
        %v1111 = vunpack.c.h.b16 %v420
        %v1112 = vunpack.c.l.b16 %v421
        %v1113 = vunpack.c.h.b16 %v421
        %v1114 = vunpack.c.l.b16 %v422
        %v1115 = vunpack.c.h.b16 %v422
        %v1116 = vunpack.c.l.b16 %v423
        %v1117 = vunpack.c.h.b16 %v423
        %v1118 = vunpack.c.l.b16 %v424
        %v1119 = vunpack.c.h.b16 %v424
        %v1120 = vunpack.c.l.b16 %v425
        %v1121 = vunpack.c.h.b16 %v425
        %v1122 = vunpack.c.l.b16 %v426
        %v1123 = vunpack.c.h.b16 %v426
        %v1124 = vunpack.c.l.b16 %v427
        %v1125 = vunpack.c.h.b16 %v427
        %v1126 = vunpack.c.l.b16 %v428
        %v1127 = vunpack.c.h.b16 %v428
        %v1128 = vunpack.c.l.b16 %v429
        %v1129 = vunpack.c.h.b16 %v429
        %v1130 = vunpack.c.l.b16 %v430
        %v1131 = vunpack.c.h.b16 %v430
        %v1132 = vunpack.c.l.b16 %v431
        %v1133 = vunpack.c.h.b16 %v431
        %v1134 = vunpack.c.l.b16 %v432
        %v1135 = vunpack.c.h.b16 %v432
        %v1136 = vunpack.c.l.b16 %v433
        %v1137 = vunpack.c.h.b16 %v433
        %v1138 = vunpack.c.l.b16 %v434
        %v1139 = vunpack.c.h.b16 %v434
        %v1140 = vunpack.c.l.b16 %v435
        %v1141 = vunpack.c.h.b16 %v435
        %v1142 = vunpack.c.l.b16 %v436
        %v1143 = vunpack.c.h.b16 %v436
        %v1144 = vunpack.c.l.b16 %v437
        %v1145 = vunpack.c.h.b16 %v437
        %v1146 = vunpack.c.l.b16 %v438
        %v1147 = vunpack.c.h.b16 %v438
        %v1148 = vunpack.c.l.b16 %v439
        %v1149 = vunpack.c.h.b16 %v439
        %v1150 = vunpack.c.l.b16 %v440
        %v1151 = vunpack.c.h.b16 %v440
        %v1152 = vunpack.c.l.b16 %v441
        %v1153 = vunpack.c.h.b16 %v441
        %v1154 = vunpack.c.l.b16 %v442
        %v1155 = vunpack.c.h.b16 %v442
        %v1156 = vunpack.c.l.b16 %v443
        %v1157 = vunpack.c.h.b16 %v443
        %v1158 = vunpack.c.l.b16 %v444
        %v1159 = vunpack.c.h.b16 %v444
        %v1160 = vunpack.c.l.b16 %v445
        %v1161 = vunpack.c.h.b16 %v445
        %v1162 = vunpack.c.l.b16 %v446
        %v1163 = vunpack.c.h.b16 %v446
        %v1164 = vunpack.c.l.b16 %v447
        %v1165 = vunpack.c.h.b16 %v447
        %v1166 = vunpack.c.l.b16 %v448
        %v1167 = vunpack.c.h.b16 %v448
        %v1168 = vunpack.c.l.b16 %v449
        %v1169 = vunpack.c.h.b16 %v449
        %v1170 = vunpack.c.l.b16 %v450
        %v1171 = vunpack.c.h.b16 %v450
        %v1172 = vunpack.c.l.b16 %v451
        %v1173 = vunpack.c.h.b16 %v451
        %v1174 = vunpack.c.l.b16 %v452
        %v1175 = vunpack.c.h.b16 %v452
        %v1176 = vunpack.c.l.b16 %v453
        %v1177 = vunpack.c.h.b16 %v453
        %v1178 = vunpack.c.l.b16 %v454
        %v1179 = vunpack.c.h.b16 %v454
        %v1180 = vunpack.c.l.b16 %v455
        %v1181 = vunpack.c.h.b16 %v455
        %v1182 = vunpack.c.l.b16 %v456
        %v1183 = vunpack.c.h.b16 %v456
        %v1184 = vunpack.c.l.b16 %v457
        %v1185 = vunpack.c.h.b16 %v457
        %v1186 = vunpack.c.l.b16 %v458
        %v1187 = vunpack.c.h.b16 %v458
        %v1188 = vunpack.c.l.b16 %v459
        %v1189 = vunpack.c.h.b16 %v459
        %v1190 = vunpack.c.l.b16 %v460
        %v1191 = vunpack.c.h.b16 %v460
        %v1192 = vunpack.c.l.b16 %v461
        %v1193 = vunpack.c.h.b16 %v461
        %v1194 = vunpack.c.l.b16 %v462
        %v1195 = vunpack.c.h.b16 %v462
        %v1196 = vunpack.c.l.b16 %v463
        %v1197 = vunpack.c.h.b16 %v463
        %v1198 = vunpack.c.l.b16 %v464
        %v1199 = vunpack.c.h.b16 %v464
        %v1200 = vunpack.c.l.b16 %v465
        %v1201 = vunpack.c.h.b16 %v465
        %v1202 = vunpack.c.l.b16 %v466
        %v1203 = vunpack.c.h.b16 %v466
        %v1204 = vunpack.c.l.b16 %v467
        %v1205 = vunpack.c.h.b16 %v467
        %v1206 = vunpack.c.l.b16 %v468
        %v1207 = vunpack.c.h.b16 %v468
        %v1208 = vunpack.c.l.b16 %v469
        %v1209 = vunpack.c.h.b16 %v469
        %v1210 = vunpack.c.l.b16 %v470
        %v1211 = vunpack.c.h.b16 %v470
        %v1212 = vunpack.c.l.b16 %v471
        %v1213 = vunpack.c.h.b16 %v471
        %v1214 = vunpack.c.l.b16 %v472
        %v1215 = vunpack.c.h.b16 %v472
        %v1216 = vunpack.c.l.b16 %v473
        %v1217 = vunpack.c.h.b16 %v473
        %v1218 = vunpack.c.l.b16 %v474
        %v1219 = vunpack.c.h.b16 %v474
        %v1220 = vunpack.c.l.b16 %v475
        %v1221 = vunpack.c.h.b16 %v475
        %v1222 = vunpack.c.l.b16 %v476
        %v1223 = vunpack.c.h.b16 %v476
        %v1224 = vunpack.c.l.b16 %v477
        %v1225 = vunpack.c.h.b16 %v477
        %v1226 = vunpack.c.l.b16 %v478
        %v1227 = vunpack.c.h.b16 %v478
        %v1228 = vunpack.c.l.b16 %v479
        %v1229 = vunpack.c.h.b16 %v479
        %v1230 = vunpack.c.l.b16 %v480
        %v1231 = vunpack.c.h.b16 %v480
        %v1232 = vunpack.c.l.b16 %v481
        %v1233 = vunpack.c.h.b16 %v481
        %v1234 = vunpack.c.l.b16 %v482
        %v1235 = vunpack.c.h.b16 %v482
        %v1236 = vunpack.c.l.b16 %v483
        %v1237 = vunpack.c.h.b16 %v483
        %v1238 = vunpack.c.l.b16 %v484
        %v1239 = vunpack.c.h.b16 %v484
        %v1240 = vunpack.c.l.b16 %v485
        %v1241 = vunpack.c.h.b16 %v485
        %v1242 = vunpack.c.l.b16 %v486
        %v1243 = vunpack.c.h.b16 %v486
        %v1244 = vunpack.c.l.b16 %v487
        %v1245 = vunpack.c.h.b16 %v487
        %v1246 = vunpack.c.l.b16 %v488
        %v1247 = vunpack.c.h.b16 %v488
        %v1248 = vunpack.c.l.b16 %v489
        %v1249 = vunpack.c.h.b16 %v489
        %v1250 = vunpack.c.l.b16 %v490
        %v1251 = vunpack.c.h.b16 %v490
        %v1252 = vunpack.c.l.b16 %v491
        %v1253 = vunpack.c.h.b16 %v491
        %v1254 = vunpack.c.l.b16 %v492
        %v1255 = vunpack.c.h.b16 %v492
        %v1256 = vunpack.c.l.b16 %v493
        %v1257 = vunpack.c.h.b16 %v493
        %v1258 = vunpack.c.l.b16 %v494
        %v1259 = vunpack.c.h.b16 %v494
        %v1260 = vunpack.c.l.b16 %v495
        %v1261 = vunpack.c.h.b16 %v495
        %v1262 = vunpack.c.l.b16 %v496
        %v1263 = vunpack.c.h.b16 %v496
        %v1264 = vunpack.c.l.b16 %v497
        %v1265 = vunpack.c.h.b16 %v497
        %v1266 = vunpack.c.l.b16 %v498
        %v1267 = vunpack.c.h.b16 %v498
        %v1268 = vunpack.c.l.b16 %v499
        %v1269 = vunpack.c.h.b16 %v499
        %v1270 = vunpack.c.l.b16 %v500
        %v1271 = vunpack.c.h.b16 %v500
        %v1272 = vunpack.c.l.b16 %v501
        %v1273 = vunpack.c.h.b16 %v501
        %v1274 = vunpack.c.l.b16 %v502
        %v1275 = vunpack.c.h.b16 %v502
        %v1276 = vunpack.c.l.b16 %v503
        %v1277 = vunpack.c.h.b16 %v503
        %v1278 = vunpack.c.l.b16 %v504
        %v1279 = vunpack.c.h.b16 %v504
        %v1280 = vunpack.c.l.b16 %v505
        %v1281 = vunpack.c.h.b16 %v505
        %v1282 = vunpack.c.l.b16 %v506
        %v1283 = vunpack.c.h.b16 %v506
        %v1284 = vunpack.c.l.b16 %v507
        %v1285 = vunpack.c.h.b16 %v507
        %v1286 = vunpack.c.l.b16 %v508
        %v1287 = vunpack.c.h.b16 %v508
        %v1288 = vunpack.c.l.b16 %v509
        %v1289 = vunpack.c.h.b16 %v509
        %v1290 = vunpack.c.l.b16 %v510
        %v1291 = vunpack.c.h.b16 %v510
        %v1292 = vunpack.c.l.b16 %v511
        %v1293 = vunpack.c.h.b16 %v511
        %v1294 = vunpack.c.l.b16 %v512
        %v1295 = vunpack.c.h.b16 %v512
        %v1296 = vunpack.c.l.b16 %v513
        %v1297 = vunpack.c.h.b16 %v513
        %v1298 = vunpack.c.l.b16 %v514
        %v1299 = vunpack.c.h.b16 %v514
        %v1300 = vunpack.c.l.b16 %v515
        %v1301 = vunpack.c.h.b16 %v515
        %v1302 = vunpack.c.l.b16 %v516
        %v1303 = vunpack.c.h.b16 %v516
        %v1304 = vunpack.c.l.b16 %v517
        %v1305 = vunpack.c.h.b16 %v517
        %v1306 = vunpack.c.l.b16 %v518
        %v1307 = vunpack.c.h.b16 %v518
        %v1308 = vunpack.c.l.b16 %v519
        %v1309 = vunpack.c.h.b16 %v519
        %v1310 = vunpack.c.l.b16 %v520
        %v1311 = vunpack.c.h.b16 %v520
        %v1312 = vunpack.c.l.b16 %v521
        %v1313 = vunpack.c.h.b16 %v521
        %v1314 = vunpack.c.l.b16 %v522
        %v1315 = vunpack.c.h.b16 %v522
        %v1316 = vunpack.c.l.b16 %v523
        %v1317 = vunpack.c.h.b16 %v523
        %v1318 = vunpack.c.l.b16 %v524
        %v1319 = vunpack.c.h.b16 %v524
        %v1320 = vunpack.c.l.b16 %v525
        %v1321 = vunpack.c.h.b16 %v525
        %v1322 = vunpack.c.l.b16 %v526
        %v1323 = vunpack.c.h.b16 %v526
        %v1324 = vunpack.c.l.b16 %v527
        %v1325 = vunpack.c.h.b16 %v527
        %v1326 = vunpack.c.l.b16 %v528
        %v1327 = vunpack.c.h.b16 %v528
        %v1328 = vunpack.c.l.b16 %v529
        %v1329 = vunpack.c.h.b16 %v529
        %v1330 = vunpack.c.l.b16 %v530
        %v1331 = vunpack.c.h.b16 %v530
        %v1332 = vunpack.c.l.b16 %v531
        %v1333 = vunpack.c.h.b16 %v531
        %v1334 = vunpack.c.l.b16 %v532
        %v1335 = vunpack.c.h.b16 %v532
        %v1336 = vunpack.c.l.b16 %v533
        %v1337 = vunpack.c.h.b16 %v533
        %v1338 = vunpack.c.l.b16 %v534
        %v1339 = vunpack.c.h.b16 %v534
        %v1340 = vunpack.c.l.b16 %v535
        %v1341 = vunpack.c.h.b16 %v535
        %v1342 = vunpack.c.l.b16 %v536
        %v1343 = vunpack.c.h.b16 %v536
        %v1344 = vunpack.c.l.b16 %v537
        %v1345 = vunpack.c.h.b16 %v537
        %v1346 = vunpack.c.l.b16 %v538
        %v1347 = vunpack.c.h.b16 %v538
        %v1348 = vunpack.c.l.b16 %v539
        %v1349 = vunpack.c.h.b16 %v539
        %v1350 = vunpack.c.l.b16 %v540
        %v1351 = vunpack.c.h.b16 %v540
        %v1352 = vunpack.c.l.b16 %v541
        %v1353 = vunpack.c.h.b16 %v541
        %v1354 = vunpack.c.l.b16 %v542
        %v1355 = vunpack.c.h.b16 %v542
        %v1356 = vunpack.c.l.b16 %v543
        %v1357 = vunpack.c.h.b16 %v543
        %v1358 = vunpack.c.l.b16 %v544
        %v1359 = vunpack.c.h.b16 %v544
        %v1360 = vunpack.c.l.b16 %v545
        %v1361 = vunpack.c.h.b16 %v545
        %v1362 = vunpack.c.l.b16 %v546
        %v1363 = vunpack.c.h.b16 %v546
        %v1364 = vunpack.c.l.b16 %v547
        %v1365 = vunpack.c.h.b16 %v547
        %v1366 = vunpack.c.l.b16 %v548
        %v1367 = vunpack.c.h.b16 %v548
        %v1368 = vunpack.c.l.b16 %v549
        %v1369 = vunpack.c.h.b16 %v549
        %v1370 = vunpack.c.l.b16 %v550
        %v1371 = vunpack.c.h.b16 %v550
        %v1372 = vunpack.c.l.b16 %v551
        %v1373 = vunpack.c.h.b16 %v551
        %v1374 = vunpack.c.l.b16 %v552
        %v1375 = vunpack.c.h.b16 %v552
        %v1376 = vunpack.c.l.b16 %v553
        %v1377 = vunpack.c.h.b16 %v553
        %v1378 = vunpack.c.l.b16 %v554
        %v1379 = vunpack.c.h.b16 %v554
        %v1380 = vunpack.c.l.b16 %v555
        %v1381 = vunpack.c.h.b16 %v555
        %v1382 = vunpack.c.l.b16 %v556
        %v1383 = vunpack.c.h.b16 %v556
        %v1384 = vunpack.c.l.b16 %v557
        %v1385 = vunpack.c.h.b16 %v557
        %v1386 = vunpack.c.l.b16 %v558
        %v1387 = vunpack.c.h.b16 %v558
        %v1388 = vunpack.c.l.b16 %v559
        %v1389 = vunpack.c.h.b16 %v559
        %v1390 = vunpack.c.l.b16 %v560
        %v1391 = vunpack.c.h.b16 %v560
        %v1392 = vunpack.c.l.b16 %v561
        %v1393 = vunpack.c.h.b16 %v561
        %v1394 = vunpack.c.l.b16 %v562
        %v1395 = vunpack.c.h.b16 %v562
        %v1396 = vunpack.c.l.b16 %v563
        %v1397 = vunpack.c.h.b16 %v563
        %v1398 = vunpack.c.l.b16 %v564
        %v1399 = vunpack.c.h.b16 %v564
        %v1400 = vunpack.c.l.b16 %v565
        %v1401 = vunpack.c.h.b16 %v565
        %v1402 = vunpack.c.l.b16 %v566
        %v1403 = vunpack.c.h.b16 %v566
        %v1404 = vunpack.c.l.b16 %v567
        %v1405 = vunpack.c.h.b16 %v567
        %v1406 = vunpack.c.l.b16 %v568
        %v1407 = vunpack.c.h.b16 %v568
        %v1408 = vunpack.c.l.b16 %v569
        %v1409 = vunpack.c.h.b16 %v569
        %v1410 = vunpack.c.l.b16 %v570
        %v1411 = vunpack.c.h.b16 %v570
        %v1412 = vunpack.c.l.b16 %v571
        %v1413 = vunpack.c.h.b16 %v571
        %v1414 = vunpack.c.l.b16 %v572
        %v1415 = vunpack.c.h.b16 %v572
        %v1416 = vunpack.c.l.b16 %v573
        %v1417 = vunpack.c.h.b16 %v573
        %v1418 = vunpack.c.l.b16 %v574
        %v1419 = vunpack.c.h.b16 %v574
        %v1420 = vunpack.c.l.b16 %v575
        %v1421 = vunpack.c.h.b16 %v575
        %v1422 = vunpack.c.l.b16 %v576
        %v1423 = vunpack.c.h.b16 %v576
        %v1424 = vunpack.c.l.b16 %v577
        %v1425 = vunpack.c.h.b16 %v577
        %v1426 = vunpack.c.l.b16 %v578
        %v1427 = vunpack.c.h.b16 %v578
        %v1428 = vunpack.c.l.b16 %v579
        %v1429 = vunpack.c.h.b16 %v579
        %v1430 = vunpack.c.l.b16 %v580
        %v1431 = vunpack.c.h.b16 %v580
        %v1432 = vunpack.c.l.b16 %v581
        %v1433 = vunpack.c.h.b16 %v581
        %v1434 = vunpack.c.l.b16 %v582
        %v1435 = vunpack.c.h.b16 %v582
        %v1436 = vunpack.c.l.b16 %v583
        %v1437 = vunpack.c.h.b16 %v583
        %v1438 = vunpack.c.l.b16 %v584
        %v1439 = vunpack.c.h.b16 %v584
        %v1440 = vunpack.c.l.b16 %v585
        %v1441 = vunpack.c.h.b16 %v585
        %v1442 = vunpack.c.l.b16 %v586
        %v1443 = vunpack.c.h.b16 %v586
        %v1444 = vunpack.c.l.b16 %v587
        %v1445 = vunpack.c.h.b16 %v587
        %v1446 = vunpack.c.l.b16 %v588
        %v1447 = vunpack.c.h.b16 %v588
        %v1448 = vunpack.c.l.b16 %v589
        %v1449 = vunpack.c.h.b16 %v589
        %v1450 = vunpack.c.l.b16 %v590
        %v1451 = vunpack.c.h.b16 %v590
        %v1452 = vunpack.c.l.b16 %v591
        %v1453 = vunpack.c.h.b16 %v591
        %v1454 = vunpack.c.l.b16 %v592
        %v1455 = vunpack.c.h.b16 %v592
        %v1456 = vunpack.c.l.b16 %v593
        %v1457 = vunpack.c.h.b16 %v593
        %v1458 = vunpack.c.l.b16 %v594
        %v1459 = vunpack.c.h.b16 %v594
        %v1460 = vunpack.c.l.b16 %v595
        %v1461 = vunpack.c.h.b16 %v595
        %v1462 = vunpack.c.l.b16 %v596
        %v1463 = vunpack.c.h.b16 %v596
        %v1464 = vunpack.c.l.b16 %v597
        %v1465 = vunpack.c.h.b16 %v597
        %v1466 = vunpack.c.l.b16 %v598
        %v1467 = vunpack.c.h.b16 %v598
        %v1468 = vunpack.c.l.b16 %v599
        %v1469 = vunpack.c.h.b16 %v599
        %v1470 = vunpack.c.l.b16 %v600
        %v1471 = vunpack.c.h.b16 %v600
        %v1472 = vunpack.c.l.b16 %v601
        %v1473 = vunpack.c.h.b16 %v601
        %v1474 = vunpack.c.l.b16 %v602
        %v1475 = vunpack.c.h.b16 %v602
        %v1476 = vunpack.c.l.b16 %v603
        %v1477 = vunpack.c.h.b16 %v603
        %v1478 = vunpack.c.l.b16 %v604
        %v1479 = vunpack.c.h.b16 %v604
        %v1480 = vunpack.c.l.b16 %v605
        %v1481 = vunpack.c.h.b16 %v605
        %v1482 = vunpack.c.l.b16 %v606
        %v1483 = vunpack.c.h.b16 %v606
        %v1484 = vunpack.c.l.b16 %v607
        %v1485 = vunpack.c.h.b16 %v607
        %v1486 = vunpack.c.l.b16 %v608
        %v1487 = vunpack.c.h.b16 %v608
        %v1488 = vunpack.c.l.b16 %v609
        %v1489 = vunpack.c.h.b16 %v609
        %v1490 = vunpack.c.l.b16 %v610
        %v1491 = vunpack.c.h.b16 %v610
        %v1492 = vunpack.c.l.b16 %v611
        %v1493 = vunpack.c.h.b16 %v611
        %v1494 = vunpack.c.l.b16 %v612
        %v1495 = vunpack.c.h.b16 %v612
        %v1496 = vunpack.c.l.b16 %v613
        %v1497 = vunpack.c.h.b16 %v613
        %v1498 = vunpack.c.l.b16 %v614
        %v1499 = vunpack.c.h.b16 %v614
        %v1500 = vunpack.c.l.b16 %v615
        %v1501 = vunpack.c.h.b16 %v615
        %v1502 = vunpack.c.l.b16 %v616
        %v1503 = vunpack.c.h.b16 %v616
        %v1504 = vunpack.c.l.b16 %v617
        %v1505 = vunpack.c.h.b16 %v617
        %v1506 = vunpack.c.l.b16 %v618
        %v1507 = vunpack.c.h.b16 %v618
        %v1508 = vunpack.c.l.b16 %v619
        %v1509 = vunpack.c.h.b16 %v619
        %v1510 = vunpack.c.l.b16 %v620
        %v1511 = vunpack.c.h.b16 %v620
        %v1512 = vunpack.c.l.b16 %v621
        %v1513 = vunpack.c.h.b16 %v621
        %v1514 = vunpack.c.l.b16 %v622
        %v1515 = vunpack.c.h.b16 %v622
        %v1516 = vunpack.c.l.b16 %v623
        %v1517 = vunpack.c.h.b16 %v623
        %v1518 = vunpack.c.l.b16 %v624
        %v1519 = vunpack.c.h.b16 %v624
        %v1520 = vunpack.c.l.b16 %v625
        %v1521 = vunpack.c.h.b16 %v625
        %v1522 = vunpack.c.l.b16 %v626
        %v1523 = vunpack.c.h.b16 %v626
        %v1524 = vunpack.c.l.b16 %v627
        %v1525 = vunpack.c.h.b16 %v627
        %v1526 = vunpack.c.l.b16 %v628
        %v1527 = vunpack.c.h.b16 %v628
        %v1528 = vunpack.c.l.b16 %v629
        %v1529 = vunpack.c.h.b16 %v629
        %v1530 = vunpack.c.l.b16 %v630
        %v1531 = vunpack.c.h.b16 %v630
        %v1532 = vunpack.c.l.b16 %v631
        %v1533 = vunpack.c.h.b16 %v631
        %v1534 = vunpack.c.l.b16 %v632
        %v1535 = vunpack.c.h.b16 %v632
        %v1536 = vunpack.c.l.b16 %v633
        %v1537 = vunpack.c.h.b16 %v633
        %v1538 = vunpack.c.l.b16 %v634
        %v1539 = vunpack.c.h.b16 %v634
        %v1540 = vunpack.c.l.b16 %v635
        %v1541 = vunpack.c.h.b16 %v635
        %v1542 = vunpack.c.l.b16 %v636
        %v1543 = vunpack.c.h.b16 %v636
        %v1544 = vunpack.c.l.b16 %v637
        %v1545 = vunpack.c.h.b16 %v637
        %v1546 = vunpack.c.l.b16 %v638
        %v1547 = vunpack.c.h.b16 %v638
        %v1548 = vunpack.c.l.b16 %v639
        %v1549 = vunpack.c.h.b16 %v639
        %v1550 = vunpack.c.l.b16 %v640
        %v1551 = vunpack.c.h.b16 %v640
        %v1552 = vunpack.c.l.b16 %v641
        %v1553 = vunpack.c.h.b16 %v641
        %v1554 = vunpack.c.l.b16 %v642
        %v1555 = vunpack.c.h.b16 %v642
        %v1556 = vunpack.c.l.b16 %v643
        %v1557 = vunpack.c.h.b16 %v643
        %v1558 = vunpack.c.l.b16 %v644
        %v1559 = vunpack.c.h.b16 %v644
        %v1560 = vunpack.c.l.b16 %v645
        %v1561 = vunpack.c.h.b16 %v645
        %v1562 = vunpack.c.l.b16 %v646
        %v1563 = vunpack.c.h.b16 %v646
        %v1564 = vunpack.c.l.b16 %v647
        %v1565 = vunpack.c.h.b16 %v647
        %v1566 = vunpack.c.l.b16 %v648
        %v1567 = vunpack.c.h.b16 %v648
        %v1568 = vunpack.c.l.b16 %v649
        %v1569 = vunpack.c.h.b16 %v649
        %v1570 = vunpack.c.l.b16 %v650
        %v1571 = vunpack.c.h.b16 %v650
        %v1572 = vunpack.c.l.b16 %v651
        %v1573 = vunpack.c.h.b16 %v651
        %v1574 = vunpack.c.l.b16 %v652
        %v1575 = vunpack.c.h.b16 %v652
        %v1576 = vunpack.c.l.b16 %v653
        %v1577 = vunpack.c.h.b16 %v653
        %v1578 = vunpack.c.l.b16 %v654
        %v1579 = vunpack.c.h.b16 %v654
        %v1580 = vunpack.c.l.b16 %v655
        %v1581 = vunpack.c.h.b16 %v655
        %v1582 = vunpack.c.l.b16 %v656
        %v1583 = vunpack.c.h.b16 %v656
        %v1584 = vunpack.c.l.b16 %v657
        %v1585 = vunpack.c.h.b16 %v657
        %v1586 = vunpack.c.l.b16 %v658
        %v1587 = vunpack.c.h.b16 %v658
        %v1588 = vunpack.c.l.b16 %v659
        %v1589 = vunpack.c.h.b16 %v659
        %v1590 = vunpack.c.l.b16 %v660
        %v1591 = vunpack.c.h.b16 %v660
        %v1592 = vunpack.c.l.b16 %v661
        %v1593 = vunpack.c.h.b16 %v661
        %v1594 = vunpack.c.l.b16 %v662
        %v1595 = vunpack.c.h.b16 %v662
        %v1596 = vunpack.c.l.b16 %v663
        %v1597 = vunpack.c.h.b16 %v663
        %v1598 = vunpack.c.l.b16 %v664
        %v1599 = vunpack.c.h.b16 %v664
        %v1600 = vunpack.c.l.b16 %v665
        %v1601 = vunpack.c.h.b16 %v665
        %v1602 = vunpack.c.l.b16 %v666
        %v1603 = vunpack.c.h.b16 %v666
        %v1604 = vunpack.c.l.b16 %v667
        %v1605 = vunpack.c.h.b16 %v667
        %v1606 = vunpack.c.l.b16 %v668
        %v1607 = vunpack.c.h.b16 %v668
        %v1608 = vunpack.c.l.b16 %v669
        %v1609 = vunpack.c.h.b16 %v669
        %v1610 = vunpack.c.l.b16 %v670
        %v1611 = vunpack.c.h.b16 %v670
        %v1612 = vunpack.c.l.b16 %v671
        %v1613 = vunpack.c.h.b16 %v671
        %v1614 = vunpack.c.l.b16 %v672
        %v1615 = vunpack.c.h.b16 %v672
        %v1616 = vunpack.c.l.b16 %v673
        %v1617 = vunpack.c.h.b16 %v673
        %v1618 = vunpack.c.l.b16 %v674
        %v1619 = vunpack.c.h.b16 %v674
        %v1620 = vunpack.c.l.b16 %v675
        %v1621 = vunpack.c.h.b16 %v675
        %v1622 = vunpack.c.l.b16 %v676
        %v1623 = vunpack.c.h.b16 %v676
        %v1624 = vunpack.c.l.b16 %v677
        %v1625 = vunpack.c.h.b16 %v677
        %v1626 = vunpack.c.l.b16 %v678
        %v1627 = vunpack.c.h.b16 %v678
        %v1628 = vunpack.c.l.b16 %v679
        %v1629 = vunpack.c.h.b16 %v679
        %v1630 = vunpack.c.l.b16 %v680
        %v1631 = vunpack.c.h.b16 %v680
        %v1632 = vunpack.c.l.b16 %v681
        %v1633 = vunpack.c.h.b16 %v681
        %v1634 = vunpack.c.l.b16 %v682
        %v1635 = vunpack.c.h.b16 %v682
        %v1636 = vunpack.c.l.b16 %v683
        %v1637 = vunpack.c.h.b16 %v683
        %v1638 = vunpack.c.l.b16 %v684
        %v1639 = vunpack.c.h.b16 %v684
        %v1640 = vunpack.c.l.b16 %v685
        %v1641 = vunpack.c.h.b16 %v685
        %v1642 = vunpack.c.l.b16 %v686
        %v1643 = vunpack.c.h.b16 %v686
        %v1644 = vunpack.c.l.b16 %v687
        %v1645 = vunpack.c.h.b16 %v687
        %v1646 = vunpack.c.l.b16 %v688
        %v1647 = vunpack.c.h.b16 %v688
        %v1648 = vunpack.c.l.b16 %v689
        %v1649 = vunpack.c.h.b16 %v689
        %v1650 = vunpack.c.l.b16 %v690
        %v1651 = vunpack.c.h.b16 %v690
        %v1652 = vunpack.c.l.b16 %v691
        %v1653 = vunpack.c.h.b16 %v691
        %v1654 = vunpack.c.l.b16 %v692
        %v1655 = vunpack.c.h.b16 %v692
        %v1656 = vunpack.c.l.b16 %v693
        %v1657 = vunpack.c.h.b16 %v693
        %v1658 = vunpack.c.l.b16 %v694
        %v1659 = vunpack.c.h.b16 %v694
        %v1660 = vunpack.c.l.b16 %v695
        %v1661 = vunpack.c.h.b16 %v695
        %v1662 = vunpack.c.l.b16 %v696
        %v1663 = vunpack.c.h.b16 %v696
        %v1664 = vunpack.c.l.b16 %v697
        %v1665 = vunpack.c.h.b16 %v697
        %v1666 = vunpack.c.l.b16 %v698
        %v1667 = vunpack.c.h.b16 %v698
        %v1668 = vunpack.c.l.b16 %v699
        %v1669 = vunpack.c.h.b16 %v699
        %v1670 = vunpack.c.l.b16 %v700
        %v1671 = vunpack.c.h.b16 %v700
        %v1672 = vunpack.c.l.b16 %v701
        %v1673 = vunpack.c.h.b16 %v701
        %v1674 = vunpack.c.l.b16 %v702
        %v1675 = vunpack.c.h.b16 %v702
        %v1676 = vunpack.c.l.b16 %v703
        %v1677 = vunpack.c.h.b16 %v703
        %v1678 = vunpack.c.l.b16 %v704
        %v1679 = vunpack.c.h.b16 %v704
        %v1680 = vunpack.c.l.b16 %v705
        %v1681 = vunpack.c.h.b16 %v705
        %v1682 = vunpack.c.l.b16 %v706
        %v1683 = vunpack.c.h.b16 %v706
        %v1684 = vunpack.c.l.b16 %v707
        %v1685 = vunpack.c.h.b16 %v707
        %v1686 = vunpack.c.l.b16 %v708
        %v1687 = vunpack.c.h.b16 %v708
        %v1688 = vunpack.c.l.b16 %v709
        %v1689 = vunpack.c.h.b16 %v709
        %v1690 = vunpack.c.l.b16 %v710
        %v1691 = vunpack.c.h.b16 %v710
        %v1692 = vunpack.c.l.b16 %v711
        %v1693 = vunpack.c.h.b16 %v711
        %v1694 = vpack.c.b16 %v1064, %v1054
        %v1695 = vpack.c.b16 %v1065, %v1055
        %v1696 = vpack.c.b16 %v1066, %v1056
        %v1697 = vpack.c.b16 %v1067, %v1057
        %v1698 = vpack.c.b16 %v1068, %v1058
        %v1699 = vpack.c.b16 %v1069, %v1059
        %v1700 = vpack.c.b16 %v1070, %v1060
        %v1701 = vpack.c.b16 %v1071, %v1061
        %v1702 = vpack.c.b16 %v1072, %v1062
        %v1703 = vpack.c.b16 %v1073, %v1063
        %v1704 = vpack.c.b16 %v1084, %v1074
        %v1705 = vpack.c.b16 %v1085, %v1075
        %v1706 = vpack.c.b16 %v1086, %v1076
        %v1707 = vpack.c.b16 %v1087, %v1077
        %v1708 = vpack.c.b16 %v1088, %v1078
        %v1709 = vpack.c.b16 %v1089, %v1079
        %v1710 = vpack.c.b16 %v1090, %v1080
        %v1711 = vpack.c.b16 %v1091, %v1081
        %v1712 = vpack.c.b16 %v1092, %v1082
        %v1713 = vpack.c.b16 %v1093, %v1083
        %v1714 = vpack.c.b16 %v1104, %v1094
        %v1715 = vpack.c.b16 %v1105, %v1095
        %v1716 = vpack.c.b16 %v1106, %v1096
        %v1717 = vpack.c.b16 %v1107, %v1097
        %v1718 = vpack.c.b16 %v1108, %v1098
        %v1719 = vpack.c.b16 %v1109, %v1099
        %v1720 = vpack.c.b16 %v1110, %v1100
        %v1721 = vpack.c.b16 %v1111, %v1101
        %v1722 = vpack.c.b16 %v1112, %v1102
        %v1723 = vpack.c.b16 %v1113, %v1103
        %v1724 = vpack.c.b16 %v1124, %v1114
        %v1725 = vpack.c.b16 %v1125, %v1115
        %v1726 = vpack.c.b16 %v1126, %v1116
        %v1727 = vpack.c.b16 %v1127, %v1117
        %v1728 = vpack.c.b16 %v1128, %v1118
        %v1729 = vpack.c.b16 %v1129, %v1119
        %v1730 = vpack.c.b16 %v1130, %v1120
        %v1731 = vpack.c.b16 %v1131, %v1121
        %v1732 = vpack.c.b16 %v1132, %v1122
        %v1733 = vpack.c.b16 %v1133, %v1123
        %v1734 = vpack.c.b16 %v1144, %v1134
        %v1735 = vpack.c.b16 %v1145, %v1135
        %v1736 = vpack.c.b16 %v1146, %v1136
        %v1737 = vpack.c.b16 %v1147, %v1137
        %v1738 = vpack.c.b16 %v1148, %v1138
        %v1739 = vpack.c.b16 %v1149, %v1139
        %v1740 = vpack.c.b16 %v1150, %v1140
        %v1741 = vpack.c.b16 %v1151, %v1141
        %v1742 = vpack.c.b16 %v1152, %v1142
        %v1743 = vpack.c.b16 %v1153, %v1143
        %v1744 = vpack.c.b16 %v1164, %v1154
        %v1745 = vpack.c.b16 %v1165, %v1155
        %v1746 = vpack.c.b16 %v1166, %v1156
        %v1747 = vpack.c.b16 %v1167, %v1157
        %v1748 = vpack.c.b16 %v1168, %v1158
        %v1749 = vpack.c.b16 %v1169, %v1159
        %v1750 = vpack.c.b16 %v1170, %v1160
        %v1751 = vpack.c.b16 %v1171, %v1161
        %v1752 = vpack.c.b16 %v1172, %v1162
        %v1753 = vpack.c.b16 %v1173, %v1163
        %v1754 = vpack.c.b16 %v1184, %v1174
        %v1755 = vpack.c.b16 %v1185, %v1175
        %v1756 = vpack.c.b16 %v1186, %v1176
        %v1757 = vpack.c.b16 %v1187, %v1177
        %v1758 = vpack.c.b16 %v1188, %v1178
        %v1759 = vpack.c.b16 %v1189, %v1179
        %v1760 = vpack.c.b16 %v1190, %v1180
        %v1761 = vpack.c.b16 %v1191, %v1181
        %v1762 = vpack.c.b16 %v1192, %v1182
        %v1763 = vpack.c.b16 %v1193, %v1183
        %v1764 = vpack.c.b16 %v1204, %v1194
        %v1765 = vpack.c.b16 %v1205, %v1195
        %v1766 = vpack.c.b16 %v1206, %v1196
        %v1767 = vpack.c.b16 %v1207, %v1197
        %v1768 = vpack.c.b16 %v1208, %v1198
        %v1769 = vpack.c.b16 %v1209, %v1199
        %v1770 = vpack.c.b16 %v1210, %v1200
        %v1771 = vpack.c.b16 %v1211, %v1201
        %v1772 = vpack.c.b16 %v1212, %v1202
        %v1773 = vpack.c.b16 %v1213, %v1203
        %v1774 = vpack.c.b16 %v1224, %v1214
        %v1775 = vpack.c.b16 %v1225, %v1215
        %v1776 = vpack.c.b16 %v1226, %v1216
        %v1777 = vpack.c.b16 %v1227, %v1217
        %v1778 = vpack.c.b16 %v1228, %v1218
        %v1779 = vpack.c.b16 %v1229, %v1219
        %v1780 = vpack.c.b16 %v1230, %v1220
        %v1781 = vpack.c.b16 %v1231, %v1221
        %v1782 = vpack.c.b16 %v1232, %v1222
        %v1783 = vpack.c.b16 %v1233, %v1223
        %v1784 = vpack.c.b16 %v1244, %v1234
        %v1785 = vpack.c.b16 %v1245, %v1235
        %v1786 = vpack.c.b16 %v1246, %v1236
        %v1787 = vpack.c.b16 %v1247, %v1237
        %v1788 = vpack.c.b16 %v1248, %v1238
        %v1789 = vpack.c.b16 %v1249, %v1239
        %v1790 = vpack.c.b16 %v1250, %v1240
        %v1791 = vpack.c.b16 %v1251, %v1241
        %v1792 = vpack.c.b16 %v1252, %v1242
        %v1793 = vpack.c.b16 %v1253, %v1243
        %v1794 = vpack.c.b16 %v1264, %v1254
        %v1795 = vpack.c.b16 %v1265, %v1255
        %v1796 = vpack.c.b16 %v1266, %v1256
        %v1797 = vpack.c.b16 %v1267, %v1257
        %v1798 = vpack.c.b16 %v1268, %v1258
        %v1799 = vpack.c.b16 %v1269, %v1259
        %v1800 = vpack.c.b16 %v1270, %v1260
        %v1801 = vpack.c.b16 %v1271, %v1261
        %v1802 = vpack.c.b16 %v1272, %v1262
        %v1803 = vpack.c.b16 %v1273, %v1263
        %v1804 = vpack.c.b16 %v1284, %v1274
        %v1805 = vpack.c.b16 %v1285, %v1275
        %v1806 = vpack.c.b16 %v1286, %v1276
        %v1807 = vpack.c.b16 %v1287, %v1277
        %v1808 = vpack.c.b16 %v1288, %v1278
        %v1809 = vpack.c.b16 %v1289, %v1279
        %v1810 = vpack.c.b16 %v1290, %v1280
        %v1811 = vpack.c.b16 %v1291, %v1281
        %v1812 = vpack.c.b16 %v1292, %v1282
        %v1813 = vpack.c.b16 %v1293, %v1283
        %v1814 = vpack.c.b16 %v1304, %v1294
        %v1815 = vpack.c.b16 %v1305, %v1295
        %v1816 = vpack.c.b16 %v1306, %v1296
        %v1817 = vpack.c.b16 %v1307, %v1297
        %v1818 = vpack.c.b16 %v1308, %v1298
        %v1819 = vpack.c.b16 %v1309, %v1299
        %v1820 = vpack.c.b16 %v1310, %v1300
        %v1821 = vpack.c.b16 %v1311, %v1301
        %v1822 = vpack.c.b16 %v1312, %v1302
        %v1823 = vpack.c.b16 %v1313, %v1303
        %v1824 = vpack.c.b16 %v1324, %v1314
        %v1825 = vpack.c.b16 %v1325, %v1315
        %v1826 = vpack.c.b16 %v1326, %v1316
        %v1827 = vpack.c.b16 %v1327, %v1317
        %v1828 = vpack.c.b16 %v1328, %v1318
        %v1829 = vpack.c.b16 %v1329, %v1319
        %v1830 = vpack.c.b16 %v1330, %v1320
        %v1831 = vpack.c.b16 %v1331, %v1321
        %v1832 = vpack.c.b16 %v1332, %v1322
        %v1833 = vpack.c.b16 %v1333, %v1323
        %v1834 = vpack.c.b16 %v1344, %v1334
        %v1835 = vpack.c.b16 %v1345, %v1335
        %v1836 = vpack.c.b16 %v1346, %v1336
        %v1837 = vpack.c.b16 %v1347, %v1337
        %v1838 = vpack.c.b16 %v1348, %v1338
        %v1839 = vpack.c.b16 %v1349, %v1339
        %v1840 = vpack.c.b16 %v1350, %v1340
        %v1841 = vpack.c.b16 %v1351, %v1341
        %v1842 = vpack.c.b16 %v1352, %v1342
        %v1843 = vpack.c.b16 %v1353, %v1343
        %v1844 = vpack.c.b16 %v1364, %v1354
        %v1845 = vpack.c.b16 %v1365, %v1355
        %v1846 = vpack.c.b16 %v1366, %v1356
        %v1847 = vpack.c.b16 %v1367, %v1357
        %v1848 = vpack.c.b16 %v1368, %v1358
        %v1849 = vpack.c.b16 %v1369, %v1359
        %v1850 = vpack.c.b16 %v1370, %v1360
        %v1851 = vpack.c.b16 %v1371, %v1361
        %v1852 = vpack.c.b16 %v1372, %v1362
        %v1853 = vpack.c.b16 %v1373, %v1363
        %v1854 = vpack.c.b16 %v1384, %v1374
        %v1855 = vpack.c.b16 %v1385, %v1375
        %v1856 = vpack.c.b16 %v1386, %v1376
        %v1857 = vpack.c.b16 %v1387, %v1377
        %v1858 = vpack.c.b16 %v1388, %v1378
        %v1859 = vpack.c.b16 %v1389, %v1379
        %v1860 = vpack.c.b16 %v1390, %v1380
        %v1861 = vpack.c.b16 %v1391, %v1381
        %v1862 = vpack.c.b16 %v1392, %v1382
        %v1863 = vpack.c.b16 %v1393, %v1383
        %v1864 = vpack.c.b16 %v1404, %v1394
        %v1865 = vpack.c.b16 %v1405, %v1395
        %v1866 = vpack.c.b16 %v1406, %v1396
        %v1867 = vpack.c.b16 %v1407, %v1397
        %v1868 = vpack.c.b16 %v1408, %v1398
        %v1869 = vpack.c.b16 %v1409, %v1399
        %v1870 = vpack.c.b16 %v1410, %v1400
        %v1871 = vpack.c.b16 %v1411, %v1401
        %v1872 = vpack.c.b16 %v1412, %v1402
        %v1873 = vpack.c.b16 %v1413, %v1403
        %v1874 = vpack.c.b16 %v1424, %v1414
        %v1875 = vpack.c.b16 %v1425, %v1415
        %v1876 = vpack.c.b16 %v1426, %v1416
        %v1877 = vpack.c.b16 %v1427, %v1417
        %v1878 = vpack.c.b16 %v1428, %v1418
        %v1879 = vpack.c.b16 %v1429, %v1419
        %v1880 = vpack.c.b16 %v1430, %v1420
        %v1881 = vpack.c.b16 %v1431, %v1421
        %v1882 = vpack.c.b16 %v1432, %v1422
        %v1883 = vpack.c.b16 %v1433, %v1423
        %v1884 = vpack.c.b16 %v1444, %v1434
        %v1885 = vpack.c.b16 %v1445, %v1435
        %v1886 = vpack.c.b16 %v1446, %v1436
        %v1887 = vpack.c.b16 %v1447, %v1437
        %v1888 = vpack.c.b16 %v1448, %v1438
        %v1889 = vpack.c.b16 %v1449, %v1439
        %v1890 = vpack.c.b16 %v1450, %v1440
        %v1891 = vpack.c.b16 %v1451, %v1441
        %v1892 = vpack.c.b16 %v1452, %v1442
        %v1893 = vpack.c.b16 %v1453, %v1443
        %v1894 = vpack.c.b16 %v1464, %v1454
        %v1895 = vpack.c.b16 %v1465, %v1455
        %v1896 = vpack.c.b16 %v1466, %v1456
        %v1897 = vpack.c.b16 %v1467, %v1457
        %v1898 = vpack.c.b16 %v1468, %v1458
        %v1899 = vpack.c.b16 %v1469, %v1459
        %v1900 = vpack.c.b16 %v1470, %v1460
        %v1901 = vpack.c.b16 %v1471, %v1461
        %v1902 = vpack.c.b16 %v1472, %v1462
        %v1903 = vpack.c.b16 %v1473, %v1463
        %v1904 = vpack.c.b16 %v1484, %v1474
        %v1905 = vpack.c.b16 %v1485, %v1475
        %v1906 = vpack.c.b16 %v1486, %v1476
        %v1907 = vpack.c.b16 %v1487, %v1477
        %v1908 = vpack.c.b16 %v1488, %v1478
        %v1909 = vpack.c.b16 %v1489, %v1479
        %v1910 = vpack.c.b16 %v1490, %v1480
        %v1911 = vpack.c.b16 %v1491, %v1481
        %v1912 = vpack.c.b16 %v1492, %v1482
        %v1913 = vpack.c.b16 %v1493, %v1483
        %v1914 = vpack.c.b16 %v1504, %v1494
        %v1915 = vpack.c.b16 %v1505, %v1495
        %v1916 = vpack.c.b16 %v1506, %v1496
        %v1917 = vpack.c.b16 %v1507, %v1497
        %v1918 = vpack.c.b16 %v1508, %v1498
        %v1919 = vpack.c.b16 %v1509, %v1499
        %v1920 = vpack.c.b16 %v1510, %v1500
        %v1921 = vpack.c.b16 %v1511, %v1501
        %v1922 = vpack.c.b16 %v1512, %v1502
        %v1923 = vpack.c.b16 %v1513, %v1503
        %v1924 = vpack.c.b16 %v1524, %v1514
        %v1925 = vpack.c.b16 %v1525, %v1515
        %v1926 = vpack.c.b16 %v1526, %v1516
        %v1927 = vpack.c.b16 %v1527, %v1517
        %v1928 = vpack.c.b16 %v1528, %v1518
        %v1929 = vpack.c.b16 %v1529, %v1519
        %v1930 = vpack.c.b16 %v1530, %v1520
        %v1931 = vpack.c.b16 %v1531, %v1521
        %v1932 = vpack.c.b16 %v1532, %v1522
        %v1933 = vpack.c.b16 %v1533, %v1523
        %v1934 = vpack.c.b16 %v1544, %v1534
        %v1935 = vpack.c.b16 %v1545, %v1535
        %v1936 = vpack.c.b16 %v1546, %v1536
        %v1937 = vpack.c.b16 %v1547, %v1537
        %v1938 = vpack.c.b16 %v1548, %v1538
        %v1939 = vpack.c.b16 %v1549, %v1539
        %v1940 = vpack.c.b16 %v1550, %v1540
        %v1941 = vpack.c.b16 %v1551, %v1541
        %v1942 = vpack.c.b16 %v1552, %v1542
        %v1943 = vpack.c.b16 %v1553, %v1543
        %v1944 = vpack.c.b16 %v1564, %v1554
        %v1945 = vpack.c.b16 %v1565, %v1555
        %v1946 = vpack.c.b16 %v1566, %v1556
        %v1947 = vpack.c.b16 %v1567, %v1557
        %v1948 = vpack.c.b16 %v1568, %v1558
        %v1949 = vpack.c.b16 %v1569, %v1559
        %v1950 = vpack.c.b16 %v1570, %v1560
        %v1951 = vpack.c.b16 %v1571, %v1561
        %v1952 = vpack.c.b16 %v1572, %v1562
        %v1953 = vpack.c.b16 %v1573, %v1563
        %v1954 = vpack.c.b16 %v1584, %v1574
        %v1955 = vpack.c.b16 %v1585, %v1575
        %v1956 = vpack.c.b16 %v1586, %v1576
        %v1957 = vpack.c.b16 %v1587, %v1577
        %v1958 = vpack.c.b16 %v1588, %v1578
        %v1959 = vpack.c.b16 %v1589, %v1579
        %v1960 = vpack.c.b16 %v1590, %v1580
        %v1961 = vpack.c.b16 %v1591, %v1581
        %v1962 = vpack.c.b16 %v1592, %v1582
        %v1963 = vpack.c.b16 %v1593, %v1583
        %v1964 = vpack.c.b16 %v1604, %v1594
        %v1965 = vpack.c.b16 %v1605, %v1595
        %v1966 = vpack.c.b16 %v1606, %v1596
        %v1967 = vpack.c.b16 %v1607, %v1597
        %v1968 = vpack.c.b16 %v1608, %v1598
        %v1969 = vpack.c.b16 %v1609, %v1599
        %v1970 = vpack.c.b16 %v1610, %v1600
        %v1971 = vpack.c.b16 %v1611, %v1601
        %v1972 = vpack.c.b16 %v1612, %v1602
        %v1973 = vpack.c.b16 %v1613, %v1603
        %v1974 = vpack.c.b16 %v1624, %v1614
        %v1975 = vpack.c.b16 %v1625, %v1615
        %v1976 = vpack.c.b16 %v1626, %v1616
        %v1977 = vpack.c.b16 %v1627, %v1617
        %v1978 = vpack.c.b16 %v1628, %v1618
        %v1979 = vpack.c.b16 %v1629, %v1619
        %v1980 = vpack.c.b16 %v1630, %v1620
        %v1981 = vpack.c.b16 %v1631, %v1621
        %v1982 = vpack.c.b16 %v1632, %v1622
        %v1983 = vpack.c.b16 %v1633, %v1623
        %v1984 = vpack.c.b16 %v1644, %v1634
        %v1985 = vpack.c.b16 %v1645, %v1635
        %v1986 = vpack.c.b16 %v1646, %v1636
        %v1987 = vpack.c.b16 %v1647, %v1637
        %v1988 = vpack.c.b16 %v1648, %v1638
        %v1989 = vpack.c.b16 %v1649, %v1639
        %v1990 = vpack.c.b16 %v1650, %v1640
        %v1991 = vpack.c.b16 %v1651, %v1641
        %v1992 = vpack.c.b16 %v1652, %v1642
        %v1993 = vpack.c.b16 %v1653, %v1643
        %v1994 = vpack.c.b16 %v1664, %v1654
        %v1995 = vpack.c.b16 %v1665, %v1655
        %v1996 = vpack.c.b16 %v1666, %v1656
        %v1997 = vpack.c.b16 %v1667, %v1657
        %v1998 = vpack.c.b16 %v1668, %v1658
        %v1999 = vpack.c.b16 %v1669, %v1659
        %v2000 = vpack.c.b16 %v1670, %v1660
        %v2001 = vpack.c.b16 %v1671, %v1661
        %v2002 = vpack.c.b16 %v1672, %v1662
        %v2003 = vpack.c.b16 %v1673, %v1663
        %v2004 = vpack.c.b16 %v1684, %v1674
        %v2005 = vpack.c.b16 %v1685, %v1675
        %v2006 = vpack.c.b16 %v1686, %v1676
        %v2007 = vpack.c.b16 %v1687, %v1677
        %v2008 = vpack.c.b16 %v1688, %v1678
        %v2009 = vpack.c.b16 %v1689, %v1679
        %v2010 = vpack.c.b16 %v1690, %v1680
        %v2011 = vpack.c.b16 %v1691, %v1681
        %v2012 = vpack.c.b16 %v1692, %v1682
        %v2013 = vpack.c.b16 %v1693, %v1683
        %2334 = vmatprep.subr.bf16.mxu0 %v1765
        %2335 = vmatpush1.bf16.msra.mxu0 %v1764
        %2336 = vmatprep.subr.bf16.mxu0 %v1755
        %2337 = vmatpush1.bf16.msra.mxu0 %v1754
        %2338 = vmatprep.subr.bf16.mxu0 %v1745
        %2339 = vmatpush1.bf16.msra.mxu0 %v1744
        %2340 = vmatprep.subr.bf16.mxu0 %v1735
        %2341 = vmatpush1.bf16.msra.mxu0 %v1734
        %2342 = vmatprep.subr.bf16.mxu0 %v1725
        %2343 = vmatpush1.bf16.msra.mxu0 %v1724
        %2344 = vmatprep.subr.bf16.mxu0 %v1715
        %2345 = vmatpush1.bf16.msra.mxu0 %v1714
        %2346 = vmatprep.subr.bf16.mxu0 %v1705
        %2347 = vmatpush1.bf16.msra.mxu0 %v1704
        %2348 = vmatprep.subr.bf16.mxu0 %v1695
        %2349 = vmatpush1.bf16.msra.mxu0 %v1694
        %2350 = vmatprep.subr.bf16.mxu0 %v1845
        %2351 = vmatpush2.bf16.msra.mxu0 %v1844
        %2352 = vmatprep.subr.bf16.mxu0 %v1835
        %2353 = vmatpush2.bf16.msra.mxu0 %v1834
        %2354 = vmatprep.subr.bf16.mxu0 %v1825
        %2355 = vmatpush2.bf16.msra.mxu0 %v1824
        %2356 = vmatprep.subr.bf16.mxu0 %v1815
        %2357 = vmatpush2.bf16.msra.mxu0 %v1814
        %2358 = vmatprep.subr.bf16.mxu0 %v1805
        %2359 = vmatpush2.bf16.msra.mxu0 %v1804
        %2360 = vmatprep.subr.bf16.mxu0 %v1795
        %2361 = vmatpush2.bf16.msra.mxu0 %v1794
        %2362 = vmatprep.subr.bf16.mxu0 %v1785
        %2363 = vmatpush2.bf16.msra.mxu0 %v1784
        %2364 = vmatprep.subr.bf16.mxu0 %v1775
        %2365 = vmatpush2.bf16.msra.mxu0 %v1774
        %2366 = vmatprep.mubr.bf16.mxu0 %v728
        %2367 = vmatmul.mubr.bf16.gmra.mxu0 %v720
        %v2368 = vpop.f32.mrf.mxu0
        %v2369 = vadd.f32 0.0, %v2368
        %v2370 = vpop.f32.mrf.mxu0
        %v2371 = vadd.f32 0.0, %v2370
        %v2372 = vpop.f32.mrf.mxu0
        %v2373 = vpop.f32.mrf.mxu0
        %2374 = vdwg.mxu0
        %2375 = vmatprep.subr.bf16.mxu0 %v1925
        %2376 = vmatpush1.bf16.msra.mxu0 %v1924
        %2377 = vmatprep.subr.bf16.mxu0 %v1915
        %2378 = vmatpush1.bf16.msra.mxu0 %v1914
        %2379 = vmatprep.subr.bf16.mxu0 %v1905
        %2380 = vmatpush1.bf16.msra.mxu0 %v1904
        %2381 = vmatprep.subr.bf16.mxu0 %v1895
        %2382 = vmatpush1.bf16.msra.mxu0 %v1894
        %2383 = vmatprep.subr.bf16.mxu0 %v1885
        %2384 = vmatpush1.bf16.msra.mxu0 %v1884
        %2385 = vmatprep.subr.bf16.mxu0 %v1875
        %2386 = vmatpush1.bf16.msra.mxu0 %v1874
        %2387 = vmatprep.subr.bf16.mxu0 %v1865
        %2388 = vmatpush1.bf16.msra.mxu0 %v1864
        %2389 = vmatprep.subr.bf16.mxu0 %v1855
        %2390 = vmatpush1.bf16.msra.mxu0 %v1854
        %2391 = vmatprep.subr.bf16.mxu0 %v2005
        %2392 = vmatpush2.bf16.msra.mxu0 %v2004
        %2393 = vmatprep.subr.bf16.mxu0 %v1995
        %2394 = vmatpush2.bf16.msra.mxu0 %v1994
        %2395 = vmatprep.subr.bf16.mxu0 %v1985
        %2396 = vmatpush2.bf16.msra.mxu0 %v1984
        %2397 = vmatprep.subr.bf16.mxu0 %v1975
        %2398 = vmatpush2.bf16.msra.mxu0 %v1974
        %2399 = vmatprep.subr.bf16.mxu0 %v1965
        %2400 = vmatpush2.bf16.msra.mxu0 %v1964
        %2401 = vmatprep.subr.bf16.mxu0 %v1955
        %2402 = vmatpush2.bf16.msra.mxu0 %v1954
        %2403 = vmatprep.subr.bf16.mxu0 %v1945
        %2404 = vmatpush2.bf16.msra.mxu0 %v1944
        %2405 = vmatprep.subr.bf16.mxu0 %v1935
        %2406 = vmatpush2.bf16.msra.mxu0 %v1934
        %2407 = vmatprep.mubr.bf16.mxu0 %v729
        %2408 = vmatmul.mubr.bf16.gmra.mxu0 %v727
        %v2409 = vpop.f32.mrf.mxu0
        %v2410 = vadd.f32 %v2369, %v2409
        %v2411 = vpop.f32.mrf.mxu0
        %v2412 = vadd.f32 %v2371, %v2411
        %v2413 = vpop.f32.mrf.mxu0
        %v2414 = vpop.f32.mrf.mxu0
        %2415 = vdwg.mxu0
        %2416 = vmatprep.subr.bf16.mxu0 %v1767
        %2417 = vmatpush1.bf16.msra.mxu0 %v1766
        %2418 = vmatprep.subr.bf16.mxu0 %v1757
        %2419 = vmatpush1.bf16.msra.mxu0 %v1756
        %2420 = vmatprep.subr.bf16.mxu0 %v1747
        %2421 = vmatpush1.bf16.msra.mxu0 %v1746
        %2422 = vmatprep.subr.bf16.mxu0 %v1737
        %2423 = vmatpush1.bf16.msra.mxu0 %v1736
        %2424 = vmatprep.subr.bf16.mxu0 %v1727
        %2425 = vmatpush1.bf16.msra.mxu0 %v1726
        %2426 = vmatprep.subr.bf16.mxu0 %v1717
        %2427 = vmatpush1.bf16.msra.mxu0 %v1716
        %2428 = vmatprep.subr.bf16.mxu0 %v1707
        %2429 = vmatpush1.bf16.msra.mxu0 %v1706
        %2430 = vmatprep.subr.bf16.mxu0 %v1697
        %2431 = vmatpush1.bf16.msra.mxu0 %v1696
        %2432 = vmatprep.subr.bf16.mxu0 %v1847
        %2433 = vmatpush2.bf16.msra.mxu0 %v1846
        %2434 = vmatprep.subr.bf16.mxu0 %v1837
        %2435 = vmatpush2.bf16.msra.mxu0 %v1836
        %2436 = vmatprep.subr.bf16.mxu0 %v1827
        %2437 = vmatpush2.bf16.msra.mxu0 %v1826
        %2438 = vmatprep.subr.bf16.mxu0 %v1817
        %2439 = vmatpush2.bf16.msra.mxu0 %v1816
        %2440 = vmatprep.subr.bf16.mxu0 %v1807
        %2441 = vmatpush2.bf16.msra.mxu0 %v1806
        %2442 = vmatprep.subr.bf16.mxu0 %v1797
        %2443 = vmatpush2.bf16.msra.mxu0 %v1796
        %2444 = vmatprep.subr.bf16.mxu0 %v1787
        %2445 = vmatpush2.bf16.msra.mxu0 %v1786
        %2446 = vmatprep.subr.bf16.mxu0 %v1777
        %2447 = vmatpush2.bf16.msra.mxu0 %v1776
        %2448 = vmatprep.mubr.bf16.mxu0 %v728
        %2449 = vmatmul.mubr.bf16.gmra.mxu0 %v720
        %v2450 = vpop.f32.mrf.mxu0
        %v2451 = vadd.f32 0.0, %v2450
        %v2452 = vpop.f32.mrf.mxu0
        %v2453 = vadd.f32 0.0, %v2452
        %v2454 = vpop.f32.mrf.mxu0
        %v2455 = vpop.f32.mrf.mxu0
        %2456 = vdwg.mxu0
        %2457 = vmatprep.subr.bf16.mxu0 %v1927
        %2458 = vmatpush1.bf16.msra.mxu0 %v1926
        %2459 = vmatprep.subr.bf16.mxu0 %v1917
        %2460 = vmatpush1.bf16.msra.mxu0 %v1916
        %2461 = vmatprep.subr.bf16.mxu0 %v1907
        %2462 = vmatpush1.bf16.msra.mxu0 %v1906
        %2463 = vmatprep.subr.bf16.mxu0 %v1897
        %2464 = vmatpush1.bf16.msra.mxu0 %v1896
        %2465 = vmatprep.subr.bf16.mxu0 %v1887
        %2466 = vmatpush1.bf16.msra.mxu0 %v1886
        %2467 = vmatprep.subr.bf16.mxu0 %v1877
        %2468 = vmatpush1.bf16.msra.mxu0 %v1876
        %2469 = vmatprep.subr.bf16.mxu0 %v1867
        %2470 = vmatpush1.bf16.msra.mxu0 %v1866
        %2471 = vmatprep.subr.bf16.mxu0 %v1857
        %2472 = vmatpush1.bf16.msra.mxu0 %v1856
        %2473 = vmatprep.subr.bf16.mxu0 %v2007
        %2474 = vmatpush2.bf16.msra.mxu0 %v2006
        %2475 = vmatprep.subr.bf16.mxu0 %v1997
        %2476 = vmatpush2.bf16.msra.mxu0 %v1996
        %2477 = vmatprep.subr.bf16.mxu0 %v1987
        %2478 = vmatpush2.bf16.msra.mxu0 %v1986
        %2479 = vmatprep.subr.bf16.mxu0 %v1977
        %2480 = vmatpush2.bf16.msra.mxu0 %v1976
        %2481 = vmatprep.subr.bf16.mxu0 %v1967
        %2482 = vmatpush2.bf16.msra.mxu0 %v1966
        %2483 = vmatprep.subr.bf16.mxu0 %v1957
        %2484 = vmatpush2.bf16.msra.mxu0 %v1956
        %2485 = vmatprep.subr.bf16.mxu0 %v1947
        %2486 = vmatpush2.bf16.msra.mxu0 %v1946
        %2487 = vmatprep.subr.bf16.mxu0 %v1937
        %2488 = vmatpush2.bf16.msra.mxu0 %v1936
        %2489 = vmatprep.mubr.bf16.mxu0 %v729
        %2490 = vmatmul.mubr.bf16.gmra.mxu0 %v727
        %v2491 = vpop.f32.mrf.mxu0
        %v2492 = vadd.f32 %v2451, %v2491
        %v2493 = vpop.f32.mrf.mxu0
        %v2494 = vadd.f32 %v2453, %v2493
        %v2495 = vpop.f32.mrf.mxu0
        %v2496 = vpop.f32.mrf.mxu0
        %2497 = vdwg.mxu0
        %2498 = vmatprep.subr.bf16.mxu0 %v1769
        %2499 = vmatpush1.bf16.msra.mxu0 %v1768
        %2500 = vmatprep.subr.bf16.mxu0 %v1759
        %2501 = vmatpush1.bf16.msra.mxu0 %v1758
        %2502 = vmatprep.subr.bf16.mxu0 %v1749
        %2503 = vmatpush1.bf16.msra.mxu0 %v1748
        %2504 = vmatprep.subr.bf16.mxu0 %v1739
        %2505 = vmatpush1.bf16.msra.mxu0 %v1738
        %2506 = vmatprep.subr.bf16.mxu0 %v1729
        %2507 = vmatpush1.bf16.msra.mxu0 %v1728
        %2508 = vmatprep.subr.bf16.mxu0 %v1719
        %2509 = vmatpush1.bf16.msra.mxu0 %v1718
        %2510 = vmatprep.subr.bf16.mxu0 %v1709
        %2511 = vmatpush1.bf16.msra.mxu0 %v1708
        %2512 = vmatprep.subr.bf16.mxu0 %v1699
        %2513 = vmatpush1.bf16.msra.mxu0 %v1698
        %2514 = vmatprep.subr.bf16.mxu0 %v1849
        %2515 = vmatpush2.bf16.msra.mxu0 %v1848
        %2516 = vmatprep.subr.bf16.mxu0 %v1839
        %2517 = vmatpush2.bf16.msra.mxu0 %v1838
        %2518 = vmatprep.subr.bf16.mxu0 %v1829
        %2519 = vmatpush2.bf16.msra.mxu0 %v1828
        %2520 = vmatprep.subr.bf16.mxu0 %v1819
        %2521 = vmatpush2.bf16.msra.mxu0 %v1818
        %2522 = vmatprep.subr.bf16.mxu0 %v1809
        %2523 = vmatpush2.bf16.msra.mxu0 %v1808
        %2524 = vmatprep.subr.bf16.mxu0 %v1799
        %2525 = vmatpush2.bf16.msra.mxu0 %v1798
        %2526 = vmatprep.subr.bf16.mxu0 %v1789
        %2527 = vmatpush2.bf16.msra.mxu0 %v1788
        %2528 = vmatprep.subr.bf16.mxu0 %v1779
        %2529 = vmatpush2.bf16.msra.mxu0 %v1778
        %2530 = vmatprep.mubr.bf16.mxu0 %v728
        %2531 = vmatmul.mubr.bf16.gmra.mxu0 %v720
        %v2532 = vpop.f32.mrf.mxu0
        %v2533 = vadd.f32 0.0, %v2532
        %v2534 = vpop.f32.mrf.mxu0
        %v2535 = vadd.f32 0.0, %v2534
        %v2536 = vpop.f32.mrf.mxu0
        %v2537 = vpop.f32.mrf.mxu0
        %2538 = vdwg.mxu0
        %2539 = vmatprep.subr.bf16.mxu0 %v1929
        %2540 = vmatpush1.bf16.msra.mxu0 %v1928
        %2541 = vmatprep.subr.bf16.mxu0 %v1919
        %2542 = vmatpush1.bf16.msra.mxu0 %v1918
        %2543 = vmatprep.subr.bf16.mxu0 %v1909
        %2544 = vmatpush1.bf16.msra.mxu0 %v1908
        %2545 = vmatprep.subr.bf16.mxu0 %v1899
        %2546 = vmatpush1.bf16.msra.mxu0 %v1898
        %2547 = vmatprep.subr.bf16.mxu0 %v1889
        %2548 = vmatpush1.bf16.msra.mxu0 %v1888
        %2549 = vmatprep.subr.bf16.mxu0 %v1879
        %2550 = vmatpush1.bf16.msra.mxu0 %v1878
        %2551 = vmatprep.subr.bf16.mxu0 %v1869
        %2552 = vmatpush1.bf16.msra.mxu0 %v1868
        %2553 = vmatprep.subr.bf16.mxu0 %v1859
        %2554 = vmatpush1.bf16.msra.mxu0 %v1858
        %2555 = vmatprep.subr.bf16.mxu0 %v2009
        %2556 = vmatpush2.bf16.msra.mxu0 %v2008
        %2557 = vmatprep.subr.bf16.mxu0 %v1999
        %2558 = vmatpush2.bf16.msra.mxu0 %v1998
        %2559 = vmatprep.subr.bf16.mxu0 %v1989
        %2560 = vmatpush2.bf16.msra.mxu0 %v1988
        %2561 = vmatprep.subr.bf16.mxu0 %v1979
        %2562 = vmatpush2.bf16.msra.mxu0 %v1978
        %2563 = vmatprep.subr.bf16.mxu0 %v1969
        %2564 = vmatpush2.bf16.msra.mxu0 %v1968
        %2565 = vmatprep.subr.bf16.mxu0 %v1959
        %2566 = vmatpush2.bf16.msra.mxu0 %v1958
        %2567 = vmatprep.subr.bf16.mxu0 %v1949
        %2568 = vmatpush2.bf16.msra.mxu0 %v1948
        %2569 = vmatprep.subr.bf16.mxu0 %v1939
        %2570 = vmatpush2.bf16.msra.mxu0 %v1938
        %2571 = vmatprep.mubr.bf16.mxu0 %v729
        %2572 = vmatmul.mubr.bf16.gmra.mxu0 %v727
        %v2573 = vpop.f32.mrf.mxu0
        %v2574 = vadd.f32 %v2533, %v2573
        %v2575 = vpop.f32.mrf.mxu0
        %v2576 = vadd.f32 %v2535, %v2575
        %v2577 = vpop.f32.mrf.mxu0
        %v2578 = vpop.f32.mrf.mxu0
        %2579 = vdwg.mxu0
        %2580 = vmatprep.subr.bf16.mxu0 %v1771
        %2581 = vmatpush1.bf16.msra.mxu0 %v1770
        %2582 = vmatprep.subr.bf16.mxu0 %v1761
        %2583 = vmatpush1.bf16.msra.mxu0 %v1760
        %2584 = vmatprep.subr.bf16.mxu0 %v1751
        %2585 = vmatpush1.bf16.msra.mxu0 %v1750
        %2586 = vmatprep.subr.bf16.mxu0 %v1741
        %2587 = vmatpush1.bf16.msra.mxu0 %v1740
        %2588 = vmatprep.subr.bf16.mxu0 %v1731
        %2589 = vmatpush1.bf16.msra.mxu0 %v1730
        %2590 = vmatprep.subr.bf16.mxu0 %v1721
        %2591 = vmatpush1.bf16.msra.mxu0 %v1720
        %2592 = vmatprep.subr.bf16.mxu0 %v1711
        %2593 = vmatpush1.bf16.msra.mxu0 %v1710
        %2594 = vmatprep.subr.bf16.mxu0 %v1701
        %2595 = vmatpush1.bf16.msra.mxu0 %v1700
        %2596 = vmatprep.subr.bf16.mxu0 %v1851
        %2597 = vmatpush2.bf16.msra.mxu0 %v1850
        %2598 = vmatprep.subr.bf16.mxu0 %v1841
        %2599 = vmatpush2.bf16.msra.mxu0 %v1840
        %2600 = vmatprep.subr.bf16.mxu0 %v1831
        %2601 = vmatpush2.bf16.msra.mxu0 %v1830
        %2602 = vmatprep.subr.bf16.mxu0 %v1821
        %2603 = vmatpush2.bf16.msra.mxu0 %v1820
        %2604 = vmatprep.subr.bf16.mxu0 %v1811
        %2605 = vmatpush2.bf16.msra.mxu0 %v1810
        %2606 = vmatprep.subr.bf16.mxu0 %v1801
        %2607 = vmatpush2.bf16.msra.mxu0 %v1800
        %2608 = vmatprep.subr.bf16.mxu0 %v1791
        %2609 = vmatpush2.bf16.msra.mxu0 %v1790
        %2610 = vmatprep.subr.bf16.mxu0 %v1781
        %2611 = vmatpush2.bf16.msra.mxu0 %v1780
        %2612 = vmatprep.mubr.bf16.mxu0 %v728
        %2613 = vmatmul.mubr.bf16.gmra.mxu0 %v720
        %v2614 = vpop.f32.mrf.mxu0
        %v2615 = vadd.f32 0.0, %v2614
        %v2616 = vpop.f32.mrf.mxu0
        %v2617 = vadd.f32 0.0, %v2616
        %v2618 = vpop.f32.mrf.mxu0
        %v2619 = vpop.f32.mrf.mxu0
        %2620 = vdwg.mxu0
        %2621 = vmatprep.subr.bf16.mxu0 %v1931
        %2622 = vmatpush1.bf16.msra.mxu0 %v1930
        %2623 = vmatprep.subr.bf16.mxu0 %v1921
        %2624 = vmatpush1.bf16.msra.mxu0 %v1920
        %2625 = vmatprep.subr.bf16.mxu0 %v1911
        %2626 = vmatpush1.bf16.msra.mxu0 %v1910
        %2627 = vmatprep.subr.bf16.mxu0 %v1901
        %2628 = vmatpush1.bf16.msra.mxu0 %v1900
        %2629 = vmatprep.subr.bf16.mxu0 %v1891
        %2630 = vmatpush1.bf16.msra.mxu0 %v1890
        %2631 = vmatprep.subr.bf16.mxu0 %v1881
        %2632 = vmatpush1.bf16.msra.mxu0 %v1880
        %2633 = vmatprep.subr.bf16.mxu0 %v1871
        %2634 = vmatpush1.bf16.msra.mxu0 %v1870
        %2635 = vmatprep.subr.bf16.mxu0 %v1861
        %2636 = vmatpush1.bf16.msra.mxu0 %v1860
        %2637 = vmatprep.subr.bf16.mxu0 %v2011
        %2638 = vmatpush2.bf16.msra.mxu0 %v2010
        %2639 = vmatprep.subr.bf16.mxu0 %v2001
        %2640 = vmatpush2.bf16.msra.mxu0 %v2000
        %2641 = vmatprep.subr.bf16.mxu0 %v1991
        %2642 = vmatpush2.bf16.msra.mxu0 %v1990
        %2643 = vmatprep.subr.bf16.mxu0 %v1981
        %2644 = vmatpush2.bf16.msra.mxu0 %v1980
        %2645 = vmatprep.subr.bf16.mxu0 %v1971
        %2646 = vmatpush2.bf16.msra.mxu0 %v1970
        %2647 = vmatprep.subr.bf16.mxu0 %v1961
        %2648 = vmatpush2.bf16.msra.mxu0 %v1960
        %2649 = vmatprep.subr.bf16.mxu0 %v1951
        %2650 = vmatpush2.bf16.msra.mxu0 %v1950
        %2651 = vmatprep.subr.bf16.mxu0 %v1941
        %2652 = vmatpush2.bf16.msra.mxu0 %v1940
        %2653 = vmatprep.mubr.bf16.mxu0 %v729
        %2654 = vmatmul.mubr.bf16.gmra.mxu0 %v727
        %v2655 = vpop.f32.mrf.mxu0
        %v2656 = vadd.f32 %v2615, %v2655
        %v2657 = vpop.f32.mrf.mxu0
        %v2658 = vadd.f32 %v2617, %v2657
        %v2659 = vpop.f32.mrf.mxu0
        %v2660 = vpop.f32.mrf.mxu0
        %2661 = vdwg.mxu0
        %2662 = vmatprep.subr.bf16.mxu0 %v1773
        %2663 = vmatpush1.bf16.msra.mxu0 %v1772
        %2664 = vmatprep.subr.bf16.mxu0 %v1763
        %2665 = vmatpush1.bf16.msra.mxu0 %v1762
        %2666 = vmatprep.subr.bf16.mxu0 %v1753
        %2667 = vmatpush1.bf16.msra.mxu0 %v1752
        %2668 = vmatprep.subr.bf16.mxu0 %v1743
        %2669 = vmatpush1.bf16.msra.mxu0 %v1742
        %2670 = vmatprep.subr.bf16.mxu0 %v1733
        %2671 = vmatpush1.bf16.msra.mxu0 %v1732
        %2672 = vmatprep.subr.bf16.mxu0 %v1723
        %2673 = vmatpush1.bf16.msra.mxu0 %v1722
        %2674 = vmatprep.subr.bf16.mxu0 %v1713
        %2675 = vmatpush1.bf16.msra.mxu0 %v1712
        %2676 = vmatprep.subr.bf16.mxu0 %v1703
        %2677 = vmatpush1.bf16.msra.mxu0 %v1702
        %2678 = vmatprep.subr.bf16.mxu0 %v1853
        %2679 = vmatpush2.bf16.msra.mxu0 %v1852
        %2680 = vmatprep.subr.bf16.mxu0 %v1843
        %2681 = vmatpush2.bf16.msra.mxu0 %v1842
        %2682 = vmatprep.subr.bf16.mxu0 %v1833
        %2683 = vmatpush2.bf16.msra.mxu0 %v1832
        %2684 = vmatprep.subr.bf16.mxu0 %v1823
        %2685 = vmatpush2.bf16.msra.mxu0 %v1822
        %2686 = vmatprep.subr.bf16.mxu0 %v1813
        %2687 = vmatpush2.bf16.msra.mxu0 %v1812
        %2688 = vmatprep.subr.bf16.mxu0 %v1803
        %2689 = vmatpush2.bf16.msra.mxu0 %v1802
        %2690 = vmatprep.subr.bf16.mxu0 %v1793
        %2691 = vmatpush2.bf16.msra.mxu0 %v1792
        %2692 = vmatprep.subr.bf16.mxu0 %v1783
        %2693 = vmatpush2.bf16.msra.mxu0 %v1782
        %2694 = vmatprep.mubr.bf16.mxu0 %v728
        %2695 = vmatmul.mubr.bf16.gmra.mxu0 %v720
        %v2696 = vpop.f32.mrf.mxu0
        %v2697 = vadd.f32 0.0, %v2696
        %v2698 = vpop.f32.mrf.mxu0
        %v2699 = vadd.f32 0.0, %v2698
        %v2700 = vpop.f32.mrf.mxu0
        %v2701 = vpop.f32.mrf.mxu0
        %2702 = vdwg.mxu0
        %2703 = vmatprep.subr.bf16.mxu0 %v1933
        %2704 = vmatpush1.bf16.msra.mxu0 %v1932
        %2705 = vmatprep.subr.bf16.mxu0 %v1923
        %2706 = vmatpush1.bf16.msra.mxu0 %v1922
        %2707 = vmatprep.subr.bf16.mxu0 %v1913
        %2708 = vmatpush1.bf16.msra.mxu0 %v1912
        %2709 = vmatprep.subr.bf16.mxu0 %v1903
        %2710 = vmatpush1.bf16.msra.mxu0 %v1902
        %2711 = vmatprep.subr.bf16.mxu0 %v1893
        %2712 = vmatpush1.bf16.msra.mxu0 %v1892
        %2713 = vmatprep.subr.bf16.mxu0 %v1883
        %2714 = vmatpush1.bf16.msra.mxu0 %v1882
        %2715 = vmatprep.subr.bf16.mxu0 %v1873
        %2716 = vmatpush1.bf16.msra.mxu0 %v1872
        %2717 = vmatprep.subr.bf16.mxu0 %v1863
        %2718 = vmatpush1.bf16.msra.mxu0 %v1862
        %2719 = vmatprep.subr.bf16.mxu0 %v2013
        %2720 = vmatpush2.bf16.msra.mxu0 %v2012
        %2721 = vmatprep.subr.bf16.mxu0 %v2003
        %2722 = vmatpush2.bf16.msra.mxu0 %v2002
        %2723 = vmatprep.subr.bf16.mxu0 %v1993
        %2724 = vmatpush2.bf16.msra.mxu0 %v1992
        %2725 = vmatprep.subr.bf16.mxu0 %v1983
        %2726 = vmatpush2.bf16.msra.mxu0 %v1982
        %2727 = vmatprep.subr.bf16.mxu0 %v1973
        %2728 = vmatpush2.bf16.msra.mxu0 %v1972
        %2729 = vmatprep.subr.bf16.mxu0 %v1963
        %2730 = vmatpush2.bf16.msra.mxu0 %v1962
        %2731 = vmatprep.subr.bf16.mxu0 %v1953
        %2732 = vmatpush2.bf16.msra.mxu0 %v1952
        %2733 = vmatprep.subr.bf16.mxu0 %v1943
        %2734 = vmatpush2.bf16.msra.mxu0 %v1942
        %2735 = vmatprep.mubr.bf16.mxu0 %v729
        %2736 = vmatmul.mubr.bf16.gmra.mxu0 %v727
        %v2737 = vpop.f32.mrf.mxu0
        %v2738 = vadd.f32 %v2697, %v2737
        %v2739 = vpop.f32.mrf.mxu0
        %v2740 = vadd.f32 %v2699, %v2739
        %v2741 = vpop.f32.mrf.mxu0
        %v2742 = vpop.f32.mrf.mxu0
        %2743 = vdwg.mxu0
        %v2754 = vcombine.low %v2410, %v2412
        %v2755 = vcombine.low %v2492, %v2494
        %v2756 = vcombine.low %v2574, %v2576
        %v2757 = vcombine.low %v2656, %v2658
        %v2758 = vcombine.low %v2738, %v2740
        %v2764 = vadd.f32 %v386, %v2754
        %v2765 = vadd.f32 %v387, %v2755
        %v2766 = vadd.f32 %v388, %v2756
        %v2767 = vadd.f32 %v389, %v2757
        %v2768 = vadd.f32 %v390, %v2758
        %2769 = vst [vmem:[#allocation2] sm:$0xff] %v2764
        %2770 = vst [vmem:[#allocation2 + $0x8] sm:$0xff] %v2765
        %2771 = vst [vmem:[#allocation2 + $0x10] sm:$0xff] %v2766
        %2772 = vst [vmem:[#allocation2 + $0x18] sm:$0xff] %v2767
        %vm2773 = vcmask 1043456
        %vm2774 = vcmask 834564
        %vm2775 = vmor %vm2774, %vm2773
        %2776 = vst.msk [vmem:[#allocation2 + $0x20] sm:$0xff] %vm2775, %v2768
        %p2777 = scmp.eq.s32.totalorder %s22, 4
        // Predicated region
        $region65: #{net_forward.7} parent=59 // pred_check
          %p2778 = pneg %p2777
        $region66: #{net_forward.7} parent=59 // pred_check_branch
          %2780 = sbr.rel (%p2778) target = $region68
        $region67: #{net_forward.7} parent=59 // pred_region
          %v2781 = vld [vmem:[#allocation2] sm:$0xff]
          %v2782 = vld [vmem:[#allocation2 + $0x8] sm:$0xff]
          %v2783 = vld [vmem:[#allocation2 + $0x10] sm:$0xff]
          %v2784 = vld [vmem:[#allocation2 + $0x18] sm:$0xff]
          %v2785 = vld [vmem:[#allocation2 + $0x20] sm:$0xff]
          %v2786 = vld [vmem:[%s2] sm:$0xff]
          %v2787 = vld [vmem:[%s2 + $0x8] sm:$0x3]
          %v2790 = vlaneseq
          %v2791 = vshrl.u32 %v2790, 7
          %v2792 = vsub.s32 0, %v2791
          %v2793 = vrot.slane %v2786, %v2792
          %v2794 = vlaneseq
          %v2795 = vshrl.u32 %v2794, 7
          %v2796 = vsub.s32 1, %v2795
          %v2797 = vrot.slane %v2786, %v2796
          %v2798 = vlaneseq
          %v2799 = vshrl.u32 %v2798, 7
          %v2800 = vsub.s32 2, %v2799
          %v2801 = vrot.slane %v2786, %v2800
          %v2802 = vlaneseq
          %v2803 = vshrl.u32 %v2802, 7
          %v2804 = vsub.s32 3, %v2803
          %v2805 = vrot.slane %v2786, %v2804
          %v2806 = vlaneseq
          %v2807 = vshrl.u32 %v2806, 7
          %v2808 = vsub.s32 4, %v2807
          %v2809 = vrot.slane %v2786, %v2808
          %v2810 = vlaneseq
          %v2811 = vshrl.u32 %v2810, 7
          %v2812 = vsub.s32 5, %v2811
          %v2813 = vrot.slane %v2786, %v2812
          %v2814 = vlaneseq
          %v2815 = vshrl.u32 %v2814, 7
          %v2816 = vsub.s32 6, %v2815
          %v2817 = vrot.slane %v2786, %v2816
          %v2818 = vlaneseq
          %v2819 = vshrl.u32 %v2818, 7
          %v2820 = vsub.s32 7, %v2819
          %v2821 = vrot.slane %v2786, %v2820
          %v2822 = vlaneseq
          %v2823 = vshrl.u32 %v2822, 7
          %v2824 = vsub.s32 0, %v2823
          %v2825 = vrot.slane %v2787, %v2824
          %v2826 = vlaneseq
          %v2827 = vshrl.u32 %v2826, 7
          %v2828 = vsub.s32 1, %v2827
          %v2829 = vrot.slane %v2787, %v2828
          %v2830 = vcombine.low %v2793, %v2797
          %v2831 = vcombine.low %v2801, %v2805
          %v2832 = vcombine.low %v2809, %v2813
          %v2833 = vcombine.low %v2817, %v2821
          %v2834 = vcombine.low %v2825, %v2829
          %v2840 = vadd.f32 %v2781, %v2830
          %v2841 = vadd.f32 %v2782, %v2831
          %v2842 = vadd.f32 %v2783, %v2832
          %v2843 = vadd.f32 %v2784, %v2833
          %v2844 = vadd.f32 %v2785, %v2834
          %v2845 = vmax.f32 %v2840, 0.0
          %v2846 = vmax.f32 %v2841, 0.0
          %v2847 = vmax.f32 %v2842, 0.0
          %v2848 = vmax.f32 %v2843, 0.0
          %v2849 = vmax.f32 %v2844, 0.0
          %v2855 = vcombine.high %v2845, %v2845
          %v2856 = vcombine.high %v2846, %v2846
          %v2857 = vcombine.high %v2847, %v2847
          %v2858 = vcombine.high %v2848, %v2848
          %v2859 = vcombine.high %v2849, %v2849
          %v2865 = vpack.c.bf16 %v2845, %v2845
          %v2866 = vpack.c.bf16 %v2855, %v2855
          %v2867 = vpack.c.bf16 %v2846, %v2846
          %v2868 = vpack.c.bf16 %v2856, %v2856
          %v2869 = vpack.c.bf16 %v2847, %v2847
          %v2870 = vpack.c.bf16 %v2857, %v2857
          %v2871 = vpack.c.bf16 %v2848, %v2848
          %v2872 = vpack.c.bf16 %v2858, %v2858
          %v2873 = vpack.c.bf16 %v2849, %v2849
          %v2874 = vpack.c.bf16 %v2859, %v2859
          %v2875 = vld [vmem:[%s3] sm:$0xff]
          %v2876 = vld [vmem:[%s3 + $0x8] sm:$0xff]
          %v2877 = vld [vmem:[%s3 + $0x10] sm:$0xf]
          %v2878 = vld [vmem:[%s3 + $0x14] sm:$0xff]
          %v2879 = vld [vmem:[%s3 + $0x1c] sm:$0xff]
          %v2880 = vld [vmem:[%s3 + $0x24] sm:$0xf]
          %v2881 = vld [vmem:[%s3 + $0x28] sm:$0xff]
          %v2882 = vld [vmem:[%s3 + $0x30] sm:$0xff]
          %v2883 = vld [vmem:[%s3 + $0x38] sm:$0xf]
          %v2884 = vld [vmem:[%s3 + $0x3c] sm:$0xff]
          %v2885 = vld [vmem:[%s3 + $0x44] sm:$0xff]
          %v2886 = vld [vmem:[%s3 + $0x4c] sm:$0xf]
          %v2887 = vld [vmem:[%s3 + $0x50] sm:$0xff]
          %v2888 = vld [vmem:[%s3 + $0x58] sm:$0xff]
          %v2889 = vld [vmem:[%s3 + $0x60] sm:$0xf]
          %v2890 = vld [vmem:[%s3 + $0x64] sm:$0xff]
          %v2891 = vld [vmem:[%s3 + $0x6c] sm:$0xff]
          %v2892 = vld [vmem:[%s3 + $0x74] sm:$0xf]
          %v2893 = vld [vmem:[%s3 + $0x78] sm:$0xff]
          %v2894 = vld [vmem:[%s3 + $0x80] sm:$0xff]
          %v2895 = vld [vmem:[%s3 + $0x88] sm:$0xf]
          %v2896 = vld [vmem:[%s3 + $0x8c] sm:$0xff]
          %v2897 = vld [vmem:[%s3 + $0x94] sm:$0xff]
          %v2898 = vld [vmem:[%s3 + $0x9c] sm:$0xf]
          %v2899 = vld [vmem:[%s3 + $0xa0] sm:$0xff]
          %v2900 = vld [vmem:[%s3 + $0xa8] sm:$0xff]
          %v2901 = vld [vmem:[%s3 + $0xb0] sm:$0xf]
          %v2902 = vld [vmem:[%s3 + $0xb4] sm:$0xff]
          %v2903 = vld [vmem:[%s3 + $0xbc] sm:$0xff]
          %v2904 = vld [vmem:[%s3 + $0xc4] sm:$0xf]
          %v2905 = vld [vmem:[%s3 + $0xc8] sm:$0xff]
          %v2906 = vld [vmem:[%s3 + $0xd0] sm:$0xff]
          %v2907 = vld [vmem:[%s3 + $0xd8] sm:$0xf]
          %v2908 = vld [vmem:[%s3 + $0xdc] sm:$0xff]
          %v2909 = vld [vmem:[%s3 + $0xe4] sm:$0xff]
          %v2910 = vld [vmem:[%s3 + $0xec] sm:$0xf]
          %v2911 = vld [vmem:[%s3 + $0xf0] sm:$0xff]
          %v2912 = vld [vmem:[%s3 + $0xf8] sm:$0xff]
          %v2913 = vld [vmem:[%s3 + $0x100] sm:$0xf]
          %v2914 = vld [vmem:[%s3 + $0x104] sm:$0xff]
          %v2915 = vld [vmem:[%s3 + $0x10c] sm:$0xff]
          %v2916 = vld [vmem:[%s3 + $0x114] sm:$0xf]
          %v2917 = vld [vmem:[%s3 + $0x118] sm:$0xff]
          %v2918 = vld [vmem:[%s3 + $0x120] sm:$0xff]
          %v2919 = vld [vmem:[%s3 + $0x128] sm:$0xf]
          %v2920 = vld [vmem:[%s3 + $0x12c] sm:$0xff]
          %v2921 = vld [vmem:[%s3 + $0x134] sm:$0xff]
          %v2922 = vld [vmem:[%s3 + $0x13c] sm:$0xf]
          %v2923 = vld [vmem:[%s3 + $0x140] sm:$0xff]
          %v2924 = vld [vmem:[%s3 + $0x148] sm:$0xff]
          %v2925 = vld [vmem:[%s3 + $0x150] sm:$0xf]
          %v2926 = vld [vmem:[%s3 + $0x154] sm:$0xff]
          %v2927 = vld [vmem:[%s3 + $0x15c] sm:$0xff]
          %v2928 = vld [vmem:[%s3 + $0x164] sm:$0xf]
          %v2929 = vld [vmem:[%s3 + $0x168] sm:$0xff]
          %v2930 = vld [vmem:[%s3 + $0x170] sm:$0xff]
          %v2931 = vld [vmem:[%s3 + $0x178] sm:$0xf]
          %v2932 = vld [vmem:[%s3 + $0x17c] sm:$0xff]
          %v2933 = vld [vmem:[%s3 + $0x184] sm:$0xff]
          %v2934 = vld [vmem:[%s3 + $0x18c] sm:$0xf]
          %v2935 = vld [vmem:[%s3 + $0x190] sm:$0xff]
          %v2936 = vld [vmem:[%s3 + $0x198] sm:$0xff]
          %v2937 = vld [vmem:[%s3 + $0x1a0] sm:$0xf]
          %v2938 = vld [vmem:[%s3 + $0x1a4] sm:$0xff]
          %v2939 = vld [vmem:[%s3 + $0x1ac] sm:$0xff]
          %v2940 = vld [vmem:[%s3 + $0x1b4] sm:$0xf]
          %v2941 = vld [vmem:[%s3 + $0x1b8] sm:$0xff]
          %v2942 = vld [vmem:[%s3 + $0x1c0] sm:$0xff]
          %v2943 = vld [vmem:[%s3 + $0x1c8] sm:$0xf]
          %v2944 = vld [vmem:[%s3 + $0x1cc] sm:$0xff]
          %v2945 = vld [vmem:[%s3 + $0x1d4] sm:$0xff]
          %v2946 = vld [vmem:[%s3 + $0x1dc] sm:$0xf]
          %v2947 = vld [vmem:[%s3 + $0x1e0] sm:$0xff]
          %v2948 = vld [vmem:[%s3 + $0x1e8] sm:$0xff]
          %v2949 = vld [vmem:[%s3 + $0x1f0] sm:$0xf]
          %v2950 = vld [vmem:[%s3 + $0x1f4] sm:$0xff]
          %v2951 = vld [vmem:[%s3 + $0x1fc] sm:$0xff]
          %v2952 = vld [vmem:[%s3 + $0x204] sm:$0xf]
          %v2953 = vld [vmem:[%s3 + $0x208] sm:$0xff]
          %v2954 = vld [vmem:[%s3 + $0x210] sm:$0xff]
          %v2955 = vld [vmem:[%s3 + $0x218] sm:$0xf]
          %v2956 = vld [vmem:[%s3 + $0x21c] sm:$0xff]
          %v2957 = vld [vmem:[%s3 + $0x224] sm:$0xff]
          %v2958 = vld [vmem:[%s3 + $0x22c] sm:$0xf]
          %v2959 = vld [vmem:[%s3 + $0x230] sm:$0xff]
          %v2960 = vld [vmem:[%s3 + $0x238] sm:$0xff]
          %v2961 = vld [vmem:[%s3 + $0x240] sm:$0xf]
          %v2962 = vld [vmem:[%s3 + $0x244] sm:$0xff]
          %v2963 = vld [vmem:[%s3 + $0x24c] sm:$0xff]
          %v2964 = vld [vmem:[%s3 + $0x254] sm:$0xf]
          %v2965 = vld [vmem:[%s3 + $0x258] sm:$0xff]
          %v2966 = vld [vmem:[%s3 + $0x260] sm:$0xff]
          %v2967 = vld [vmem:[%s3 + $0x268] sm:$0xf]
          %v2968 = vld [vmem:[%s3 + $0x26c] sm:$0xff]
          %v2969 = vld [vmem:[%s3 + $0x274] sm:$0xff]
          %v2970 = vld [vmem:[%s3 + $0x27c] sm:$0xf]
          %v2971 = vld [vmem:[%s3 + $0x280] sm:$0xff]
          %v2972 = vld [vmem:[%s3 + $0x288] sm:$0xff]
          %v2973 = vld [vmem:[%s3 + $0x290] sm:$0xf]
          %v2974 = vld [vmem:[%s3 + $0x294] sm:$0xff]
          %v2975 = vld [vmem:[%s3 + $0x29c] sm:$0xff]
          %v2976 = vld [vmem:[%s3 + $0x2a4] sm:$0xf]
          %v2977 = vld [vmem:[%s3 + $0x2a8] sm:$0xff]
          %v2978 = vld [vmem:[%s3 + $0x2b0] sm:$0xff]
          %v2979 = vld [vmem:[%s3 + $0x2b8] sm:$0xf]
          %v2980 = vld [vmem:[%s3 + $0x2bc] sm:$0xff]
          %v2981 = vld [vmem:[%s3 + $0x2c4] sm:$0xff]
          %v2982 = vld [vmem:[%s3 + $0x2cc] sm:$0xf]
          %v2983 = vld [vmem:[%s3 + $0x2d0] sm:$0xff]
          %v2984 = vld [vmem:[%s3 + $0x2d8] sm:$0xff]
          %v2985 = vld [vmem:[%s3 + $0x2e0] sm:$0xf]
          %v2986 = vld [vmem:[%s3 + $0x2e4] sm:$0xff]
          %v2987 = vld [vmem:[%s3 + $0x2ec] sm:$0xff]
          %v2988 = vld [vmem:[%s3 + $0x2f4] sm:$0xf]
          %v2989 = vld [vmem:[%s3 + $0x2f8] sm:$0xff]
          %v2990 = vld [vmem:[%s3 + $0x300] sm:$0xff]
          %v2991 = vld [vmem:[%s3 + $0x308] sm:$0xf]
          %v2992 = vld [vmem:[%s3 + $0x30c] sm:$0xff]
          %v2993 = vld [vmem:[%s3 + $0x314] sm:$0xff]
          %v2994 = vld [vmem:[%s3 + $0x31c] sm:$0xf]
          %v2995 = vld [vmem:[%s3 + $0x320] sm:$0xff]
          %v2996 = vld [vmem:[%s3 + $0x328] sm:$0xff]
          %v2997 = vld [vmem:[%s3 + $0x330] sm:$0xf]
          %v2998 = vld [vmem:[%s3 + $0x334] sm:$0xff]
          %v2999 = vld [vmem:[%s3 + $0x33c] sm:$0xff]
          %v3000 = vld [vmem:[%s3 + $0x344] sm:$0xf]
          %v3001 = vld [vmem:[%s3 + $0x348] sm:$0xff]
          %v3002 = vld [vmem:[%s3 + $0x350] sm:$0xff]
          %v3003 = vld [vmem:[%s3 + $0x358] sm:$0xf]
          %v3004 = vld [vmem:[%s3 + $0x35c] sm:$0xff]
          %v3005 = vld [vmem:[%s3 + $0x364] sm:$0xff]
          %v3006 = vld [vmem:[%s3 + $0x36c] sm:$0xf]
          %v3007 = vld [vmem:[%s3 + $0x370] sm:$0xff]
          %v3008 = vld [vmem:[%s3 + $0x378] sm:$0xff]
          %v3009 = vld [vmem:[%s3 + $0x380] sm:$0xf]
          %v3010 = vld [vmem:[%s3 + $0x384] sm:$0xff]
          %v3011 = vld [vmem:[%s3 + $0x38c] sm:$0xff]
          %v3012 = vld [vmem:[%s3 + $0x394] sm:$0xf]
          %v3013 = vld [vmem:[%s3 + $0x398] sm:$0xff]
          %v3014 = vld [vmem:[%s3 + $0x3a0] sm:$0xff]
          %v3015 = vld [vmem:[%s3 + $0x3a8] sm:$0xf]
          %v3016 = vld [vmem:[%s3 + $0x3ac] sm:$0xff]
          %v3017 = vld [vmem:[%s3 + $0x3b4] sm:$0xff]
          %v3018 = vld [vmem:[%s3 + $0x3bc] sm:$0xf]
          %v3019 = vld [vmem:[%s3 + $0x3c0] sm:$0xff]
          %v3020 = vld [vmem:[%s3 + $0x3c8] sm:$0xff]
          %v3021 = vld [vmem:[%s3 + $0x3d0] sm:$0xf]
          %v3022 = vld [vmem:[%s3 + $0x3d4] sm:$0xff]
          %v3023 = vld [vmem:[%s3 + $0x3dc] sm:$0xff]
          %v3024 = vld [vmem:[%s3 + $0x3e4] sm:$0xf]
          %v3025 = vld [vmem:[%s3 + $0x3e8] sm:$0xff]
          %v3026 = vld [vmem:[%s3 + $0x3f0] sm:$0xff]
          %v3027 = vld [vmem:[%s3 + $0x3f8] sm:$0xf]
          %v3028 = vld [vmem:[%s3 + $0x3fc] sm:$0xff]
          %v3029 = vld [vmem:[%s3 + $0x404] sm:$0xff]
          %v3030 = vld [vmem:[%s3 + $0x40c] sm:$0xf]
          %v3031 = vld [vmem:[%s3 + $0x410] sm:$0xff]
          %v3032 = vld [vmem:[%s3 + $0x418] sm:$0xff]
          %v3033 = vld [vmem:[%s3 + $0x420] sm:$0xf]
          %v3034 = vld [vmem:[%s3 + $0x424] sm:$0xff]
          %v3035 = vld [vmem:[%s3 + $0x42c] sm:$0xff]
          %v3036 = vld [vmem:[%s3 + $0x434] sm:$0xf]
          %v3037 = vld [vmem:[%s3 + $0x438] sm:$0xff]
          %v3038 = vld [vmem:[%s3 + $0x440] sm:$0xff]
          %v3039 = vld [vmem:[%s3 + $0x448] sm:$0xf]
          %v3040 = vld [vmem:[%s3 + $0x44c] sm:$0xff]
          %v3041 = vld [vmem:[%s3 + $0x454] sm:$0xff]
          %v3042 = vld [vmem:[%s3 + $0x45c] sm:$0xf]
          %v3043 = vld [vmem:[%s3 + $0x460] sm:$0xff]
          %v3044 = vld [vmem:[%s3 + $0x468] sm:$0xff]
          %v3045 = vld [vmem:[%s3 + $0x470] sm:$0xf]
          %v3046 = vld [vmem:[%s3 + $0x474] sm:$0xff]
          %v3047 = vld [vmem:[%s3 + $0x47c] sm:$0xff]
          %v3048 = vld [vmem:[%s3 + $0x484] sm:$0xf]
          %v3049 = vld [vmem:[%s3 + $0x488] sm:$0xff]
          %v3050 = vld [vmem:[%s3 + $0x490] sm:$0xff]
          %v3051 = vld [vmem:[%s3 + $0x498] sm:$0xf]
          %v3052 = vld [vmem:[%s3 + $0x49c] sm:$0xff]
          %v3053 = vld [vmem:[%s3 + $0x4a4] sm:$0xff]
          %v3054 = vld [vmem:[%s3 + $0x4ac] sm:$0xf]
          %v3055 = vld [vmem:[%s3 + $0x4b0] sm:$0xff]
          %v3056 = vld [vmem:[%s3 + $0x4b8] sm:$0xff]
          %v3057 = vld [vmem:[%s3 + $0x4c0] sm:$0xf]
          %v3058 = vld [vmem:[%s3 + $0x4c4] sm:$0xff]
          %v3059 = vld [vmem:[%s3 + $0x4cc] sm:$0xff]
          %v3060 = vld [vmem:[%s3 + $0x4d4] sm:$0xf]
          %v3061 = vld [vmem:[%s3 + $0x4d8] sm:$0xff]
          %v3062 = vld [vmem:[%s3 + $0x4e0] sm:$0xff]
          %v3063 = vld [vmem:[%s3 + $0x4e8] sm:$0xf]
          %v3064 = vld [vmem:[%s3 + $0x4ec] sm:$0xff]
          %v3065 = vld [vmem:[%s3 + $0x4f4] sm:$0xff]
          %v3066 = vld [vmem:[%s3 + $0x4fc] sm:$0xf]
          %v3067 = vld [vmem:[%s3 + $0x500] sm:$0xff]
          %v3068 = vld [vmem:[%s3 + $0x508] sm:$0xff]
          %v3069 = vld [vmem:[%s3 + $0x510] sm:$0xf]
          %v3070 = vld [vmem:[%s3 + $0x514] sm:$0xff]
          %v3071 = vld [vmem:[%s3 + $0x51c] sm:$0xff]
          %v3072 = vld [vmem:[%s3 + $0x524] sm:$0xf]
          %v3073 = vld [vmem:[%s3 + $0x528] sm:$0xff]
          %v3074 = vld [vmem:[%s3 + $0x530] sm:$0xff]
          %v3075 = vld [vmem:[%s3 + $0x538] sm:$0xf]
          %v3076 = vld [vmem:[%s3 + $0x53c] sm:$0xff]
          %v3077 = vld [vmem:[%s3 + $0x544] sm:$0xff]
          %v3078 = vld [vmem:[%s3 + $0x54c] sm:$0xf]
          %v3079 = vld [vmem:[%s3 + $0x550] sm:$0xff]
          %v3080 = vld [vmem:[%s3 + $0x558] sm:$0xff]
          %v3081 = vld [vmem:[%s3 + $0x560] sm:$0xf]
          %v3082 = vld [vmem:[%s3 + $0x564] sm:$0xff]
          %v3083 = vld [vmem:[%s3 + $0x56c] sm:$0xff]
          %v3084 = vld [vmem:[%s3 + $0x574] sm:$0xf]
          %v3085 = vld [vmem:[%s3 + $0x578] sm:$0xff]
          %v3086 = vld [vmem:[%s3 + $0x580] sm:$0xff]
          %v3087 = vld [vmem:[%s3 + $0x588] sm:$0xf]
          %v3088 = vld [vmem:[%s3 + $0x58c] sm:$0xff]
          %v3089 = vld [vmem:[%s3 + $0x594] sm:$0xff]
          %v3090 = vld [vmem:[%s3 + $0x59c] sm:$0xf]
          %v3091 = vld [vmem:[%s3 + $0x5a0] sm:$0xff]
          %v3092 = vld [vmem:[%s3 + $0x5a8] sm:$0xff]
          %v3093 = vld [vmem:[%s3 + $0x5b0] sm:$0xf]
          %v3094 = vld [vmem:[%s3 + $0x5b4] sm:$0xff]
          %v3095 = vld [vmem:[%s3 + $0x5bc] sm:$0xff]
          %v3096 = vld [vmem:[%s3 + $0x5c4] sm:$0xf]
          %v3097 = vld [vmem:[%s3 + $0x5c8] sm:$0xff]
          %v3098 = vld [vmem:[%s3 + $0x5d0] sm:$0xff]
          %v3099 = vld [vmem:[%s3 + $0x5d8] sm:$0xf]
          %v3100 = vld [vmem:[%s3 + $0x5dc] sm:$0xff]
          %v3101 = vld [vmem:[%s3 + $0x5e4] sm:$0xff]
          %v3102 = vld [vmem:[%s3 + $0x5ec] sm:$0xf]
          %v3103 = vld [vmem:[%s3 + $0x5f0] sm:$0xff]
          %v3104 = vld [vmem:[%s3 + $0x5f8] sm:$0xff]
          %v3105 = vld [vmem:[%s3 + $0x600] sm:$0xf]
          %v3106 = vld [vmem:[%s3 + $0x604] sm:$0xff]
          %v3107 = vld [vmem:[%s3 + $0x60c] sm:$0xff]
          %v3108 = vld [vmem:[%s3 + $0x614] sm:$0xf]
          %v3109 = vld [vmem:[%s3 + $0x618] sm:$0xff]
          %v3110 = vld [vmem:[%s3 + $0x620] sm:$0xff]
          %v3111 = vld [vmem:[%s3 + $0x628] sm:$0xf]
          %v3112 = vld [vmem:[%s3 + $0x62c] sm:$0xff]
          %v3113 = vld [vmem:[%s3 + $0x634] sm:$0xff]
          %v3114 = vld [vmem:[%s3 + $0x63c] sm:$0xf]
          %v3115 = vld [vmem:[%s3 + $0x640] sm:$0xff]
          %v3116 = vld [vmem:[%s3 + $0x648] sm:$0xff]
          %v3117 = vld [vmem:[%s3 + $0x650] sm:$0xf]
          %v3118 = vld [vmem:[%s3 + $0x654] sm:$0xff]
          %v3119 = vld [vmem:[%s3 + $0x65c] sm:$0xff]
          %v3120 = vld [vmem:[%s3 + $0x664] sm:$0xf]
          %v3121 = vld [vmem:[%s3 + $0x668] sm:$0xff]
          %v3122 = vld [vmem:[%s3 + $0x670] sm:$0xff]
          %v3123 = vld [vmem:[%s3 + $0x678] sm:$0xf]
          %v3124 = vld [vmem:[%s3 + $0x67c] sm:$0xff]
          %v3125 = vld [vmem:[%s3 + $0x684] sm:$0xff]
          %v3126 = vld [vmem:[%s3 + $0x68c] sm:$0xf]
          %v3127 = vld [vmem:[%s3 + $0x690] sm:$0xff]
          %v3128 = vld [vmem:[%s3 + $0x698] sm:$0xff]
          %v3129 = vld [vmem:[%s3 + $0x6a0] sm:$0xf]
          %v3130 = vld [vmem:[%s3 + $0x6a4] sm:$0xff]
          %v3131 = vld [vmem:[%s3 + $0x6ac] sm:$0xff]
          %v3132 = vld [vmem:[%s3 + $0x6b4] sm:$0xf]
          %v3133 = vld [vmem:[%s3 + $0x6b8] sm:$0xff]
          %v3134 = vld [vmem:[%s3 + $0x6c0] sm:$0xff]
          %v3135 = vld [vmem:[%s3 + $0x6c8] sm:$0xf]
          %v3136 = vld [vmem:[%s3 + $0x6cc] sm:$0xff]
          %v3137 = vld [vmem:[%s3 + $0x6d4] sm:$0xff]
          %v3138 = vld [vmem:[%s3 + $0x6dc] sm:$0xf]
          %v3139 = vld [vmem:[%s3 + $0x6e0] sm:$0xff]
          %v3140 = vld [vmem:[%s3 + $0x6e8] sm:$0xff]
          %v3141 = vld [vmem:[%s3 + $0x6f0] sm:$0xf]
          %v3142 = vld [vmem:[%s3 + $0x6f4] sm:$0xff]
          %v3143 = vld [vmem:[%s3 + $0x6fc] sm:$0xff]
          %v3144 = vld [vmem:[%s3 + $0x704] sm:$0xf]
          %v3145 = vld [vmem:[%s3 + $0x708] sm:$0xff]
          %v3146 = vld [vmem:[%s3 + $0x710] sm:$0xff]
          %v3147 = vld [vmem:[%s3 + $0x718] sm:$0xf]
          %v3148 = vld [vmem:[%s3 + $0x71c] sm:$0xff]
          %v3149 = vld [vmem:[%s3 + $0x724] sm:$0xff]
          %v3150 = vld [vmem:[%s3 + $0x72c] sm:$0xf]
          %v3151 = vld [vmem:[%s3 + $0x730] sm:$0xff]
          %v3152 = vld [vmem:[%s3 + $0x738] sm:$0xff]
          %v3153 = vld [vmem:[%s3 + $0x740] sm:$0xf]
          %v3154 = vld [vmem:[%s3 + $0x744] sm:$0xff]
          %v3155 = vld [vmem:[%s3 + $0x74c] sm:$0xff]
          %v3156 = vld [vmem:[%s3 + $0x754] sm:$0xf]
          %v3157 = vld [vmem:[%s3 + $0x758] sm:$0xff]
          %v3158 = vld [vmem:[%s3 + $0x760] sm:$0xff]
          %v3159 = vld [vmem:[%s3 + $0x768] sm:$0xf]
          %v3160 = vld [vmem:[%s3 + $0x76c] sm:$0xff]
          %v3161 = vld [vmem:[%s3 + $0x774] sm:$0xff]
          %v3162 = vld [vmem:[%s3 + $0x77c] sm:$0xf]
          %v3163 = vld [vmem:[%s3 + $0x780] sm:$0xff]
          %v3164 = vld [vmem:[%s3 + $0x788] sm:$0xff]
          %v3165 = vld [vmem:[%s3 + $0x790] sm:$0xf]
          %v3166 = vld [vmem:[%s3 + $0x794] sm:$0xff]
          %v3167 = vld [vmem:[%s3 + $0x79c] sm:$0xff]
          %v3168 = vld [vmem:[%s3 + $0x7a4] sm:$0xf]
          %v3169 = vld [vmem:[%s3 + $0x7a8] sm:$0xff]
          %v3170 = vld [vmem:[%s3 + $0x7b0] sm:$0xff]
          %v3171 = vld [vmem:[%s3 + $0x7b8] sm:$0xf]
          %v3172 = vld [vmem:[%s3 + $0x7bc] sm:$0xff]
          %v3173 = vld [vmem:[%s3 + $0x7c4] sm:$0xff]
          %v3174 = vld [vmem:[%s3 + $0x7cc] sm:$0xf]
          %v3175 = vld [vmem:[%s3 + $0x7d0] sm:$0xff]
          %v3176 = vld [vmem:[%s3 + $0x7d8] sm:$0xff]
          %v3177 = vld [vmem:[%s3 + $0x7e0] sm:$0xf]
          %v3178 = vld [vmem:[%s3 + $0x7e4] sm:$0xff]
          %v3179 = vld [vmem:[%s3 + $0x7ec] sm:$0xff]
          %v3180 = vld [vmem:[%s3 + $0x7f4] sm:$0xf]
          %v3181 = vld [vmem:[%s3 + $0x7f8] sm:$0xff]
          %v3182 = vld [vmem:[%s3 + $0x800] sm:$0xff]
          %v3183 = vld [vmem:[%s3 + $0x808] sm:$0xf]
          %v3184 = vld [vmem:[%s3 + $0x80c] sm:$0xff]
          %v3185 = vld [vmem:[%s3 + $0x814] sm:$0xff]
          %v3186 = vld [vmem:[%s3 + $0x81c] sm:$0xf]
          %v3187 = vld [vmem:[%s3 + $0x820] sm:$0xff]
          %v3188 = vld [vmem:[%s3 + $0x828] sm:$0xff]
          %v3189 = vld [vmem:[%s3 + $0x830] sm:$0xf]
          %v3190 = vld [vmem:[%s3 + $0x834] sm:$0xff]
          %v3191 = vld [vmem:[%s3 + $0x83c] sm:$0xff]
          %v3192 = vld [vmem:[%s3 + $0x844] sm:$0xf]
          %v3193 = vld [vmem:[%s3 + $0x848] sm:$0xff]
          %v3194 = vld [vmem:[%s3 + $0x850] sm:$0xff]
          %v3195 = vld [vmem:[%s3 + $0x858] sm:$0xf]
          %v3196 = vld [vmem:[%s3 + $0x85c] sm:$0xff]
          %v3197 = vld [vmem:[%s3 + $0x864] sm:$0xff]
          %v3198 = vld [vmem:[%s3 + $0x86c] sm:$0xf]
          %v3199 = vld [vmem:[%s3 + $0x870] sm:$0xff]
          %v3200 = vld [vmem:[%s3 + $0x878] sm:$0xff]
          %v3201 = vld [vmem:[%s3 + $0x880] sm:$0xf]
          %v3202 = vld [vmem:[%s3 + $0x884] sm:$0xff]
          %v3203 = vld [vmem:[%s3 + $0x88c] sm:$0xff]
          %v3204 = vld [vmem:[%s3 + $0x894] sm:$0xf]
          %v3205 = vld [vmem:[%s3 + $0x898] sm:$0xff]
          %v3206 = vld [vmem:[%s3 + $0x8a0] sm:$0xff]
          %v3207 = vld [vmem:[%s3 + $0x8a8] sm:$0xf]
          %v3208 = vld [vmem:[%s3 + $0x8ac] sm:$0xff]
          %v3209 = vld [vmem:[%s3 + $0x8b4] sm:$0xff]
          %v3210 = vld [vmem:[%s3 + $0x8bc] sm:$0xf]
          %v3211 = vld [vmem:[%s3 + $0x8c0] sm:$0xff]
          %v3212 = vld [vmem:[%s3 + $0x8c8] sm:$0xff]
          %v3213 = vld [vmem:[%s3 + $0x8d0] sm:$0xf]
          %v3214 = vld [vmem:[%s3 + $0x8d4] sm:$0xff]
          %v3215 = vld [vmem:[%s3 + $0x8dc] sm:$0xff]
          %v3216 = vld [vmem:[%s3 + $0x8e4] sm:$0xf]
          %v3217 = vld [vmem:[%s3 + $0x8e8] sm:$0xff]
          %v3218 = vld [vmem:[%s3 + $0x8f0] sm:$0xff]
          %v3219 = vld [vmem:[%s3 + $0x8f8] sm:$0xf]
          %v3220 = vld [vmem:[%s3 + $0x8fc] sm:$0xff]
          %v3221 = vld [vmem:[%s3 + $0x904] sm:$0xff]
          %v3222 = vld [vmem:[%s3 + $0x90c] sm:$0xf]
          %v3223 = vld [vmem:[%s3 + $0x910] sm:$0xff]
          %v3224 = vld [vmem:[%s3 + $0x918] sm:$0xff]
          %v3225 = vld [vmem:[%s3 + $0x920] sm:$0xf]
          %v3226 = vld [vmem:[%s3 + $0x924] sm:$0xff]
          %v3227 = vld [vmem:[%s3 + $0x92c] sm:$0xff]
          %v3228 = vld [vmem:[%s3 + $0x934] sm:$0xf]
          %v3229 = vld [vmem:[%s3 + $0x938] sm:$0xff]
          %v3230 = vld [vmem:[%s3 + $0x940] sm:$0xff]
          %v3231 = vld [vmem:[%s3 + $0x948] sm:$0xf]
          %v3232 = vld [vmem:[%s3 + $0x94c] sm:$0xff]
          %v3233 = vld [vmem:[%s3 + $0x954] sm:$0xff]
          %v3234 = vld [vmem:[%s3 + $0x95c] sm:$0xf]
          %v3235 = vld [vmem:[%s3 + $0x960] sm:$0xff]
          %v3236 = vld [vmem:[%s3 + $0x968] sm:$0xff]
          %v3237 = vld [vmem:[%s3 + $0x970] sm:$0xf]
          %v3238 = vld [vmem:[%s3 + $0x974] sm:$0xff]
          %v3239 = vld [vmem:[%s3 + $0x97c] sm:$0xff]
          %v3240 = vld [vmem:[%s3 + $0x984] sm:$0xf]
          %v3241 = vld [vmem:[%s3 + $0x988] sm:$0xff]
          %v3242 = vld [vmem:[%s3 + $0x990] sm:$0xff]
          %v3243 = vld [vmem:[%s3 + $0x998] sm:$0xf]
          %v3244 = vld [vmem:[%s3 + $0x99c] sm:$0xff]
          %v3245 = vld [vmem:[%s3 + $0x9a4] sm:$0xff]
          %v3246 = vld [vmem:[%s3 + $0x9ac] sm:$0xf]
          %v3247 = vld [vmem:[%s3 + $0x9b0] sm:$0xff]
          %v3248 = vld [vmem:[%s3 + $0x9b8] sm:$0xff]
          %v3249 = vld [vmem:[%s3 + $0x9c0] sm:$0xf]
          %v3250 = vld [vmem:[%s3 + $0x9c4] sm:$0xff]
          %v3251 = vld [vmem:[%s3 + $0x9cc] sm:$0xff]
          %v3252 = vld [vmem:[%s3 + $0x9d4] sm:$0xf]
          %v3253 = vld [vmem:[%s3 + $0x9d8] sm:$0xff]
          %v3254 = vld [vmem:[%s3 + $0x9e0] sm:$0xff]
          %v3255 = vld [vmem:[%s3 + $0x9e8] sm:$0xf]
          %v3256 = vld [vmem:[%s3 + $0x9ec] sm:$0xff]
          %v3257 = vld [vmem:[%s3 + $0x9f4] sm:$0xff]
          %v3258 = vld [vmem:[%s3 + $0x9fc] sm:$0xf]
          %v3259 = vld [vmem:[%s3 + $0xa00] sm:$0xff]
          %v3260 = vld [vmem:[%s3 + $0xa08] sm:$0xff]
          %v3261 = vld [vmem:[%s3 + $0xa10] sm:$0xf]
          %v3262 = vld [vmem:[%s3 + $0xa14] sm:$0xff]
          %v3263 = vld [vmem:[%s3 + $0xa1c] sm:$0xff]
          %v3264 = vld [vmem:[%s3 + $0xa24] sm:$0xf]
          %v3265 = vld [vmem:[%s3 + $0xa28] sm:$0xff]
          %v3266 = vld [vmem:[%s3 + $0xa30] sm:$0xff]
          %v3267 = vld [vmem:[%s3 + $0xa38] sm:$0xf]
          %v3268 = vld [vmem:[%s3 + $0xa3c] sm:$0xff]
          %v3269 = vld [vmem:[%s3 + $0xa44] sm:$0xff]
          %v3270 = vld [vmem:[%s3 + $0xa4c] sm:$0xf]
          %v3271 = vld [vmem:[%s3 + $0xa50] sm:$0xff]
          %v3272 = vld [vmem:[%s3 + $0xa58] sm:$0xff]
          %v3273 = vld [vmem:[%s3 + $0xa60] sm:$0xf]
          %v3274 = vld [vmem:[%s3 + $0xa64] sm:$0xff]
          %v3275 = vld [vmem:[%s3 + $0xa6c] sm:$0xff]
          %v3276 = vld [vmem:[%s3 + $0xa74] sm:$0xf]
          %v3277 = vld [vmem:[%s3 + $0xa78] sm:$0xff]
          %v3278 = vld [vmem:[%s3 + $0xa80] sm:$0xff]
          %v3279 = vld [vmem:[%s3 + $0xa88] sm:$0xf]
          %v3280 = vld [vmem:[%s3 + $0xa8c] sm:$0xff]
          %v3281 = vld [vmem:[%s3 + $0xa94] sm:$0xff]
          %v3282 = vld [vmem:[%s3 + $0xa9c] sm:$0xf]
          %v3283 = vld [vmem:[%s3 + $0xaa0] sm:$0xff]
          %v3284 = vld [vmem:[%s3 + $0xaa8] sm:$0xff]
          %v3285 = vld [vmem:[%s3 + $0xab0] sm:$0xf]
          %v3286 = vld [vmem:[%s3 + $0xab4] sm:$0xff]
          %v3287 = vld [vmem:[%s3 + $0xabc] sm:$0xff]
          %v3288 = vld [vmem:[%s3 + $0xac4] sm:$0xf]
          %v3289 = vld [vmem:[%s3 + $0xac8] sm:$0xff]
          %v3290 = vld [vmem:[%s3 + $0xad0] sm:$0xff]
          %v3291 = vld [vmem:[%s3 + $0xad8] sm:$0xf]
          %v3292 = vld [vmem:[%s3 + $0xadc] sm:$0xff]
          %v3293 = vld [vmem:[%s3 + $0xae4] sm:$0xff]
          %v3294 = vld [vmem:[%s3 + $0xaec] sm:$0xf]
          %v3295 = vld [vmem:[%s3 + $0xaf0] sm:$0xff]
          %v3296 = vld [vmem:[%s3 + $0xaf8] sm:$0xff]
          %v3297 = vld [vmem:[%s3 + $0xb00] sm:$0xf]
          %v3298 = vld [vmem:[%s3 + $0xb04] sm:$0xff]
          %v3299 = vld [vmem:[%s3 + $0xb0c] sm:$0xff]
          %v3300 = vld [vmem:[%s3 + $0xb14] sm:$0xf]
          %v3301 = vld [vmem:[%s3 + $0xb18] sm:$0xff]
          %v3302 = vld [vmem:[%s3 + $0xb20] sm:$0xff]
          %v3303 = vld [vmem:[%s3 + $0xb28] sm:$0xf]
          %v3304 = vld [vmem:[%s3 + $0xb2c] sm:$0xff]
          %v3305 = vld [vmem:[%s3 + $0xb34] sm:$0xff]
          %v3306 = vld [vmem:[%s3 + $0xb3c] sm:$0xf]
          %v3307 = vld [vmem:[%s3 + $0xb40] sm:$0xff]
          %v3308 = vld [vmem:[%s3 + $0xb48] sm:$0xff]
          %v3309 = vld [vmem:[%s3 + $0xb50] sm:$0xf]
          %v3310 = vld [vmem:[%s3 + $0xb54] sm:$0xff]
          %v3311 = vld [vmem:[%s3 + $0xb5c] sm:$0xff]
          %v3312 = vld [vmem:[%s3 + $0xb64] sm:$0xf]
          %v3313 = vld [vmem:[%s3 + $0xb68] sm:$0xff]
          %v3314 = vld [vmem:[%s3 + $0xb70] sm:$0xff]
          %v3315 = vld [vmem:[%s3 + $0xb78] sm:$0xf]
          %v3316 = vld [vmem:[%s3 + $0xb7c] sm:$0xff]
          %v3317 = vld [vmem:[%s3 + $0xb84] sm:$0xff]
          %v3318 = vld [vmem:[%s3 + $0xb8c] sm:$0xf]
          %v3319 = vld [vmem:[%s3 + $0xb90] sm:$0xff]
          %v3320 = vld [vmem:[%s3 + $0xb98] sm:$0xff]
          %v3321 = vld [vmem:[%s3 + $0xba0] sm:$0xf]
          %v3322 = vld [vmem:[%s3 + $0xba4] sm:$0xff]
          %v3323 = vld [vmem:[%s3 + $0xbac] sm:$0xff]
          %v3324 = vld [vmem:[%s3 + $0xbb4] sm:$0xf]
          %v3325 = vld [vmem:[%s3 + $0xbb8] sm:$0xff]
          %v3326 = vld [vmem:[%s3 + $0xbc0] sm:$0xff]
          %v3327 = vld [vmem:[%s3 + $0xbc8] sm:$0xf]
          %v3328 = vld [vmem:[%s3 + $0xbcc] sm:$0xff]
          %v3329 = vld [vmem:[%s3 + $0xbd4] sm:$0xff]
          %v3330 = vld [vmem:[%s3 + $0xbdc] sm:$0xf]
          %v3331 = vld [vmem:[%s3 + $0xbe0] sm:$0xff]
          %v3332 = vld [vmem:[%s3 + $0xbe8] sm:$0xff]
          %v3333 = vld [vmem:[%s3 + $0xbf0] sm:$0xf]
          %v3334 = vld [vmem:[%s3 + $0xbf4] sm:$0xff]
          %v3335 = vld [vmem:[%s3 + $0xbfc] sm:$0xff]
          %v3336 = vld [vmem:[%s3 + $0xc04] sm:$0xf]
          %v3337 = vld [vmem:[%s3 + $0xc08] sm:$0xff]
          %v3338 = vld [vmem:[%s3 + $0xc10] sm:$0xff]
          %v3339 = vld [vmem:[%s3 + $0xc18] sm:$0xf]
          %v3340 = vld [vmem:[%s3 + $0xc1c] sm:$0xff]
          %v3341 = vld [vmem:[%s3 + $0xc24] sm:$0xff]
          %v3342 = vld [vmem:[%s3 + $0xc2c] sm:$0xf]
          %v3343 = vld [vmem:[%s3 + $0xc30] sm:$0x77]
          %v3344 = vld [vmem:[%s3 + $0xc38] sm:$0x77]
          %v3345 = vld [vmem:[%s3 + $0xc40] sm:$0x7]
          %v3346 = vld [vmem:[%s4] sm:$0x1f]
          %v3348 = vlaneseq
          %v3349 = vshrl.u32 %v3348, 7
          %v3350 = vsub.s32 0, %v3349
          %v3351 = vrot.slane %v3346, %v3350
          %v3352 = vlaneseq
          %v3353 = vshrl.u32 %v3352, 7
          %v3354 = vsub.s32 1, %v3353
          %v3355 = vrot.slane %v3346, %v3354
          %v3356 = vlaneseq
          %v3357 = vshrl.u32 %v3356, 7
          %v3358 = vsub.s32 2, %v3357
          %v3359 = vrot.slane %v3346, %v3358
          %v3360 = vlaneseq
          %v3361 = vshrl.u32 %v3360, 7
          %v3362 = vsub.s32 3, %v3361
          %v3363 = vrot.slane %v3346, %v3362
          %v3364 = vlaneseq
          %v3365 = vshrl.u32 %v3364, 7
          %v3366 = vsub.s32 4, %v3365
          %v3367 = vrot.slane %v3346, %v3366
          %v3844 = vunpack.c.l.b16 %v2875
          %v3845 = vunpack.c.h.b16 %v2875
          %v3846 = vunpack.c.l.b16 %v2876
          %v3847 = vunpack.c.h.b16 %v2876
          %v3848 = vunpack.c.l.b16 %v2877
          %v3849 = vunpack.c.l.b16 %v2878
          %v3850 = vunpack.c.h.b16 %v2878
          %v3851 = vunpack.c.l.b16 %v2879
          %v3852 = vunpack.c.h.b16 %v2879
          %v3853 = vunpack.c.l.b16 %v2880
          %v3854 = vunpack.c.l.b16 %v2881
          %v3855 = vunpack.c.h.b16 %v2881
          %v3856 = vunpack.c.l.b16 %v2882
          %v3857 = vunpack.c.h.b16 %v2882
          %v3858 = vunpack.c.l.b16 %v2883
          %v3859 = vunpack.c.l.b16 %v2884
          %v3860 = vunpack.c.h.b16 %v2884
          %v3861 = vunpack.c.l.b16 %v2885
          %v3862 = vunpack.c.h.b16 %v2885
          %v3863 = vunpack.c.l.b16 %v2886
          %v3864 = vunpack.c.l.b16 %v2887
          %v3865 = vunpack.c.h.b16 %v2887
          %v3866 = vunpack.c.l.b16 %v2888
          %v3867 = vunpack.c.h.b16 %v2888
          %v3868 = vunpack.c.l.b16 %v2889
          %v3869 = vunpack.c.l.b16 %v2890
          %v3870 = vunpack.c.h.b16 %v2890
          %v3871 = vunpack.c.l.b16 %v2891
          %v3872 = vunpack.c.h.b16 %v2891
          %v3873 = vunpack.c.l.b16 %v2892
          %v3874 = vunpack.c.l.b16 %v2893
          %v3875 = vunpack.c.h.b16 %v2893
          %v3876 = vunpack.c.l.b16 %v2894
          %v3877 = vunpack.c.h.b16 %v2894
          %v3878 = vunpack.c.l.b16 %v2895
          %v3879 = vunpack.c.l.b16 %v2896
          %v3880 = vunpack.c.h.b16 %v2896
          %v3881 = vunpack.c.l.b16 %v2897
          %v3882 = vunpack.c.h.b16 %v2897
          %v3883 = vunpack.c.l.b16 %v2898
          %v3884 = vunpack.c.l.b16 %v2899
          %v3885 = vunpack.c.h.b16 %v2899
          %v3886 = vunpack.c.l.b16 %v2900
          %v3887 = vunpack.c.h.b16 %v2900
          %v3888 = vunpack.c.l.b16 %v2901
          %v3889 = vunpack.c.l.b16 %v2902
          %v3890 = vunpack.c.h.b16 %v2902
          %v3891 = vunpack.c.l.b16 %v2903
          %v3892 = vunpack.c.h.b16 %v2903
          %v3893 = vunpack.c.l.b16 %v2904
          %v3894 = vunpack.c.l.b16 %v2905
          %v3895 = vunpack.c.h.b16 %v2905
          %v3896 = vunpack.c.l.b16 %v2906
          %v3897 = vunpack.c.h.b16 %v2906
          %v3898 = vunpack.c.l.b16 %v2907
          %v3899 = vunpack.c.l.b16 %v2908
          %v3900 = vunpack.c.h.b16 %v2908
          %v3901 = vunpack.c.l.b16 %v2909
          %v3902 = vunpack.c.h.b16 %v2909
          %v3903 = vunpack.c.l.b16 %v2910
          %v3904 = vunpack.c.l.b16 %v2911
          %v3905 = vunpack.c.h.b16 %v2911
          %v3906 = vunpack.c.l.b16 %v2912
          %v3907 = vunpack.c.h.b16 %v2912
          %v3908 = vunpack.c.l.b16 %v2913
          %v3909 = vunpack.c.l.b16 %v2914
          %v3910 = vunpack.c.h.b16 %v2914
          %v3911 = vunpack.c.l.b16 %v2915
          %v3912 = vunpack.c.h.b16 %v2915
          %v3913 = vunpack.c.l.b16 %v2916
          %v3914 = vunpack.c.l.b16 %v2917
          %v3915 = vunpack.c.h.b16 %v2917
          %v3916 = vunpack.c.l.b16 %v2918
          %v3917 = vunpack.c.h.b16 %v2918
          %v3918 = vunpack.c.l.b16 %v2919
          %v3919 = vunpack.c.l.b16 %v2920
          %v3920 = vunpack.c.h.b16 %v2920
          %v3921 = vunpack.c.l.b16 %v2921
          %v3922 = vunpack.c.h.b16 %v2921
          %v3923 = vunpack.c.l.b16 %v2922
          %v3924 = vunpack.c.l.b16 %v2923
          %v3925 = vunpack.c.h.b16 %v2923
          %v3926 = vunpack.c.l.b16 %v2924
          %v3927 = vunpack.c.h.b16 %v2924
          %v3928 = vunpack.c.l.b16 %v2925
          %v3929 = vunpack.c.l.b16 %v2926
          %v3930 = vunpack.c.h.b16 %v2926
          %v3931 = vunpack.c.l.b16 %v2927
          %v3932 = vunpack.c.h.b16 %v2927
          %v3933 = vunpack.c.l.b16 %v2928
          %v3934 = vunpack.c.l.b16 %v2929
          %v3935 = vunpack.c.h.b16 %v2929
          %v3936 = vunpack.c.l.b16 %v2930
          %v3937 = vunpack.c.h.b16 %v2930
          %v3938 = vunpack.c.l.b16 %v2931
          %v3939 = vunpack.c.l.b16 %v2932
          %v3940 = vunpack.c.h.b16 %v2932
          %v3941 = vunpack.c.l.b16 %v2933
          %v3942 = vunpack.c.h.b16 %v2933
          %v3943 = vunpack.c.l.b16 %v2934
          %v3944 = vunpack.c.l.b16 %v2935
          %v3945 = vunpack.c.h.b16 %v2935
          %v3946 = vunpack.c.l.b16 %v2936
          %v3947 = vunpack.c.h.b16 %v2936
          %v3948 = vunpack.c.l.b16 %v2937
          %v3949 = vunpack.c.l.b16 %v2938
          %v3950 = vunpack.c.h.b16 %v2938
          %v3951 = vunpack.c.l.b16 %v2939
          %v3952 = vunpack.c.h.b16 %v2939
          %v3953 = vunpack.c.l.b16 %v2940
          %v3954 = vunpack.c.l.b16 %v2941
          %v3955 = vunpack.c.h.b16 %v2941
          %v3956 = vunpack.c.l.b16 %v2942
          %v3957 = vunpack.c.h.b16 %v2942
          %v3958 = vunpack.c.l.b16 %v2943
          %v3959 = vunpack.c.l.b16 %v2944
          %v3960 = vunpack.c.h.b16 %v2944
          %v3961 = vunpack.c.l.b16 %v2945
          %v3962 = vunpack.c.h.b16 %v2945
          %v3963 = vunpack.c.l.b16 %v2946
          %v3964 = vunpack.c.l.b16 %v2947
          %v3965 = vunpack.c.h.b16 %v2947
          %v3966 = vunpack.c.l.b16 %v2948
          %v3967 = vunpack.c.h.b16 %v2948
          %v3968 = vunpack.c.l.b16 %v2949
          %v3969 = vunpack.c.l.b16 %v2950
          %v3970 = vunpack.c.h.b16 %v2950
          %v3971 = vunpack.c.l.b16 %v2951
          %v3972 = vunpack.c.h.b16 %v2951
          %v3973 = vunpack.c.l.b16 %v2952
          %v3974 = vunpack.c.l.b16 %v2953
          %v3975 = vunpack.c.h.b16 %v2953
          %v3976 = vunpack.c.l.b16 %v2954
          %v3977 = vunpack.c.h.b16 %v2954
          %v3978 = vunpack.c.l.b16 %v2955
          %v3979 = vunpack.c.l.b16 %v2956
          %v3980 = vunpack.c.h.b16 %v2956
          %v3981 = vunpack.c.l.b16 %v2957
          %v3982 = vunpack.c.h.b16 %v2957
          %v3983 = vunpack.c.l.b16 %v2958
          %v3984 = vunpack.c.l.b16 %v2959
          %v3985 = vunpack.c.h.b16 %v2959
          %v3986 = vunpack.c.l.b16 %v2960
          %v3987 = vunpack.c.h.b16 %v2960
          %v3988 = vunpack.c.l.b16 %v2961
          %v3989 = vunpack.c.l.b16 %v2962
          %v3990 = vunpack.c.h.b16 %v2962
          %v3991 = vunpack.c.l.b16 %v2963
          %v3992 = vunpack.c.h.b16 %v2963
          %v3993 = vunpack.c.l.b16 %v2964
          %v3994 = vunpack.c.l.b16 %v2965
          %v3995 = vunpack.c.h.b16 %v2965
          %v3996 = vunpack.c.l.b16 %v2966
          %v3997 = vunpack.c.h.b16 %v2966
          %v3998 = vunpack.c.l.b16 %v2967
          %v3999 = vunpack.c.l.b16 %v2968
          %v4000 = vunpack.c.h.b16 %v2968
          %v4001 = vunpack.c.l.b16 %v2969
          %v4002 = vunpack.c.h.b16 %v2969
          %v4003 = vunpack.c.l.b16 %v2970
          %v4004 = vunpack.c.l.b16 %v2971
          %v4005 = vunpack.c.h.b16 %v2971
          %v4006 = vunpack.c.l.b16 %v2972
          %v4007 = vunpack.c.h.b16 %v2972
          %v4008 = vunpack.c.l.b16 %v2973
          %v4009 = vunpack.c.l.b16 %v2974
          %v4010 = vunpack.c.h.b16 %v2974
          %v4011 = vunpack.c.l.b16 %v2975
          %v4012 = vunpack.c.h.b16 %v2975
          %v4013 = vunpack.c.l.b16 %v2976
          %v4014 = vunpack.c.l.b16 %v2977
          %v4015 = vunpack.c.h.b16 %v2977
          %v4016 = vunpack.c.l.b16 %v2978
          %v4017 = vunpack.c.h.b16 %v2978
          %v4018 = vunpack.c.l.b16 %v2979
          %v4019 = vunpack.c.l.b16 %v2980
          %v4020 = vunpack.c.h.b16 %v2980
          %v4021 = vunpack.c.l.b16 %v2981
          %v4022 = vunpack.c.h.b16 %v2981
          %v4023 = vunpack.c.l.b16 %v2982
          %v4024 = vunpack.c.l.b16 %v2983
          %v4025 = vunpack.c.h.b16 %v2983
          %v4026 = vunpack.c.l.b16 %v2984
          %v4027 = vunpack.c.h.b16 %v2984
          %v4028 = vunpack.c.l.b16 %v2985
          %v4029 = vunpack.c.l.b16 %v2986
          %v4030 = vunpack.c.h.b16 %v2986
          %v4031 = vunpack.c.l.b16 %v2987
          %v4032 = vunpack.c.h.b16 %v2987
          %v4033 = vunpack.c.l.b16 %v2988
          %v4034 = vunpack.c.l.b16 %v2989
          %v4035 = vunpack.c.h.b16 %v2989
          %v4036 = vunpack.c.l.b16 %v2990
          %v4037 = vunpack.c.h.b16 %v2990
          %v4038 = vunpack.c.l.b16 %v2991
          %v4039 = vunpack.c.l.b16 %v2992
          %v4040 = vunpack.c.h.b16 %v2992
          %v4041 = vunpack.c.l.b16 %v2993
          %v4042 = vunpack.c.h.b16 %v2993
          %v4043 = vunpack.c.l.b16 %v2994
          %v4044 = vunpack.c.l.b16 %v2995
          %v4045 = vunpack.c.h.b16 %v2995
          %v4046 = vunpack.c.l.b16 %v2996
          %v4047 = vunpack.c.h.b16 %v2996
          %v4048 = vunpack.c.l.b16 %v2997
          %v4049 = vunpack.c.l.b16 %v2998
          %v4050 = vunpack.c.h.b16 %v2998
          %v4051 = vunpack.c.l.b16 %v2999
          %v4052 = vunpack.c.h.b16 %v2999
          %v4053 = vunpack.c.l.b16 %v3000
          %v4054 = vunpack.c.l.b16 %v3001
          %v4055 = vunpack.c.h.b16 %v3001
          %v4056 = vunpack.c.l.b16 %v3002
          %v4057 = vunpack.c.h.b16 %v3002
          %v4058 = vunpack.c.l.b16 %v3003
          %v4059 = vunpack.c.l.b16 %v3004
          %v4060 = vunpack.c.h.b16 %v3004
          %v4061 = vunpack.c.l.b16 %v3005
          %v4062 = vunpack.c.h.b16 %v3005
          %v4063 = vunpack.c.l.b16 %v3006
          %v4064 = vunpack.c.l.b16 %v3007
          %v4065 = vunpack.c.h.b16 %v3007
          %v4066 = vunpack.c.l.b16 %v3008
          %v4067 = vunpack.c.h.b16 %v3008
          %v4068 = vunpack.c.l.b16 %v3009
          %v4069 = vunpack.c.l.b16 %v3010
          %v4070 = vunpack.c.h.b16 %v3010
          %v4071 = vunpack.c.l.b16 %v3011
          %v4072 = vunpack.c.h.b16 %v3011
          %v4073 = vunpack.c.l.b16 %v3012
          %v4074 = vunpack.c.l.b16 %v3013
          %v4075 = vunpack.c.h.b16 %v3013
          %v4076 = vunpack.c.l.b16 %v3014
          %v4077 = vunpack.c.h.b16 %v3014
          %v4078 = vunpack.c.l.b16 %v3015
          %v4079 = vunpack.c.l.b16 %v3016
          %v4080 = vunpack.c.h.b16 %v3016
          %v4081 = vunpack.c.l.b16 %v3017
          %v4082 = vunpack.c.h.b16 %v3017
          %v4083 = vunpack.c.l.b16 %v3018
          %v4084 = vunpack.c.l.b16 %v3019
          %v4085 = vunpack.c.h.b16 %v3019
          %v4086 = vunpack.c.l.b16 %v3020
          %v4087 = vunpack.c.h.b16 %v3020
          %v4088 = vunpack.c.l.b16 %v3021
          %v4089 = vunpack.c.l.b16 %v3022
          %v4090 = vunpack.c.h.b16 %v3022
          %v4091 = vunpack.c.l.b16 %v3023
          %v4092 = vunpack.c.h.b16 %v3023
          %v4093 = vunpack.c.l.b16 %v3024
          %v4094 = vunpack.c.l.b16 %v3025
          %v4095 = vunpack.c.h.b16 %v3025
          %v4096 = vunpack.c.l.b16 %v3026
          %v4097 = vunpack.c.h.b16 %v3026
          %v4098 = vunpack.c.l.b16 %v3027
          %v4099 = vunpack.c.l.b16 %v3028
          %v4100 = vunpack.c.h.b16 %v3028
          %v4101 = vunpack.c.l.b16 %v3029
          %v4102 = vunpack.c.h.b16 %v3029
          %v4103 = vunpack.c.l.b16 %v3030
          %v4104 = vunpack.c.l.b16 %v3031
          %v4105 = vunpack.c.h.b16 %v3031
          %v4106 = vunpack.c.l.b16 %v3032
          %v4107 = vunpack.c.h.b16 %v3032
          %v4108 = vunpack.c.l.b16 %v3033
          %v4109 = vunpack.c.l.b16 %v3034
          %v4110 = vunpack.c.h.b16 %v3034
          %v4111 = vunpack.c.l.b16 %v3035
          %v4112 = vunpack.c.h.b16 %v3035
          %v4113 = vunpack.c.l.b16 %v3036
          %v4114 = vunpack.c.l.b16 %v3037
          %v4115 = vunpack.c.h.b16 %v3037
          %v4116 = vunpack.c.l.b16 %v3038
          %v4117 = vunpack.c.h.b16 %v3038
          %v4118 = vunpack.c.l.b16 %v3039
          %v4119 = vunpack.c.l.b16 %v3040
          %v4120 = vunpack.c.h.b16 %v3040
          %v4121 = vunpack.c.l.b16 %v3041
          %v4122 = vunpack.c.h.b16 %v3041
          %v4123 = vunpack.c.l.b16 %v3042
          %v4124 = vunpack.c.l.b16 %v3043
          %v4125 = vunpack.c.h.b16 %v3043
          %v4126 = vunpack.c.l.b16 %v3044
          %v4127 = vunpack.c.h.b16 %v3044
          %v4128 = vunpack.c.l.b16 %v3045
          %v4129 = vunpack.c.l.b16 %v3046
          %v4130 = vunpack.c.h.b16 %v3046
          %v4131 = vunpack.c.l.b16 %v3047
          %v4132 = vunpack.c.h.b16 %v3047
          %v4133 = vunpack.c.l.b16 %v3048
          %v4134 = vunpack.c.l.b16 %v3049
          %v4135 = vunpack.c.h.b16 %v3049
          %v4136 = vunpack.c.l.b16 %v3050
          %v4137 = vunpack.c.h.b16 %v3050
          %v4138 = vunpack.c.l.b16 %v3051
          %v4139 = vunpack.c.l.b16 %v3052
          %v4140 = vunpack.c.h.b16 %v3052
          %v4141 = vunpack.c.l.b16 %v3053
          %v4142 = vunpack.c.h.b16 %v3053
          %v4143 = vunpack.c.l.b16 %v3054
          %v4144 = vunpack.c.l.b16 %v3055
          %v4145 = vunpack.c.h.b16 %v3055
          %v4146 = vunpack.c.l.b16 %v3056
          %v4147 = vunpack.c.h.b16 %v3056
          %v4148 = vunpack.c.l.b16 %v3057
          %v4149 = vunpack.c.l.b16 %v3058
          %v4150 = vunpack.c.h.b16 %v3058
          %v4151 = vunpack.c.l.b16 %v3059
          %v4152 = vunpack.c.h.b16 %v3059
          %v4153 = vunpack.c.l.b16 %v3060
          %v4154 = vunpack.c.l.b16 %v3061
          %v4155 = vunpack.c.h.b16 %v3061
          %v4156 = vunpack.c.l.b16 %v3062
          %v4157 = vunpack.c.h.b16 %v3062
          %v4158 = vunpack.c.l.b16 %v3063
          %v4159 = vunpack.c.l.b16 %v3064
          %v4160 = vunpack.c.h.b16 %v3064
          %v4161 = vunpack.c.l.b16 %v3065
          %v4162 = vunpack.c.h.b16 %v3065
          %v4163 = vunpack.c.l.b16 %v3066
          %v4164 = vunpack.c.l.b16 %v3067
          %v4165 = vunpack.c.h.b16 %v3067
          %v4166 = vunpack.c.l.b16 %v3068
          %v4167 = vunpack.c.h.b16 %v3068
          %v4168 = vunpack.c.l.b16 %v3069
          %v4169 = vunpack.c.l.b16 %v3070
          %v4170 = vunpack.c.h.b16 %v3070
          %v4171 = vunpack.c.l.b16 %v3071
          %v4172 = vunpack.c.h.b16 %v3071
          %v4173 = vunpack.c.l.b16 %v3072
          %v4174 = vunpack.c.l.b16 %v3073
          %v4175 = vunpack.c.h.b16 %v3073
          %v4176 = vunpack.c.l.b16 %v3074
          %v4177 = vunpack.c.h.b16 %v3074
          %v4178 = vunpack.c.l.b16 %v3075
          %v4179 = vunpack.c.l.b16 %v3076
          %v4180 = vunpack.c.h.b16 %v3076
          %v4181 = vunpack.c.l.b16 %v3077
          %v4182 = vunpack.c.h.b16 %v3077
          %v4183 = vunpack.c.l.b16 %v3078
          %v4184 = vunpack.c.l.b16 %v3079
          %v4185 = vunpack.c.h.b16 %v3079
          %v4186 = vunpack.c.l.b16 %v3080
          %v4187 = vunpack.c.h.b16 %v3080
          %v4188 = vunpack.c.l.b16 %v3081
          %v4189 = vunpack.c.l.b16 %v3082
          %v4190 = vunpack.c.h.b16 %v3082
          %v4191 = vunpack.c.l.b16 %v3083
          %v4192 = vunpack.c.h.b16 %v3083
          %v4193 = vunpack.c.l.b16 %v3084
          %v4194 = vunpack.c.l.b16 %v3085
          %v4195 = vunpack.c.h.b16 %v3085
          %v4196 = vunpack.c.l.b16 %v3086
          %v4197 = vunpack.c.h.b16 %v3086
          %v4198 = vunpack.c.l.b16 %v3087
          %v4199 = vunpack.c.l.b16 %v3088
          %v4200 = vunpack.c.h.b16 %v3088
          %v4201 = vunpack.c.l.b16 %v3089
          %v4202 = vunpack.c.h.b16 %v3089
          %v4203 = vunpack.c.l.b16 %v3090
          %v4204 = vunpack.c.l.b16 %v3091
          %v4205 = vunpack.c.h.b16 %v3091
          %v4206 = vunpack.c.l.b16 %v3092
          %v4207 = vunpack.c.h.b16 %v3092
          %v4208 = vunpack.c.l.b16 %v3093
          %v4209 = vunpack.c.l.b16 %v3094
          %v4210 = vunpack.c.h.b16 %v3094
          %v4211 = vunpack.c.l.b16 %v3095
          %v4212 = vunpack.c.h.b16 %v3095
          %v4213 = vunpack.c.l.b16 %v3096
          %v4214 = vunpack.c.l.b16 %v3097
          %v4215 = vunpack.c.h.b16 %v3097
          %v4216 = vunpack.c.l.b16 %v3098
          %v4217 = vunpack.c.h.b16 %v3098
          %v4218 = vunpack.c.l.b16 %v3099
          %v4219 = vunpack.c.l.b16 %v3100
          %v4220 = vunpack.c.h.b16 %v3100
          %v4221 = vunpack.c.l.b16 %v3101
          %v4222 = vunpack.c.h.b16 %v3101
          %v4223 = vunpack.c.l.b16 %v3102
          %v4224 = vunpack.c.l.b16 %v3103
          %v4225 = vunpack.c.h.b16 %v3103
          %v4226 = vunpack.c.l.b16 %v3104
          %v4227 = vunpack.c.h.b16 %v3104
          %v4228 = vunpack.c.l.b16 %v3105
          %v4229 = vunpack.c.l.b16 %v3106
          %v4230 = vunpack.c.h.b16 %v3106
          %v4231 = vunpack.c.l.b16 %v3107
          %v4232 = vunpack.c.h.b16 %v3107
          %v4233 = vunpack.c.l.b16 %v3108
          %v4234 = vunpack.c.l.b16 %v3109
          %v4235 = vunpack.c.h.b16 %v3109
          %v4236 = vunpack.c.l.b16 %v3110
          %v4237 = vunpack.c.h.b16 %v3110
          %v4238 = vunpack.c.l.b16 %v3111
          %v4239 = vunpack.c.l.b16 %v3112
          %v4240 = vunpack.c.h.b16 %v3112
          %v4241 = vunpack.c.l.b16 %v3113
          %v4242 = vunpack.c.h.b16 %v3113
          %v4243 = vunpack.c.l.b16 %v3114
          %v4244 = vunpack.c.l.b16 %v3115
          %v4245 = vunpack.c.h.b16 %v3115
          %v4246 = vunpack.c.l.b16 %v3116
          %v4247 = vunpack.c.h.b16 %v3116
          %v4248 = vunpack.c.l.b16 %v3117
          %v4249 = vunpack.c.l.b16 %v3118
          %v4250 = vunpack.c.h.b16 %v3118
          %v4251 = vunpack.c.l.b16 %v3119
          %v4252 = vunpack.c.h.b16 %v3119
          %v4253 = vunpack.c.l.b16 %v3120
          %v4254 = vunpack.c.l.b16 %v3121
          %v4255 = vunpack.c.h.b16 %v3121
          %v4256 = vunpack.c.l.b16 %v3122
          %v4257 = vunpack.c.h.b16 %v3122
          %v4258 = vunpack.c.l.b16 %v3123
          %v4259 = vunpack.c.l.b16 %v3124
          %v4260 = vunpack.c.h.b16 %v3124
          %v4261 = vunpack.c.l.b16 %v3125
          %v4262 = vunpack.c.h.b16 %v3125
          %v4263 = vunpack.c.l.b16 %v3126
          %v4264 = vunpack.c.l.b16 %v3127
          %v4265 = vunpack.c.h.b16 %v3127
          %v4266 = vunpack.c.l.b16 %v3128
          %v4267 = vunpack.c.h.b16 %v3128
          %v4268 = vunpack.c.l.b16 %v3129
          %v4269 = vunpack.c.l.b16 %v3130
          %v4270 = vunpack.c.h.b16 %v3130
          %v4271 = vunpack.c.l.b16 %v3131
          %v4272 = vunpack.c.h.b16 %v3131
          %v4273 = vunpack.c.l.b16 %v3132
          %v4274 = vunpack.c.l.b16 %v3133
          %v4275 = vunpack.c.h.b16 %v3133
          %v4276 = vunpack.c.l.b16 %v3134
          %v4277 = vunpack.c.h.b16 %v3134
          %v4278 = vunpack.c.l.b16 %v3135
          %v4279 = vunpack.c.l.b16 %v3136
          %v4280 = vunpack.c.h.b16 %v3136
          %v4281 = vunpack.c.l.b16 %v3137
          %v4282 = vunpack.c.h.b16 %v3137
          %v4283 = vunpack.c.l.b16 %v3138
          %v4284 = vunpack.c.l.b16 %v3139
          %v4285 = vunpack.c.h.b16 %v3139
          %v4286 = vunpack.c.l.b16 %v3140
          %v4287 = vunpack.c.h.b16 %v3140
          %v4288 = vunpack.c.l.b16 %v3141
          %v4289 = vunpack.c.l.b16 %v3142
          %v4290 = vunpack.c.h.b16 %v3142
          %v4291 = vunpack.c.l.b16 %v3143
          %v4292 = vunpack.c.h.b16 %v3143
          %v4293 = vunpack.c.l.b16 %v3144
          %v4294 = vunpack.c.l.b16 %v3145
          %v4295 = vunpack.c.h.b16 %v3145
          %v4296 = vunpack.c.l.b16 %v3146
          %v4297 = vunpack.c.h.b16 %v3146
          %v4298 = vunpack.c.l.b16 %v3147
          %v4299 = vunpack.c.l.b16 %v3148
          %v4300 = vunpack.c.h.b16 %v3148
          %v4301 = vunpack.c.l.b16 %v3149
          %v4302 = vunpack.c.h.b16 %v3149
          %v4303 = vunpack.c.l.b16 %v3150
          %v4304 = vunpack.c.l.b16 %v3151
          %v4305 = vunpack.c.h.b16 %v3151
          %v4306 = vunpack.c.l.b16 %v3152
          %v4307 = vunpack.c.h.b16 %v3152
          %v4308 = vunpack.c.l.b16 %v3153
          %v4309 = vunpack.c.l.b16 %v3154
          %v4310 = vunpack.c.h.b16 %v3154
          %v4311 = vunpack.c.l.b16 %v3155
          %v4312 = vunpack.c.h.b16 %v3155
          %v4313 = vunpack.c.l.b16 %v3156
          %v4314 = vunpack.c.l.b16 %v3157
          %v4315 = vunpack.c.h.b16 %v3157
          %v4316 = vunpack.c.l.b16 %v3158
          %v4317 = vunpack.c.h.b16 %v3158
          %v4318 = vunpack.c.l.b16 %v3159
          %v4319 = vunpack.c.l.b16 %v3160
          %v4320 = vunpack.c.h.b16 %v3160
          %v4321 = vunpack.c.l.b16 %v3161
          %v4322 = vunpack.c.h.b16 %v3161
          %v4323 = vunpack.c.l.b16 %v3162
          %v4324 = vunpack.c.l.b16 %v3163
          %v4325 = vunpack.c.h.b16 %v3163
          %v4326 = vunpack.c.l.b16 %v3164
          %v4327 = vunpack.c.h.b16 %v3164
          %v4328 = vunpack.c.l.b16 %v3165
          %v4329 = vunpack.c.l.b16 %v3166
          %v4330 = vunpack.c.h.b16 %v3166
          %v4331 = vunpack.c.l.b16 %v3167
          %v4332 = vunpack.c.h.b16 %v3167
          %v4333 = vunpack.c.l.b16 %v3168
          %v4334 = vunpack.c.l.b16 %v3169
          %v4335 = vunpack.c.h.b16 %v3169
          %v4336 = vunpack.c.l.b16 %v3170
          %v4337 = vunpack.c.h.b16 %v3170
          %v4338 = vunpack.c.l.b16 %v3171
          %v4339 = vunpack.c.l.b16 %v3172
          %v4340 = vunpack.c.h.b16 %v3172
          %v4341 = vunpack.c.l.b16 %v3173
          %v4342 = vunpack.c.h.b16 %v3173
          %v4343 = vunpack.c.l.b16 %v3174
          %v4344 = vunpack.c.l.b16 %v3175
          %v4345 = vunpack.c.h.b16 %v3175
          %v4346 = vunpack.c.l.b16 %v3176
          %v4347 = vunpack.c.h.b16 %v3176
          %v4348 = vunpack.c.l.b16 %v3177
          %v4349 = vunpack.c.l.b16 %v3178
          %v4350 = vunpack.c.h.b16 %v3178
          %v4351 = vunpack.c.l.b16 %v3179
          %v4352 = vunpack.c.h.b16 %v3179
          %v4353 = vunpack.c.l.b16 %v3180
          %v4354 = vunpack.c.l.b16 %v3181
          %v4355 = vunpack.c.h.b16 %v3181
          %v4356 = vunpack.c.l.b16 %v3182
          %v4357 = vunpack.c.h.b16 %v3182
          %v4358 = vunpack.c.l.b16 %v3183
          %v4359 = vunpack.c.l.b16 %v3184
          %v4360 = vunpack.c.h.b16 %v3184
          %v4361 = vunpack.c.l.b16 %v3185
          %v4362 = vunpack.c.h.b16 %v3185
          %v4363 = vunpack.c.l.b16 %v3186
          %v4364 = vunpack.c.l.b16 %v3187
          %v4365 = vunpack.c.h.b16 %v3187
          %v4366 = vunpack.c.l.b16 %v3188
          %v4367 = vunpack.c.h.b16 %v3188
          %v4368 = vunpack.c.l.b16 %v3189
          %v4369 = vunpack.c.l.b16 %v3190
          %v4370 = vunpack.c.h.b16 %v3190
          %v4371 = vunpack.c.l.b16 %v3191
          %v4372 = vunpack.c.h.b16 %v3191
          %v4373 = vunpack.c.l.b16 %v3192
          %v4374 = vunpack.c.l.b16 %v3193
          %v4375 = vunpack.c.h.b16 %v3193
          %v4376 = vunpack.c.l.b16 %v3194
          %v4377 = vunpack.c.h.b16 %v3194
          %v4378 = vunpack.c.l.b16 %v3195
          %v4379 = vunpack.c.l.b16 %v3196
          %v4380 = vunpack.c.h.b16 %v3196
          %v4381 = vunpack.c.l.b16 %v3197
          %v4382 = vunpack.c.h.b16 %v3197
          %v4383 = vunpack.c.l.b16 %v3198
          %v4384 = vunpack.c.l.b16 %v3199
          %v4385 = vunpack.c.h.b16 %v3199
          %v4386 = vunpack.c.l.b16 %v3200
          %v4387 = vunpack.c.h.b16 %v3200
          %v4388 = vunpack.c.l.b16 %v3201
          %v4389 = vunpack.c.l.b16 %v3202
          %v4390 = vunpack.c.h.b16 %v3202
          %v4391 = vunpack.c.l.b16 %v3203
          %v4392 = vunpack.c.h.b16 %v3203
          %v4393 = vunpack.c.l.b16 %v3204
          %v4394 = vunpack.c.l.b16 %v3205
          %v4395 = vunpack.c.h.b16 %v3205
          %v4396 = vunpack.c.l.b16 %v3206
          %v4397 = vunpack.c.h.b16 %v3206
          %v4398 = vunpack.c.l.b16 %v3207
          %v4399 = vunpack.c.l.b16 %v3208
          %v4400 = vunpack.c.h.b16 %v3208
          %v4401 = vunpack.c.l.b16 %v3209
          %v4402 = vunpack.c.h.b16 %v3209
          %v4403 = vunpack.c.l.b16 %v3210
          %v4404 = vunpack.c.l.b16 %v3211
          %v4405 = vunpack.c.h.b16 %v3211
          %v4406 = vunpack.c.l.b16 %v3212
          %v4407 = vunpack.c.h.b16 %v3212
          %v4408 = vunpack.c.l.b16 %v3213
          %v4409 = vunpack.c.l.b16 %v3214
          %v4410 = vunpack.c.h.b16 %v3214
          %v4411 = vunpack.c.l.b16 %v3215
          %v4412 = vunpack.c.h.b16 %v3215
          %v4413 = vunpack.c.l.b16 %v3216
          %v4414 = vunpack.c.l.b16 %v3217
          %v4415 = vunpack.c.h.b16 %v3217
          %v4416 = vunpack.c.l.b16 %v3218
          %v4417 = vunpack.c.h.b16 %v3218
          %v4418 = vunpack.c.l.b16 %v3219
          %v4419 = vunpack.c.l.b16 %v3220
          %v4420 = vunpack.c.h.b16 %v3220
          %v4421 = vunpack.c.l.b16 %v3221
          %v4422 = vunpack.c.h.b16 %v3221
          %v4423 = vunpack.c.l.b16 %v3222
          %v4424 = vunpack.c.l.b16 %v3223
          %v4425 = vunpack.c.h.b16 %v3223
          %v4426 = vunpack.c.l.b16 %v3224
          %v4427 = vunpack.c.h.b16 %v3224
          %v4428 = vunpack.c.l.b16 %v3225
          %v4429 = vunpack.c.l.b16 %v3226
          %v4430 = vunpack.c.h.b16 %v3226
          %v4431 = vunpack.c.l.b16 %v3227
          %v4432 = vunpack.c.h.b16 %v3227
          %v4433 = vunpack.c.l.b16 %v3228
          %v4434 = vunpack.c.l.b16 %v3229
          %v4435 = vunpack.c.h.b16 %v3229
          %v4436 = vunpack.c.l.b16 %v3230
          %v4437 = vunpack.c.h.b16 %v3230
          %v4438 = vunpack.c.l.b16 %v3231
          %v4439 = vunpack.c.l.b16 %v3232
          %v4440 = vunpack.c.h.b16 %v3232
          %v4441 = vunpack.c.l.b16 %v3233
          %v4442 = vunpack.c.h.b16 %v3233
          %v4443 = vunpack.c.l.b16 %v3234
          %v4444 = vunpack.c.l.b16 %v3235
          %v4445 = vunpack.c.h.b16 %v3235
          %v4446 = vunpack.c.l.b16 %v3236
          %v4447 = vunpack.c.h.b16 %v3236
          %v4448 = vunpack.c.l.b16 %v3237
          %v4449 = vunpack.c.l.b16 %v3238
          %v4450 = vunpack.c.h.b16 %v3238
          %v4451 = vunpack.c.l.b16 %v3239
          %v4452 = vunpack.c.h.b16 %v3239
          %v4453 = vunpack.c.l.b16 %v3240
          %v4454 = vunpack.c.l.b16 %v3241
          %v4455 = vunpack.c.h.b16 %v3241
          %v4456 = vunpack.c.l.b16 %v3242
          %v4457 = vunpack.c.h.b16 %v3242
          %v4458 = vunpack.c.l.b16 %v3243
          %v4459 = vunpack.c.l.b16 %v3244
          %v4460 = vunpack.c.h.b16 %v3244
          %v4461 = vunpack.c.l.b16 %v3245
          %v4462 = vunpack.c.h.b16 %v3245
          %v4463 = vunpack.c.l.b16 %v3246
          %v4464 = vunpack.c.l.b16 %v3247
          %v4465 = vunpack.c.h.b16 %v3247
          %v4466 = vunpack.c.l.b16 %v3248
          %v4467 = vunpack.c.h.b16 %v3248
          %v4468 = vunpack.c.l.b16 %v3249
          %v4469 = vunpack.c.l.b16 %v3250
          %v4470 = vunpack.c.h.b16 %v3250
          %v4471 = vunpack.c.l.b16 %v3251
          %v4472 = vunpack.c.h.b16 %v3251
          %v4473 = vunpack.c.l.b16 %v3252
          %v4474 = vunpack.c.l.b16 %v3253
          %v4475 = vunpack.c.h.b16 %v3253
          %v4476 = vunpack.c.l.b16 %v3254
          %v4477 = vunpack.c.h.b16 %v3254
          %v4478 = vunpack.c.l.b16 %v3255
          %v4479 = vunpack.c.l.b16 %v3256
          %v4480 = vunpack.c.h.b16 %v3256
          %v4481 = vunpack.c.l.b16 %v3257
          %v4482 = vunpack.c.h.b16 %v3257
          %v4483 = vunpack.c.l.b16 %v3258
          %v4484 = vunpack.c.l.b16 %v3259
          %v4485 = vunpack.c.h.b16 %v3259
          %v4486 = vunpack.c.l.b16 %v3260
          %v4487 = vunpack.c.h.b16 %v3260
          %v4488 = vunpack.c.l.b16 %v3261
          %v4489 = vunpack.c.l.b16 %v3262
          %v4490 = vunpack.c.h.b16 %v3262
          %v4491 = vunpack.c.l.b16 %v3263
          %v4492 = vunpack.c.h.b16 %v3263
          %v4493 = vunpack.c.l.b16 %v3264
          %v4494 = vunpack.c.l.b16 %v3265
          %v4495 = vunpack.c.h.b16 %v3265
          %v4496 = vunpack.c.l.b16 %v3266
          %v4497 = vunpack.c.h.b16 %v3266
          %v4498 = vunpack.c.l.b16 %v3267
          %v4499 = vunpack.c.l.b16 %v3268
          %v4500 = vunpack.c.h.b16 %v3268
          %v4501 = vunpack.c.l.b16 %v3269
          %v4502 = vunpack.c.h.b16 %v3269
          %v4503 = vunpack.c.l.b16 %v3270
          %v4504 = vunpack.c.l.b16 %v3271
          %v4505 = vunpack.c.h.b16 %v3271
          %v4506 = vunpack.c.l.b16 %v3272
          %v4507 = vunpack.c.h.b16 %v3272
          %v4508 = vunpack.c.l.b16 %v3273
          %v4509 = vunpack.c.l.b16 %v3274
          %v4510 = vunpack.c.h.b16 %v3274
          %v4511 = vunpack.c.l.b16 %v3275
          %v4512 = vunpack.c.h.b16 %v3275
          %v4513 = vunpack.c.l.b16 %v3276
          %v4514 = vunpack.c.l.b16 %v3277
          %v4515 = vunpack.c.h.b16 %v3277
          %v4516 = vunpack.c.l.b16 %v3278
          %v4517 = vunpack.c.h.b16 %v3278
          %v4518 = vunpack.c.l.b16 %v3279
          %v4519 = vunpack.c.l.b16 %v3280
          %v4520 = vunpack.c.h.b16 %v3280
          %v4521 = vunpack.c.l.b16 %v3281
          %v4522 = vunpack.c.h.b16 %v3281
          %v4523 = vunpack.c.l.b16 %v3282
          %v4524 = vunpack.c.l.b16 %v3283
          %v4525 = vunpack.c.h.b16 %v3283
          %v4526 = vunpack.c.l.b16 %v3284
          %v4527 = vunpack.c.h.b16 %v3284
          %v4528 = vunpack.c.l.b16 %v3285
          %v4529 = vunpack.c.l.b16 %v3286
          %v4530 = vunpack.c.h.b16 %v3286
          %v4531 = vunpack.c.l.b16 %v3287
          %v4532 = vunpack.c.h.b16 %v3287
          %v4533 = vunpack.c.l.b16 %v3288
          %v4534 = vunpack.c.l.b16 %v3289
          %v4535 = vunpack.c.h.b16 %v3289
          %v4536 = vunpack.c.l.b16 %v3290
          %v4537 = vunpack.c.h.b16 %v3290
          %v4538 = vunpack.c.l.b16 %v3291
          %v4539 = vunpack.c.l.b16 %v3292
          %v4540 = vunpack.c.h.b16 %v3292
          %v4541 = vunpack.c.l.b16 %v3293
          %v4542 = vunpack.c.h.b16 %v3293
          %v4543 = vunpack.c.l.b16 %v3294
          %v4544 = vunpack.c.l.b16 %v3295
          %v4545 = vunpack.c.h.b16 %v3295
          %v4546 = vunpack.c.l.b16 %v3296
          %v4547 = vunpack.c.h.b16 %v3296
          %v4548 = vunpack.c.l.b16 %v3297
          %v4549 = vunpack.c.l.b16 %v3298
          %v4550 = vunpack.c.h.b16 %v3298
          %v4551 = vunpack.c.l.b16 %v3299
          %v4552 = vunpack.c.h.b16 %v3299
          %v4553 = vunpack.c.l.b16 %v3300
          %v4554 = vunpack.c.l.b16 %v3301
          %v4555 = vunpack.c.h.b16 %v3301
          %v4556 = vunpack.c.l.b16 %v3302
          %v4557 = vunpack.c.h.b16 %v3302
          %v4558 = vunpack.c.l.b16 %v3303
          %v4559 = vunpack.c.l.b16 %v3304
          %v4560 = vunpack.c.h.b16 %v3304
          %v4561 = vunpack.c.l.b16 %v3305
          %v4562 = vunpack.c.h.b16 %v3305
          %v4563 = vunpack.c.l.b16 %v3306
          %v4564 = vunpack.c.l.b16 %v3307
          %v4565 = vunpack.c.h.b16 %v3307
          %v4566 = vunpack.c.l.b16 %v3308
          %v4567 = vunpack.c.h.b16 %v3308
          %v4568 = vunpack.c.l.b16 %v3309
          %v4569 = vunpack.c.l.b16 %v3310
          %v4570 = vunpack.c.h.b16 %v3310
          %v4571 = vunpack.c.l.b16 %v3311
          %v4572 = vunpack.c.h.b16 %v3311
          %v4573 = vunpack.c.l.b16 %v3312
          %v4574 = vunpack.c.l.b16 %v3313
          %v4575 = vunpack.c.h.b16 %v3313
          %v4576 = vunpack.c.l.b16 %v3314
          %v4577 = vunpack.c.h.b16 %v3314
          %v4578 = vunpack.c.l.b16 %v3315
          %v4579 = vunpack.c.l.b16 %v3316
          %v4580 = vunpack.c.h.b16 %v3316
          %v4581 = vunpack.c.l.b16 %v3317
          %v4582 = vunpack.c.h.b16 %v3317
          %v4583 = vunpack.c.l.b16 %v3318
          %v4584 = vunpack.c.l.b16 %v3319
          %v4585 = vunpack.c.h.b16 %v3319
          %v4586 = vunpack.c.l.b16 %v3320
          %v4587 = vunpack.c.h.b16 %v3320
          %v4588 = vunpack.c.l.b16 %v3321
          %v4589 = vunpack.c.l.b16 %v3322
          %v4590 = vunpack.c.h.b16 %v3322
          %v4591 = vunpack.c.l.b16 %v3323
          %v4592 = vunpack.c.h.b16 %v3323
          %v4593 = vunpack.c.l.b16 %v3324
          %v4594 = vunpack.c.l.b16 %v3325
          %v4595 = vunpack.c.h.b16 %v3325
          %v4596 = vunpack.c.l.b16 %v3326
          %v4597 = vunpack.c.h.b16 %v3326
          %v4598 = vunpack.c.l.b16 %v3327
          %v4599 = vunpack.c.l.b16 %v3328
          %v4600 = vunpack.c.h.b16 %v3328
          %v4601 = vunpack.c.l.b16 %v3329
          %v4602 = vunpack.c.h.b16 %v3329
          %v4603 = vunpack.c.l.b16 %v3330
          %v4604 = vunpack.c.l.b16 %v3331
          %v4605 = vunpack.c.h.b16 %v3331
          %v4606 = vunpack.c.l.b16 %v3332
          %v4607 = vunpack.c.h.b16 %v3332
          %v4608 = vunpack.c.l.b16 %v3333
          %v4609 = vunpack.c.l.b16 %v3334
          %v4610 = vunpack.c.h.b16 %v3334
          %v4611 = vunpack.c.l.b16 %v3335
          %v4612 = vunpack.c.h.b16 %v3335
          %v4613 = vunpack.c.l.b16 %v3336
          %v4614 = vunpack.c.l.b16 %v3337
          %v4615 = vunpack.c.h.b16 %v3337
          %v4616 = vunpack.c.l.b16 %v3338
          %v4617 = vunpack.c.h.b16 %v3338
          %v4618 = vunpack.c.l.b16 %v3339
          %v4619 = vunpack.c.l.b16 %v3340
          %v4620 = vunpack.c.h.b16 %v3340
          %v4621 = vunpack.c.l.b16 %v3341
          %v4622 = vunpack.c.h.b16 %v3341
          %v4623 = vunpack.c.l.b16 %v3342
          %v4624 = vunpack.c.l.b16 %v3343
          %v4625 = vunpack.c.h.b16 %v3343
          %v4626 = vunpack.c.l.b16 %v3344
          %v4627 = vunpack.c.h.b16 %v3344
          %v4628 = vunpack.c.l.b16 %v3345
          %v4629 = vpack.c.b16 %v3849, %v3844
          %v4630 = vpack.c.b16 %v3850, %v3845
          %v4631 = vpack.c.b16 %v3851, %v3846
          %v4632 = vpack.c.b16 %v3852, %v3847
          %v4633 = vpack.c.b16 %v3853, %v3848
          %v4634 = vpack.c.b16 %v3859, %v3854
          %v4635 = vpack.c.b16 %v3860, %v3855
          %v4636 = vpack.c.b16 %v3861, %v3856
          %v4637 = vpack.c.b16 %v3862, %v3857
          %v4638 = vpack.c.b16 %v3863, %v3858
          %v4639 = vpack.c.b16 %v3869, %v3864
          %v4640 = vpack.c.b16 %v3870, %v3865
          %v4641 = vpack.c.b16 %v3871, %v3866
          %v4642 = vpack.c.b16 %v3872, %v3867
          %v4643 = vpack.c.b16 %v3873, %v3868
          %v4644 = vpack.c.b16 %v3879, %v3874
          %v4645 = vpack.c.b16 %v3880, %v3875
          %v4646 = vpack.c.b16 %v3881, %v3876
          %v4647 = vpack.c.b16 %v3882, %v3877
          %v4648 = vpack.c.b16 %v3883, %v3878
          %v4649 = vpack.c.b16 %v3889, %v3884
          %v4650 = vpack.c.b16 %v3890, %v3885
          %v4651 = vpack.c.b16 %v3891, %v3886
          %v4652 = vpack.c.b16 %v3892, %v3887
          %v4653 = vpack.c.b16 %v3893, %v3888
          %v4654 = vpack.c.b16 %v3899, %v3894
          %v4655 = vpack.c.b16 %v3900, %v3895
          %v4656 = vpack.c.b16 %v3901, %v3896
          %v4657 = vpack.c.b16 %v3902, %v3897
          %v4658 = vpack.c.b16 %v3903, %v3898
          %v4659 = vpack.c.b16 %v3909, %v3904
          %v4660 = vpack.c.b16 %v3910, %v3905
          %v4661 = vpack.c.b16 %v3911, %v3906
          %v4662 = vpack.c.b16 %v3912, %v3907
          %v4663 = vpack.c.b16 %v3913, %v3908
          %v4664 = vpack.c.b16 %v3919, %v3914
          %v4665 = vpack.c.b16 %v3920, %v3915
          %v4666 = vpack.c.b16 %v3921, %v3916
          %v4667 = vpack.c.b16 %v3922, %v3917
          %v4668 = vpack.c.b16 %v3923, %v3918
          %v4669 = vpack.c.b16 %v3929, %v3924
          %v4670 = vpack.c.b16 %v3930, %v3925
          %v4671 = vpack.c.b16 %v3931, %v3926
          %v4672 = vpack.c.b16 %v3932, %v3927
          %v4673 = vpack.c.b16 %v3933, %v3928
          %v4674 = vpack.c.b16 %v3939, %v3934
          %v4675 = vpack.c.b16 %v3940, %v3935
          %v4676 = vpack.c.b16 %v3941, %v3936
          %v4677 = vpack.c.b16 %v3942, %v3937
          %v4678 = vpack.c.b16 %v3943, %v3938
          %v4679 = vpack.c.b16 %v3949, %v3944
          %v4680 = vpack.c.b16 %v3950, %v3945
          %v4681 = vpack.c.b16 %v3951, %v3946
          %v4682 = vpack.c.b16 %v3952, %v3947
          %v4683 = vpack.c.b16 %v3953, %v3948
          %v4684 = vpack.c.b16 %v3959, %v3954
          %v4685 = vpack.c.b16 %v3960, %v3955
          %v4686 = vpack.c.b16 %v3961, %v3956
          %v4687 = vpack.c.b16 %v3962, %v3957
          %v4688 = vpack.c.b16 %v3963, %v3958
          %v4689 = vpack.c.b16 %v3969, %v3964
          %v4690 = vpack.c.b16 %v3970, %v3965
          %v4691 = vpack.c.b16 %v3971, %v3966
          %v4692 = vpack.c.b16 %v3972, %v3967
          %v4693 = vpack.c.b16 %v3973, %v3968
          %v4694 = vpack.c.b16 %v3979, %v3974
          %v4695 = vpack.c.b16 %v3980, %v3975
          %v4696 = vpack.c.b16 %v3981, %v3976
          %v4697 = vpack.c.b16 %v3982, %v3977
          %v4698 = vpack.c.b16 %v3983, %v3978
          %v4699 = vpack.c.b16 %v3989, %v3984
          %v4700 = vpack.c.b16 %v3990, %v3985
          %v4701 = vpack.c.b16 %v3991, %v3986
          %v4702 = vpack.c.b16 %v3992, %v3987
          %v4703 = vpack.c.b16 %v3993, %v3988
          %v4704 = vpack.c.b16 %v3999, %v3994
          %v4705 = vpack.c.b16 %v4000, %v3995
          %v4706 = vpack.c.b16 %v4001, %v3996
          %v4707 = vpack.c.b16 %v4002, %v3997
          %v4708 = vpack.c.b16 %v4003, %v3998
          %v4709 = vpack.c.b16 %v4009, %v4004
          %v4710 = vpack.c.b16 %v4010, %v4005
          %v4711 = vpack.c.b16 %v4011, %v4006
          %v4712 = vpack.c.b16 %v4012, %v4007
          %v4713 = vpack.c.b16 %v4013, %v4008
          %v4714 = vpack.c.b16 %v4019, %v4014
          %v4715 = vpack.c.b16 %v4020, %v4015
          %v4716 = vpack.c.b16 %v4021, %v4016
          %v4717 = vpack.c.b16 %v4022, %v4017
          %v4718 = vpack.c.b16 %v4023, %v4018
          %v4719 = vpack.c.b16 %v4029, %v4024
          %v4720 = vpack.c.b16 %v4030, %v4025
          %v4721 = vpack.c.b16 %v4031, %v4026
          %v4722 = vpack.c.b16 %v4032, %v4027
          %v4723 = vpack.c.b16 %v4033, %v4028
          %v4724 = vpack.c.b16 %v4039, %v4034
          %v4725 = vpack.c.b16 %v4040, %v4035
          %v4726 = vpack.c.b16 %v4041, %v4036
          %v4727 = vpack.c.b16 %v4042, %v4037
          %v4728 = vpack.c.b16 %v4043, %v4038
          %v4729 = vpack.c.b16 %v4049, %v4044
          %v4730 = vpack.c.b16 %v4050, %v4045
          %v4731 = vpack.c.b16 %v4051, %v4046
          %v4732 = vpack.c.b16 %v4052, %v4047
          %v4733 = vpack.c.b16 %v4053, %v4048
          %v4734 = vpack.c.b16 %v4059, %v4054
          %v4735 = vpack.c.b16 %v4060, %v4055
          %v4736 = vpack.c.b16 %v4061, %v4056
          %v4737 = vpack.c.b16 %v4062, %v4057
          %v4738 = vpack.c.b16 %v4063, %v4058
          %v4739 = vpack.c.b16 %v4069, %v4064
          %v4740 = vpack.c.b16 %v4070, %v4065
          %v4741 = vpack.c.b16 %v4071, %v4066
          %v4742 = vpack.c.b16 %v4072, %v4067
          %v4743 = vpack.c.b16 %v4073, %v4068
          %v4744 = vpack.c.b16 %v4079, %v4074
          %v4745 = vpack.c.b16 %v4080, %v4075
          %v4746 = vpack.c.b16 %v4081, %v4076
          %v4747 = vpack.c.b16 %v4082, %v4077
          %v4748 = vpack.c.b16 %v4083, %v4078
          %v4749 = vpack.c.b16 %v4089, %v4084
          %v4750 = vpack.c.b16 %v4090, %v4085
          %v4751 = vpack.c.b16 %v4091, %v4086
          %v4752 = vpack.c.b16 %v4092, %v4087
          %v4753 = vpack.c.b16 %v4093, %v4088
          %v4754 = vpack.c.b16 %v4099, %v4094
          %v4755 = vpack.c.b16 %v4100, %v4095
          %v4756 = vpack.c.b16 %v4101, %v4096
          %v4757 = vpack.c.b16 %v4102, %v4097
          %v4758 = vpack.c.b16 %v4103, %v4098
          %v4759 = vpack.c.b16 %v4109, %v4104
          %v4760 = vpack.c.b16 %v4110, %v4105
          %v4761 = vpack.c.b16 %v4111, %v4106
          %v4762 = vpack.c.b16 %v4112, %v4107
          %v4763 = vpack.c.b16 %v4113, %v4108
          %v4764 = vpack.c.b16 %v4119, %v4114
          %v4765 = vpack.c.b16 %v4120, %v4115
          %v4766 = vpack.c.b16 %v4121, %v4116
          %v4767 = vpack.c.b16 %v4122, %v4117
          %v4768 = vpack.c.b16 %v4123, %v4118
          %v4769 = vpack.c.b16 %v4129, %v4124
          %v4770 = vpack.c.b16 %v4130, %v4125
          %v4771 = vpack.c.b16 %v4131, %v4126
          %v4772 = vpack.c.b16 %v4132, %v4127
          %v4773 = vpack.c.b16 %v4133, %v4128
          %v4774 = vpack.c.b16 %v4139, %v4134
          %v4775 = vpack.c.b16 %v4140, %v4135
          %v4776 = vpack.c.b16 %v4141, %v4136
          %v4777 = vpack.c.b16 %v4142, %v4137
          %v4778 = vpack.c.b16 %v4143, %v4138
          %v4779 = vpack.c.b16 %v4149, %v4144
          %v4780 = vpack.c.b16 %v4150, %v4145
          %v4781 = vpack.c.b16 %v4151, %v4146
          %v4782 = vpack.c.b16 %v4152, %v4147
          %v4783 = vpack.c.b16 %v4153, %v4148
          %v4784 = vpack.c.b16 %v4159, %v4154
          %v4785 = vpack.c.b16 %v4160, %v4155
          %v4786 = vpack.c.b16 %v4161, %v4156
          %v4787 = vpack.c.b16 %v4162, %v4157
          %v4788 = vpack.c.b16 %v4163, %v4158
          %v4789 = vpack.c.b16 %v4169, %v4164
          %v4790 = vpack.c.b16 %v4170, %v4165
          %v4791 = vpack.c.b16 %v4171, %v4166
          %v4792 = vpack.c.b16 %v4172, %v4167
          %v4793 = vpack.c.b16 %v4173, %v4168
          %v4794 = vpack.c.b16 %v4179, %v4174
          %v4795 = vpack.c.b16 %v4180, %v4175
          %v4796 = vpack.c.b16 %v4181, %v4176
          %v4797 = vpack.c.b16 %v4182, %v4177
          %v4798 = vpack.c.b16 %v4183, %v4178
          %v4799 = vpack.c.b16 %v4189, %v4184
          %v4800 = vpack.c.b16 %v4190, %v4185
          %v4801 = vpack.c.b16 %v4191, %v4186
          %v4802 = vpack.c.b16 %v4192, %v4187
          %v4803 = vpack.c.b16 %v4193, %v4188
          %v4804 = vpack.c.b16 %v4199, %v4194
          %v4805 = vpack.c.b16 %v4200, %v4195
          %v4806 = vpack.c.b16 %v4201, %v4196
          %v4807 = vpack.c.b16 %v4202, %v4197
          %v4808 = vpack.c.b16 %v4203, %v4198
          %v4809 = vpack.c.b16 %v4209, %v4204
          %v4810 = vpack.c.b16 %v4210, %v4205
          %v4811 = vpack.c.b16 %v4211, %v4206
          %v4812 = vpack.c.b16 %v4212, %v4207
          %v4813 = vpack.c.b16 %v4213, %v4208
          %v4814 = vpack.c.b16 %v4219, %v4214
          %v4815 = vpack.c.b16 %v4220, %v4215
          %v4816 = vpack.c.b16 %v4221, %v4216
          %v4817 = vpack.c.b16 %v4222, %v4217
          %v4818 = vpack.c.b16 %v4223, %v4218
          %v4819 = vpack.c.b16 %v4229, %v4224
          %v4820 = vpack.c.b16 %v4230, %v4225
          %v4821 = vpack.c.b16 %v4231, %v4226
          %v4822 = vpack.c.b16 %v4232, %v4227
          %v4823 = vpack.c.b16 %v4233, %v4228
          %v4824 = vpack.c.b16 %v4239, %v4234
          %v4825 = vpack.c.b16 %v4240, %v4235
          %v4826 = vpack.c.b16 %v4241, %v4236
          %v4827 = vpack.c.b16 %v4242, %v4237
          %v4828 = vpack.c.b16 %v4243, %v4238
          %v4829 = vpack.c.b16 %v4249, %v4244
          %v4830 = vpack.c.b16 %v4250, %v4245
          %v4831 = vpack.c.b16 %v4251, %v4246
          %v4832 = vpack.c.b16 %v4252, %v4247
          %v4833 = vpack.c.b16 %v4253, %v4248
          %v4834 = vpack.c.b16 %v4259, %v4254
          %v4835 = vpack.c.b16 %v4260, %v4255
          %v4836 = vpack.c.b16 %v4261, %v4256
          %v4837 = vpack.c.b16 %v4262, %v4257
          %v4838 = vpack.c.b16 %v4263, %v4258
          %v4839 = vpack.c.b16 %v4269, %v4264
          %v4840 = vpack.c.b16 %v4270, %v4265
          %v4841 = vpack.c.b16 %v4271, %v4266
          %v4842 = vpack.c.b16 %v4272, %v4267
          %v4843 = vpack.c.b16 %v4273, %v4268
          %v4844 = vpack.c.b16 %v4279, %v4274
          %v4845 = vpack.c.b16 %v4280, %v4275
          %v4846 = vpack.c.b16 %v4281, %v4276
          %v4847 = vpack.c.b16 %v4282, %v4277
          %v4848 = vpack.c.b16 %v4283, %v4278
          %v4849 = vpack.c.b16 %v4289, %v4284
          %v4850 = vpack.c.b16 %v4290, %v4285
          %v4851 = vpack.c.b16 %v4291, %v4286
          %v4852 = vpack.c.b16 %v4292, %v4287
          %v4853 = vpack.c.b16 %v4293, %v4288
          %v4854 = vpack.c.b16 %v4299, %v4294
          %v4855 = vpack.c.b16 %v4300, %v4295
          %v4856 = vpack.c.b16 %v4301, %v4296
          %v4857 = vpack.c.b16 %v4302, %v4297
          %v4858 = vpack.c.b16 %v4303, %v4298
          %v4859 = vpack.c.b16 %v4309, %v4304
          %v4860 = vpack.c.b16 %v4310, %v4305
          %v4861 = vpack.c.b16 %v4311, %v4306
          %v4862 = vpack.c.b16 %v4312, %v4307
          %v4863 = vpack.c.b16 %v4313, %v4308
          %v4864 = vpack.c.b16 %v4319, %v4314
          %v4865 = vpack.c.b16 %v4320, %v4315
          %v4866 = vpack.c.b16 %v4321, %v4316
          %v4867 = vpack.c.b16 %v4322, %v4317
          %v4868 = vpack.c.b16 %v4323, %v4318
          %v4869 = vpack.c.b16 %v4329, %v4324
          %v4870 = vpack.c.b16 %v4330, %v4325
          %v4871 = vpack.c.b16 %v4331, %v4326
          %v4872 = vpack.c.b16 %v4332, %v4327
          %v4873 = vpack.c.b16 %v4333, %v4328
          %v4874 = vpack.c.b16 %v4339, %v4334
          %v4875 = vpack.c.b16 %v4340, %v4335
          %v4876 = vpack.c.b16 %v4341, %v4336
          %v4877 = vpack.c.b16 %v4342, %v4337
          %v4878 = vpack.c.b16 %v4343, %v4338
          %v4879 = vpack.c.b16 %v4349, %v4344
          %v4880 = vpack.c.b16 %v4350, %v4345
          %v4881 = vpack.c.b16 %v4351, %v4346
          %v4882 = vpack.c.b16 %v4352, %v4347
          %v4883 = vpack.c.b16 %v4353, %v4348
          %v4884 = vpack.c.b16 %v4359, %v4354
          %v4885 = vpack.c.b16 %v4360, %v4355
          %v4886 = vpack.c.b16 %v4361, %v4356
          %v4887 = vpack.c.b16 %v4362, %v4357
          %v4888 = vpack.c.b16 %v4363, %v4358
          %v4889 = vpack.c.b16 %v4369, %v4364
          %v4890 = vpack.c.b16 %v4370, %v4365
          %v4891 = vpack.c.b16 %v4371, %v4366
          %v4892 = vpack.c.b16 %v4372, %v4367
          %v4893 = vpack.c.b16 %v4373, %v4368
          %v4894 = vpack.c.b16 %v4379, %v4374
          %v4895 = vpack.c.b16 %v4380, %v4375
          %v4896 = vpack.c.b16 %v4381, %v4376
          %v4897 = vpack.c.b16 %v4382, %v4377
          %v4898 = vpack.c.b16 %v4383, %v4378
          %v4899 = vpack.c.b16 %v4389, %v4384
          %v4900 = vpack.c.b16 %v4390, %v4385
          %v4901 = vpack.c.b16 %v4391, %v4386
          %v4902 = vpack.c.b16 %v4392, %v4387
          %v4903 = vpack.c.b16 %v4393, %v4388
          %v4904 = vpack.c.b16 %v4399, %v4394
          %v4905 = vpack.c.b16 %v4400, %v4395
          %v4906 = vpack.c.b16 %v4401, %v4396
          %v4907 = vpack.c.b16 %v4402, %v4397
          %v4908 = vpack.c.b16 %v4403, %v4398
          %v4909 = vpack.c.b16 %v4409, %v4404
          %v4910 = vpack.c.b16 %v4410, %v4405
          %v4911 = vpack.c.b16 %v4411, %v4406
          %v4912 = vpack.c.b16 %v4412, %v4407
          %v4913 = vpack.c.b16 %v4413, %v4408
          %v4914 = vpack.c.b16 %v4419, %v4414
          %v4915 = vpack.c.b16 %v4420, %v4415
          %v4916 = vpack.c.b16 %v4421, %v4416
          %v4917 = vpack.c.b16 %v4422, %v4417
          %v4918 = vpack.c.b16 %v4423, %v4418
          %v4919 = vpack.c.b16 %v4429, %v4424
          %v4920 = vpack.c.b16 %v4430, %v4425
          %v4921 = vpack.c.b16 %v4431, %v4426
          %v4922 = vpack.c.b16 %v4432, %v4427
          %v4923 = vpack.c.b16 %v4433, %v4428
          %v4924 = vpack.c.b16 %v4439, %v4434
          %v4925 = vpack.c.b16 %v4440, %v4435
          %v4926 = vpack.c.b16 %v4441, %v4436
          %v4927 = vpack.c.b16 %v4442, %v4437
          %v4928 = vpack.c.b16 %v4443, %v4438
          %v4929 = vpack.c.b16 %v4449, %v4444
          %v4930 = vpack.c.b16 %v4450, %v4445
          %v4931 = vpack.c.b16 %v4451, %v4446
          %v4932 = vpack.c.b16 %v4452, %v4447
          %v4933 = vpack.c.b16 %v4453, %v4448
          %v4934 = vpack.c.b16 %v4459, %v4454
          %v4935 = vpack.c.b16 %v4460, %v4455
          %v4936 = vpack.c.b16 %v4461, %v4456
          %v4937 = vpack.c.b16 %v4462, %v4457
          %v4938 = vpack.c.b16 %v4463, %v4458
          %v4939 = vpack.c.b16 %v4469, %v4464
          %v4940 = vpack.c.b16 %v4470, %v4465
          %v4941 = vpack.c.b16 %v4471, %v4466
          %v4942 = vpack.c.b16 %v4472, %v4467
          %v4943 = vpack.c.b16 %v4473, %v4468
          %v4944 = vpack.c.b16 %v4479, %v4474
          %v4945 = vpack.c.b16 %v4480, %v4475
          %v4946 = vpack.c.b16 %v4481, %v4476
          %v4947 = vpack.c.b16 %v4482, %v4477
          %v4948 = vpack.c.b16 %v4483, %v4478
          %v4949 = vpack.c.b16 %v4489, %v4484
          %v4950 = vpack.c.b16 %v4490, %v4485
          %v4951 = vpack.c.b16 %v4491, %v4486
          %v4952 = vpack.c.b16 %v4492, %v4487
          %v4953 = vpack.c.b16 %v4493, %v4488
          %v4954 = vpack.c.b16 %v4499, %v4494
          %v4955 = vpack.c.b16 %v4500, %v4495
          %v4956 = vpack.c.b16 %v4501, %v4496
          %v4957 = vpack.c.b16 %v4502, %v4497
          %v4958 = vpack.c.b16 %v4503, %v4498
          %v4959 = vpack.c.b16 %v4509, %v4504
          %v4960 = vpack.c.b16 %v4510, %v4505
          %v4961 = vpack.c.b16 %v4511, %v4506
          %v4962 = vpack.c.b16 %v4512, %v4507
          %v4963 = vpack.c.b16 %v4513, %v4508
          %v4964 = vpack.c.b16 %v4519, %v4514
          %v4965 = vpack.c.b16 %v4520, %v4515
          %v4966 = vpack.c.b16 %v4521, %v4516
          %v4967 = vpack.c.b16 %v4522, %v4517
          %v4968 = vpack.c.b16 %v4523, %v4518
          %v4969 = vpack.c.b16 %v4529, %v4524
          %v4970 = vpack.c.b16 %v4530, %v4525
          %v4971 = vpack.c.b16 %v4531, %v4526
          %v4972 = vpack.c.b16 %v4532, %v4527
          %v4973 = vpack.c.b16 %v4533, %v4528
          %v4974 = vpack.c.b16 %v4539, %v4534
          %v4975 = vpack.c.b16 %v4540, %v4535
          %v4976 = vpack.c.b16 %v4541, %v4536
          %v4977 = vpack.c.b16 %v4542, %v4537
          %v4978 = vpack.c.b16 %v4543, %v4538
          %v4979 = vpack.c.b16 %v4549, %v4544
          %v4980 = vpack.c.b16 %v4550, %v4545
          %v4981 = vpack.c.b16 %v4551, %v4546
          %v4982 = vpack.c.b16 %v4552, %v4547
          %v4983 = vpack.c.b16 %v4553, %v4548
          %v4984 = vpack.c.b16 %v4559, %v4554
          %v4985 = vpack.c.b16 %v4560, %v4555
          %v4986 = vpack.c.b16 %v4561, %v4556
          %v4987 = vpack.c.b16 %v4562, %v4557
          %v4988 = vpack.c.b16 %v4563, %v4558
          %v4989 = vpack.c.b16 %v4569, %v4564
          %v4990 = vpack.c.b16 %v4570, %v4565
          %v4991 = vpack.c.b16 %v4571, %v4566
          %v4992 = vpack.c.b16 %v4572, %v4567
          %v4993 = vpack.c.b16 %v4573, %v4568
          %v4994 = vpack.c.b16 %v4579, %v4574
          %v4995 = vpack.c.b16 %v4580, %v4575
          %v4996 = vpack.c.b16 %v4581, %v4576
          %v4997 = vpack.c.b16 %v4582, %v4577
          %v4998 = vpack.c.b16 %v4583, %v4578
          %v4999 = vpack.c.b16 %v4589, %v4584
          %v5000 = vpack.c.b16 %v4590, %v4585
          %v5001 = vpack.c.b16 %v4591, %v4586
          %v5002 = vpack.c.b16 %v4592, %v4587
          %v5003 = vpack.c.b16 %v4593, %v4588
          %v5004 = vpack.c.b16 %v4599, %v4594
          %v5005 = vpack.c.b16 %v4600, %v4595
          %v5006 = vpack.c.b16 %v4601, %v4596
          %v5007 = vpack.c.b16 %v4602, %v4597
          %v5008 = vpack.c.b16 %v4603, %v4598
          %v5009 = vpack.c.b16 %v4609, %v4604
          %v5010 = vpack.c.b16 %v4610, %v4605
          %v5011 = vpack.c.b16 %v4611, %v4606
          %v5012 = vpack.c.b16 %v4612, %v4607
          %v5013 = vpack.c.b16 %v4613, %v4608
          %v5014 = vpack.c.b16 %v4619, %v4614
          %v5015 = vpack.c.b16 %v4620, %v4615
          %v5016 = vpack.c.b16 %v4621, %v4616
          %v5017 = vpack.c.b16 %v4622, %v4617
          %v5018 = vpack.c.b16 %v4623, %v4618
          %v5019 = vpack.c.b16 %v4624, %v4624
          %v5020 = vpack.c.b16 %v4625, %v4625
          %v5021 = vpack.c.b16 %v4626, %v4626
          %v5022 = vpack.c.b16 %v4627, %v4627
          %v5023 = vpack.c.b16 %v4628, %v4628
          %vm5414 = vcmask 834560
          %v5416 = vsel %vm5414, %v2874, 0
          %vm5418 = vcmask 1042432
          %v5420 = vsel %vm5418, %v5019, 0
          %v5423 = vsel %vm5418, %v5020, 0
          %v5426 = vsel %vm5418, %v5021, 0
          %v5429 = vsel %vm5418, %v5022, 0
          %v5432 = vsel %vm5418, %v5023, 0
          %5434 = vmatprep.subr.bf16.mxu0 %v4665
          %5435 = vmatpush1.bf16.msra.mxu0 %v4664
          %5436 = vmatprep.subr.bf16.mxu0 %v4660
          %5437 = vmatpush1.bf16.msra.mxu0 %v4659
          %5438 = vmatprep.subr.bf16.mxu0 %v4655
          %5439 = vmatpush1.bf16.msra.mxu0 %v4654
          %5440 = vmatprep.subr.bf16.mxu0 %v4650
          %5441 = vmatpush1.bf16.msra.mxu0 %v4649
          %5442 = vmatprep.subr.bf16.mxu0 %v4645
          %5443 = vmatpush1.bf16.msra.mxu0 %v4644
          %5444 = vmatprep.subr.bf16.mxu0 %v4640
          %5445 = vmatpush1.bf16.msra.mxu0 %v4639
          %5446 = vmatprep.subr.bf16.mxu0 %v4635
          %5447 = vmatpush1.bf16.msra.mxu0 %v4634
          %5448 = vmatprep.subr.bf16.mxu0 %v4630
          %5449 = vmatpush1.bf16.msra.mxu0 %v4629
          %5450 = vmatprep.subr.bf16.mxu0 %v4705
          %5451 = vmatpush2.bf16.msra.mxu0 %v4704
          %5452 = vmatprep.subr.bf16.mxu0 %v4700
          %5453 = vmatpush2.bf16.msra.mxu0 %v4699
          %5454 = vmatprep.subr.bf16.mxu0 %v4695
          %5455 = vmatpush2.bf16.msra.mxu0 %v4694
          %5456 = vmatprep.subr.bf16.mxu0 %v4690
          %5457 = vmatpush2.bf16.msra.mxu0 %v4689
          %5458 = vmatprep.subr.bf16.mxu0 %v4685
          %5459 = vmatpush2.bf16.msra.mxu0 %v4684
          %5460 = vmatprep.subr.bf16.mxu0 %v4680
          %5461 = vmatpush2.bf16.msra.mxu0 %v4679
          %5462 = vmatprep.subr.bf16.mxu0 %v4675
          %5463 = vmatpush2.bf16.msra.mxu0 %v4674
          %5464 = vmatprep.subr.bf16.mxu0 %v4670
          %5465 = vmatpush2.bf16.msra.mxu0 %v4669
          %5466 = vmatprep.mubr.bf16.mxu0 %v2866
          %5467 = vmatmul.mubr.bf16.gmra.mxu0 %v2865
          %v5468 = vpop.f32.mrf.mxu0
          %v5469 = vadd.f32 %v3351, %v5468
          %v5470 = vpop.f32.mrf.mxu0
          %v5471 = vadd.f32 %v3355, %v5470
          %v5472 = vpop.f32.mrf.mxu0
          %v5473 = vpop.f32.mrf.mxu0
          %5474 = vdwg.mxu0
          %5475 = vmatprep.subr.bf16.mxu0 %v4745
          %5476 = vmatpush1.bf16.msra.mxu0 %v4744
          %5477 = vmatprep.subr.bf16.mxu0 %v4740
          %5478 = vmatpush1.bf16.msra.mxu0 %v4739
          %5479 = vmatprep.subr.bf16.mxu0 %v4735
          %5480 = vmatpush1.bf16.msra.mxu0 %v4734
          %5481 = vmatprep.subr.bf16.mxu0 %v4730
          %5482 = vmatpush1.bf16.msra.mxu0 %v4729
          %5483 = vmatprep.subr.bf16.mxu0 %v4725
          %5484 = vmatpush1.bf16.msra.mxu0 %v4724
          %5485 = vmatprep.subr.bf16.mxu0 %v4720
          %5486 = vmatpush1.bf16.msra.mxu0 %v4719
          %5487 = vmatprep.subr.bf16.mxu0 %v4715
          %5488 = vmatpush1.bf16.msra.mxu0 %v4714
          %5489 = vmatprep.subr.bf16.mxu0 %v4710
          %5490 = vmatpush1.bf16.msra.mxu0 %v4709
          %5491 = vmatprep.subr.bf16.mxu0 %v4785
          %5492 = vmatpush2.bf16.msra.mxu0 %v4784
          %5493 = vmatprep.subr.bf16.mxu0 %v4780
          %5494 = vmatpush2.bf16.msra.mxu0 %v4779
          %5495 = vmatprep.subr.bf16.mxu0 %v4775
          %5496 = vmatpush2.bf16.msra.mxu0 %v4774
          %5497 = vmatprep.subr.bf16.mxu0 %v4770
          %5498 = vmatpush2.bf16.msra.mxu0 %v4769
          %5499 = vmatprep.subr.bf16.mxu0 %v4765
          %5500 = vmatpush2.bf16.msra.mxu0 %v4764
          %5501 = vmatprep.subr.bf16.mxu0 %v4760
          %5502 = vmatpush2.bf16.msra.mxu0 %v4759
          %5503 = vmatprep.subr.bf16.mxu0 %v4755
          %5504 = vmatpush2.bf16.msra.mxu0 %v4754
          %5505 = vmatprep.subr.bf16.mxu0 %v4750
          %5506 = vmatpush2.bf16.msra.mxu0 %v4749
          %5507 = vmatprep.mubr.bf16.mxu0 %v2868
          %5508 = vmatmul.mubr.bf16.gmra.mxu0 %v2867
          %v5509 = vpop.f32.mrf.mxu0
          %v5510 = vadd.f32 %v5469, %v5509
          %v5511 = vpop.f32.mrf.mxu0
          %v5512 = vadd.f32 %v5471, %v5511
          %v5513 = vpop.f32.mrf.mxu0
          %v5514 = vpop.f32.mrf.mxu0
          %5515 = vdwg.mxu0
          %5516 = vmatprep.subr.bf16.mxu0 %v4825
          %5517 = vmatpush1.bf16.msra.mxu0 %v4824
          %5518 = vmatprep.subr.bf16.mxu0 %v4820
          %5519 = vmatpush1.bf16.msra.mxu0 %v4819
          %5520 = vmatprep.subr.bf16.mxu0 %v4815
          %5521 = vmatpush1.bf16.msra.mxu0 %v4814
          %5522 = vmatprep.subr.bf16.mxu0 %v4810
          %5523 = vmatpush1.bf16.msra.mxu0 %v4809
          %5524 = vmatprep.subr.bf16.mxu0 %v4805
          %5525 = vmatpush1.bf16.msra.mxu0 %v4804
          %5526 = vmatprep.subr.bf16.mxu0 %v4800
          %5527 = vmatpush1.bf16.msra.mxu0 %v4799
          %5528 = vmatprep.subr.bf16.mxu0 %v4795
          %5529 = vmatpush1.bf16.msra.mxu0 %v4794
          %5530 = vmatprep.subr.bf16.mxu0 %v4790
          %5531 = vmatpush1.bf16.msra.mxu0 %v4789
          %5532 = vmatprep.subr.bf16.mxu0 %v4865
          %5533 = vmatpush2.bf16.msra.mxu0 %v4864
          %5534 = vmatprep.subr.bf16.mxu0 %v4860
          %5535 = vmatpush2.bf16.msra.mxu0 %v4859
          %5536 = vmatprep.subr.bf16.mxu0 %v4855
          %5537 = vmatpush2.bf16.msra.mxu0 %v4854
          %5538 = vmatprep.subr.bf16.mxu0 %v4850
          %5539 = vmatpush2.bf16.msra.mxu0 %v4849
          %5540 = vmatprep.subr.bf16.mxu0 %v4845
          %5541 = vmatpush2.bf16.msra.mxu0 %v4844
          %5542 = vmatprep.subr.bf16.mxu0 %v4840
          %5543 = vmatpush2.bf16.msra.mxu0 %v4839
          %5544 = vmatprep.subr.bf16.mxu0 %v4835
          %5545 = vmatpush2.bf16.msra.mxu0 %v4834
          %5546 = vmatprep.subr.bf16.mxu0 %v4830
          %5547 = vmatpush2.bf16.msra.mxu0 %v4829
          %5548 = vmatprep.mubr.bf16.mxu0 %v2870
          %5549 = vmatmul.mubr.bf16.gmra.mxu0 %v2869
          %v5550 = vpop.f32.mrf.mxu0
          %v5551 = vadd.f32 %v5510, %v5550
          %v5552 = vpop.f32.mrf.mxu0
          %v5553 = vadd.f32 %v5512, %v5552
          %v5554 = vpop.f32.mrf.mxu0
          %v5555 = vpop.f32.mrf.mxu0
          %5556 = vdwg.mxu0
          %5557 = vmatprep.subr.bf16.mxu0 %v4905
          %5558 = vmatpush1.bf16.msra.mxu0 %v4904
          %5559 = vmatprep.subr.bf16.mxu0 %v4900
          %5560 = vmatpush1.bf16.msra.mxu0 %v4899
          %5561 = vmatprep.subr.bf16.mxu0 %v4895
          %5562 = vmatpush1.bf16.msra.mxu0 %v4894
          %5563 = vmatprep.subr.bf16.mxu0 %v4890
          %5564 = vmatpush1.bf16.msra.mxu0 %v4889
          %5565 = vmatprep.subr.bf16.mxu0 %v4885
          %5566 = vmatpush1.bf16.msra.mxu0 %v4884
          %5567 = vmatprep.subr.bf16.mxu0 %v4880
          %5568 = vmatpush1.bf16.msra.mxu0 %v4879
          %5569 = vmatprep.subr.bf16.mxu0 %v4875
          %5570 = vmatpush1.bf16.msra.mxu0 %v4874
          %5571 = vmatprep.subr.bf16.mxu0 %v4870
          %5572 = vmatpush1.bf16.msra.mxu0 %v4869
          %5573 = vmatprep.subr.bf16.mxu0 %v4945
          %5574 = vmatpush2.bf16.msra.mxu0 %v4944
          %5575 = vmatprep.subr.bf16.mxu0 %v4940
          %5576 = vmatpush2.bf16.msra.mxu0 %v4939
          %5577 = vmatprep.subr.bf16.mxu0 %v4935
          %5578 = vmatpush2.bf16.msra.mxu0 %v4934
          %5579 = vmatprep.subr.bf16.mxu0 %v4930
          %5580 = vmatpush2.bf16.msra.mxu0 %v4929
          %5581 = vmatprep.subr.bf16.mxu0 %v4925
          %5582 = vmatpush2.bf16.msra.mxu0 %v4924
          %5583 = vmatprep.subr.bf16.mxu0 %v4920
          %5584 = vmatpush2.bf16.msra.mxu0 %v4919
          %5585 = vmatprep.subr.bf16.mxu0 %v4915
          %5586 = vmatpush2.bf16.msra.mxu0 %v4914
          %5587 = vmatprep.subr.bf16.mxu0 %v4910
          %5588 = vmatpush2.bf16.msra.mxu0 %v4909
          %5589 = vmatprep.mubr.bf16.mxu0 %v2872
          %5590 = vmatmul.mubr.bf16.gmra.mxu0 %v2871
          %v5591 = vpop.f32.mrf.mxu0
          %v5592 = vadd.f32 %v5551, %v5591
          %v5593 = vpop.f32.mrf.mxu0
          %v5594 = vadd.f32 %v5553, %v5593
          %v5595 = vpop.f32.mrf.mxu0
          %v5596 = vpop.f32.mrf.mxu0
          %5597 = vdwg.mxu0
          %5598 = vmatprep.subr.bf16.mxu0 %v4985
          %5599 = vmatpush1.bf16.msra.mxu0 %v4984
          %5600 = vmatprep.subr.bf16.mxu0 %v4980
          %5601 = vmatpush1.bf16.msra.mxu0 %v4979
          %5602 = vmatprep.subr.bf16.mxu0 %v4975
          %5603 = vmatpush1.bf16.msra.mxu0 %v4974
          %5604 = vmatprep.subr.bf16.mxu0 %v4970
          %5605 = vmatpush1.bf16.msra.mxu0 %v4969
          %5606 = vmatprep.subr.bf16.mxu0 %v4965
          %5607 = vmatpush1.bf16.msra.mxu0 %v4964
          %5608 = vmatprep.subr.bf16.mxu0 %v4960
          %5609 = vmatpush1.bf16.msra.mxu0 %v4959
          %5610 = vmatprep.subr.bf16.mxu0 %v4955
          %5611 = vmatpush1.bf16.msra.mxu0 %v4954
          %5612 = vmatprep.subr.bf16.mxu0 %v4950
          %5613 = vmatpush1.bf16.msra.mxu0 %v4949
          %5614 = vmatprep.subr.bf16.mxu0 0
          %5615 = vmatpush2.bf16.msra.mxu0 0
          %5616 = vmatprep.subr.bf16.mxu0 %v5423
          %5617 = vmatpush2.bf16.msra.mxu0 %v5420
          %5618 = vmatprep.subr.bf16.mxu0 %v5015
          %5619 = vmatpush2.bf16.msra.mxu0 %v5014
          %5620 = vmatprep.subr.bf16.mxu0 %v5010
          %5621 = vmatpush2.bf16.msra.mxu0 %v5009
          %5622 = vmatprep.subr.bf16.mxu0 %v5005
          %5623 = vmatpush2.bf16.msra.mxu0 %v5004
          %5624 = vmatprep.subr.bf16.mxu0 %v5000
          %5625 = vmatpush2.bf16.msra.mxu0 %v4999
          %5626 = vmatprep.subr.bf16.mxu0 %v4995
          %5627 = vmatpush2.bf16.msra.mxu0 %v4994
          %5628 = vmatprep.subr.bf16.mxu0 %v4990
          %5629 = vmatpush2.bf16.msra.mxu0 %v4989
          %5630 = vmatprep.mubr.bf16.mxu0 %v5416
          %5631 = vmatmul.mubr.bf16.gmra.mxu0 %v2873
          %v5632 = vpop.f32.mrf.mxu0
          %v5633 = vadd.f32 %v5592, %v5632
          %v5634 = vpop.f32.mrf.mxu0
          %v5635 = vadd.f32 %v5594, %v5634
          %v5636 = vpop.f32.mrf.mxu0
          %v5637 = vpop.f32.mrf.mxu0
          %5638 = vdwg.mxu0
          %5639 = vmatprep.subr.bf16.mxu0 %v4667
          %5640 = vmatpush1.bf16.msra.mxu0 %v4666
          %5641 = vmatprep.subr.bf16.mxu0 %v4662
          %5642 = vmatpush1.bf16.msra.mxu0 %v4661
          %5643 = vmatprep.subr.bf16.mxu0 %v4657
          %5644 = vmatpush1.bf16.msra.mxu0 %v4656
          %5645 = vmatprep.subr.bf16.mxu0 %v4652
          %5646 = vmatpush1.bf16.msra.mxu0 %v4651
          %5647 = vmatprep.subr.bf16.mxu0 %v4647
          %5648 = vmatpush1.bf16.msra.mxu0 %v4646
          %5649 = vmatprep.subr.bf16.mxu0 %v4642
          %5650 = vmatpush1.bf16.msra.mxu0 %v4641
          %5651 = vmatprep.subr.bf16.mxu0 %v4637
          %5652 = vmatpush1.bf16.msra.mxu0 %v4636
          %5653 = vmatprep.subr.bf16.mxu0 %v4632
          %5654 = vmatpush1.bf16.msra.mxu0 %v4631
          %5655 = vmatprep.subr.bf16.mxu0 %v4707
          %5656 = vmatpush2.bf16.msra.mxu0 %v4706
          %5657 = vmatprep.subr.bf16.mxu0 %v4702
          %5658 = vmatpush2.bf16.msra.mxu0 %v4701
          %5659 = vmatprep.subr.bf16.mxu0 %v4697
          %5660 = vmatpush2.bf16.msra.mxu0 %v4696
          %5661 = vmatprep.subr.bf16.mxu0 %v4692
          %5662 = vmatpush2.bf16.msra.mxu0 %v4691
          %5663 = vmatprep.subr.bf16.mxu0 %v4687
          %5664 = vmatpush2.bf16.msra.mxu0 %v4686
          %5665 = vmatprep.subr.bf16.mxu0 %v4682
          %5666 = vmatpush2.bf16.msra.mxu0 %v4681
          %5667 = vmatprep.subr.bf16.mxu0 %v4677
          %5668 = vmatpush2.bf16.msra.mxu0 %v4676
          %5669 = vmatprep.subr.bf16.mxu0 %v4672
          %5670 = vmatpush2.bf16.msra.mxu0 %v4671
          %5671 = vmatprep.mubr.bf16.mxu0 %v2866
          %5672 = vmatmul.mubr.bf16.gmra.mxu0 %v2865
          %v5673 = vpop.f32.mrf.mxu0
          %v5674 = vadd.f32 %v3359, %v5673
          %v5675 = vpop.f32.mrf.mxu0
          %v5676 = vadd.f32 %v3363, %v5675
          %v5677 = vpop.f32.mrf.mxu0
          %v5678 = vpop.f32.mrf.mxu0
          %5679 = vdwg.mxu0
          %5680 = vmatprep.subr.bf16.mxu0 %v4747
          %5681 = vmatpush1.bf16.msra.mxu0 %v4746
          %5682 = vmatprep.subr.bf16.mxu0 %v4742
          %5683 = vmatpush1.bf16.msra.mxu0 %v4741
          %5684 = vmatprep.subr.bf16.mxu0 %v4737
          %5685 = vmatpush1.bf16.msra.mxu0 %v4736
          %5686 = vmatprep.subr.bf16.mxu0 %v4732
          %5687 = vmatpush1.bf16.msra.mxu0 %v4731
          %5688 = vmatprep.subr.bf16.mxu0 %v4727
          %5689 = vmatpush1.bf16.msra.mxu0 %v4726
          %5690 = vmatprep.subr.bf16.mxu0 %v4722
          %5691 = vmatpush1.bf16.msra.mxu0 %v4721
          %5692 = vmatprep.subr.bf16.mxu0 %v4717
          %5693 = vmatpush1.bf16.msra.mxu0 %v4716
          %5694 = vmatprep.subr.bf16.mxu0 %v4712
          %5695 = vmatpush1.bf16.msra.mxu0 %v4711
          %5696 = vmatprep.subr.bf16.mxu0 %v4787
          %5697 = vmatpush2.bf16.msra.mxu0 %v4786
          %5698 = vmatprep.subr.bf16.mxu0 %v4782
          %5699 = vmatpush2.bf16.msra.mxu0 %v4781
          %5700 = vmatprep.subr.bf16.mxu0 %v4777
          %5701 = vmatpush2.bf16.msra.mxu0 %v4776
          %5702 = vmatprep.subr.bf16.mxu0 %v4772
          %5703 = vmatpush2.bf16.msra.mxu0 %v4771
          %5704 = vmatprep.subr.bf16.mxu0 %v4767
          %5705 = vmatpush2.bf16.msra.mxu0 %v4766
          %5706 = vmatprep.subr.bf16.mxu0 %v4762
          %5707 = vmatpush2.bf16.msra.mxu0 %v4761
          %5708 = vmatprep.subr.bf16.mxu0 %v4757
          %5709 = vmatpush2.bf16.msra.mxu0 %v4756
          %5710 = vmatprep.subr.bf16.mxu0 %v4752
          %5711 = vmatpush2.bf16.msra.mxu0 %v4751
          %5712 = vmatprep.mubr.bf16.mxu0 %v2868
          %5713 = vmatmul.mubr.bf16.gmra.mxu0 %v2867
          %v5714 = vpop.f32.mrf.mxu0
          %v5715 = vadd.f32 %v5674, %v5714
          %v5716 = vpop.f32.mrf.mxu0
          %v5717 = vadd.f32 %v5676, %v5716
          %v5718 = vpop.f32.mrf.mxu0
          %v5719 = vpop.f32.mrf.mxu0
          %5720 = vdwg.mxu0
          %5721 = vmatprep.subr.bf16.mxu0 %v4827
          %5722 = vmatpush1.bf16.msra.mxu0 %v4826
          %5723 = vmatprep.subr.bf16.mxu0 %v4822
          %5724 = vmatpush1.bf16.msra.mxu0 %v4821
          %5725 = vmatprep.subr.bf16.mxu0 %v4817
          %5726 = vmatpush1.bf16.msra.mxu0 %v4816
          %5727 = vmatprep.subr.bf16.mxu0 %v4812
          %5728 = vmatpush1.bf16.msra.mxu0 %v4811
          %5729 = vmatprep.subr.bf16.mxu0 %v4807
          %5730 = vmatpush1.bf16.msra.mxu0 %v4806
          %5731 = vmatprep.subr.bf16.mxu0 %v4802
          %5732 = vmatpush1.bf16.msra.mxu0 %v4801
          %5733 = vmatprep.subr.bf16.mxu0 %v4797
          %5734 = vmatpush1.bf16.msra.mxu0 %v4796
          %5735 = vmatprep.subr.bf16.mxu0 %v4792
          %5736 = vmatpush1.bf16.msra.mxu0 %v4791
          %5737 = vmatprep.subr.bf16.mxu0 %v4867
          %5738 = vmatpush2.bf16.msra.mxu0 %v4866
          %5739 = vmatprep.subr.bf16.mxu0 %v4862
          %5740 = vmatpush2.bf16.msra.mxu0 %v4861
          %5741 = vmatprep.subr.bf16.mxu0 %v4857
          %5742 = vmatpush2.bf16.msra.mxu0 %v4856
          %5743 = vmatprep.subr.bf16.mxu0 %v4852
          %5744 = vmatpush2.bf16.msra.mxu0 %v4851
          %5745 = vmatprep.subr.bf16.mxu0 %v4847
          %5746 = vmatpush2.bf16.msra.mxu0 %v4846
          %5747 = vmatprep.subr.bf16.mxu0 %v4842
          %5748 = vmatpush2.bf16.msra.mxu0 %v4841
          %5749 = vmatprep.subr.bf16.mxu0 %v4837
          %5750 = vmatpush2.bf16.msra.mxu0 %v4836
          %5751 = vmatprep.subr.bf16.mxu0 %v4832
          %5752 = vmatpush2.bf16.msra.mxu0 %v4831
          %5753 = vmatprep.mubr.bf16.mxu0 %v2870
          %5754 = vmatmul.mubr.bf16.gmra.mxu0 %v2869
          %v5755 = vpop.f32.mrf.mxu0
          %v5756 = vadd.f32 %v5715, %v5755
          %v5757 = vpop.f32.mrf.mxu0
          %v5758 = vadd.f32 %v5717, %v5757
          %v5759 = vpop.f32.mrf.mxu0
          %v5760 = vpop.f32.mrf.mxu0
          %5761 = vdwg.mxu0
          %5762 = vmatprep.subr.bf16.mxu0 %v4907
          %5763 = vmatpush1.bf16.msra.mxu0 %v4906
          %5764 = vmatprep.subr.bf16.mxu0 %v4902
          %5765 = vmatpush1.bf16.msra.mxu0 %v4901
          %5766 = vmatprep.subr.bf16.mxu0 %v4897
          %5767 = vmatpush1.bf16.msra.mxu0 %v4896
          %5768 = vmatprep.subr.bf16.mxu0 %v4892
          %5769 = vmatpush1.bf16.msra.mxu0 %v4891
          %5770 = vmatprep.subr.bf16.mxu0 %v4887
          %5771 = vmatpush1.bf16.msra.mxu0 %v4886
          %5772 = vmatprep.subr.bf16.mxu0 %v4882
          %5773 = vmatpush1.bf16.msra.mxu0 %v4881
          %5774 = vmatprep.subr.bf16.mxu0 %v4877
          %5775 = vmatpush1.bf16.msra.mxu0 %v4876
          %5776 = vmatprep.subr.bf16.mxu0 %v4872
          %5777 = vmatpush1.bf16.msra.mxu0 %v4871
          %5778 = vmatprep.subr.bf16.mxu0 %v4947
          %5779 = vmatpush2.bf16.msra.mxu0 %v4946
          %5780 = vmatprep.subr.bf16.mxu0 %v4942
          %5781 = vmatpush2.bf16.msra.mxu0 %v4941
          %5782 = vmatprep.subr.bf16.mxu0 %v4937
          %5783 = vmatpush2.bf16.msra.mxu0 %v4936
          %5784 = vmatprep.subr.bf16.mxu0 %v4932
          %5785 = vmatpush2.bf16.msra.mxu0 %v4931
          %5786 = vmatprep.subr.bf16.mxu0 %v4927
          %5787 = vmatpush2.bf16.msra.mxu0 %v4926
          %5788 = vmatprep.subr.bf16.mxu0 %v4922
          %5789 = vmatpush2.bf16.msra.mxu0 %v4921
          %5790 = vmatprep.subr.bf16.mxu0 %v4917
          %5791 = vmatpush2.bf16.msra.mxu0 %v4916
          %5792 = vmatprep.subr.bf16.mxu0 %v4912
          %5793 = vmatpush2.bf16.msra.mxu0 %v4911
          %5794 = vmatprep.mubr.bf16.mxu0 %v2872
          %5795 = vmatmul.mubr.bf16.gmra.mxu0 %v2871
          %v5796 = vpop.f32.mrf.mxu0
          %v5797 = vadd.f32 %v5756, %v5796
          %v5798 = vpop.f32.mrf.mxu0
          %v5799 = vadd.f32 %v5758, %v5798
          %v5800 = vpop.f32.mrf.mxu0
          %v5801 = vpop.f32.mrf.mxu0
          %5802 = vdwg.mxu0
          %5803 = vmatprep.subr.bf16.mxu0 %v4987
          %5804 = vmatpush1.bf16.msra.mxu0 %v4986
          %5805 = vmatprep.subr.bf16.mxu0 %v4982
          %5806 = vmatpush1.bf16.msra.mxu0 %v4981
          %5807 = vmatprep.subr.bf16.mxu0 %v4977
          %5808 = vmatpush1.bf16.msra.mxu0 %v4976
          %5809 = vmatprep.subr.bf16.mxu0 %v4972
          %5810 = vmatpush1.bf16.msra.mxu0 %v4971
          %5811 = vmatprep.subr.bf16.mxu0 %v4967
          %5812 = vmatpush1.bf16.msra.mxu0 %v4966
          %5813 = vmatprep.subr.bf16.mxu0 %v4962
          %5814 = vmatpush1.bf16.msra.mxu0 %v4961
          %5815 = vmatprep.subr.bf16.mxu0 %v4957
          %5816 = vmatpush1.bf16.msra.mxu0 %v4956
          %5817 = vmatprep.subr.bf16.mxu0 %v4952
          %5818 = vmatpush1.bf16.msra.mxu0 %v4951
          %5819 = vmatprep.subr.bf16.mxu0 0
          %5820 = vmatpush2.bf16.msra.mxu0 0
          %5821 = vmatprep.subr.bf16.mxu0 %v5429
          %5822 = vmatpush2.bf16.msra.mxu0 %v5426
          %5823 = vmatprep.subr.bf16.mxu0 %v5017
          %5824 = vmatpush2.bf16.msra.mxu0 %v5016
          %5825 = vmatprep.subr.bf16.mxu0 %v5012
          %5826 = vmatpush2.bf16.msra.mxu0 %v5011
          %5827 = vmatprep.subr.bf16.mxu0 %v5007
          %5828 = vmatpush2.bf16.msra.mxu0 %v5006
          %5829 = vmatprep.subr.bf16.mxu0 %v5002
          %5830 = vmatpush2.bf16.msra.mxu0 %v5001
          %5831 = vmatprep.subr.bf16.mxu0 %v4997
          %5832 = vmatpush2.bf16.msra.mxu0 %v4996
          %5833 = vmatprep.subr.bf16.mxu0 %v4992
          %5834 = vmatpush2.bf16.msra.mxu0 %v4991
          %5835 = vmatprep.mubr.bf16.mxu0 %v5416
          %5836 = vmatmul.mubr.bf16.gmra.mxu0 %v2873
          %v5837 = vpop.f32.mrf.mxu0
          %v5838 = vadd.f32 %v5797, %v5837
          %v5839 = vpop.f32.mrf.mxu0
          %v5840 = vadd.f32 %v5799, %v5839
          %v5841 = vpop.f32.mrf.mxu0
          %v5842 = vpop.f32.mrf.mxu0
          %5843 = vdwg.mxu0
          %5844 = vmatprep.subr.bf16.mxu0 0
          %5845 = vmatpush1.bf16.msra.mxu0 %v4668
          %5846 = vmatprep.subr.bf16.mxu0 0
          %5847 = vmatpush1.bf16.msra.mxu0 %v4663
          %5848 = vmatprep.subr.bf16.mxu0 0
          %5849 = vmatpush1.bf16.msra.mxu0 %v4658
          %5850 = vmatprep.subr.bf16.mxu0 0
          %5851 = vmatpush1.bf16.msra.mxu0 %v4653
          %5852 = vmatprep.subr.bf16.mxu0 0
          %5853 = vmatpush1.bf16.msra.mxu0 %v4648
          %5854 = vmatprep.subr.bf16.mxu0 0
          %5855 = vmatpush1.bf16.msra.mxu0 %v4643
          %5856 = vmatprep.subr.bf16.mxu0 0
          %5857 = vmatpush1.bf16.msra.mxu0 %v4638
          %5858 = vmatprep.subr.bf16.mxu0 0
          %5859 = vmatpush1.bf16.msra.mxu0 %v4633
          %5860 = vmatprep.subr.bf16.mxu0 0
          %5861 = vmatpush2.bf16.msra.mxu0 %v4708
          %5862 = vmatprep.subr.bf16.mxu0 0
          %5863 = vmatpush2.bf16.msra.mxu0 %v4703
          %5864 = vmatprep.subr.bf16.mxu0 0
          %5865 = vmatpush2.bf16.msra.mxu0 %v4698
          %5866 = vmatprep.subr.bf16.mxu0 0
          %5867 = vmatpush2.bf16.msra.mxu0 %v4693
          %5868 = vmatprep.subr.bf16.mxu0 0
          %5869 = vmatpush2.bf16.msra.mxu0 %v4688
          %5870 = vmatprep.subr.bf16.mxu0 0
          %5871 = vmatpush2.bf16.msra.mxu0 %v4683
          %5872 = vmatprep.subr.bf16.mxu0 0
          %5873 = vmatpush2.bf16.msra.mxu0 %v4678
          %5874 = vmatprep.subr.bf16.mxu0 0
          %5875 = vmatpush2.bf16.msra.mxu0 %v4673
          %5876 = vmatprep.mubr.bf16.mxu0 %v2866
          %5877 = vmatmul.mubr.bf16.gmra.mxu0 %v2865
          %v5878 = vpop.f32.mrf.mxu0
          %v5879 = vadd.f32 %v3367, %v5878
          %v5880 = vpop.f32.mrf.mxu0
          %v5881 = vpop.f32.mrf.mxu0
          %v5882 = vpop.f32.mrf.mxu0
          %5883 = vdwg.mxu0
          %5884 = vmatprep.subr.bf16.mxu0 0
          %5885 = vmatpush1.bf16.msra.mxu0 %v4748
          %5886 = vmatprep.subr.bf16.mxu0 0
          %5887 = vmatpush1.bf16.msra.mxu0 %v4743
          %5888 = vmatprep.subr.bf16.mxu0 0
          %5889 = vmatpush1.bf16.msra.mxu0 %v4738
          %5890 = vmatprep.subr.bf16.mxu0 0
          %5891 = vmatpush1.bf16.msra.mxu0 %v4733
          %5892 = vmatprep.subr.bf16.mxu0 0
          %5893 = vmatpush1.bf16.msra.mxu0 %v4728
          %5894 = vmatprep.subr.bf16.mxu0 0
          %5895 = vmatpush1.bf16.msra.mxu0 %v4723
          %5896 = vmatprep.subr.bf16.mxu0 0
          %5897 = vmatpush1.bf16.msra.mxu0 %v4718
          %5898 = vmatprep.subr.bf16.mxu0 0
          %5899 = vmatpush1.bf16.msra.mxu0 %v4713
          %5900 = vmatprep.subr.bf16.mxu0 0
          %5901 = vmatpush2.bf16.msra.mxu0 %v4788
          %5902 = vmatprep.subr.bf16.mxu0 0
          %5903 = vmatpush2.bf16.msra.mxu0 %v4783
          %5904 = vmatprep.subr.bf16.mxu0 0
          %5905 = vmatpush2.bf16.msra.mxu0 %v4778
          %5906 = vmatprep.subr.bf16.mxu0 0
          %5907 = vmatpush2.bf16.msra.mxu0 %v4773
          %5908 = vmatprep.subr.bf16.mxu0 0
          %5909 = vmatpush2.bf16.msra.mxu0 %v4768
          %5910 = vmatprep.subr.bf16.mxu0 0
          %5911 = vmatpush2.bf16.msra.mxu0 %v4763
          %5912 = vmatprep.subr.bf16.mxu0 0
          %5913 = vmatpush2.bf16.msra.mxu0 %v4758
          %5914 = vmatprep.subr.bf16.mxu0 0
          %5915 = vmatpush2.bf16.msra.mxu0 %v4753
          %5916 = vmatprep.mubr.bf16.mxu0 %v2868
          %5917 = vmatmul.mubr.bf16.gmra.mxu0 %v2867
          %v5918 = vpop.f32.mrf.mxu0
          %v5919 = vadd.f32 %v5879, %v5918
          %v5920 = vpop.f32.mrf.mxu0
          %v5921 = vpop.f32.mrf.mxu0
          %v5922 = vpop.f32.mrf.mxu0
          %5923 = vdwg.mxu0
          %5924 = vmatprep.subr.bf16.mxu0 0
          %5925 = vmatpush1.bf16.msra.mxu0 %v4828
          %5926 = vmatprep.subr.bf16.mxu0 0
          %5927 = vmatpush1.bf16.msra.mxu0 %v4823
          %5928 = vmatprep.subr.bf16.mxu0 0
          %5929 = vmatpush1.bf16.msra.mxu0 %v4818
          %5930 = vmatprep.subr.bf16.mxu0 0
          %5931 = vmatpush1.bf16.msra.mxu0 %v4813
          %5932 = vmatprep.subr.bf16.mxu0 0
          %5933 = vmatpush1.bf16.msra.mxu0 %v4808
          %5934 = vmatprep.subr.bf16.mxu0 0
          %5935 = vmatpush1.bf16.msra.mxu0 %v4803
          %5936 = vmatprep.subr.bf16.mxu0 0
          %5937 = vmatpush1.bf16.msra.mxu0 %v4798
          %5938 = vmatprep.subr.bf16.mxu0 0
          %5939 = vmatpush1.bf16.msra.mxu0 %v4793
          %5940 = vmatprep.subr.bf16.mxu0 0
          %5941 = vmatpush2.bf16.msra.mxu0 %v4868
          %5942 = vmatprep.subr.bf16.mxu0 0
          %5943 = vmatpush2.bf16.msra.mxu0 %v4863
          %5944 = vmatprep.subr.bf16.mxu0 0
          %5945 = vmatpush2.bf16.msra.mxu0 %v4858
          %5946 = vmatprep.subr.bf16.mxu0 0
          %5947 = vmatpush2.bf16.msra.mxu0 %v4853
          %5948 = vmatprep.subr.bf16.mxu0 0
          %5949 = vmatpush2.bf16.msra.mxu0 %v4848
          %5950 = vmatprep.subr.bf16.mxu0 0
          %5951 = vmatpush2.bf16.msra.mxu0 %v4843
          %5952 = vmatprep.subr.bf16.mxu0 0
          %5953 = vmatpush2.bf16.msra.mxu0 %v4838
          %5954 = vmatprep.subr.bf16.mxu0 0
          %5955 = vmatpush2.bf16.msra.mxu0 %v4833
          %5956 = vmatprep.mubr.bf16.mxu0 %v2870
          %5957 = vmatmul.mubr.bf16.gmra.mxu0 %v2869
          %v5958 = vpop.f32.mrf.mxu0
          %v5959 = vadd.f32 %v5919, %v5958
          %v5960 = vpop.f32.mrf.mxu0
          %v5961 = vpop.f32.mrf.mxu0
          %v5962 = vpop.f32.mrf.mxu0
          %5963 = vdwg.mxu0
          %5964 = vmatprep.subr.bf16.mxu0 0
          %5965 = vmatpush1.bf16.msra.mxu0 %v4908
          %5966 = vmatprep.subr.bf16.mxu0 0
          %5967 = vmatpush1.bf16.msra.mxu0 %v4903
          %5968 = vmatprep.subr.bf16.mxu0 0
          %5969 = vmatpush1.bf16.msra.mxu0 %v4898
          %5970 = vmatprep.subr.bf16.mxu0 0
          %5971 = vmatpush1.bf16.msra.mxu0 %v4893
          %5972 = vmatprep.subr.bf16.mxu0 0
          %5973 = vmatpush1.bf16.msra.mxu0 %v4888
          %5974 = vmatprep.subr.bf16.mxu0 0
          %5975 = vmatpush1.bf16.msra.mxu0 %v4883
          %5976 = vmatprep.subr.bf16.mxu0 0
          %5977 = vmatpush1.bf16.msra.mxu0 %v4878
          %5978 = vmatprep.subr.bf16.mxu0 0
          %5979 = vmatpush1.bf16.msra.mxu0 %v4873
          %5980 = vmatprep.subr.bf16.mxu0 0
          %5981 = vmatpush2.bf16.msra.mxu0 %v4948
          %5982 = vmatprep.subr.bf16.mxu0 0
          %5983 = vmatpush2.bf16.msra.mxu0 %v4943
          %5984 = vmatprep.subr.bf16.mxu0 0
          %5985 = vmatpush2.bf16.msra.mxu0 %v4938
          %5986 = vmatprep.subr.bf16.mxu0 0
          %5987 = vmatpush2.bf16.msra.mxu0 %v4933
          %5988 = vmatprep.subr.bf16.mxu0 0
          %5989 = vmatpush2.bf16.msra.mxu0 %v4928
          %5990 = vmatprep.subr.bf16.mxu0 0
          %5991 = vmatpush2.bf16.msra.mxu0 %v4923
          %5992 = vmatprep.subr.bf16.mxu0 0
          %5993 = vmatpush2.bf16.msra.mxu0 %v4918
          %5994 = vmatprep.subr.bf16.mxu0 0
          %5995 = vmatpush2.bf16.msra.mxu0 %v4913
          %5996 = vmatprep.mubr.bf16.mxu0 %v2872
          %5997 = vmatmul.mubr.bf16.gmra.mxu0 %v2871
          %v5998 = vpop.f32.mrf.mxu0
          %v5999 = vadd.f32 %v5959, %v5998
          %v6000 = vpop.f32.mrf.mxu0
          %v6001 = vpop.f32.mrf.mxu0
          %v6002 = vpop.f32.mrf.mxu0
          %6003 = vdwg.mxu0
          %6004 = vmatprep.subr.bf16.mxu0 0
          %6005 = vmatpush1.bf16.msra.mxu0 %v4988
          %6006 = vmatprep.subr.bf16.mxu0 0
          %6007 = vmatpush1.bf16.msra.mxu0 %v4983
          %6008 = vmatprep.subr.bf16.mxu0 0
          %6009 = vmatpush1.bf16.msra.mxu0 %v4978
          %6010 = vmatprep.subr.bf16.mxu0 0
          %6011 = vmatpush1.bf16.msra.mxu0 %v4973
          %6012 = vmatprep.subr.bf16.mxu0 0
          %6013 = vmatpush1.bf16.msra.mxu0 %v4968
          %6014 = vmatprep.subr.bf16.mxu0 0
          %6015 = vmatpush1.bf16.msra.mxu0 %v4963
          %6016 = vmatprep.subr.bf16.mxu0 0
          %6017 = vmatpush1.bf16.msra.mxu0 %v4958
          %6018 = vmatprep.subr.bf16.mxu0 0
          %6019 = vmatpush1.bf16.msra.mxu0 %v4953
          %6020 = vmatprep.subr.bf16.mxu0 0
          %6021 = vmatpush2.bf16.msra.mxu0 0
          %6022 = vmatprep.subr.bf16.mxu0 0
          %6023 = vmatpush2.bf16.msra.mxu0 %v5432
          %6024 = vmatprep.subr.bf16.mxu0 0
          %6025 = vmatpush2.bf16.msra.mxu0 %v5018
          %6026 = vmatprep.subr.bf16.mxu0 0
          %6027 = vmatpush2.bf16.msra.mxu0 %v5013
          %6028 = vmatprep.subr.bf16.mxu0 0
          %6029 = vmatpush2.bf16.msra.mxu0 %v5008
          %6030 = vmatprep.subr.bf16.mxu0 0
          %6031 = vmatpush2.bf16.msra.mxu0 %v5003
          %6032 = vmatprep.subr.bf16.mxu0 0
          %6033 = vmatpush2.bf16.msra.mxu0 %v4998
          %6034 = vmatprep.subr.bf16.mxu0 0
          %6035 = vmatpush2.bf16.msra.mxu0 %v4993
          %6036 = vmatprep.mubr.bf16.mxu0 %v5416
          %6037 = vmatmul.mubr.bf16.gmra.mxu0 %v2873
          %v6038 = vpop.f32.mrf.mxu0
          %v6039 = vadd.f32 %v5999, %v6038
          %v6040 = vpop.f32.mrf.mxu0
          %v6041 = vpop.f32.mrf.mxu0
          %v6042 = vpop.f32.mrf.mxu0
          %6043 = vdwg.mxu0
          %v6044 = vmax.f32 %v5633, 0.0
          %v6045 = vmax.f32 %v5635, 0.0
          %v6046 = vmax.f32 %v5838, 0.0
          %v6047 = vmax.f32 %v5840, 0.0
          %v6048 = vmax.f32 %v6039, 0.0
          %v6049 = vld [vmem:[%s5] sm:$0xff]
          %v6050 = vld [vmem:[%s5 + $0x8] sm:$0xff]
          %v6051 = vld [vmem:[%s5 + $0x10] sm:$0xff]
          %v6052 = vld [vmem:[%s5 + $0x18] sm:$0xff]
          %v6053 = vld [vmem:[%s5 + $0x20] sm:$0xff]
          %v6054 = vld [vmem:[%s5 + $0x28] sm:$0xff]
          %v6055 = vld [vmem:[%s5 + $0x30] sm:$0xff]
          %v6056 = vld [vmem:[%s5 + $0x38] sm:$0xff]
          %v6057 = vld [vmem:[%s5 + $0x40] sm:$0xff]
          %v6058 = vld [vmem:[%s5 + $0x48] sm:$0xff]
          %v6059 = vld [vmem:[%s5 + $0x50] sm:$0xff]
          %v6060 = vld [vmem:[%s5 + $0x58] sm:$0xff]
          %v6061 = vld [vmem:[%s5 + $0x60] sm:$0xff]
          %v6062 = vld [vmem:[%s5 + $0x68] sm:$0xff]
          %v6063 = vld [vmem:[%s5 + $0x70] sm:$0xff]
          %v6064 = vld [vmem:[%s5 + $0x78] sm:$0xff]
          %v6065 = vld [vmem:[%s5 + $0x80] sm:$0xff]
          %v6066 = vld [vmem:[%s5 + $0x88] sm:$0xff]
          %v6067 = vld [vmem:[%s5 + $0x90] sm:$0xff]
          %v6068 = vld [vmem:[%s5 + $0x98] sm:$0xff]
          %v6069 = vld [vmem:[%s5 + $0xa0] sm:$0xff]
          %v6070 = vld [vmem:[%s5 + $0xa8] sm:$0xff]
          %v6071 = vld [vmem:[%s5 + $0xb0] sm:$0xff]
          %v6072 = vld [vmem:[%s5 + $0xb8] sm:$0xff]
          %v6073 = vld [vmem:[%s5 + $0xc0] sm:$0xff]
          %v6074 = vld [vmem:[%s5 + $0xc8] sm:$0xff]
          %v6075 = vld [vmem:[%s5 + $0xd0] sm:$0xff]
          %v6076 = vld [vmem:[%s5 + $0xd8] sm:$0xff]
          %v6077 = vld [vmem:[%s5 + $0xe0] sm:$0xff]
          %v6078 = vld [vmem:[%s5 + $0xe8] sm:$0xff]
          %v6079 = vld [vmem:[%s5 + $0xf0] sm:$0xff]
          %v6080 = vld [vmem:[%s5 + $0xf8] sm:$0xff]
          %v6081 = vld [vmem:[%s5 + $0x100] sm:$0xff]
          %v6082 = vld [vmem:[%s5 + $0x108] sm:$0xff]
          %v6083 = vld [vmem:[%s5 + $0x110] sm:$0xff]
          %v6084 = vld [vmem:[%s5 + $0x118] sm:$0xff]
          %v6085 = vld [vmem:[%s5 + $0x120] sm:$0xff]
          %v6086 = vld [vmem:[%s5 + $0x128] sm:$0xff]
          %v6087 = vld [vmem:[%s5 + $0x130] sm:$0xff]
          %v6088 = vld [vmem:[%s5 + $0x138] sm:$0xff]
          %v6089 = vld [vmem:[%s5 + $0x140] sm:$0xff]
          %v6090 = vld [vmem:[%s5 + $0x148] sm:$0xff]
          %v6091 = vld [vmem:[%s5 + $0x150] sm:$0xff]
          %v6092 = vld [vmem:[%s5 + $0x158] sm:$0xff]
          %v6093 = vld [vmem:[%s5 + $0x160] sm:$0xff]
          %v6094 = vld [vmem:[%s5 + $0x168] sm:$0xff]
          %v6095 = vld [vmem:[%s5 + $0x170] sm:$0xff]
          %v6096 = vld [vmem:[%s5 + $0x178] sm:$0xff]
          %v6097 = vld [vmem:[%s5 + $0x180] sm:$0xff]
          %v6098 = vld [vmem:[%s5 + $0x188] sm:$0xff]
          %v6099 = vld [vmem:[%s5 + $0x190] sm:$0xff]
          %v6100 = vld [vmem:[%s5 + $0x198] sm:$0xff]
          %v6101 = vld [vmem:[%s5 + $0x1a0] sm:$0xff]
          %v6102 = vld [vmem:[%s5 + $0x1a8] sm:$0xff]
          %v6103 = vld [vmem:[%s5 + $0x1b0] sm:$0xff]
          %v6104 = vld [vmem:[%s5 + $0x1b8] sm:$0xff]
          %v6105 = vld [vmem:[%s5 + $0x1c0] sm:$0xff]
          %v6106 = vld [vmem:[%s5 + $0x1c8] sm:$0xff]
          %v6107 = vld [vmem:[%s5 + $0x1d0] sm:$0xff]
          %v6108 = vld [vmem:[%s5 + $0x1d8] sm:$0xff]
          %v6109 = vld [vmem:[%s5 + $0x1e0] sm:$0xff]
          %v6110 = vld [vmem:[%s5 + $0x1e8] sm:$0xff]
          %v6111 = vld [vmem:[%s5 + $0x1f0] sm:$0xff]
          %v6112 = vld [vmem:[%s5 + $0x1f8] sm:$0xff]
          %v6113 = vld [vmem:[%s5 + $0x200] sm:$0xff]
          %v6114 = vld [vmem:[%s5 + $0x208] sm:$0xff]
          %v6115 = vld [vmem:[%s5 + $0x210] sm:$0xff]
          %v6116 = vld [vmem:[%s5 + $0x218] sm:$0xff]
          %v6117 = vld [vmem:[%s5 + $0x220] sm:$0xff]
          %v6118 = vld [vmem:[%s5 + $0x228] sm:$0xff]
          %v6119 = vld [vmem:[%s5 + $0x230] sm:$0xff]
          %v6120 = vld [vmem:[%s5 + $0x238] sm:$0xff]
          %v6121 = vld [vmem:[%s5 + $0x240] sm:$0xff]
          %v6122 = vld [vmem:[%s5 + $0x248] sm:$0xff]
          %v6123 = vld [vmem:[%s5 + $0x250] sm:$0xff]
          %v6124 = vld [vmem:[%s5 + $0x258] sm:$0xff]
          %v6125 = vld [vmem:[%s5 + $0x260] sm:$0xff]
          %v6126 = vld [vmem:[%s5 + $0x268] sm:$0xff]
          %v6127 = vld [vmem:[%s5 + $0x270] sm:$0x7]
          %v6128 = vld [vmem:[%s6] sm:$0x1]
          %v6130 = vlaneseq
          %v6131 = vshrl.u32 %v6130, 7
          %v6132 = vsub.s32 0, %v6131
          %v6133 = vrot.slane %v6128, %v6132
          %vm6135 = vcmask 941056
          %v6137 = vsel %vm6135, %v6048, 0
          %v6140 = vsel %vm5418, %v6127, 0
          %6142 = vmatprep.subr.mxu0 0.0
          %6143 = vmatpush1.msra.mxu0 %v6064
          %6144 = vmatprep.subr.mxu0 0.0
          %6145 = vmatpush1.msra.mxu0 %v6063
          %6146 = vmatprep.subr.mxu0 0.0
          %6147 = vmatpush1.msra.mxu0 %v6062
          %6148 = vmatprep.subr.mxu0 0.0
          %6149 = vmatpush1.msra.mxu0 %v6061
          %6150 = vmatprep.subr.mxu0 0.0
          %6151 = vmatpush1.msra.mxu0 %v6060
          %6152 = vmatprep.subr.mxu0 0.0
          %6153 = vmatpush1.msra.mxu0 %v6059
          %6154 = vmatprep.subr.mxu0 0.0
          %6155 = vmatpush1.msra.mxu0 %v6058
          %6156 = vmatprep.subr.mxu0 0.0
          %6157 = vmatpush1.msra.mxu0 %v6057
          %6158 = vmatprep.subr.mxu0 0.0
          %6159 = vmatpush1.msra.mxu0 %v6056
          %6160 = vmatprep.subr.mxu0 0.0
          %6161 = vmatpush1.msra.mxu0 %v6055
          %6162 = vmatprep.subr.mxu0 0.0
          %6163 = vmatpush1.msra.mxu0 %v6054
          %6164 = vmatprep.subr.mxu0 0.0
          %6165 = vmatpush1.msra.mxu0 %v6053
          %6166 = vmatprep.subr.mxu0 0.0
          %6167 = vmatpush1.msra.mxu0 %v6052
          %6168 = vmatprep.subr.mxu0 0.0
          %6169 = vmatpush1.msra.mxu0 %v6051
          %6170 = vmatprep.subr.mxu0 0.0
          %6171 = vmatpush1.msra.mxu0 %v6050
          %6172 = vmatprep.subr.mxu0 0.0
          %6173 = vmatpush1.msra.mxu0 %v6049
          %6174 = vmatprep.subr.mxu0 0.0
          %6175 = vmatpush2.msra.mxu0 %v6080
          %6176 = vmatprep.subr.mxu0 0.0
          %6177 = vmatpush2.msra.mxu0 %v6079
          %6178 = vmatprep.subr.mxu0 0.0
          %6179 = vmatpush2.msra.mxu0 %v6078
          %6180 = vmatprep.subr.mxu0 0.0
          %6181 = vmatpush2.msra.mxu0 %v6077
          %6182 = vmatprep.subr.mxu0 0.0
          %6183 = vmatpush2.msra.mxu0 %v6076
          %6184 = vmatprep.subr.mxu0 0.0
          %6185 = vmatpush2.msra.mxu0 %v6075
          %6186 = vmatprep.subr.mxu0 0.0
          %6187 = vmatpush2.msra.mxu0 %v6074
          %6188 = vmatprep.subr.mxu0 0.0
          %6189 = vmatpush2.msra.mxu0 %v6073
          %6190 = vmatprep.subr.mxu0 0.0
          %6191 = vmatpush2.msra.mxu0 %v6072
          %6192 = vmatprep.subr.mxu0 0.0
          %6193 = vmatpush2.msra.mxu0 %v6071
          %6194 = vmatprep.subr.mxu0 0.0
          %6195 = vmatpush2.msra.mxu0 %v6070
          %6196 = vmatprep.subr.mxu0 0.0
          %6197 = vmatpush2.msra.mxu0 %v6069
          %6198 = vmatprep.subr.mxu0 0.0
          %6199 = vmatpush2.msra.mxu0 %v6068
          %6200 = vmatprep.subr.mxu0 0.0
          %6201 = vmatpush2.msra.mxu0 %v6067
          %6202 = vmatprep.subr.mxu0 0.0
          %6203 = vmatpush2.msra.mxu0 %v6066
          %6204 = vmatprep.subr.mxu0 0.0
          %6205 = vmatpush2.msra.mxu0 %v6065
          %6206 = vmatprep.mubr.f32.mxu0 %v6045
          %6207 = vmatmul.mubr.f32.gmra.mxu0 %v6044
          %v6208 = vpop.f32.mrf.mxu0
          %v6209 = vadd.f32 %v6133, %v6208
          %v6210 = vpop.f32.mrf.mxu0
          %6211 = vdwg.mxu0
          %6212 = vmatprep.subr.mxu0 0.0
          %6213 = vmatpush1.msra.mxu0 %v6096
          %6214 = vmatprep.subr.mxu0 0.0
          %6215 = vmatpush1.msra.mxu0 %v6095
          %6216 = vmatprep.subr.mxu0 0.0
          %6217 = vmatpush1.msra.mxu0 %v6094
          %6218 = vmatprep.subr.mxu0 0.0
          %6219 = vmatpush1.msra.mxu0 %v6093
          %6220 = vmatprep.subr.mxu0 0.0
          %6221 = vmatpush1.msra.mxu0 %v6092
          %6222 = vmatprep.subr.mxu0 0.0
          %6223 = vmatpush1.msra.mxu0 %v6091
          %6224 = vmatprep.subr.mxu0 0.0
          %6225 = vmatpush1.msra.mxu0 %v6090
          %6226 = vmatprep.subr.mxu0 0.0
          %6227 = vmatpush1.msra.mxu0 %v6089
          %6228 = vmatprep.subr.mxu0 0.0
          %6229 = vmatpush1.msra.mxu0 %v6088
          %6230 = vmatprep.subr.mxu0 0.0
          %6231 = vmatpush1.msra.mxu0 %v6087
          %6232 = vmatprep.subr.mxu0 0.0
          %6233 = vmatpush1.msra.mxu0 %v6086
          %6234 = vmatprep.subr.mxu0 0.0
          %6235 = vmatpush1.msra.mxu0 %v6085
          %6236 = vmatprep.subr.mxu0 0.0
          %6237 = vmatpush1.msra.mxu0 %v6084
          %6238 = vmatprep.subr.mxu0 0.0
          %6239 = vmatpush1.msra.mxu0 %v6083
          %6240 = vmatprep.subr.mxu0 0.0
          %6241 = vmatpush1.msra.mxu0 %v6082
          %6242 = vmatprep.subr.mxu0 0.0
          %6243 = vmatpush1.msra.mxu0 %v6081
          %6244 = vmatprep.subr.mxu0 0.0
          %6245 = vmatpush2.msra.mxu0 %v6112
          %6246 = vmatprep.subr.mxu0 0.0
          %6247 = vmatpush2.msra.mxu0 %v6111
          %6248 = vmatprep.subr.mxu0 0.0
          %6249 = vmatpush2.msra.mxu0 %v6110
          %6250 = vmatprep.subr.mxu0 0.0
          %6251 = vmatpush2.msra.mxu0 %v6109
          %6252 = vmatprep.subr.mxu0 0.0
          %6253 = vmatpush2.msra.mxu0 %v6108
          %6254 = vmatprep.subr.mxu0 0.0
          %6255 = vmatpush2.msra.mxu0 %v6107
          %6256 = vmatprep.subr.mxu0 0.0
          %6257 = vmatpush2.msra.mxu0 %v6106
          %6258 = vmatprep.subr.mxu0 0.0
          %6259 = vmatpush2.msra.mxu0 %v6105
          %6260 = vmatprep.subr.mxu0 0.0
          %6261 = vmatpush2.msra.mxu0 %v6104
          %6262 = vmatprep.subr.mxu0 0.0
          %6263 = vmatpush2.msra.mxu0 %v6103
          %6264 = vmatprep.subr.mxu0 0.0
          %6265 = vmatpush2.msra.mxu0 %v6102
          %6266 = vmatprep.subr.mxu0 0.0
          %6267 = vmatpush2.msra.mxu0 %v6101
          %6268 = vmatprep.subr.mxu0 0.0
          %6269 = vmatpush2.msra.mxu0 %v6100
          %6270 = vmatprep.subr.mxu0 0.0
          %6271 = vmatpush2.msra.mxu0 %v6099
          %6272 = vmatprep.subr.mxu0 0.0
          %6273 = vmatpush2.msra.mxu0 %v6098
          %6274 = vmatprep.subr.mxu0 0.0
          %6275 = vmatpush2.msra.mxu0 %v6097
          %6276 = vmatprep.mubr.f32.mxu0 %v6047
          %6277 = vmatmul.mubr.f32.gmra.mxu0 %v6046
          %v6278 = vpop.f32.mrf.mxu0
          %v6279 = vadd.f32 %v6209, %v6278
          %v6280 = vpop.f32.mrf.mxu0
          %6281 = vdwg.mxu0
          %6282 = vmatprep.subr.mxu0 0.0
          %6283 = vmatpush1.msra.mxu0 0.0
          %6284 = vmatprep.subr.mxu0 0.0
          %6285 = vmatpush1.msra.mxu0 %v6140
          %6286 = vmatprep.subr.mxu0 0.0
          %6287 = vmatpush1.msra.mxu0 %v6126
          %6288 = vmatprep.subr.mxu0 0.0
          %6289 = vmatpush1.msra.mxu0 %v6125
          %6290 = vmatprep.subr.mxu0 0.0
          %6291 = vmatpush1.msra.mxu0 %v6124
          %6292 = vmatprep.subr.mxu0 0.0
          %6293 = vmatpush1.msra.mxu0 %v6123
          %6294 = vmatprep.subr.mxu0 0.0
          %6295 = vmatpush1.msra.mxu0 %v6122
          %6296 = vmatprep.subr.mxu0 0.0
          %6297 = vmatpush1.msra.mxu0 %v6121
          %6298 = vmatprep.subr.mxu0 0.0
          %6299 = vmatpush1.msra.mxu0 %v6120
          %6300 = vmatprep.subr.mxu0 0.0
          %6301 = vmatpush1.msra.mxu0 %v6119
          %6302 = vmatprep.subr.mxu0 0.0
          %6303 = vmatpush1.msra.mxu0 %v6118
          %6304 = vmatprep.subr.mxu0 0.0
          %6305 = vmatpush1.msra.mxu0 %v6117
          %6306 = vmatprep.subr.mxu0 0.0
          %6307 = vmatpush1.msra.mxu0 %v6116
          %6308 = vmatprep.subr.mxu0 0.0
          %6309 = vmatpush1.msra.mxu0 %v6115
          %6310 = vmatprep.subr.mxu0 0.0
          %6311 = vmatpush1.msra.mxu0 %v6114
          %6312 = vmatprep.subr.mxu0 0.0
          %6313 = vmatpush1.msra.mxu0 %v6113
          %6314 = vmatprep.subr.mxu0 0.0
          %6315 = vmatpush2.msra.mxu0 0.0
          %6316 = vmatprep.subr.mxu0 0.0
          %6317 = vmatpush2.msra.mxu0 0.0
          %6318 = vmatprep.subr.mxu0 0.0
          %6319 = vmatpush2.msra.mxu0 0.0
          %6320 = vmatprep.subr.mxu0 0.0
          %6321 = vmatpush2.msra.mxu0 0.0
          %6322 = vmatprep.subr.mxu0 0.0
          %6323 = vmatpush2.msra.mxu0 0.0
          %6324 = vmatprep.subr.mxu0 0.0
          %6325 = vmatpush2.msra.mxu0 0.0
          %6326 = vmatprep.subr.mxu0 0.0
          %6327 = vmatpush2.msra.mxu0 0.0
          %6328 = vmatprep.subr.mxu0 0.0
          %6329 = vmatpush2.msra.mxu0 0.0
          %6330 = vmatprep.subr.mxu0 0.0
          %6331 = vmatpush2.msra.mxu0 0.0
          %6332 = vmatprep.subr.mxu0 0.0
          %6333 = vmatpush2.msra.mxu0 0.0
          %6334 = vmatprep.subr.mxu0 0.0
          %6335 = vmatpush2.msra.mxu0 0.0
          %6336 = vmatprep.subr.mxu0 0.0
          %6337 = vmatpush2.msra.mxu0 0.0
          %6338 = vmatprep.subr.mxu0 0.0
          %6339 = vmatpush2.msra.mxu0 0.0
          %6340 = vmatprep.subr.mxu0 0.0
          %6341 = vmatpush2.msra.mxu0 0.0
          %6342 = vmatprep.subr.mxu0 0.0
          %6343 = vmatpush2.msra.mxu0 0.0
          %6344 = vmatprep.subr.mxu0 0.0
          %6345 = vmatpush2.msra.mxu0 0.0
          %6346 = vmatprep.mubr.f32.mxu0 0.0
          %6347 = vmatmul.mubr.f32.gmra.mxu0 %v6137
          %v6348 = vpop.f32.mrf.mxu0
          %v6349 = vadd.f32 %v6279, %v6348
          %v6350 = vpop.f32.mrf.mxu0
          %6351 = vdwg.mxu0
          %v6352 = vmax.f32 %v6349, 0.0
          %v6353 = vld [vmem:[%s7] sm:$0xff]
          %v6354 = vld [vmem:[%s7 + $0x8] sm:$0xff]
          %v6355 = vld [vmem:[%s7 + $0x10] sm:$0xff]
          %v6356 = vld [vmem:[%s7 + $0x18] sm:$0xff]
          %v6357 = vld [vmem:[%s8] sm:$0xff]
          %v6358 = vld [vmem:[%s8 + $0x8] sm:$0xff]
          %v6359 = vld [vmem:[%s8 + $0x10] sm:$0xff]
          %v6360 = vld [vmem:[%s8 + $0x18] sm:$0xff]
          %v6362 = vrot.slane %v6352, 2
          %vm6363 = vcmask 261120
          %v6364 = vsel %vm6363, %v6362, 0
          %6366 = vmatprep.subr.mxu0 0.0
          %6367 = vmatpush1.msra.mxu0 0.0
          %6368 = vmatprep.subr.mxu0 0.0
          %6369 = vmatpush1.msra.mxu0 0.0
          %6370 = vmatprep.subr.mxu0 0.0
          %6371 = vmatpush1.msra.mxu0 0.0
          %6372 = vmatprep.subr.mxu0 0.0
          %6373 = vmatpush1.msra.mxu0 0.0
          %6374 = vmatprep.subr.mxu0 0.0
          %6375 = vmatpush1.msra.mxu0 0.0
          %6376 = vmatprep.subr.mxu0 0.0
          %6377 = vmatpush1.msra.mxu0 0.0
          %6378 = vmatprep.subr.mxu0 0.0
          %6379 = vmatpush1.msra.mxu0 0.0
          %6380 = vmatprep.subr.mxu0 0.0
          %6381 = vmatpush1.msra.mxu0 0.0
          %6382 = vmatprep.subr.mxu0 0.0
          %6383 = vmatpush1.msra.mxu0 0.0
          %6384 = vmatprep.subr.mxu0 0.0
          %6385 = vmatpush1.msra.mxu0 0.0
          %6386 = vmatprep.subr.mxu0 0.0
          %6387 = vmatpush1.msra.mxu0 0.0
          %6388 = vmatprep.subr.mxu0 0.0
          %6389 = vmatpush1.msra.mxu0 0.0
          %6390 = vmatprep.subr.mxu0 0.0
          %6391 = vmatpush1.msra.mxu0 %v6360
          %6392 = vmatprep.subr.mxu0 0.0
          %6393 = vmatpush1.msra.mxu0 %v6359
          %6394 = vmatprep.subr.mxu0 0.0
          %6395 = vmatpush1.msra.mxu0 %v6358
          %6396 = vmatprep.subr.mxu0 0.0
          %6397 = vmatpush1.msra.mxu0 %v6357
          %6398 = vmatprep.subr.mxu0 0.0
          %6399 = vmatpush2.msra.mxu0 0.0
          %6400 = vmatprep.subr.mxu0 0.0
          %6401 = vmatpush2.msra.mxu0 0.0
          %6402 = vmatprep.subr.mxu0 0.0
          %6403 = vmatpush2.msra.mxu0 0.0
          %6404 = vmatprep.subr.mxu0 0.0
          %6405 = vmatpush2.msra.mxu0 0.0
          %6406 = vmatprep.subr.mxu0 0.0
          %6407 = vmatpush2.msra.mxu0 0.0
          %6408 = vmatprep.subr.mxu0 0.0
          %6409 = vmatpush2.msra.mxu0 0.0
          %6410 = vmatprep.subr.mxu0 0.0
          %6411 = vmatpush2.msra.mxu0 0.0
          %6412 = vmatprep.subr.mxu0 0.0
          %6413 = vmatpush2.msra.mxu0 0.0
          %6414 = vmatprep.subr.mxu0 0.0
          %6415 = vmatpush2.msra.mxu0 0.0
          %6416 = vmatprep.subr.mxu0 0.0
          %6417 = vmatpush2.msra.mxu0 0.0
          %6418 = vmatprep.subr.mxu0 0.0
          %6419 = vmatpush2.msra.mxu0 0.0
          %6420 = vmatprep.subr.mxu0 0.0
          %6421 = vmatpush2.msra.mxu0 0.0
          %6422 = vmatprep.subr.mxu0 0.0
          %6423 = vmatpush2.msra.mxu0 0.0
          %6424 = vmatprep.subr.mxu0 0.0
          %6425 = vmatpush2.msra.mxu0 0.0
          %6426 = vmatprep.subr.mxu0 0.0
          %6427 = vmatpush2.msra.mxu0 0.0
          %6428 = vmatprep.subr.mxu0 0.0
          %6429 = vmatpush2.msra.mxu0 0.0
          %6430 = vmatprep.mubr.f32.mxu0 0.0
          %6431 = vmatmul.mubr.f32.gmra.mxu0 %v6364
          %v6432 = vpop.f32.mrf.mxu0
          %v6433 = vadd.f32 0.0, %v6432
          %v6434 = vpop.f32.mrf.mxu0
          %6435 = vdwg.mxu0
          %v6436 = vsel %vm6363, %v6352, 0
          %6438 = vmatprep.subr.mxu0 0.0
          %6439 = vmatpush1.msra.mxu0 0.0
          %6440 = vmatprep.subr.mxu0 0.0
          %6441 = vmatpush1.msra.mxu0 0.0
          %6442 = vmatprep.subr.mxu0 0.0
          %6443 = vmatpush1.msra.mxu0 0.0
          %6444 = vmatprep.subr.mxu0 0.0
          %6445 = vmatpush1.msra.mxu0 0.0
          %6446 = vmatprep.subr.mxu0 0.0
          %6447 = vmatpush1.msra.mxu0 0.0
          %6448 = vmatprep.subr.mxu0 0.0
          %6449 = vmatpush1.msra.mxu0 0.0
          %6450 = vmatprep.subr.mxu0 0.0
          %6451 = vmatpush1.msra.mxu0 0.0
          %6452 = vmatprep.subr.mxu0 0.0
          %6453 = vmatpush1.msra.mxu0 0.0
          %6454 = vmatprep.subr.mxu0 0.0
          %6455 = vmatpush1.msra.mxu0 0.0
          %6456 = vmatprep.subr.mxu0 0.0
          %6457 = vmatpush1.msra.mxu0 0.0
          %6458 = vmatprep.subr.mxu0 0.0
          %6459 = vmatpush1.msra.mxu0 0.0
          %6460 = vmatprep.subr.mxu0 0.0
          %6461 = vmatpush1.msra.mxu0 0.0
          %6462 = vmatprep.subr.mxu0 0.0
          %6463 = vmatpush1.msra.mxu0 %v6356
          %6464 = vmatprep.subr.mxu0 0.0
          %6465 = vmatpush1.msra.mxu0 %v6355
          %6466 = vmatprep.subr.mxu0 0.0
          %6467 = vmatpush1.msra.mxu0 %v6354
          %6468 = vmatprep.subr.mxu0 0.0
          %6469 = vmatpush1.msra.mxu0 %v6353
          %6470 = vmatprep.subr.mxu0 0.0
          %6471 = vmatpush2.msra.mxu0 0.0
          %6472 = vmatprep.subr.mxu0 0.0
          %6473 = vmatpush2.msra.mxu0 0.0
          %6474 = vmatprep.subr.mxu0 0.0
          %6475 = vmatpush2.msra.mxu0 0.0
          %6476 = vmatprep.subr.mxu0 0.0
          %6477 = vmatpush2.msra.mxu0 0.0
          %6478 = vmatprep.subr.mxu0 0.0
          %6479 = vmatpush2.msra.mxu0 0.0
          %6480 = vmatprep.subr.mxu0 0.0
          %6481 = vmatpush2.msra.mxu0 0.0
          %6482 = vmatprep.subr.mxu0 0.0
          %6483 = vmatpush2.msra.mxu0 0.0
          %6484 = vmatprep.subr.mxu0 0.0
          %6485 = vmatpush2.msra.mxu0 0.0
          %6486 = vmatprep.subr.mxu0 0.0
          %6487 = vmatpush2.msra.mxu0 0.0
          %6488 = vmatprep.subr.mxu0 0.0
          %6489 = vmatpush2.msra.mxu0 0.0
          %6490 = vmatprep.subr.mxu0 0.0
          %6491 = vmatpush2.msra.mxu0 0.0
          %6492 = vmatprep.subr.mxu0 0.0
          %6493 = vmatpush2.msra.mxu0 0.0
          %6494 = vmatprep.subr.mxu0 0.0
          %6495 = vmatpush2.msra.mxu0 0.0
          %6496 = vmatprep.subr.mxu0 0.0
          %6497 = vmatpush2.msra.mxu0 0.0
          %6498 = vmatprep.subr.mxu0 0.0
          %6499 = vmatpush2.msra.mxu0 0.0
          %6500 = vmatprep.subr.mxu0 0.0
          %6501 = vmatpush2.msra.mxu0 0.0
          %6502 = vmatprep.mubr.f32.mxu0 0.0
          %6503 = vmatmul.mubr.f32.gmra.mxu0 %v6436
          %v6504 = vpop.f32.mrf.mxu0
          %v6505 = vadd.f32 %v6433, %v6504
          %v6506 = vpop.f32.mrf.mxu0
          %6507 = vdwg.mxu0
          %v6508 = vld [vmem:[%s9] sm:$0x1]
          %v6510 = vlaneseq
          %v6511 = vshrl.u32 %v6510, 7
          %v6512 = vsub.s32 0, %v6511
          %v6513 = vrot.slane %v6508, %v6512
          %v6515 = vadd.f32 %v6505, %v6513
          %vm6516 = vcmask 25600
          %6517 = vst.msk [vmem:[#allocation3] sm:$0x3] %vm6516, %v6515
        $region68: #{net_forward.7} parent=59 // pred_fallthru
          _
        // Predicated region
        $region69: #{net_forward.7} parent=59 // pred_check
          %p6518 = pneg %p255
        $region70: #{net_forward.7} parent=59 // pred_check_branch
          %6520 = sbr.rel (%p6518) target = $region72
        $region71: #{net_forward.7} parent=59 // pred_region
          %s6522 = ssub.s32 32, 32
          %6523 = vsyncadd [#allocation4], %s6522
          %s6525 = sshll.u32 [#allocation3], 4
          %s6526 = int_to_ptr.vmem [resolvable:$true] %s6525
          %6528 = dma.vmem_to_hbm [thread:$0]  %s6526, 32, %s10, [#allocation4]
        $region72: #{net_forward.7} parent=59 // pred_fallthru
          _
        // Predicated region
        $region73: #{net_forward.7} parent=59 // pred_check
          %p6529 = pneg %p255
        $region74: #{net_forward.7} parent=59 // pred_check_branch
          %6531 = sbr.rel (%p6529) target = $region76
        $region75: #{net_forward.7} parent=59 // pred_region
          %6532 = dma.done [#allocation4], 32
        $region76: #{net_forward.7} parent=59 // pred_fallthru
          _
      $region60: #{net_forward.7} parent=5 // pred_fallthru
        _
      %p6533 = scmp.le.s32.totalorder 2, %s17
      // Predicated region
      $region77: #{net_forward.7} parent=5 // pred_check
        %p6534 = pneg %p6533
      $region78: #{net_forward.7} parent=5 // pred_check_branch
        %6536 = sbr.rel (%p6534) target = $region80
      $region79: #{net_forward.7} parent=5 // pred_region
        %s6537 = ssub.s32 %s17, 2
      $region80: #{net_forward.7} parent=5 // pred_fallthru
        _
    $region6: #{net_forward.7} parent=1 // loop_footer
      %s21 = sadd.s32 1, %s17
    $region7: #{net_forward.7} parent=1 // loop_footer_branch
      %16 = sbr.rel target = $region3
    $region8: #{net_forward.7} parent=1 // loop_exit
      _
    %6538 = vsyncpa [#allocation4], 1
    %s6539 = scalar_lea.sflag [#allocation4], 1
    %6540 = vsyncpa %s6539, 1

</llo_original>
